<compile_context>
chip_gen: v6e
topology: v6e:2x2x1
jax: 0.10.0
libtpu: 0.0.40
codegen_flags: <defaults>
</compile_context>

<pallas_src>
import functools
import math

import jax
import jax.numpy as jnp
from jax.experimental import pallas as pl
from jax.experimental.pallas import tpu as pltpu

# ----- small synthetic config (consistent with the module's forward) -----
VOCAB = 64
BATCH = 2
SEQ = 16
HIDDEN = 32
NUM_HEADS = 4            # BertAttention in the module uses 4 heads
FFN_DIM = 64
NUM_BACKBONE_LAYERS = 4
NUM_LAYERS_IN_HEAD = 4   # "num_layers_in_head" (K)
TARGET_NAMES = ["cohesion", "syntax", "vocabulary", "phraseology", "grammar", "conventions"]
NUM_TARGETS = len(TARGET_NAMES)
LN_EPS = 1e-12
INIT_STD = 0.02
# config flags chosen for this synthetic instantiation:
USE_FUSION = True
FLATTEN_EMBEDDINGS = True
LOSS_FN = "mse"


# ---------------------------------------------------------------------------
# In-kernel math helpers (operate on 2-D [rows, H] tiles)
# ---------------------------------------------------------------------------
def _layer_norm(x, gamma, beta):
    mu = jnp.mean(x, axis=-1, keepdims=True)
    var = jnp.mean(jnp.square(x - mu), axis=-1, keepdims=True)
    return (x - mu) * jax.lax.rsqrt(var + LN_EPS) * gamma + beta


def _mha_ln(x, bias, wqkv, bqkv, wo, bo, gamma, beta, *, num_heads, head_dim):
    """BertAttention: MHA (fused qkv) + output dense + residual + LayerNorm.

    x    : [rows, H]  (batch folded into rows)
    bias : [rows, rows] additive scores bias; -10000 for cross-batch / padded
           keys, 0 otherwise.  Padded *query* rows produce finite but unused
           values (they are masked out later by mean pooling, as in HF).
    """
    H = num_heads * head_dim
    qkv = jnp.dot(x, wqkv, preferred_element_type=jnp.float32) + bqkv        # [rows, 3H]
    scale = 1.0 / math.sqrt(head_dim)
    ctx_parts = []
    for h in range(num_heads):
        lo = h * head_dim
        qh = qkv[:, lo:lo + head_dim]
        kh = qkv[:, H + lo:H + lo + head_dim]
        vh = qkv[:, 2 * H + lo:2 * H + lo + head_dim]
        s = jax.lax.dot_general(qh, kh, (((1,), (1,)), ((), ())),
                                preferred_element_type=jnp.float32) * scale + bias
        p = jax.nn.softmax(s, axis=-1)
        ctx_parts.append(jnp.dot(p, vh, preferred_element_type=jnp.float32))
    ctx = jnp.concatenate(ctx_parts, axis=-1)                                # [rows, H]
    attn = jnp.dot(ctx, wo, preferred_element_type=jnp.float32) + bo
    return _layer_norm(attn + x, gamma, beta)


def _ffn_ln(x, w1, b1, w2, b2, gamma, beta):
    """BertIntermediate+BertOutput: GELU dense + dense + residual + LayerNorm."""
    h1 = jnp.dot(x, w1, preferred_element_type=jnp.float32) + b1
    h1 = jax.nn.gelu(h1, approximate=True)
    h2 = jnp.dot(h1, w2, preferred_element_type=jnp.float32) + b2
    return _layer_norm(h2 + x, gamma, beta)


# ---------------------------------------------------------------------------
# Kernel 1: full backbone (all encoder layers), grid over layers
# ---------------------------------------------------------------------------
def _backbone_kernel(x0_ref, bias_ref, wqkv_ref, bqkv_ref, wo_ref, bo_ref,
                     g1_ref, be1_ref, w1_ref, fb1_ref, w2_ref, fb2_ref,
                     g2_ref, be2_ref, hs_ref, x_vmem, *, num_heads, head_dim):
    @pl.when(pl.program_id(0) == 0)
    def _():
        x_vmem[...] = x0_ref[...]

    x = x_vmem[...]                                            # [B*S, H]
    y = _mha_ln(x, bias_ref[...], wqkv_ref[0], bqkv_ref[0], wo_ref[0], bo_ref[0],
                g1_ref[0], be1_ref[0], num_heads=num_heads, head_dim=head_dim)
    z = _ffn_ln(y, w1_ref[0], fb1_ref[0], w2_ref[0], fb2_ref[0],
                g2_ref[0], be2_ref[0])
    x_vmem[...] = z
    hs_ref[0] = z


def run_backbone(x0, bias, p):
    L = NUM_BACKBONE_LAYERS
    N, H = x0.shape
    F = FFN_DIM

    def per_l(d2, d3):
        return pl.BlockSpec((1, d2, d3), lambda l: (l, 0, 0))

    def full2(d1, d2):
        return pl.BlockSpec((d1, d2), lambda l: (0, 0))

    kernel = functools.partial(_backbone_kernel, num_heads=NUM_HEADS,
                               head_dim=H // NUM_HEADS)
    return pl.pallas_call(
        kernel,
        out_shape=jax.ShapeDtypeStruct((L, N, H), jnp.float32),
        grid=(L,),
        in_specs=[
            full2(N, H),                       # x0 (embedding output)
            full2(N, N),                       # additive attention bias
            per_l(H, 3 * H), per_l(1, 3 * H),  # wqkv, bqkv
            per_l(H, H), per_l(1, H),          # wo, bo
            per_l(1, H), per_l(1, H),          # attn LN gamma, beta
            per_l(H, F), per_l(1, F),          # w1, b1
            per_l(F, H), per_l(1, H),          # w2, b2
            per_l(1, H), per_l(1, H),          # ffn LN gamma, beta
        ],
        out_specs=pl.BlockSpec((1, N, H), lambda l: (l, 0, 0)),
        scratch_shapes=[pltpu.VMEM((N, H), jnp.float32)],
        compiler_params=pltpu.CompilerParams(dimension_semantics=("arbitrary",)),
    )(x0, bias, p["wqkv"], p["bqkv"], p["wo"], p["bo"], p["ln1_g"], p["ln1_b"],
      p["w1"], p["b1"], p["w2"], p["b2"], p["ln2_g"], p["ln2_b"])


# ---------------------------------------------------------------------------
# Kernel 2: all 6 FeatureExtractor heads (weighted sum + attention + mean pool)
# ---------------------------------------------------------------------------
def _head_kernel(lw_ref, hs_ref, bias_ref, sel_ref, wqkv_ref, bqkv_ref,
                 wo_ref, bo_ref, g_ref, be_ref, feat_ref,
                 *, num_heads, head_dim, num_layers):
    t = pl.program_id(0)
    # weighted average of the last K hidden states (softmaxed weights in SMEM)
    enc = lw_ref[t, 0] * hs_ref[0]
    for k in range(1, num_layers):
        enc = enc + lw_ref[t, k] * hs_ref[k]                   # [B*S, H]
    y = _mha_ln(enc, bias_ref[...], wqkv_ref[0], bqkv_ref[0], wo_ref[0], bo_ref[0],
                g_ref[0], be_ref[0], num_heads=num_heads, head_dim=head_dim)
    # masked mean pooling via a [B, B*S] selection matrix (mask folded in)
    sel = sel_ref[...]                                         # [B, B*S]
    summed = jnp.dot(sel, y, preferred_element_type=jnp.float32)    # [B, H]
    counts = jnp.sum(sel, axis=-1, keepdims=True)                   # [B, 1]
    feat_ref[0] = summed / jnp.maximum(counts, 1e-9)


def run_heads(lw, hs_stack, bias, pool_sel, p):
    T = NUM_TARGETS
    K, N, H = hs_stack.shape
    B = pool_sel.shape[0]

    def per_t(d2, d3):
        return pl.BlockSpec((1, d2, d3), lambda t: (t, 0, 0))

    kernel = functools.partial(_head_kernel, num_heads=NUM_HEADS,
                               head_dim=H // NUM_HEADS, num_layers=K)
    return pl.pallas_call(
        kernel,
        out_shape=jax.ShapeDtypeStruct((T, B, H), jnp.float32),
        grid=(T,),
        in_specs=[
            pl.BlockSpec(memory_space=pltpu.MemorySpace.SMEM),   # softmaxed layer weights [T, K]
            pl.BlockSpec((K, N, H), lambda t: (0, 0, 0)),        # hidden-state stack (VMEM-resident)
            pl.BlockSpec((N, N), lambda t: (0, 0)),              # attention bias
            pl.BlockSpec((B, N), lambda t: (0, 0)),              # pooling selection matrix
            per_t(H, 3 * H), per_t(1, 3 * H),                    # wqkv, bqkv
            per_t(H, H), per_t(1, H),                            # wo, bo
            per_t(1, H), per_t(1, H),                            # LN gamma, beta
        ],
        out_specs=pl.BlockSpec((1, B, H), lambda t: (t, 0, 0)),
        compiler_params=pltpu.CompilerParams(dimension_semantics=("parallel",)),
    )(lw, hs_stack, bias, pool_sel, p["wqkv"], p["bqkv"], p["wo"], p["bo"],
      p["ln_g"], p["ln_b"])


# ---------------------------------------------------------------------------
# Kernel 3: fusion attention over the target axis + flatten + classifier
# ---------------------------------------------------------------------------
def _fusion_cls_kernel(emb_ref, fbias_ref, wqkv_ref, bqkv_ref, wo_ref, bo_ref,
                       g_ref, be_ref, cw_ref, cb_ref, o_ref,
                       *, num_heads, head_dim, num_targets, batch):
    x = emb_ref[...]                                           # [T*B, H], row = t*B + b
    fused = _mha_ln(x, fbias_ref[...], wqkv_ref[...], bqkv_ref[...], wo_ref[...],
                    bo_ref[...], g_ref[...], be_ref[...],
                    num_heads=num_heads, head_dim=head_dim)
    # flatten_embeddings: flat[b] = concat_t fused[b, t, :]  -> [B, T*H]
    flat = jnp.concatenate(
        [fused[t * batch:(t + 1) * batch, :] for t in range(num_targets)], axis=-1)
    o_ref[...] = jnp.dot(flat, cw_ref[...],
                         preferred_element_type=jnp.float32) + cb_ref[...]


def run_fusion_classifier(emb_rows, fbias, pf, cls_w, cls_b):
    H = emb_rows.shape[1]
    kernel = functools.partial(_fusion_cls_kernel, num_heads=NUM_HEADS,
                               head_dim=H // NUM_HEADS, num_targets=NUM_TARGETS,
                               batch=BATCH)
    return pl.pallas_call(
        kernel,
        out_shape=jax.ShapeDtypeStruct((BATCH, NUM_TARGETS), jnp.float32),
    )(emb_rows, fbias, pf["wqkv"], pf["bqkv"], pf["wo"], pf["bo"],
      pf["ln_g"], pf["ln_b"], cls_w, cls_b)


# ---------------------------------------------------------------------------
# Parameter init (deterministic, synthetic, stacked for the fused kernels)
# ---------------------------------------------------------------------------
def _dense(key, shape):
    return jax.random.normal(key, shape, jnp.float32) * INIT_STD


def init_params(key):
    H, F = HIDDEN, FFN_DIM
    L, T, K = NUM_BACKBONE_LAYERS, NUM_TARGETS, NUM_LAYERS_IN_HEAD
    ks = jax.random.split(key, 11)
    params = dict(
        tok_emb=_dense(ks[0], (VOCAB, H)),
        pos_emb=_dense(ks[1], (SEQ, H)),
        emb_ln_g=jnp.ones((H,), jnp.float32),
        emb_ln_b=jnp.zeros((H,), jnp.float32),
        backbone=dict(
            wqkv=_dense(ks[2], (L, H, 3 * H)), bqkv=jnp.zeros((L, 1, 3 * H), jnp.float32),
            wo=_dense(ks[3], (L, H, H)), bo=jnp.zeros((L, 1, H), jnp.float32),
            ln1_g=jnp.ones((L, 1, H), jnp.float32), ln1_b=jnp.zeros((L, 1, H), jnp.float32),
            w1=_dense(ks[4], (L, H, F)), b1=jnp.zeros((L, 1, F), jnp.float32),
            w2=_dense(ks[5], (L, F, H)), b2=jnp.zeros((L, 1, H), jnp.float32),
            ln2_g=jnp.ones((L, 1, H), jnp.float32), ln2_b=jnp.zeros((L, 1, H), jnp.float32),
        ),
        # each FeatureExtractor initializes its layer weights to linspace(-5, 5, K)
        head_layer_weights=jnp.tile(jnp.linspace(-5.0, 5.0, K)[None, :], (T, 1)).astype(jnp.float32),
        heads=dict(
            wqkv=_dense(ks[6], (T, H, 3 * H)), bqkv=jnp.zeros((T, 1, 3 * H), jnp.float32),
            wo=_dense(ks[7], (T, H, H)), bo=jnp.zeros((T, 1, H), jnp.float32),
            ln_g=jnp.ones((T, 1, H), jnp.float32), ln_b=jnp.zeros((T, 1, H), jnp.float32),
        ),
        fusion=dict(
            wqkv=_dense(ks[8], (H, 3 * H)), bqkv=jnp.zeros((1, 3 * H), jnp.float32),
            wo=_dense(ks[9], (H, H)), bo=jnp.zeros((1, H), jnp.float32),
            ln_g=jnp.ones((1, H), jnp.float32), ln_b=jnp.zeros((1, H), jnp.float32),
        ),
        cls_w=_dense(ks[10], (H * T, T)),
        cls_b=jnp.zeros((1, T), jnp.float32),
    )
    return params


# ---------------------------------------------------------------------------
# Forward pass (mirrors FeedbackModelSetFit.forward)
# ---------------------------------------------------------------------------
def forward(params, input_ids, attention_mask, labels=None):
    B, S = input_ids.shape
    N = B * S
    H = HIDDEN
    maskf = attention_mask.astype(jnp.float32)                      # [B, S]
    mask_flat = maskf.reshape(N)                                    # [N]
    batch_id = jnp.repeat(jnp.arange(B), S)                         # [N]

    # --- embeddings (gather + LN kept as tiny JAX glue) ---
    emb = params["tok_emb"][input_ids] + params["pos_emb"][None, :S, :]
    x0 = _layer_norm(emb, params["emb_ln_g"], params["emb_ln_b"]).reshape(N, H)

    # block-diagonal additive attention bias over the flattened batch*seq rows:
    # 0 for (same batch AND valid key), -10000 otherwise (HF-style key masking;
    # exp(-1e4) == 0 in f32 so cross-batch keys contribute exactly nothing).
    key_ok = (batch_id[:, None] == batch_id[None, :]) & (mask_flat[None, :] > 0.5)
    bias = jnp.where(key_ok, 0.0, -10000.0).astype(jnp.float32)     # [N, N]

    # --- synthetic backbone with output_hidden_states=True (1 pallas_call) ---
    hs_layers = run_backbone(x0, bias, params["backbone"])          # [L, N, H]
    all_hs = jnp.concatenate([x0[None], hs_layers], axis=0)         # [L+1, N, H]
    hs_stack = all_hs[-NUM_LAYERS_IN_HEAD:]                         # [K, N, H]

    # --- all 6 per-target FeatureExtractor heads (1 pallas_call) ---
    lw = jax.nn.softmax(params["head_layer_weights"], axis=-1)      # [T, K] (glue)
    pool_sel = ((batch_id[None, :] == jnp.arange(B)[:, None]).astype(jnp.float32)
                * mask_flat[None, :])                               # [B, N]
    feats = run_heads(lw, hs_stack, bias, pool_sel, params["heads"])  # [T, B, H]

    # --- fusion attention over targets + classifier (1 pallas_call) ---
    emb_rows = feats.reshape(NUM_TARGETS * B, H)                    # row = t*B + b
    row_batch = jnp.tile(jnp.arange(B), NUM_TARGETS)
    fbias = jnp.where(row_batch[:, None] == row_batch[None, :],
                      0.0, -10000.0).astype(jnp.float32)            # [T*B, T*B]
    logits = run_fusion_classifier(emb_rows, fbias, params["fusion"],
                                   params["cls_w"], params["cls_b"])  # [B, T]

    # --- per-target weighted MSE loss (scalar glue in JAX) ---
    loss = None
    loss_dict = {}
    if labels is not None:
        loss_weights = [1.05, 1.0, 0.95, 0.95, 1.0, 0.95]
        for idx, name in enumerate(TARGET_NAMES):
            tl = jnp.mean((logits[:, idx] - labels[:, idx]) ** 2)
            contrib = loss_weights[idx] * tl / NUM_TARGETS
            loss = contrib if loss is None else loss + contrib
            loss_dict[name] = tl
    return logits, loss, loss_dict


# ---------------------------------------------------------------------------
if __name__ == "__main__":
    key = jax.random.PRNGKey(0)
    k_param, k_ids, k_lab = jax.random.split(key, 3)

    params = init_params(k_param)

    input_ids = jax.random.randint(k_ids, (BATCH, SEQ), 0, VOCAB, dtype=jnp.int32)
    # deterministic padding mask: row 0 fully valid, row 1 has 10 valid tokens
    lengths = jnp.array([SEQ, 10], dtype=jnp.int32)
    attention_mask = (jnp.arange(SEQ)[None, :] < lengths[:, None]).astype(jnp.int32)
    labels = 1.0 + 4.0 * jax.random.uniform(k_lab, (BATCH, NUM_TARGETS), jnp.float32)

    fwd = jax.jit(forward)
    logits, loss, loss_dict = fwd(params, input_ids, attention_mask, labels)
    jax.block_until_ready((logits, loss, loss_dict))

    assert logits.shape == (BATCH, NUM_TARGETS)
    assert bool(jnp.all(jnp.isfinite(logits))) and bool(jnp.isfinite(loss))
    print("KERNEL_OK")
</pallas_src>

<mosaic_0001>
module attributes {stable_mosaic.version = 11 : i64} {
  func.func @_fusion_cls_kernel(%arg0: memref<12x32xf32, #tpu.memory_space<vmem>>, %arg1: memref<12x12xf32, #tpu.memory_space<vmem>>, %arg2: memref<32x96xf32, #tpu.memory_space<vmem>>, %arg3: memref<1x96xf32, #tpu.memory_space<vmem>>, %arg4: memref<32x32xf32, #tpu.memory_space<vmem>>, %arg5: memref<1x32xf32, #tpu.memory_space<vmem>>, %arg6: memref<1x32xf32, #tpu.memory_space<vmem>>, %arg7: memref<1x32xf32, #tpu.memory_space<vmem>>, %arg8: memref<192x6xf32, #tpu.memory_space<vmem>>, %arg9: memref<1x6xf32, #tpu.memory_space<vmem>>, %arg10: memref<2x6xf32, #tpu.memory_space<vmem>>) attributes {dimension_semantics = [], scalar_prefetch = 0 : i64, scratch_operands = 0 : i64, tpu.core_type = #tpu.core_type<tc>} {
    %c0 = arith.constant 0 : index
    %c0_0 = arith.constant 0 : index
    %0 = vector.load %arg0[%c0, %c0_0] : memref<12x32xf32, #tpu.memory_space<vmem>>, vector<12x32xf32>
    %c0_1 = arith.constant 0 : index
    %c0_2 = arith.constant 0 : index
    %1 = vector.load %arg1[%c0_1, %c0_2] : memref<12x12xf32, #tpu.memory_space<vmem>>, vector<12x12xf32>
    %c0_3 = arith.constant 0 : index
    %c0_4 = arith.constant 0 : index
    %2 = vector.load %arg2[%c0_3, %c0_4] : memref<32x96xf32, #tpu.memory_space<vmem>>, vector<32x96xf32>
    %c0_5 = arith.constant 0 : index
    %c0_6 = arith.constant 0 : index
    %3 = vector.load %arg3[%c0_5, %c0_6] : memref<1x96xf32, #tpu.memory_space<vmem>>, vector<1x96xf32>
    %c0_7 = arith.constant 0 : index
    %c0_8 = arith.constant 0 : index
    %4 = vector.load %arg4[%c0_7, %c0_8] : memref<32x32xf32, #tpu.memory_space<vmem>>, vector<32x32xf32>
    %c0_9 = arith.constant 0 : index
    %c0_10 = arith.constant 0 : index
    %5 = vector.load %arg5[%c0_9, %c0_10] : memref<1x32xf32, #tpu.memory_space<vmem>>, vector<1x32xf32>
    %c0_11 = arith.constant 0 : index
    %c0_12 = arith.constant 0 : index
    %6 = vector.load %arg6[%c0_11, %c0_12] : memref<1x32xf32, #tpu.memory_space<vmem>>, vector<1x32xf32>
    %c0_13 = arith.constant 0 : index
    %c0_14 = arith.constant 0 : index
    %7 = vector.load %arg7[%c0_13, %c0_14] : memref<1x32xf32, #tpu.memory_space<vmem>>, vector<1x32xf32>
    %cst = arith.constant dense<0.000000e+00> : vector<12x96xf32>
    %8 = tpu.matmul %0, %2, %cst {dimension_numbers = #tpu.dot_dimension_numbers<[1], [0], [0], [1], [0, 0, 1, 1], [], []>} : vector<12x32xf32>, vector<32x96xf32>, vector<12x96xf32> -> vector<12x96xf32>
    %9 = vector.broadcast %3 : vector<1x96xf32> to vector<12x96xf32>
    %10 = arith.addf %8, %9 : vector<12x96xf32>
    %11 = vector.extract_strided_slice %10 {offsets = [0, 0], sizes = [12, 8], strides = [1, 1]} : vector<12x96xf32> to vector<12x8xf32>
    %12 = vector.extract_strided_slice %10 {offsets = [0, 32], sizes = [12, 8], strides = [1, 1]} : vector<12x96xf32> to vector<12x8xf32>
    %13 = vector.extract_strided_slice %10 {offsets = [0, 64], sizes = [12, 8], strides = [1, 1]} : vector<12x96xf32> to vector<12x8xf32>
    %cst_15 = arith.constant dense<0.000000e+00> : vector<12x12xf32>
    %14 = tpu.matmul %11, %12, %cst_15 {dimension_numbers = #tpu.dot_dimension_numbers<[1], [1], [0], [0], [0, 0, 1, 0], [], []>} : vector<12x8xf32>, vector<12x8xf32>, vector<12x12xf32> -> vector<12x12xf32>
    %cst_16 = arith.constant 0.353553385 : f32
    %15 = vector.broadcast %cst_16 : f32 to vector<12x12xf32>
    %16 = arith.mulf %14, %15 : vector<12x12xf32>
    %17 = arith.addf %16, %1 : vector<12x12xf32>
    %cst_17 = arith.constant dense<0xFF800000> : vector<12xf32>
    %18 = vector.multi_reduction <maximumf>, %17, %cst_17 [1] : vector<12x12xf32> to vector<12xf32>
    %cst_18 = arith.constant 0xFF800000 : f32
    %19 = vector.broadcast %cst_18 : f32 to vector<12xf32>
    %20 = arith.maximumf %19, %18 : vector<12xf32>
    %21 = vector.shape_cast %20 : vector<12xf32> to vector<12x1xf32>
    %22 = vector.broadcast %21 : vector<12x1xf32> to vector<12x12xf32>
    %23 = arith.subf %17, %22 : vector<12x12xf32>
    %24 = math.exp %23 : vector<12x12xf32>
    %cst_19 = arith.constant dense<0.000000e+00> : vector<12xf32>
    %25 = vector.multi_reduction <add>, %24, %cst_19 [1] : vector<12x12xf32> to vector<12xf32>
    %26 = vector.shape_cast %25 : vector<12xf32> to vector<12x1xf32>
    %27 = vector.broadcast %26 : vector<12x1xf32> to vector<12x12xf32>
    %28 = arith.divf %24, %27 : vector<12x12xf32>
    %cst_20 = arith.constant dense<0.000000e+00> : vector<12x8xf32>
    %29 = tpu.matmul %28, %13, %cst_20 {dimension_numbers = #tpu.dot_dimension_numbers<[1], [0], [0], [1], [0, 0, 1, 1], [], []>} : vector<12x12xf32>, vector<12x8xf32>, vector<12x8xf32> -> vector<12x8xf32>
    %30 = vector.extract_strided_slice %10 {offsets = [0, 8], sizes = [12, 8], strides = [1, 1]} : vector<12x96xf32> to vector<12x8xf32>
    %31 = vector.extract_strided_slice %10 {offsets = [0, 40], sizes = [12, 8], strides = [1, 1]} : vector<12x96xf32> to vector<12x8xf32>
    %32 = vector.extract_strided_slice %10 {offsets = [0, 72], sizes = [12, 8], strides = [1, 1]} : vector<12x96xf32> to vector<12x8xf32>
    %cst_21 = arith.constant dense<0.000000e+00> : vector<12x12xf32>
    %33 = tpu.matmul %30, %31, %cst_21 {dimension_numbers = #tpu.dot_dimension_numbers<[1], [1], [0], [0], [0, 0, 1, 0], [], []>} : vector<12x8xf32>, vector<12x8xf32>, vector<12x12xf32> -> vector<12x12xf32>
    %cst_22 = arith.constant 0.353553385 : f32
    %34 = vector.broadcast %cst_22 : f32 to vector<12x12xf32>
    %35 = arith.mulf %33, %34 : vector<12x12xf32>
    %36 = arith.addf %35, %1 : vector<12x12xf32>
    %cst_23 = arith.constant dense<0xFF800000> : vector<12xf32>
    %37 = vector.multi_reduction <maximumf>, %36, %cst_23 [1] : vector<12x12xf32> to vector<12xf32>
    %cst_24 = arith.constant 0xFF800000 : f32
    %38 = vector.broadcast %cst_24 : f32 to vector<12xf32>
    %39 = arith.maximumf %38, %37 : vector<12xf32>
    %40 = vector.shape_cast %39 : vector<12xf32> to vector<12x1xf32>
    %41 = vector.broadcast %40 : vector<12x1xf32> to vector<12x12xf32>
    %42 = arith.subf %36, %41 : vector<12x12xf32>
    %43 = math.exp %42 : vector<12x12xf32>
    %cst_25 = arith.constant dense<0.000000e+00> : vector<12xf32>
    %44 = vector.multi_reduction <add>, %43, %cst_25 [1] : vector<12x12xf32> to vector<12xf32>
    %45 = vector.shape_cast %44 : vector<12xf32> to vector<12x1xf32>
    %46 = vector.broadcast %45 : vector<12x1xf32> to vector<12x12xf32>
    %47 = arith.divf %43, %46 : vector<12x12xf32>
    %cst_26 = arith.constant dense<0.000000e+00> : vector<12x8xf32>
    %48 = tpu.matmul %47, %32, %cst_26 {dimension_numbers = #tpu.dot_dimension_numbers<[1], [0], [0], [1], [0, 0, 1, 1], [], []>} : vector<12x12xf32>, vector<12x8xf32>, vector<12x8xf32> -> vector<12x8xf32>
    %49 = vector.extract_strided_slice %10 {offsets = [0, 16], sizes = [12, 8], strides = [1, 1]} : vector<12x96xf32> to vector<12x8xf32>
    %50 = vector.extract_strided_slice %10 {offsets = [0, 48], sizes = [12, 8], strides = [1, 1]} : vector<12x96xf32> to vector<12x8xf32>
    %51 = vector.extract_strided_slice %10 {offsets = [0, 80], sizes = [12, 8], strides = [1, 1]} : vector<12x96xf32> to vector<12x8xf32>
    %cst_27 = arith.constant dense<0.000000e+00> : vector<12x12xf32>
    %52 = tpu.matmul %49, %50, %cst_27 {dimension_numbers = #tpu.dot_dimension_numbers<[1], [1], [0], [0], [0, 0, 1, 0], [], []>} : vector<12x8xf32>, vector<12x8xf32>, vector<12x12xf32> -> vector<12x12xf32>
    %cst_28 = arith.constant 0.353553385 : f32
    %53 = vector.broadcast %cst_28 : f32 to vector<12x12xf32>
    %54 = arith.mulf %52, %53 : vector<12x12xf32>
    %55 = arith.addf %54, %1 : vector<12x12xf32>
    %cst_29 = arith.constant dense<0xFF800000> : vector<12xf32>
    %56 = vector.multi_reduction <maximumf>, %55, %cst_29 [1] : vector<12x12xf32> to vector<12xf32>
    %cst_30 = arith.constant 0xFF800000 : f32
    %57 = vector.broadcast %cst_30 : f32 to vector<12xf32>
    %58 = arith.maximumf %57, %56 : vector<12xf32>
    %59 = vector.shape_cast %58 : vector<12xf32> to vector<12x1xf32>
    %60 = vector.broadcast %59 : vector<12x1xf32> to vector<12x12xf32>
    %61 = arith.subf %55, %60 : vector<12x12xf32>
    %62 = math.exp %61 : vector<12x12xf32>
    %cst_31 = arith.constant dense<0.000000e+00> : vector<12xf32>
    %63 = vector.multi_reduction <add>, %62, %cst_31 [1] : vector<12x12xf32> to vector<12xf32>
    %64 = vector.shape_cast %63 : vector<12xf32> to vector<12x1xf32>
    %65 = vector.broadcast %64 : vector<12x1xf32> to vector<12x12xf32>
    %66 = arith.divf %62, %65 : vector<12x12xf32>
    %cst_32 = arith.constant dense<0.000000e+00> : vector<12x8xf32>
    %67 = tpu.matmul %66, %51, %cst_32 {dimension_numbers = #tpu.dot_dimension_numbers<[1], [0], [0], [1], [0, 0, 1, 1], [], []>} : vector<12x12xf32>, vector<12x8xf32>, vector<12x8xf32> -> vector<12x8xf32>
    %68 = vector.extract_strided_slice %10 {offsets = [0, 24], sizes = [12, 8], strides = [1, 1]} : vector<12x96xf32> to vector<12x8xf32>
    %69 = vector.extract_strided_slice %10 {offsets = [0, 56], sizes = [12, 8], strides = [1, 1]} : vector<12x96xf32> to vector<12x8xf32>
    %70 = vector.extract_strided_slice %10 {offsets = [0, 88], sizes = [12, 8], strides = [1, 1]} : vector<12x96xf32> to vector<12x8xf32>
    %cst_33 = arith.constant dense<0.000000e+00> : vector<12x12xf32>
    %71 = tpu.matmul %68, %69, %cst_33 {dimension_numbers = #tpu.dot_dimension_numbers<[1], [1], [0], [0], [0, 0, 1, 0], [], []>} : vector<12x8xf32>, vector<12x8xf32>, vector<12x12xf32> -> vector<12x12xf32>
    %cst_34 = arith.constant 0.353553385 : f32
    %72 = vector.broadcast %cst_34 : f32 to vector<12x12xf32>
    %73 = arith.mulf %71, %72 : vector<12x12xf32>
    %74 = arith.addf %73, %1 : vector<12x12xf32>
    %cst_35 = arith.constant dense<0xFF800000> : vector<12xf32>
    %75 = vector.multi_reduction <maximumf>, %74, %cst_35 [1] : vector<12x12xf32> to vector<12xf32>
    %cst_36 = arith.constant 0xFF800000 : f32
    %76 = vector.broadcast %cst_36 : f32 to vector<12xf32>
    %77 = arith.maximumf %76, %75 : vector<12xf32>
    %78 = vector.shape_cast %77 : vector<12xf32> to vector<12x1xf32>
    %79 = vector.broadcast %78 : vector<12x1xf32> to vector<12x12xf32>
    %80 = arith.subf %74, %79 : vector<12x12xf32>
    %81 = math.exp %80 : vector<12x12xf32>
    %cst_37 = arith.constant dense<0.000000e+00> : vector<12xf32>
    %82 = vector.multi_reduction <add>, %81, %cst_37 [1] : vector<12x12xf32> to vector<12xf32>
    %83 = vector.shape_cast %82 : vector<12xf32> to vector<12x1xf32>
    %84 = vector.broadcast %83 : vector<12x1xf32> to vector<12x12xf32>
    %85 = arith.divf %81, %84 : vector<12x12xf32>
    %cst_38 = arith.constant dense<0.000000e+00> : vector<12x8xf32>
    %86 = tpu.matmul %85, %70, %cst_38 {dimension_numbers = #tpu.dot_dimension_numbers<[1], [0], [0], [1], [0, 0, 1, 1], [], []>} : vector<12x12xf32>, vector<12x8xf32>, vector<12x8xf32> -> vector<12x8xf32>
    %87 = tpu.concatenate %29, %48, %67, %86 in 1 : vector<12x8xf32>, vector<12x8xf32>, vector<12x8xf32>, vector<12x8xf32> -> vector<12x32xf32>
    %cst_39 = arith.constant dense<0.000000e+00> : vector<12x32xf32>
    %88 = tpu.matmul %87, %4, %cst_39 {dimension_numbers = #tpu.dot_dimension_numbers<[1], [0], [0], [1], [0, 0, 1, 1], [], []>} : vector<12x32xf32>, vector<32x32xf32>, vector<12x32xf32> -> vector<12x32xf32>
    %89 = vector.broadcast %5 : vector<1x32xf32> to vector<12x32xf32>
    %90 = arith.addf %88, %89 : vector<12x32xf32>
    %91 = arith.addf %90, %0 : vector<12x32xf32>
    %cst_40 = arith.constant dense<0.000000e+00> : vector<12xf32>
    %92 = vector.multi_reduction <add>, %91, %cst_40 [1] : vector<12x32xf32> to vector<12xf32>
    %93 = vector.shape_cast %92 : vector<12xf32> to vector<12x1xf32>
    %cst_41 = arith.constant 3.200000e+01 : f32
    %94 = vector.broadcast %cst_41 : f32 to vector<12x1xf32>
    %95 = arith.divf %93, %94 : vector<12x1xf32>
    %96 = vector.broadcast %95 : vector<12x1xf32> to vector<12x32xf32>
    %97 = arith.subf %91, %96 : vector<12x32xf32>
    %98 = arith.mulf %97, %97 : vector<12x32xf32>
    %cst_42 = arith.constant dense<0.000000e+00> : vector<12xf32>
    %99 = vector.multi_reduction <add>, %98, %cst_42 [1] : vector<12x32xf32> to vector<12xf32>
    %100 = vector.shape_cast %99 : vector<12xf32> to vector<12x1xf32>
    %cst_43 = arith.constant 3.200000e+01 : f32
    %101 = vector.broadcast %cst_43 : f32 to vector<12x1xf32>
    %102 = arith.divf %100, %101 : vector<12x1xf32>
    %103 = vector.broadcast %95 : vector<12x1xf32> to vector<12x32xf32>
    %104 = arith.subf %91, %103 : vector<12x32xf32>
    %cst_44 = arith.constant 9.99999996E-13 : f32
    %105 = vector.broadcast %cst_44 : f32 to vector<12x1xf32>
    %106 = arith.addf %102, %105 : vector<12x1xf32>
    %107 = math.rsqrt %106 : vector<12x1xf32>
    %108 = vector.broadcast %107 : vector<12x1xf32> to vector<12x32xf32>
    %109 = arith.mulf %104, %108 : vector<12x32xf32>
    %110 = vector.broadcast %6 : vector<1x32xf32> to vector<12x32xf32>
    %111 = arith.mulf %109, %110 : vector<12x32xf32>
    %112 = vector.broadcast %7 : vector<1x32xf32> to vector<12x32xf32>
    %113 = arith.addf %111, %112 : vector<12x32xf32>
    %114 = vector.extract_strided_slice %113 {offsets = [0, 0], sizes = [2, 32], strides = [1, 1]} : vector<12x32xf32> to vector<2x32xf32>
    %115 = vector.extract_strided_slice %113 {offsets = [2, 0], sizes = [2, 32], strides = [1, 1]} : vector<12x32xf32> to vector<2x32xf32>
    %116 = vector.extract_strided_slice %113 {offsets = [4, 0], sizes = [2, 32], strides = [1, 1]} : vector<12x32xf32> to vector<2x32xf32>
    %117 = vector.extract_strided_slice %113 {offsets = [6, 0], sizes = [2, 32], strides = [1, 1]} : vector<12x32xf32> to vector<2x32xf32>
    %118 = vector.extract_strided_slice %113 {offsets = [8, 0], sizes = [2, 32], strides = [1, 1]} : vector<12x32xf32> to vector<2x32xf32>
    %119 = vector.extract_strided_slice %113 {offsets = [10, 0], sizes = [2, 32], strides = [1, 1]} : vector<12x32xf32> to vector<2x32xf32>
    %120 = tpu.concatenate %114, %115, %116, %117, %118, %119 in 1 : vector<2x32xf32>, vector<2x32xf32>, vector<2x32xf32>, vector<2x32xf32>, vector<2x32xf32>, vector<2x32xf32> -> vector<2x192xf32>
    %c0_45 = arith.constant 0 : index
    %c0_46 = arith.constant 0 : index
    %121 = vector.load %arg8[%c0_45, %c0_46] : memref<192x6xf32, #tpu.memory_space<vmem>>, vector<192x6xf32>
    %cst_47 = arith.constant dense<0.000000e+00> : vector<2x6xf32>
    %122 = tpu.matmul %120, %121, %cst_47 {dimension_numbers = #tpu.dot_dimension_numbers<[1], [0], [0], [1], [0, 0, 1, 1], [], []>} : vector<2x192xf32>, vector<192x6xf32>, vector<2x6xf32> -> vector<2x6xf32>
    %c0_48 = arith.constant 0 : index
    %c0_49 = arith.constant 0 : index
    %123 = vector.load %arg9[%c0_48, %c0_49] : memref<1x6xf32, #tpu.memory_space<vmem>>, vector<1x6xf32>
    %124 = vector.broadcast %123 : vector<1x6xf32> to vector<2x6xf32>
    %125 = arith.addf %122, %124 : vector<2x6xf32>
    %c0_50 = arith.constant 0 : index
    %c0_51 = arith.constant 0 : index
    %126 = vector.load %arg10[%c0_50, %c0_51] : memref<2x6xf32, #tpu.memory_space<vmem>>, vector<2x6xf32>
    tpu.vector_store %arg10[%c0_50, %c0_51], %125 {strides = array<i32>} : memref<2x6xf32, #tpu.memory_space<vmem>>, vector<2x6xf32>,
    return
  }
}

module attributes {stable_mosaic.version = 11 : i64} {
  func.func @_backbone_kernel(%arg0: i32, %arg1: memref<32x32xf32, #tpu.memory_space<vmem>>, %arg2: memref<32x32xf32, #tpu.memory_space<vmem>>, %arg3: memref<1x32x96xf32, #tpu.memory_space<vmem>>, %arg4: memref<1x1x96xf32, #tpu.memory_space<vmem>>, %arg5: memref<1x32x32xf32, #tpu.memory_space<vmem>>, %arg6: memref<1x1x32xf32, #tpu.memory_space<vmem>>, %arg7: memref<1x1x32xf32, #tpu.memory_space<vmem>>, %arg8: memref<1x1x32xf32, #tpu.memory_space<vmem>>, %arg9: memref<1x32x64xf32, #tpu.memory_space<vmem>>, %arg10: memref<1x1x64xf32, #tpu.memory_space<vmem>>, %arg11: memref<1x64x32xf32, #tpu.memory_space<vmem>>, %arg12: memref<1x1x32xf32, #tpu.memory_space<vmem>>, %arg13: memref<1x1x32xf32, #tpu.memory_space<vmem>>, %arg14: memref<1x1x32xf32, #tpu.memory_space<vmem>>, %arg15: memref<1x32x32xf32, #tpu.memory_space<vmem>>, %arg16: memref<32x32xf32, #tpu.memory_space<vmem>>) attributes {dimension_semantics = [#tpu.dimension_semantics<arbitrary>], iteration_bounds = array<i64: 4>, scalar_prefetch = 0 : i64, scratch_operands = 1 : i64, tpu.core_type = #tpu.core_type<tc>, window_params = [{pipeline_mode = #tpu.pipeline_mode<synchronous>, transform_indices = @transform_0, window_bounds = array<i64: 32, 32>}, {pipeline_mode = #tpu.pipeline_mode<synchronous>, transform_indices = @transform_1, window_bounds = array<i64: 32, 32>}, {transform_indices = @transform_2, window_bounds = array<i64: 1, 32, 96>}, {transform_indices = @transform_3, window_bounds = array<i64: 1, 1, 96>}, {transform_indices = @transform_4, window_bounds = array<i64: 1, 32, 32>}, {transform_indices = @transform_5, window_bounds = array<i64: 1, 1, 32>}, {transform_indices = @transform_6, window_bounds = array<i64: 1, 1, 32>}, {transform_indices = @transform_7, window_bounds = array<i64: 1, 1, 32>}, {transform_indices = @transform_8, window_bounds = array<i64: 1, 32, 64>}, {transform_indices = @transform_9, window_bounds = array<i64: 1, 1, 64>}, {transform_indices = @transform_10, window_bounds = array<i64: 1, 64, 32>}, {transform_indices = @transform_11, window_bounds = array<i64: 1, 1, 32>}, {transform_indices = @transform_12, window_bounds = array<i64: 1, 1, 32>}, {transform_indices = @transform_13, window_bounds = array<i64: 1, 1, 32>}, {transform_indices = @transform_14, window_bounds = array<i64: 1, 32, 32>}]} {
    %c0_i32 = arith.constant 0 : i32
    %0 = arith.cmpi eq, %arg0, %c0_i32 : i32
    %1 = arith.extui %0 : i1 to i32
    %c0_i32_0 = arith.constant 0 : i32
    %2 = arith.cmpi ne, %1, %c0_i32_0 : i32
    scf.if %2 {
      %c0_86 = arith.constant 0 : index
      %c0_87 = arith.constant 0 : index
      %181 = vector.load %arg1[%c0_86, %c0_87] : memref<32x32xf32, #tpu.memory_space<vmem>>, vector<32x32xf32>
      %c0_88 = arith.constant 0 : index
      %c0_89 = arith.constant 0 : index
      %182 = vector.load %arg16[%c0_88, %c0_89] : memref<32x32xf32, #tpu.memory_space<vmem>>, vector<32x32xf32>
      tpu.vector_store %arg16[%c0_88, %c0_89], %181 {strides = array<i32>} : memref<32x32xf32, #tpu.memory_space<vmem>>, vector<32x32xf32>,
    } else {
    }
    %c0 = arith.constant 0 : index
    %c0_1 = arith.constant 0 : index
    %3 = vector.load %arg16[%c0, %c0_1] : memref<32x32xf32, #tpu.memory_space<vmem>>, vector<32x32xf32>
    %c0_2 = arith.constant 0 : index
    %c0_3 = arith.constant 0 : index
    %4 = vector.load %arg2[%c0_2, %c0_3] : memref<32x32xf32, #tpu.memory_space<vmem>>, vector<32x32xf32>
    %c0_4 = arith.constant 0 : index
    %c0_5 = arith.constant 0 : index
    %c0_6 = arith.constant 0 : index
    %5 = vector.load %arg3[%c0_4, %c0_5, %c0_6] : memref<1x32x96xf32, #tpu.memory_space<vmem>>, vector<1x32x96xf32>
    %6 = vector.shape_cast %5 : vector<1x32x96xf32> to vector<32x96xf32>
    %c0_7 = arith.constant 0 : index
    %c0_8 = arith.constant 0 : index
    %c0_9 = arith.constant 0 : index
    %7 = vector.load %arg4[%c0_7, %c0_8, %c0_9] : memref<1x1x96xf32, #tpu.memory_space<vmem>>, vector<1x1x96xf32>
    %8 = vector.shape_cast %7 : vector<1x1x96xf32> to vector<1x96xf32>
    %c0_10 = arith.constant 0 : index
    %c0_11 = arith.constant 0 : index
    %c0_12 = arith.constant 0 : index
    %9 = vector.load %arg5[%c0_10, %c0_11, %c0_12] : memref<1x32x32xf32, #tpu.memory_space<vmem>>, vector<1x32x32xf32>
    %10 = vector.shape_cast %9 : vector<1x32x32xf32> to vector<32x32xf32>
    %c0_13 = arith.constant 0 : index
    %c0_14 = arith.constant 0 : index
    %c0_15 = arith.constant 0 : index
    %11 = vector.load %arg6[%c0_13, %c0_14, %c0_15] : memref<1x1x32xf32, #tpu.memory_space<vmem>>, vector<1x1x32xf32>
    %12 = vector.shape_cast %11 : vector<1x1x32xf32> to vector<1x32xf32>
    %c0_16 = arith.constant 0 : index
    %c0_17 = arith.constant 0 : index
    %c0_18 = arith.constant 0 : index
    %13 = vector.load %arg7[%c0_16, %c0_17, %c0_18] : memref<1x1x32xf32, #tpu.memory_space<vmem>>, vector<1x1x32xf32>
    %14 = vector.shape_cast %13 : vector<1x1x32xf32> to vector<1x32xf32>
    %c0_19 = arith.constant 0 : index
    %c0_20 = arith.constant 0 : index
    %c0_21 = arith.constant 0 : index
    %15 = vector.load %arg8[%c0_19, %c0_20, %c0_21] : memref<1x1x32xf32, #tpu.memory_space<vmem>>, vector<1x1x32xf32>
    %16 = vector.shape_cast %15 : vector<1x1x32xf32> to vector<1x32xf32>
    %cst = arith.constant dense<0.000000e+00> : vector<32x96xf32>
    %17 = tpu.matmul %3, %6, %cst {dimension_numbers = #tpu.dot_dimension_numbers<[1], [0], [0], [1], [0, 0, 1, 1], [], []>} : vector<32x32xf32>, vector<32x96xf32>, vector<32x96xf32> -> vector<32x96xf32>
    %18 = vector.broadcast %8 : vector<1x96xf32> to vector<32x96xf32>
    %19 = arith.addf %17, %18 : vector<32x96xf32>
    %20 = vector.extract_strided_slice %19 {offsets = [0, 0], sizes = [32, 8], strides = [1, 1]} : vector<32x96xf32> to vector<32x8xf32>
    %21 = vector.extract_strided_slice %19 {offsets = [0, 32], sizes = [32, 8], strides = [1, 1]} : vector<32x96xf32> to vector<32x8xf32>
    %22 = vector.extract_strided_slice %19 {offsets = [0, 64], sizes = [32, 8], strides = [1, 1]} : vector<32x96xf32> to vector<32x8xf32>
    %cst_22 = arith.constant dense<0.000000e+00> : vector<32x32xf32>
    %23 = tpu.matmul %20, %21, %cst_22 {dimension_numbers = #tpu.dot_dimension_numbers<[1], [1], [0], [0], [0, 0, 1, 0], [], []>} : vector<32x8xf32>, vector<32x8xf32>, vector<32x32xf32> -> vector<32x32xf32>
    %cst_23 = arith.constant 0.353553385 : f32
    %24 = vector.broadcast %cst_23 : f32 to vector<32x32xf32>
    %25 = arith.mulf %23, %24 : vector<32x32xf32>
    %26 = arith.addf %25, %4 : vector<32x32xf32>
    %cst_24 = arith.constant dense<0xFF800000> : vector<32xf32>
    %27 = vector.multi_reduction <maximumf>, %26, %cst_24 [1] : vector<32x32xf32> to vector<32xf32>
    %cst_25 = arith.constant 0xFF800000 : f32
    %28 = vector.broadcast %cst_25 : f32 to vector<32xf32>
    %29 = arith.maximumf %28, %27 : vector<32xf32>
    %30 = vector.shape_cast %29 : vector<32xf32> to vector<32x1xf32>
    %31 = vector.broadcast %30 : vector<32x1xf32> to vector<32x32xf32>
    %32 = arith.subf %26, %31 : vector<32x32xf32>
    %33 = math.exp %32 : vector<32x32xf32>
    %cst_26 = arith.constant dense<0.000000e+00> : vector<32xf32>
    %34 = vector.multi_reduction <add>, %33, %cst_26 [1] : vector<32x32xf32> to vector<32xf32>
    %35 = vector.shape_cast %34 : vector<32xf32> to vector<32x1xf32>
    %36 = vector.broadcast %35 : vector<32x1xf32> to vector<32x32xf32>
    %37 = arith.divf %33, %36 : vector<32x32xf32>
    %cst_27 = arith.constant dense<0.000000e+00> : vector<32x8xf32>
    %38 = tpu.matmul %37, %22, %cst_27 {dimension_numbers = #tpu.dot_dimension_numbers<[1], [0], [0], [1], [0, 0, 1, 1], [], []>} : vector<32x32xf32>, vector<32x8xf32>, vector<32x8xf32> -> vector<32x8xf32>
    %39 = vector.extract_strided_slice %19 {offsets = [0, 8], sizes = [32, 8], strides = [1, 1]} : vector<32x96xf32> to vector<32x8xf32>
    %40 = vector.extract_strided_slice %19 {offsets = [0, 40], sizes = [32, 8], strides = [1, 1]} : vector<32x96xf32> to vector<32x8xf32>
    %41 = vector.extract_strided_slice %19 {offsets = [0, 72], sizes = [32, 8], strides = [1, 1]} : vector<32x96xf32> to vector<32x8xf32>
    %cst_28 = arith.constant dense<0.000000e+00> : vector<32x32xf32>
    %42 = tpu.matmul %39, %40, %cst_28 {dimension_numbers = #tpu.dot_dimension_numbers<[1], [1], [0], [0], [0, 0, 1, 0], [], []>} : vector<32x8xf32>, vector<32x8xf32>, vector<32x32xf32> -> vector<32x32xf32>
    %cst_29 = arith.constant 0.353553385 : f32
    %43 = vector.broadcast %cst_29 : f32 to vector<32x32xf32>
    %44 = arith.mulf %42, %43 : vector<32x32xf32>
    %45 = arith.addf %44, %4 : vector<32x32xf32>
    %cst_30 = arith.constant dense<0xFF800000> : vector<32xf32>
    %46 = vector.multi_reduction <maximumf>, %45, %cst_30 [1] : vector<32x32xf32> to vector<32xf32>
    %cst_31 = arith.constant 0xFF800000 : f32
    %47 = vector.broadcast %cst_31 : f32 to vector<32xf32>
    %48 = arith.maximumf %47, %46 : vector<32xf32>
    %49 = vector.shape_cast %48 : vector<32xf32> to vector<32x1xf32>
    %50 = vector.broadcast %49 : vector<32x1xf32> to vector<32x32xf32>
    %51 = arith.subf %45, %50 : vector<32x32xf32>
    %52 = math.exp %51 : vector<32x32xf32>
    %cst_32 = arith.constant dense<0.000000e+00> : vector<32xf32>
    %53 = vector.multi_reduction <add>, %52, %cst_32 [1] : vector<32x32xf32> to vector<32xf32>
    %54 = vector.shape_cast %53 : vector<32xf32> to vector<32x1xf32>
    %55 = vector.broadcast %54 : vector<32x1xf32> to vector<32x32xf32>
    %56 = arith.divf %52, %55 : vector<32x32xf32>
    %cst_33 = arith.constant dense<0.000000e+00> : vector<32x8xf32>
    %57 = tpu.matmul %56, %41, %cst_33 {dimension_numbers = #tpu.dot_dimension_numbers<[1], [0], [0], [1], [0, 0, 1, 1], [], []>} : vector<32x32xf32>, vector<32x8xf32>, vector<32x8xf32> -> vector<32x8xf32>
    %58 = vector.extract_strided_slice %19 {offsets = [0, 16], sizes = [32, 8], strides = [1, 1]} : vector<32x96xf32> to vector<32x8xf32>
    %59 = vector.extract_strided_slice %19 {offsets = [0, 48], sizes = [32, 8], strides = [1, 1]} : vector<32x96xf32> to vector<32x8xf32>
    %60 = vector.extract_strided_slice %19 {offsets = [0, 80], sizes = [32, 8], strides = [1, 1]} : vector<32x96xf32> to vector<32x8xf32>
    %cst_34 = arith.constant dense<0.000000e+00> : vector<32x32xf32>
    %61 = tpu.matmul %58, %59, %cst_34 {dimension_numbers = #tpu.dot_dimension_numbers<[1], [1], [0], [0], [0, 0, 1, 0], [], []>} : vector<32x8xf32>, vector<32x8xf32>, vector<32x32xf32> -> vector<32x32xf32>
    %cst_35 = arith.constant 0.353553385 : f32
    %62 = vector.broadcast %cst_35 : f32 to vector<32x32xf32>
    %63 = arith.mulf %61, %62 : vector<32x32xf32>
    %64 = arith.addf %63, %4 : vector<32x32xf32>
    %cst_36 = arith.constant dense<0xFF800000> : vector<32xf32>
    %65 = vector.multi_reduction <maximumf>, %64, %cst_36 [1] : vector<32x32xf32> to vector<32xf32>
    %cst_37 = arith.constant 0xFF800000 : f32
    %66 = vector.broadcast %cst_37 : f32 to vector<32xf32>
    %67 = arith.maximumf %66, %65 : vector<32xf32>
    %68 = vector.shape_cast %67 : vector<32xf32> to vector<32x1xf32>
    %69 = vector.broadcast %68 : vector<32x1xf32> to vector<32x32xf32>
    %70 = arith.subf %64, %69 : vector<32x32xf32>
    %71 = math.exp %70 : vector<32x32xf32>
    %cst_38 = arith.constant dense<0.000000e+00> : vector<32xf32>
    %72 = vector.multi_reduction <add>, %71, %cst_38 [1] : vector<32x32xf32> to vector<32xf32>
    %73 = vector.shape_cast %72 : vector<32xf32> to vector<32x1xf32>
    %74 = vector.broadcast %73 : vector<32x1xf32> to vector<32x32xf32>
    %75 = arith.divf %71, %74 : vector<32x32xf32>
    %cst_39 = arith.constant dense<0.000000e+00> : vector<32x8xf32>
    %76 = tpu.matmul %75, %60, %cst_39 {dimension_numbers = #tpu.dot_dimension_numbers<[1], [0], [0], [1], [0, 0, 1, 1], [], []>} : vector<32x32xf32>, vector<32x8xf32>, vector<32x8xf32> -> vector<32x8xf32>
    %77 = vector.extract_strided_slice %19 {offsets = [0, 24], sizes = [32, 8], strides = [1, 1]} : vector<32x96xf32> to vector<32x8xf32>
    %78 = vector.extract_strided_slice %19 {offsets = [0, 56], sizes = [32, 8], strides = [1, 1]} : vector<32x96xf32> to vector<32x8xf32>
    %79 = vector.extract_strided_slice %19 {offsets = [0, 88], sizes = [32, 8], strides = [1, 1]} : vector<32x96xf32> to vector<32x8xf32>
    %cst_40 = arith.constant dense<0.000000e+00> : vector<32x32xf32>
    %80 = tpu.matmul %77, %78, %cst_40 {dimension_numbers = #tpu.dot_dimension_numbers<[1], [1], [0], [0], [0, 0, 1, 0], [], []>} : vector<32x8xf32>, vector<32x8xf32>, vector<32x32xf32> -> vector<32x32xf32>
    %cst_41 = arith.constant 0.353553385 : f32
    %81 = vector.broadcast %cst_41 : f32 to vector<32x32xf32>
    %82 = arith.mulf %80, %81 : vector<32x32xf32>
    %83 = arith.addf %82, %4 : vector<32x32xf32>
    %cst_42 = arith.constant dense<0xFF800000> : vector<32xf32>
    %84 = vector.multi_reduction <maximumf>, %83, %cst_42 [1] : vector<32x32xf32> to vector<32xf32>
    %cst_43 = arith.constant 0xFF800000 : f32
    %85 = vector.broadcast %cst_43 : f32 to vector<32xf32>
    %86 = arith.maximumf %85, %84 : vector<32xf32>
    %87 = vector.shape_cast %86 : vector<32xf32> to vector<32x1xf32>
    %88 = vector.broadcast %87 : vector<32x1xf32> to vector<32x32xf32>
    %89 = arith.subf %83, %88 : vector<32x32xf32>
    %90 = math.exp %89 : vector<32x32xf32>
    %cst_44 = arith.constant dense<0.000000e+00> : vector<32xf32>
    %91 = vector.multi_reduction <add>, %90, %cst_44 [1] : vector<32x32xf32> to vector<32xf32>
    %92 = vector.shape_cast %91 : vector<32xf32> to vector<32x1xf32>
    %93 = vector.broadcast %92 : vector<32x1xf32> to vector<32x32xf32>
    %94 = arith.divf %90, %93 : vector<32x32xf32>
    %cst_45 = arith.constant dense<0.000000e+00> : vector<32x8xf32>
    %95 = tpu.matmul %94, %79, %cst_45 {dimension_numbers = #tpu.dot_dimension_numbers<[1], [0], [0], [1], [0, 0, 1, 1], [], []>} : vector<32x32xf32>, vector<32x8xf32>, vector<32x8xf32> -> vector<32x8xf32>
    %96 = tpu.concatenate %38, %57, %76, %95 in 1 : vector<32x8xf32>, vector<32x8xf32>, vector<32x8xf32>, vector<32x8xf32> -> vector<32x32xf32>
    %cst_46 = arith.constant dense<0.000000e+00> : vector<32x32xf32>
    %97 = tpu.matmul %96, %10, %cst_46 {dimension_numbers = #tpu.dot_dimension_numbers<[1], [0], [0], [1], [0, 0, 1, 1], [], []>} : vector<32x32xf32>, vector<32x32xf32>, vector<32x32xf32> -> vector<32x32xf32>
    %98 = vector.broadcast %12 : vector<1x32xf32> to vector<32x32xf32>
    %99 = arith.addf %97, %98 : vector<32x32xf32>
    %100 = arith.addf %99, %3 : vector<32x32xf32>
    %cst_47 = arith.constant dense<0.000000e+00> : vector<32xf32>
    %101 = vector.multi_reduction <add>, %100, %cst_47 [1] : vector<32x32xf32> to vector<32xf32>
    %102 = vector.shape_cast %101 : vector<32xf32> to vector<32x1xf32>
    %cst_48 = arith.constant 3.200000e+01 : f32
    %103 = vector.broadcast %cst_48 : f32 to vector<32x1xf32>
    %104 = arith.divf %102, %103 : vector<32x1xf32>
    %105 = vector.broadcast %104 : vector<32x1xf32> to vector<32x32xf32>
    %106 = arith.subf %100, %105 : vector<32x32xf32>
    %107 = arith.mulf %106, %106 : vector<32x32xf32>
    %cst_49 = arith.constant dense<0.000000e+00> : vector<32xf32>
    %108 = vector.multi_reduction <add>, %107, %cst_49 [1] : vector<32x32xf32> to vector<32xf32>
    %109 = vector.shape_cast %108 : vector<32xf32> to vector<32x1xf32>
    %cst_50 = arith.constant 3.200000e+01 : f32
    %110 = vector.broadcast %cst_50 : f32 to vector<32x1xf32>
    %111 = arith.divf %109, %110 : vector<32x1xf32>
    %112 = vector.broadcast %104 : vector<32x1xf32> to vector<32x32xf32>
    %113 = arith.subf %100, %112 : vector<32x32xf32>
    %cst_51 = arith.constant 9.99999996E-13 : f32
    %114 = vector.broadcast %cst_51 : f32 to vector<32x1xf32>
    %115 = arith.addf %111, %114 : vector<32x1xf32>
    %116 = math.rsqrt %115 : vector<32x1xf32>
    %117 = vector.broadcast %116 : vector<32x1xf32> to vector<32x32xf32>
    %118 = arith.mulf %113, %117 : vector<32x32xf32>
    %119 = vector.broadcast %14 : vector<1x32xf32> to vector<32x32xf32>
    %120 = arith.mulf %118, %119 : vector<32x32xf32>
    %121 = vector.broadcast %16 : vector<1x32xf32> to vector<32x32xf32>
    %122 = arith.addf %120, %121 : vector<32x32xf32>
    %c0_52 = arith.constant 0 : index
    %c0_53 = arith.constant 0 : index
    %c0_54 = arith.constant 0 : index
    %123 = vector.load %arg9[%c0_52, %c0_53, %c0_54] : memref<1x32x64xf32, #tpu.memory_space<vmem>>, vector<1x32x64xf32>
    %124 = vector.shape_cast %123 : vector<1x32x64xf32> to vector<32x64xf32>
    %c0_55 = arith.constant 0 : index
    %c0_56 = arith.constant 0 : index
    %c0_57 = arith.constant 0 : index
    %125 = vector.load %arg10[%c0_55, %c0_56, %c0_57] : memref<1x1x64xf32, #tpu.memory_space<vmem>>, vector<1x1x64xf32>
    %126 = vector.shape_cast %125 : vector<1x1x64xf32> to vector<1x64xf32>
    %c0_58 = arith.constant 0 : index
    %c0_59 = arith.constant 0 : index
    %c0_60 = arith.constant 0 : index
    %127 = vector.load %arg11[%c0_58, %c0_59, %c0_60] : memref<1x64x32xf32, #tpu.memory_space<vmem>>, vector<1x64x32xf32>
    %128 = vector.shape_cast %127 : vector<1x64x32xf32> to vector<64x32xf32>
    %c0_61 = arith.constant 0 : index
    %c0_62 = arith.constant 0 : index
    %c0_63 = arith.constant 0 : index
    %129 = vector.load %arg12[%c0_61, %c0_62, %c0_63] : memref<1x1x32xf32, #tpu.memory_space<vmem>>, vector<1x1x32xf32>
    %130 = vector.shape_cast %129 : vector<1x1x32xf32> to vector<1x32xf32>
    %c0_64 = arith.constant 0 : index
    %c0_65 = arith.constant 0 : index
    %c0_66 = arith.constant 0 : index
    %131 = vector.load %arg13[%c0_64, %c0_65, %c0_66] : memref<1x1x32xf32, #tpu.memory_space<vmem>>, vector<1x1x32xf32>
    %132 = vector.shape_cast %131 : vector<1x1x32xf32> to vector<1x32xf32>
    %c0_67 = arith.constant 0 : index
    %c0_68 = arith.constant 0 : index
    %c0_69 = arith.constant 0 : index
    %133 = vector.load %arg14[%c0_67, %c0_68, %c0_69] : memref<1x1x32xf32, #tpu.memory_space<vmem>>, vector<1x1x32xf32>
    %134 = vector.shape_cast %133 : vector<1x1x32xf32> to vector<1x32xf32>
    %cst_70 = arith.constant dense<0.000000e+00> : vector<32x64xf32>
    %135 = tpu.matmul %122, %124, %cst_70 {dimension_numbers = #tpu.dot_dimension_numbers<[1], [0], [0], [1], [0, 0, 1, 1], [], []>} : vector<32x32xf32>, vector<32x64xf32>, vector<32x64xf32> -> vector<32x64xf32>
    %136 = vector.broadcast %126 : vector<1x64xf32> to vector<32x64xf32>
    %137 = arith.addf %135, %136 : vector<32x64xf32>
    %138 = arith.mulf %137, %137 : vector<32x64xf32>
    %139 = arith.mulf %137, %138 : vector<32x64xf32>
    %cst_71 = arith.constant 4.471500e-02 : f32
    %140 = vector.broadcast %cst_71 : f32 to vector<32x64xf32>
    %141 = arith.mulf %140, %139 : vector<32x64xf32>
    %142 = arith.addf %137, %141 : vector<32x64xf32>
    %cst_72 = arith.constant 0.797884583 : f32
    %143 = vector.broadcast %cst_72 : f32 to vector<32x64xf32>
    %144 = arith.mulf %143, %142 : vector<32x64xf32>
    %145 = math.tanh %144 : vector<32x64xf32>
    %cst_73 = arith.constant 1.000000e+00 : f32
    %146 = vector.broadcast %cst_73 : f32 to vector<32x64xf32>
    %147 = arith.addf %146, %145 : vector<32x64xf32>
    %cst_74 = arith.constant 5.000000e-01 : f32
    %148 = vector.broadcast %cst_74 : f32 to vector<32x64xf32>
    %149 = arith.mulf %148, %147 : vector<32x64xf32>
    %150 = arith.mulf %137, %149 : vector<32x64xf32>
    %cst_75 = arith.constant dense<0.000000e+00> : vector<32x32xf32>
    %151 = tpu.matmul %150, %128, %cst_75 {dimension_numbers = #tpu.dot_dimension_numbers<[1], [0], [0], [1], [0, 0, 1, 1], [], []>} : vector<32x64xf32>, vector<64x32xf32>, vector<32x32xf32> -> vector<32x32xf32>
    %152 = vector.broadcast %130 : vector<1x32xf32> to vector<32x32xf32>
    %153 = arith.addf %151, %152 : vector<32x32xf32>
    %154 = arith.addf %153, %122 : vector<32x32xf32>
    %cst_76 = arith.constant dense<0.000000e+00> : vector<32xf32>
    %155 = vector.multi_reduction <add>, %154, %cst_76 [1] : vector<32x32xf32> to vector<32xf32>
    %156 = vector.shape_cast %155 : vector<32xf32> to vector<32x1xf32>
    %cst_77 = arith.constant 3.200000e+01 : f32
    %157 = vector.broadcast %cst_77 : f32 to vector<32x1xf32>
    %158 = arith.divf %156, %157 : vector<32x1xf32>
    %159 = vector.broadcast %158 : vector<32x1xf32> to vector<32x32xf32>
    %160 = arith.subf %154, %159 : vector<32x32xf32>
    %161 = arith.mulf %160, %160 : vector<32x32xf32>
    %cst_78 = arith.constant dense<0.000000e+00> : vector<32xf32>
    %162 = vector.multi_reduction <add>, %161, %cst_78 [1] : vector<32x32xf32> to vector<32xf32>
    %163 = vector.shape_cast %162 : vector<32xf32> to vector<32x1xf32>
    %cst_79 = arith.constant 3.200000e+01 : f32
    %164 = vector.broadcast %cst_79 : f32 to vector<32x1xf32>
    %165 = arith.divf %163, %164 : vector<32x1xf32>
    %166 = vector.broadcast %158 : vector<32x1xf32> to vector<32x32xf32>
    %167 = arith.subf %154, %166 : vector<32x32xf32>
    %cst_80 = arith.constant 9.99999996E-13 : f32
    %168 = vector.broadcast %cst_80 : f32 to vector<32x1xf32>
    %169 = arith.addf %165, %168 : vector<32x1xf32>
    %170 = math.rsqrt %169 : vector<32x1xf32>
    %171 = vector.broadcast %170 : vector<32x1xf32> to vector<32x32xf32>
    %172 = arith.mulf %167, %171 : vector<32x32xf32>
    %173 = vector.broadcast %132 : vector<1x32xf32> to vector<32x32xf32>
    %174 = arith.mulf %172, %173 : vector<32x32xf32>
    %175 = vector.broadcast %134 : vector<1x32xf32> to vector<32x32xf32>
    %176 = arith.addf %174, %175 : vector<32x32xf32>
    %c0_81 = arith.constant 0 : index
    %c0_82 = arith.constant 0 : index
    %177 = vector.load %arg16[%c0_81, %c0_82] : memref<32x32xf32, #tpu.memory_space<vmem>>, vector<32x32xf32>
    tpu.vector_store %arg16[%c0_81, %c0_82], %176 {strides = array<i32>} : memref<32x32xf32, #tpu.memory_space<vmem>>, vector<32x32xf32>,
    %c0_83 = arith.constant 0 : index
    %c0_84 = arith.constant 0 : index
    %c0_85 = arith.constant 0 : index
    %178 = vector.load %arg15[%c0_83, %c0_84, %c0_85] : memref<1x32x32xf32, #tpu.memory_space<vmem>>, vector<1x32x32xf32>
    %179 = vector.shape_cast %178 : vector<1x32x32xf32> to vector<32x32xf32>
    %180 = vector.shape_cast %176 : vector<32x32xf32> to vector<1x32x32xf32>
    tpu.vector_store %arg15[%c0_83, %c0_84, %c0_85], %180 {strides = array<i32>} : memref<1x32x32xf32, #tpu.memory_space<vmem>>, vector<1x32x32xf32>,
    return
  }
  func.func @transform_0(%arg0: i32) -> (i32, i32) {
    %c0_i32 = arith.constant 0 : i32
    %c0_i32_0 = arith.constant 0 : i32
    %c0_i32_1 = arith.constant 0 : i32
    return %c0_i32, %c0_i32_0 : i32, i32
  }
  func.func @transform_1(%arg0: i32) -> (i32, i32) {
    %c0_i32 = arith.constant 0 : i32
    %c0_i32_0 = arith.constant 0 : i32
    %c0_i32_1 = arith.constant 0 : i32
    return %c0_i32, %c0_i32_0 : i32, i32
  }
  func.func @transform_2(%arg0: i32) -> (i32, i32, i32) {
    %c0_i32 = arith.constant 0 : i32
    %c0_i32_0 = arith.constant 0 : i32
    %c0_i32_1 = arith.constant 0 : i32
    return %arg0, %c0_i32, %c0_i32_0 : i32, i32, i32
  }
  func.func @transform_3(%arg0: i32) -> (i32, i32, i32) {
    %c0_i32 = arith.constant 0 : i32
    %c0_i32_0 = arith.constant 0 : i32
    %c0_i32_1 = arith.constant 0 : i32
    return %arg0, %c0_i32, %c0_i32_0 : i32, i32, i32
  }
  func.func @transform_4(%arg0: i32) -> (i32, i32, i32) {
    %c0_i32 = arith.constant 0 : i32
    %c0_i32_0 = arith.constant 0 : i32
    %c0_i32_1 = arith.constant 0 : i32
    return %arg0, %c0_i32, %c0_i32_0 : i32, i32, i32
  }
  func.func @transform_5(%arg0: i32) -> (i32, i32, i32) {
    %c0_i32 = arith.constant 0 : i32
    %c0_i32_0 = arith.constant 0 : i32
    %c0_i32_1 = arith.constant 0 : i32
    return %arg0, %c0_i32, %c0_i32_0 : i32, i32, i32
  }
  func.func @transform_6(%arg0: i32) -> (i32, i32, i32) {
    %c0_i32 = arith.constant 0 : i32
    %c0_i32_0 = arith.constant 0 : i32
    %c0_i32_1 = arith.constant 0 : i32
    return %arg0, %c0_i32, %c0_i32_0 : i32, i32, i32
  }
  func.func @transform_7(%arg0: i32) -> (i32, i32, i32) {
    %c0_i32 = arith.constant 0 : i32
    %c0_i32_0 = arith.constant 0 : i32
    %c0_i32_1 = arith.constant 0 : i32
    return %arg0, %c0_i32, %c0_i32_0 : i32, i32, i32
  }
  func.func @transform_8(%arg0: i32) -> (i32, i32, i32) {
    %c0_i32 = arith.constant 0 : i32
    %c0_i32_0 = arith.constant 0 : i32
    %c0_i32_1 = arith.constant 0 : i32
    return %arg0, %c0_i32, %c0_i32_0 : i32, i32, i32
  }
  func.func @transform_9(%arg0: i32) -> (i32, i32, i32) {
    %c0_i32 = arith.constant 0 : i32
    %c0_i32_0 = arith.constant 0 : i32
    %c0_i32_1 = arith.constant 0 : i32
    return %arg0, %c0_i32, %c0_i32_0 : i32, i32, i32
  }
  func.func @transform_10(%arg0: i32) -> (i32, i32, i32) {
    %c0_i32 = arith.constant 0 : i32
    %c0_i32_0 = arith.constant 0 : i32
    %c0_i32_1 = arith.constant 0 : i32
    return %arg0, %c0_i32, %c0_i32_0 : i32, i32, i32
  }
  func.func @transform_11(%arg0: i32) -> (i32, i32, i32) {
    %c0_i32 = arith.constant 0 : i32
    %c0_i32_0 = arith.constant 0 : i32
    %c0_i32_1 = arith.constant 0 : i32
    return %arg0, %c0_i32, %c0_i32_0 : i32, i32, i32
  }
  func.func @transform_12(%arg0: i32) -> (i32, i32, i32) {
    %c0_i32 = arith.constant 0 : i32
    %c0_i32_0 = arith.constant 0 : i32
    %c0_i32_1 = arith.constant 0 : i32
    return %arg0, %c0_i32, %c0_i32_0 : i32, i32, i32
  }
  func.func @transform_13(%arg0: i32) -> (i32, i32, i32) {
    %c0_i32 = arith.constant 0 : i32
    %c0_i32_0 = arith.constant 0 : i32
    %c0_i32_1 = arith.constant 0 : i32
    return %arg0, %c0_i32, %c0_i32_0 : i32, i32, i32
  }
  func.func @transform_14(%arg0: i32) -> (i32, i32, i32) {
    %c0_i32 = arith.constant 0 : i32
    %c0_i32_0 = arith.constant 0 : i32
    %c0_i32_1 = arith.constant 0 : i32
    return %arg0, %c0_i32, %c0_i32_0 : i32, i32, i32
  }
}

module attributes {stable_mosaic.version = 11 : i64} {
  func.func @_head_kernel(%arg0: i32, %arg1: memref<6x4xf32, #tpu.memory_space<smem>>, %arg2: memref<4x32x32xf32, #tpu.memory_space<vmem>>, %arg3: memref<32x32xf32, #tpu.memory_space<vmem>>, %arg4: memref<2x32xf32, #tpu.memory_space<vmem>>, %arg5: memref<1x32x96xf32, #tpu.memory_space<vmem>>, %arg6: memref<1x1x96xf32, #tpu.memory_space<vmem>>, %arg7: memref<1x32x32xf32, #tpu.memory_space<vmem>>, %arg8: memref<1x1x32xf32, #tpu.memory_space<vmem>>, %arg9: memref<1x1x32xf32, #tpu.memory_space<vmem>>, %arg10: memref<1x1x32xf32, #tpu.memory_space<vmem>>, %arg11: memref<1x2x32xf32, #tpu.memory_space<vmem>>) attributes {dimension_semantics = [#tpu.dimension_semantics<parallel>], iteration_bounds = array<i64: 6>, scalar_prefetch = 0 : i64, scratch_operands = 0 : i64, tpu.core_type = #tpu.core_type<tc>, window_params = [{transform_indices = @transform_0, window_bounds = array<i64: 6, 4>}, {pipeline_mode = #tpu.pipeline_mode<synchronous>, transform_indices = @transform_1, window_bounds = array<i64: 4, 32, 32>}, {pipeline_mode = #tpu.pipeline_mode<synchronous>, transform_indices = @transform_2, window_bounds = array<i64: 32, 32>}, {pipeline_mode = #tpu.pipeline_mode<synchronous>, transform_indices = @transform_3, window_bounds = array<i64: 2, 32>}, {transform_indices = @transform_4, window_bounds = array<i64: 1, 32, 96>}, {transform_indices = @transform_5, window_bounds = array<i64: 1, 1, 96>}, {transform_indices = @transform_6, window_bounds = array<i64: 1, 32, 32>}, {transform_indices = @transform_7, window_bounds = array<i64: 1, 1, 32>}, {transform_indices = @transform_8, window_bounds = array<i64: 1, 1, 32>}, {transform_indices = @transform_9, window_bounds = array<i64: 1, 1, 32>}, {transform_indices = @transform_10, window_bounds = array<i64: 1, 2, 32>}]} {
    %0 = arith.index_cast %arg0 : i32 to index
    %c0 = arith.constant 0 : index
    %1 = memref.load %arg1[%0, %c0] : memref<6x4xf32, #tpu.memory_space<smem>>
    %c0_0 = arith.constant 0 : index
    %c0_1 = arith.constant 0 : index
    %c0_2 = arith.constant 0 : index
    %2 = vector.load %arg2[%c0_0, %c0_1, %c0_2] : memref<4x32x32xf32, #tpu.memory_space<vmem>>, vector<1x32x32xf32>
    %3 = vector.shape_cast %2 : vector<1x32x32xf32> to vector<32x32xf32>
    %4 = vector.broadcast %1 : f32 to vector<32x32xf32>
    %5 = arith.mulf %4, %3 : vector<32x32xf32>
    %6 = arith.index_cast %arg0 : i32 to index
    %c1 = arith.constant 1 : index
    %7 = memref.load %arg1[%6, %c1] : memref<6x4xf32, #tpu.memory_space<smem>>
    %c1_3 = arith.constant 1 : index
    %c0_4 = arith.constant 0 : index
    %c0_5 = arith.constant 0 : index
    %8 = vector.load %arg2[%c1_3, %c0_4, %c0_5] : memref<4x32x32xf32, #tpu.memory_space<vmem>>, vector<1x32x32xf32>
    %9 = vector.shape_cast %8 : vector<1x32x32xf32> to vector<32x32xf32>
    %10 = vector.broadcast %7 : f32 to vector<32x32xf32>
    %11 = arith.mulf %10, %9 : vector<32x32xf32>
    %12 = arith.addf %5, %11 : vector<32x32xf32>
    %13 = arith.index_cast %arg0 : i32 to index
    %c2 = arith.constant 2 : index
    %14 = memref.load %arg1[%13, %c2] : memref<6x4xf32, #tpu.memory_space<smem>>
    %c2_6 = arith.constant 2 : index
    %c0_7 = arith.constant 0 : index
    %c0_8 = arith.constant 0 : index
    %15 = vector.load %arg2[%c2_6, %c0_7, %c0_8] : memref<4x32x32xf32, #tpu.memory_space<vmem>>, vector<1x32x32xf32>
    %16 = vector.shape_cast %15 : vector<1x32x32xf32> to vector<32x32xf32>
    %17 = vector.broadcast %14 : f32 to vector<32x32xf32>
    %18 = arith.mulf %17, %16 : vector<32x32xf32>
    %19 = arith.addf %12, %18 : vector<32x32xf32>
    %20 = arith.index_cast %arg0 : i32 to index
    %c3 = arith.constant 3 : index
    %21 = memref.load %arg1[%20, %c3] : memref<6x4xf32, #tpu.memory_space<smem>>
    %c3_9 = arith.constant 3 : index
    %c0_10 = arith.constant 0 : index
    %c0_11 = arith.constant 0 : index
    %22 = vector.load %arg2[%c3_9, %c0_10, %c0_11] : memref<4x32x32xf32, #tpu.memory_space<vmem>>, vector<1x32x32xf32>
    %23 = vector.shape_cast %22 : vector<1x32x32xf32> to vector<32x32xf32>
    %24 = vector.broadcast %21 : f32 to vector<32x32xf32>
    %25 = arith.mulf %24, %23 : vector<32x32xf32>
    %26 = arith.addf %19, %25 : vector<32x32xf32>
    %c0_12 = arith.constant 0 : index
    %c0_13 = arith.constant 0 : index
    %27 = vector.load %arg3[%c0_12, %c0_13] : memref<32x32xf32, #tpu.memory_space<vmem>>, vector<32x32xf32>
    %c0_14 = arith.constant 0 : index
    %c0_15 = arith.constant 0 : index
    %c0_16 = arith.constant 0 : index
    %28 = vector.load %arg5[%c0_14, %c0_15, %c0_16] : memref<1x32x96xf32, #tpu.memory_space<vmem>>, vector<1x32x96xf32>
    %29 = vector.shape_cast %28 : vector<1x32x96xf32> to vector<32x96xf32>
    %c0_17 = arith.constant 0 : index
    %c0_18 = arith.constant 0 : index
    %c0_19 = arith.constant 0 : index
    %30 = vector.load %arg6[%c0_17, %c0_18, %c0_19] : memref<1x1x96xf32, #tpu.memory_space<vmem>>, vector<1x1x96xf32>
    %31 = vector.shape_cast %30 : vector<1x1x96xf32> to vector<1x96xf32>
    %c0_20 = arith.constant 0 : index
    %c0_21 = arith.constant 0 : index
    %c0_22 = arith.constant 0 : index
    %32 = vector.load %arg7[%c0_20, %c0_21, %c0_22] : memref<1x32x32xf32, #tpu.memory_space<vmem>>, vector<1x32x32xf32>
    %33 = vector.shape_cast %32 : vector<1x32x32xf32> to vector<32x32xf32>
    %c0_23 = arith.constant 0 : index
    %c0_24 = arith.constant 0 : index
    %c0_25 = arith.constant 0 : index
    %34 = vector.load %arg8[%c0_23, %c0_24, %c0_25] : memref<1x1x32xf32, #tpu.memory_space<vmem>>, vector<1x1x32xf32>
    %35 = vector.shape_cast %34 : vector<1x1x32xf32> to vector<1x32xf32>
    %c0_26 = arith.constant 0 : index
    %c0_27 = arith.constant 0 : index
    %c0_28 = arith.constant 0 : index
    %36 = vector.load %arg9[%c0_26, %c0_27, %c0_28] : memref<1x1x32xf32, #tpu.memory_space<vmem>>, vector<1x1x32xf32>
    %37 = vector.shape_cast %36 : vector<1x1x32xf32> to vector<1x32xf32>
    %c0_29 = arith.constant 0 : index
    %c0_30 = arith.constant 0 : index
    %c0_31 = arith.constant 0 : index
    %38 = vector.load %arg10[%c0_29, %c0_30, %c0_31] : memref<1x1x32xf32, #tpu.memory_space<vmem>>, vector<1x1x32xf32>
    %39 = vector.shape_cast %38 : vector<1x1x32xf32> to vector<1x32xf32>
    %cst = arith.constant dense<0.000000e+00> : vector<32x96xf32>
    %40 = tpu.matmul %26, %29, %cst {dimension_numbers = #tpu.dot_dimension_numbers<[1], [0], [0], [1], [0, 0, 1, 1], [], []>} : vector<32x32xf32>, vector<32x96xf32>, vector<32x96xf32> -> vector<32x96xf32>
    %41 = vector.broadcast %31 : vector<1x96xf32> to vector<32x96xf32>
    %42 = arith.addf %40, %41 : vector<32x96xf32>
    %43 = vector.extract_strided_slice %42 {offsets = [0, 0], sizes = [32, 8], strides = [1, 1]} : vector<32x96xf32> to vector<32x8xf32>
    %44 = vector.extract_strided_slice %42 {offsets = [0, 32], sizes = [32, 8], strides = [1, 1]} : vector<32x96xf32> to vector<32x8xf32>
    %45 = vector.extract_strided_slice %42 {offsets = [0, 64], sizes = [32, 8], strides = [1, 1]} : vector<32x96xf32> to vector<32x8xf32>
    %cst_32 = arith.constant dense<0.000000e+00> : vector<32x32xf32>
    %46 = tpu.matmul %43, %44, %cst_32 {dimension_numbers = #tpu.dot_dimension_numbers<[1], [1], [0], [0], [0, 0, 1, 0], [], []>} : vector<32x8xf32>, vector<32x8xf32>, vector<32x32xf32> -> vector<32x32xf32>
    %cst_33 = arith.constant 0.353553385 : f32
    %47 = vector.broadcast %cst_33 : f32 to vector<32x32xf32>
    %48 = arith.mulf %46, %47 : vector<32x32xf32>
    %49 = arith.addf %48, %27 : vector<32x32xf32>
    %cst_34 = arith.constant dense<0xFF800000> : vector<32xf32>
    %50 = vector.multi_reduction <maximumf>, %49, %cst_34 [1] : vector<32x32xf32> to vector<32xf32>
    %cst_35 = arith.constant 0xFF800000 : f32
    %51 = vector.broadcast %cst_35 : f32 to vector<32xf32>
    %52 = arith.maximumf %51, %50 : vector<32xf32>
    %53 = vector.shape_cast %52 : vector<32xf32> to vector<32x1xf32>
    %54 = vector.broadcast %53 : vector<32x1xf32> to vector<32x32xf32>
    %55 = arith.subf %49, %54 : vector<32x32xf32>
    %56 = math.exp %55 : vector<32x32xf32>
    %cst_36 = arith.constant dense<0.000000e+00> : vector<32xf32>
    %57 = vector.multi_reduction <add>, %56, %cst_36 [1] : vector<32x32xf32> to vector<32xf32>
    %58 = vector.shape_cast %57 : vector<32xf32> to vector<32x1xf32>
    %59 = vector.broadcast %58 : vector<32x1xf32> to vector<32x32xf32>
    %60 = arith.divf %56, %59 : vector<32x32xf32>
    %cst_37 = arith.constant dense<0.000000e+00> : vector<32x8xf32>
    %61 = tpu.matmul %60, %45, %cst_37 {dimension_numbers = #tpu.dot_dimension_numbers<[1], [0], [0], [1], [0, 0, 1, 1], [], []>} : vector<32x32xf32>, vector<32x8xf32>, vector<32x8xf32> -> vector<32x8xf32>
    %62 = vector.extract_strided_slice %42 {offsets = [0, 8], sizes = [32, 8], strides = [1, 1]} : vector<32x96xf32> to vector<32x8xf32>
    %63 = vector.extract_strided_slice %42 {offsets = [0, 40], sizes = [32, 8], strides = [1, 1]} : vector<32x96xf32> to vector<32x8xf32>
    %64 = vector.extract_strided_slice %42 {offsets = [0, 72], sizes = [32, 8], strides = [1, 1]} : vector<32x96xf32> to vector<32x8xf32>
    %cst_38 = arith.constant dense<0.000000e+00> : vector<32x32xf32>
    %65 = tpu.matmul %62, %63, %cst_38 {dimension_numbers = #tpu.dot_dimension_numbers<[1], [1], [0], [0], [0, 0, 1, 0], [], []>} : vector<32x8xf32>, vector<32x8xf32>, vector<32x32xf32> -> vector<32x32xf32>
    %cst_39 = arith.constant 0.353553385 : f32
    %66 = vector.broadcast %cst_39 : f32 to vector<32x32xf32>
    %67 = arith.mulf %65, %66 : vector<32x32xf32>
    %68 = arith.addf %67, %27 : vector<32x32xf32>
    %cst_40 = arith.constant dense<0xFF800000> : vector<32xf32>
    %69 = vector.multi_reduction <maximumf>, %68, %cst_40 [1] : vector<32x32xf32> to vector<32xf32>
    %cst_41 = arith.constant 0xFF800000 : f32
    %70 = vector.broadcast %cst_41 : f32 to vector<32xf32>
    %71 = arith.maximumf %70, %69 : vector<32xf32>
    %72 = vector.shape_cast %71 : vector<32xf32> to vector<32x1xf32>
    %73 = vector.broadcast %72 : vector<32x1xf32> to vector<32x32xf32>
    %74 = arith.subf %68, %73 : vector<32x32xf32>
    %75 = math.exp %74 : vector<32x32xf32>
    %cst_42 = arith.constant dense<0.000000e+00> : vector<32xf32>
    %76 = vector.multi_reduction <add>, %75, %cst_42 [1] : vector<32x32xf32> to vector<32xf32>
    %77 = vector.shape_cast %76 : vector<32xf32> to vector<32x1xf32>
    %78 = vector.broadcast %77 : vector<32x1xf32> to vector<32x32xf32>
    %79 = arith.divf %75, %78 : vector<32x32xf32>
    %cst_43 = arith.constant dense<0.000000e+00> : vector<32x8xf32>
    %80 = tpu.matmul %79, %64, %cst_43 {dimension_numbers = #tpu.dot_dimension_numbers<[1], [0], [0], [1], [0, 0, 1, 1], [], []>} : vector<32x32xf32>, vector<32x8xf32>, vector<32x8xf32> -> vector<32x8xf32>
    %81 = vector.extract_strided_slice %42 {offsets = [0, 16], sizes = [32, 8], strides = [1, 1]} : vector<32x96xf32> to vector<32x8xf32>
    %82 = vector.extract_strided_slice %42 {offsets = [0, 48], sizes = [32, 8], strides = [1, 1]} : vector<32x96xf32> to vector<32x8xf32>
    %83 = vector.extract_strided_slice %42 {offsets = [0, 80], sizes = [32, 8], strides = [1, 1]} : vector<32x96xf32> to vector<32x8xf32>
    %cst_44 = arith.constant dense<0.000000e+00> : vector<32x32xf32>
    %84 = tpu.matmul %81, %82, %cst_44 {dimension_numbers = #tpu.dot_dimension_numbers<[1], [1], [0], [0], [0, 0, 1, 0], [], []>} : vector<32x8xf32>, vector<32x8xf32>, vector<32x32xf32> -> vector<32x32xf32>
    %cst_45 = arith.constant 0.353553385 : f32
    %85 = vector.broadcast %cst_45 : f32 to vector<32x32xf32>
    %86 = arith.mulf %84, %85 : vector<32x32xf32>
    %87 = arith.addf %86, %27 : vector<32x32xf32>
    %cst_46 = arith.constant dense<0xFF800000> : vector<32xf32>
    %88 = vector.multi_reduction <maximumf>, %87, %cst_46 [1] : vector<32x32xf32> to vector<32xf32>
    %cst_47 = arith.constant 0xFF800000 : f32
    %89 = vector.broadcast %cst_47 : f32 to vector<32xf32>
    %90 = arith.maximumf %89, %88 : vector<32xf32>
    %91 = vector.shape_cast %90 : vector<32xf32> to vector<32x1xf32>
    %92 = vector.broadcast %91 : vector<32x1xf32> to vector<32x32xf32>
    %93 = arith.subf %87, %92 : vector<32x32xf32>
    %94 = math.exp %93 : vector<32x32xf32>
    %cst_48 = arith.constant dense<0.000000e+00> : vector<32xf32>
    %95 = vector.multi_reduction <add>, %94, %cst_48 [1] : vector<32x32xf32> to vector<32xf32>
    %96 = vector.shape_cast %95 : vector<32xf32> to vector<32x1xf32>
    %97 = vector.broadcast %96 : vector<32x1xf32> to vector<32x32xf32>
    %98 = arith.divf %94, %97 : vector<32x32xf32>
    %cst_49 = arith.constant dense<0.000000e+00> : vector<32x8xf32>
    %99 = tpu.matmul %98, %83, %cst_49 {dimension_numbers = #tpu.dot_dimension_numbers<[1], [0], [0], [1], [0, 0, 1, 1], [], []>} : vector<32x32xf32>, vector<32x8xf32>, vector<32x8xf32> -> vector<32x8xf32>
    %100 = vector.extract_strided_slice %42 {offsets = [0, 24], sizes = [32, 8], strides = [1, 1]} : vector<32x96xf32> to vector<32x8xf32>
    %101 = vector.extract_strided_slice %42 {offsets = [0, 56], sizes = [32, 8], strides = [1, 1]} : vector<32x96xf32> to vector<32x8xf32>
    %102 = vector.extract_strided_slice %42 {offsets = [0, 88], sizes = [32, 8], strides = [1, 1]} : vector<32x96xf32> to vector<32x8xf32>
    %cst_50 = arith.constant dense<0.000000e+00> : vector<32x32xf32>
    %103 = tpu.matmul %100, %101, %cst_50 {dimension_numbers = #tpu.dot_dimension_numbers<[1], [1], [0], [0], [0, 0, 1, 0], [], []>} : vector<32x8xf32>, vector<32x8xf32>, vector<32x32xf32> -> vector<32x32xf32>
    %cst_51 = arith.constant 0.353553385 : f32
    %104 = vector.broadcast %cst_51 : f32 to vector<32x32xf32>
    %105 = arith.mulf %103, %104 : vector<32x32xf32>
    %106 = arith.addf %105, %27 : vector<32x32xf32>
    %cst_52 = arith.constant dense<0xFF800000> : vector<32xf32>
    %107 = vector.multi_reduction <maximumf>, %106, %cst_52 [1] : vector<32x32xf32> to vector<32xf32>
    %cst_53 = arith.constant 0xFF800000 : f32
    %108 = vector.broadcast %cst_53 : f32 to vector<32xf32>
    %109 = arith.maximumf %108, %107 : vector<32xf32>
    %110 = vector.shape_cast %109 : vector<32xf32> to vector<32x1xf32>
    %111 = vector.broadcast %110 : vector<32x1xf32> to vector<32x32xf32>
    %112 = arith.subf %106, %111 : vector<32x32xf32>
    %113 = math.exp %112 : vector<32x32xf32>
    %cst_54 = arith.constant dense<0.000000e+00> : vector<32xf32>
    %114 = vector.multi_reduction <add>, %113, %cst_54 [1] : vector<32x32xf32> to vector<32xf32>
    %115 = vector.shape_cast %114 : vector<32xf32> to vector<32x1xf32>
    %116 = vector.broadcast %115 : vector<32x1xf32> to vector<32x32xf32>
    %117 = arith.divf %113, %116 : vector<32x32xf32>
    %cst_55 = arith.constant dense<0.000000e+00> : vector<32x8xf32>
    %118 = tpu.matmul %117, %102, %cst_55 {dimension_numbers = #tpu.dot_dimension_numbers<[1], [0], [0], [1], [0, 0, 1, 1], [], []>} : vector<32x32xf32>, vector<32x8xf32>, vector<32x8xf32> -> vector<32x8xf32>
    %119 = tpu.concatenate %61, %80, %99, %118 in 1 : vector<32x8xf32>, vector<32x8xf32>, vector<32x8xf32>, vector<32x8xf32> -> vector<32x32xf32>
    %cst_56 = arith.constant dense<0.000000e+00> : vector<32x32xf32>
    %120 = tpu.matmul %119, %33, %cst_56 {dimension_numbers = #tpu.dot_dimension_numbers<[1], [0], [0], [1], [0, 0, 1, 1], [], []>} : vector<32x32xf32>, vector<32x32xf32>, vector<32x32xf32> -> vector<32x32xf32>
    %121 = vector.broadcast %35 : vector<1x32xf32> to vector<32x32xf32>
    %122 = arith.addf %120, %121 : vector<32x32xf32>
    %123 = arith.addf %122, %26 : vector<32x32xf32>
    %cst_57 = arith.constant dense<0.000000e+00> : vector<32xf32>
    %124 = vector.multi_reduction <add>, %123, %cst_57 [1] : vector<32x32xf32> to vector<32xf32>
    %125 = vector.shape_cast %124 : vector<32xf32> to vector<32x1xf32>
    %cst_58 = arith.constant 3.200000e+01 : f32
    %126 = vector.broadcast %cst_58 : f32 to vector<32x1xf32>
    %127 = arith.divf %125, %126 : vector<32x1xf32>
    %128 = vector.broadcast %127 : vector<32x1xf32> to vector<32x32xf32>
    %129 = arith.subf %123, %128 : vector<32x32xf32>
    %130 = arith.mulf %129, %129 : vector<32x32xf32>
    %cst_59 = arith.constant dense<0.000000e+00> : vector<32xf32>
    %131 = vector.multi_reduction <add>, %130, %cst_59 [1] : vector<32x32xf32> to vector<32xf32>
    %132 = vector.shape_cast %131 : vector<32xf32> to vector<32x1xf32>
    %cst_60 = arith.constant 3.200000e+01 : f32
    %133 = vector.broadcast %cst_60 : f32 to vector<32x1xf32>
    %134 = arith.divf %132, %133 : vector<32x1xf32>
    %135 = vector.broadcast %127 : vector<32x1xf32> to vector<32x32xf32>
    %136 = arith.subf %123, %135 : vector<32x32xf32>
    %cst_61 = arith.constant 9.99999996E-13 : f32
    %137 = vector.broadcast %cst_61 : f32 to vector<32x1xf32>
    %138 = arith.addf %134, %137 : vector<32x1xf32>
    %139 = math.rsqrt %138 : vector<32x1xf32>
    %140 = vector.broadcast %139 : vector<32x1xf32> to vector<32x32xf32>
    %141 = arith.mulf %136, %140 : vector<32x32xf32>
    %142 = vector.broadcast %37 : vector<1x32xf32> to vector<32x32xf32>
    %143 = arith.mulf %141, %142 : vector<32x32xf32>
    %144 = vector.broadcast %39 : vector<1x32xf32> to vector<32x32xf32>
    %145 = arith.addf %143, %144 : vector<32x32xf32>
    %c0_62 = arith.constant 0 : index
    %c0_63 = arith.constant 0 : index
    %146 = vector.load %arg4[%c0_62, %c0_63] : memref<2x32xf32, #tpu.memory_space<vmem>>, vector<2x32xf32>
    %cst_64 = arith.constant dense<0.000000e+00> : vector<2x32xf32>
    %147 = tpu.matmul %146, %145, %cst_64 {dimension_numbers = #tpu.dot_dimension_numbers<[1], [0], [0], [1], [0, 0, 1, 1], [], []>} : vector<2x32xf32>, vector<32x32xf32>, vector<2x32xf32> -> vector<2x32xf32>
    %cst_65 = arith.constant dense<0.000000e+00> : vector<2xf32>
    %148 = vector.multi_reduction <add>, %146, %cst_65 [1] : vector<2x32xf32> to vector<2xf32>
    %149 = vector.shape_cast %148 : vector<2xf32> to vector<2x1xf32>
    %cst_66 = arith.constant 9.99999971E-10 : f32
    %150 = vector.broadcast %cst_66 : f32 to vector<2x1xf32>
    %151 = arith.maximumf %149, %150 : vector<2x1xf32>
    %152 = vector.broadcast %151 : vector<2x1xf32> to vector<2x32xf32>
    %153 = arith.divf %147, %152 : vector<2x32xf32>
    %c0_67 = arith.constant 0 : index
    %c0_68 = arith.constant 0 : index
    %c0_69 = arith.constant 0 : index
    %154 = vector.load %arg11[%c0_67, %c0_68, %c0_69] : memref<1x2x32xf32, #tpu.memory_space<vmem>>, vector<1x2x32xf32>
    %155 = vector.shape_cast %154 : vector<1x2x32xf32> to vector<2x32xf32>
    %156 = vector.shape_cast %153 : vector<2x32xf32> to vector<1x2x32xf32>
    tpu.vector_store %arg11[%c0_67, %c0_68, %c0_69], %156 {strides = array<i32>} : memref<1x2x32xf32, #tpu.memory_space<vmem>>, vector<1x2x32xf32>,
    return
  }
  func.func @transform_0(%arg0: i32) -> (i32, i32) {
    %c0_i32 = arith.constant 0 : i32
    %c0_i32_0 = arith.constant 0 : i32
    %c0_i32_1 = arith.constant 0 : i32
    return %c0_i32, %c0_i32_0 : i32, i32
  }
  func.func @transform_1(%arg0: i32) -> (i32, i32, i32) {
    %c0_i32 = arith.constant 0 : i32
    %c0_i32_0 = arith.constant 0 : i32
    %c0_i32_1 = arith.constant 0 : i32
    %c0_i32_2 = arith.constant 0 : i32
    return %c0_i32, %c0_i32_0, %c0_i32_1 : i32, i32, i32
  }
  func.func @transform_2(%arg0: i32) -> (i32, i32) {
    %c0_i32 = arith.constant 0 : i32
    %c0_i32_0 = arith.constant 0 : i32
    %c0_i32_1 = arith.constant 0 : i32
    return %c0_i32, %c0_i32_0 : i32, i32
  }
  func.func @transform_3(%arg0: i32) -> (i32, i32) {
    %c0_i32 = arith.constant 0 : i32
    %c0_i32_0 = arith.constant 0 : i32
    %c0_i32_1 = arith.constant 0 : i32
    return %c0_i32, %c0_i32_0 : i32, i32
  }
  func.func @transform_4(%arg0: i32) -> (i32, i32, i32) {
    %c0_i32 = arith.constant 0 : i32
    %c0_i32_0 = arith.constant 0 : i32
    %c0_i32_1 = arith.constant 0 : i32
    return %arg0, %c0_i32, %c0_i32_0 : i32, i32, i32
  }
  func.func @transform_5(%arg0: i32) -> (i32, i32, i32) {
    %c0_i32 = arith.constant 0 : i32
    %c0_i32_0 = arith.constant 0 : i32
    %c0_i32_1 = arith.constant 0 : i32
    return %arg0, %c0_i32, %c0_i32_0 : i32, i32, i32
  }
  func.func @transform_6(%arg0: i32) -> (i32, i32, i32) {
    %c0_i32 = arith.constant 0 : i32
    %c0_i32_0 = arith.constant 0 : i32
    %c0_i32_1 = arith.constant 0 : i32
    return %arg0, %c0_i32, %c0_i32_0 : i32, i32, i32
  }
  func.func @transform_7(%arg0: i32) -> (i32, i32, i32) {
    %c0_i32 = arith.constant 0 : i32
    %c0_i32_0 = arith.constant 0 : i32
    %c0_i32_1 = arith.constant 0 : i32
    return %arg0, %c0_i32, %c0_i32_0 : i32, i32, i32
  }
  func.func @transform_8(%arg0: i32) -> (i32, i32, i32) {
    %c0_i32 = arith.constant 0 : i32
    %c0_i32_0 = arith.constant 0 : i32
    %c0_i32_1 = arith.constant 0 : i32
    return %arg0, %c0_i32, %c0_i32_0 : i32, i32, i32
  }
  func.func @transform_9(%arg0: i32) -> (i32, i32, i32) {
    %c0_i32 = arith.constant 0 : i32
    %c0_i32_0 = arith.constant 0 : i32
    %c0_i32_1 = arith.constant 0 : i32
    return %arg0, %c0_i32, %c0_i32_0 : i32, i32, i32
  }
  func.func @transform_10(%arg0: i32) -> (i32, i32, i32) {
    %c0_i32 = arith.constant 0 : i32
    %c0_i32_0 = arith.constant 0 : i32
    %c0_i32_1 = arith.constant 0 : i32
    return %arg0, %c0_i32, %c0_i32_0 : i32, i32, i32
  }
}

</mosaic_0001>

<llo_original>
// kernel: eq.36
$region0: #{eq.36}
  %s0 = inlined_call_operand.vmem [shape: s32[6,2], index: 0, kind: input, shape index: {}]
  %s1 = inlined_call_operand.vmem [shape: s32[12], index: 1, kind: output, shape index: {}]
  $region1: #{eq.36} parent=0
    #allocation0 [shape = 'u8[4096]{0}', space=vmem, size = 0x1000, scoped, tag = 'scoped mem for output reshape']
    %v2 = vld [vmem:[%s0] sm:$0x1]
    %vm3 = vcmask 15360
    %4 = vst.msk [vmem:[#allocation0] sm:$0x1] %vm3, %v2
    %s5 = scalar_lea.vmem %s0, 5
    %v6 = vld [vmem:[%s5] sm:$0x1]
    %7 = vrot.lane.b32.xlu0 %v6, 10
    %v8 = vpop.permute.xlu0 %7
    %vm9 = vcmask 97360
    %10 = vst.msk [vmem:[#allocation0] sm:$0x1] %vm9, %v8
    %s11 = scalar_lea.vmem %s0, 4
    %v12 = vld [vmem:[%s11] sm:$0x1]
    %13 = vrot.lane.b32.xlu0 %v12, 8
    %v14 = vpop.permute.xlu0 %13
    %vm15 = vcmask 80960
    %16 = vst.msk [vmem:[#allocation0] sm:$0x1] %vm15, %v14
    %s17 = scalar_lea.vmem %s0, 3
    %v18 = vld [vmem:[%s17] sm:$0x1]
    %19 = vrot.lane.b32.xlu0 %v18, 6
    %v20 = vpop.permute.xlu0 %19
    %vm21 = vcmask 64560
    %22 = vst.msk [vmem:[#allocation0] sm:$0x1] %vm21, %v20
    %s23 = scalar_lea.vmem %s0, 2
    %v24 = vld [vmem:[%s23] sm:$0x1]
    %25 = vrot.lane.b32.xlu0 %v24, 4
    %v26 = vpop.permute.xlu0 %25
    %vm27 = vcmask 48160
    %28 = vst.msk [vmem:[#allocation0] sm:$0x1] %vm27, %v26
    %s29 = scalar_lea.vmem %s0, 1
    %v30 = vld [vmem:[%s29] sm:$0x1]
    %31 = vrot.lane.b32.xlu0 %v30, 2
    %v32 = vpop.permute.xlu0 %31
    %vm33 = vcmask 31760
    %34 = vst.msk [vmem:[#allocation0] sm:$0x1] %vm33, %v32
    %s36 = sshll.u32 1, 1
    %s37 = ssub.s32 %s36, 1
    %v39 = vld [vmem:[#allocation0] sm:%s37]
    %s40 = sshll.u32 1, 1
    %s41 = ssub.s32 %s40, 1
    %42 = vst [vmem:[%s1] sm:%s41] %v39

// kernel: forward.5
$region0: #{forward.5}
  #allocation0 [shape = 'u32[]', space=smem, size = 0x4, offset = 0x4, fixed_abs, tag = 'smem constant byte address 0x4 - core index']
  #allocation1 [shape = 'u32[144,128]{1,0:T(1,128)}', space=vmem, size = 0x12000, scoped, tag = 'internal scratch']
  %s0 = inlined_call_operand.vmem [shape: f32[12,32], index: 0, kind: input, shape index: {}]
  %s1 = inlined_call_operand.vmem [shape: f32[12,12], index: 1, kind: input, shape index: {}]
  %s2 = inlined_call_operand.vmem [shape: f32[32,96], index: 2, kind: input, shape index: {}]
  %s3 = inlined_call_operand.vmem [shape: f32[1,96], index: 3, kind: input, shape index: {}]
  %s4 = inlined_call_operand.vmem [shape: f32[32,32], index: 4, kind: input, shape index: {}]
  %s5 = inlined_call_operand.vmem [shape: f32[1,32], index: 5, kind: input, shape index: {}]
  %s6 = inlined_call_operand.vmem [shape: f32[1,32], index: 6, kind: input, shape index: {}]
  %s7 = inlined_call_operand.vmem [shape: f32[1,32], index: 7, kind: input, shape index: {}]
  %s8 = inlined_call_operand.vmem [shape: f32[192,6], index: 8, kind: input, shape index: {}]
  %s9 = inlined_call_operand.vmem [shape: f32[1,6], index: 9, kind: input, shape index: {}]
  %s10 = inlined_call_operand.vmem [shape: f32[2,6], index: 10, kind: output, shape index: {}]
  %s11 = sld [smem:[#allocation0]]
  $region50: #{forward.5} parent=0
    _
  %s13 = ssub.s32 1, %s11
  %s14 = scalar_select 0, %s13, %s11
  // Predicated region
  $region2: #{forward.5} parent=0 // pred_check
    _
  $region3: #{forward.5} parent=0 // pred_check_branch
    %16 = sbr.rel (0) target = $region5
  $region4: #{forward.5} parent=0 // pred_region
    _
  $region5: #{forward.5} parent=0 // pred_fallthru
    _
  // Predicated region
  $region6: #{forward.5} parent=0 // pred_check
    _
  $region7: #{forward.5} parent=0 // pred_check_branch
    %18 = sbr.rel (0) target = $region9
  $region8: #{forward.5} parent=0 // pred_region
    _
  $region9: #{forward.5} parent=0 // pred_fallthru
    _
  // Predicated region
  $region10: #{forward.5} parent=0 // pred_check
    _
  $region11: #{forward.5} parent=0 // pred_check_branch
    %20 = sbr.rel (0) target = $region13
  $region12: #{forward.5} parent=0 // pred_region
    _
  $region13: #{forward.5} parent=0 // pred_fallthru
    _
  // Predicated region
  $region14: #{forward.5} parent=0 // pred_check
    _
  $region15: #{forward.5} parent=0 // pred_check_branch
    %22 = sbr.rel (0) target = $region17
  $region16: #{forward.5} parent=0 // pred_region
    _
  $region17: #{forward.5} parent=0 // pred_fallthru
    _
  // Predicated region
  $region18: #{forward.5} parent=0 // pred_check
    _
  $region19: #{forward.5} parent=0 // pred_check_branch
    %24 = sbr.rel (0) target = $region21
  $region20: #{forward.5} parent=0 // pred_region
    _
  $region21: #{forward.5} parent=0 // pred_fallthru
    _
  // Predicated region
  $region22: #{forward.5} parent=0 // pred_check
    _
  $region23: #{forward.5} parent=0 // pred_check_branch
    %26 = sbr.rel (0) target = $region25
  $region24: #{forward.5} parent=0 // pred_region
    _
  $region25: #{forward.5} parent=0 // pred_fallthru
    _
  // Predicated region
  $region26: #{forward.5} parent=0 // pred_check
    _
  $region27: #{forward.5} parent=0 // pred_check_branch
    %28 = sbr.rel (0) target = $region29
  $region28: #{forward.5} parent=0 // pred_region
    _
  $region29: #{forward.5} parent=0 // pred_fallthru
    _
  // Predicated region
  $region30: #{forward.5} parent=0 // pred_check
    _
  $region31: #{forward.5} parent=0 // pred_check_branch
    %30 = sbr.rel (0) target = $region33
  $region32: #{forward.5} parent=0 // pred_region
    _
  $region33: #{forward.5} parent=0 // pred_fallthru
    _
  // Predicated region
  $region34: #{forward.5} parent=0 // pred_check
    _
  $region35: #{forward.5} parent=0 // pred_check_branch
    %32 = sbr.rel (0) target = $region37
  $region36: #{forward.5} parent=0 // pred_region
    _
  $region37: #{forward.5} parent=0 // pred_fallthru
    _
  // Predicated region
  $region38: #{forward.5} parent=0 // pred_check
    _
  $region39: #{forward.5} parent=0 // pred_check_branch
    %34 = sbr.rel (0) target = $region41
  $region40: #{forward.5} parent=0 // pred_region
    _
  $region41: #{forward.5} parent=0 // pred_fallthru
    _
  %v35 = vld [vmem:[%s0] sm:$0xff]
  %v36 = vld [vmem:[%s0 + $0x8] sm:$0xf]
  %v37 = vld [vmem:[%s1] sm:$0xff]
  %v38 = vld [vmem:[%s1 + $0x8] sm:$0xf]
  %v39 = vld [vmem:[%s2] sm:$0xff]
  %v40 = vld [vmem:[%s2 + $0x8] sm:$0xff]
  %v41 = vld [vmem:[%s2 + $0x10] sm:$0xff]
  %v42 = vld [vmem:[%s2 + $0x18] sm:$0xff]
  %v43 = vld [vmem:[%s3] sm:$0x1]
  %v44 = vld [vmem:[%s4] sm:$0xff]
  %v45 = vld [vmem:[%s4 + $0x8] sm:$0xff]
  %v46 = vld [vmem:[%s4 + $0x10] sm:$0xff]
  %v47 = vld [vmem:[%s4 + $0x18] sm:$0xff]
  %v48 = vld [vmem:[%s5] sm:$0x1]
  %v49 = vld [vmem:[%s6] sm:$0x1]
  %v50 = vld [vmem:[%s7] sm:$0x1]
  %v52 = vlaneseq
  %v53 = vshrl.u32 %v52, 7
  %v54 = vsub.s32 0, %v53
  %v55 = vrot.slane %v43, %v54
  %vm57 = vcmask 261120
  %v59 = vsel %vm57, %v35, 0
  %v62 = vsel %vm57, %v36, 0
  %64 = vmatprep.subr.mxu0 0.0
  %65 = vmatpush1.msra.mxu0 0.0
  %66 = vmatprep.subr.mxu0 0.0
  %67 = vmatpush1.msra.mxu0 0.0
  %68 = vmatprep.subr.mxu0 0.0
  %69 = vmatpush1.msra.mxu0 0.0
  %70 = vmatprep.subr.mxu0 0.0
  %71 = vmatpush1.msra.mxu0 0.0
  %72 = vmatprep.subr.mxu0 0.0
  %73 = vmatpush1.msra.mxu0 0.0
  %74 = vmatprep.subr.mxu0 0.0
  %75 = vmatpush1.msra.mxu0 0.0
  %76 = vmatprep.subr.mxu0 0.0
  %77 = vmatpush1.msra.mxu0 0.0
  %78 = vmatprep.subr.mxu0 0.0
  %79 = vmatpush1.msra.mxu0 0.0
  %80 = vmatprep.subr.mxu0 0.0
  %81 = vmatpush1.msra.mxu0 0.0
  %82 = vmatprep.subr.mxu0 0.0
  %83 = vmatpush1.msra.mxu0 0.0
  %84 = vmatprep.subr.mxu0 0.0
  %85 = vmatpush1.msra.mxu0 0.0
  %86 = vmatprep.subr.mxu0 0.0
  %87 = vmatpush1.msra.mxu0 0.0
  %88 = vmatprep.subr.mxu0 0.0
  %89 = vmatpush1.msra.mxu0 %v42
  %90 = vmatprep.subr.mxu0 0.0
  %91 = vmatpush1.msra.mxu0 %v41
  %92 = vmatprep.subr.mxu0 0.0
  %93 = vmatpush1.msra.mxu0 %v40
  %94 = vmatprep.subr.mxu0 0.0
  %95 = vmatpush1.msra.mxu0 %v39
  %96 = vmatprep.subr.mxu0 0.0
  %97 = vmatpush2.msra.mxu0 0.0
  %98 = vmatprep.subr.mxu0 0.0
  %99 = vmatpush2.msra.mxu0 0.0
  %100 = vmatprep.subr.mxu0 0.0
  %101 = vmatpush2.msra.mxu0 0.0
  %102 = vmatprep.subr.mxu0 0.0
  %103 = vmatpush2.msra.mxu0 0.0
  %104 = vmatprep.subr.mxu0 0.0
  %105 = vmatpush2.msra.mxu0 0.0
  %106 = vmatprep.subr.mxu0 0.0
  %107 = vmatpush2.msra.mxu0 0.0
  %108 = vmatprep.subr.mxu0 0.0
  %109 = vmatpush2.msra.mxu0 0.0
  %110 = vmatprep.subr.mxu0 0.0
  %111 = vmatpush2.msra.mxu0 0.0
  %112 = vmatprep.subr.mxu0 0.0
  %113 = vmatpush2.msra.mxu0 0.0
  %114 = vmatprep.subr.mxu0 0.0
  %115 = vmatpush2.msra.mxu0 0.0
  %116 = vmatprep.subr.mxu0 0.0
  %117 = vmatpush2.msra.mxu0 0.0
  %118 = vmatprep.subr.mxu0 0.0
  %119 = vmatpush2.msra.mxu0 0.0
  %120 = vmatprep.subr.mxu0 0.0
  %121 = vmatpush2.msra.mxu0 0.0
  %122 = vmatprep.subr.mxu0 0.0
  %123 = vmatpush2.msra.mxu0 0.0
  %124 = vmatprep.subr.mxu0 0.0
  %125 = vmatpush2.msra.mxu0 0.0
  %126 = vmatprep.subr.mxu0 0.0
  %127 = vmatpush2.msra.mxu0 0.0
  %128 = vmatprep.mubr.f32.mxu0 0.0
  %129 = vmatmul.mubr.f32.gmra.mxu0 %v59
  %v130 = vpop.f32.mrf.mxu0
  %v131 = vadd.f32 %v55, %v130
  %v132 = vpop.f32.mrf.mxu0
  %133 = vmatprep.mubr.f32.mxu0 0.0
  %134 = vmatmul.mubr.f32.gmra.mxu0 %v62
  %v135 = vpop.f32.mrf.mxu0
  %v136 = vadd.f32 %v55, %v135
  %v137 = vpop.f32.mrf.mxu0
  %138 = vdwg.mxu0
  %141 = vrot.lane.b32.xlu0 %v131, 96
  %v142 = vpop.permute.xlu0 %141
  %143 = vrot.lane.b32.xlu0 %v136, 96
  %v144 = vpop.permute.xlu0 %143
  %vm145 = vcmask 64512
  %v146 = vsel %vm145, %v131, 0
  %v148 = vsel %vm145, %v136, 0
  %v150 = vsel %vm145, %v142, 0
  %v152 = vsel %vm145, %v144, 0
  %154 = vmatprep.subr.mxu0 0.0
  %155 = vmatpush1.xpose.msra.mxu0 0.0
  %156 = vmatprep.subr.mxu0 0.0
  %157 = vmatpush1.xpose.msra.mxu0 0.0
  %158 = vmatprep.subr.mxu0 0.0
  %159 = vmatpush1.xpose.msra.mxu0 0.0
  %160 = vmatprep.subr.mxu0 0.0
  %161 = vmatpush1.xpose.msra.mxu0 0.0
  %162 = vmatprep.subr.mxu0 0.0
  %163 = vmatpush1.xpose.msra.mxu0 0.0
  %164 = vmatprep.subr.mxu0 0.0
  %165 = vmatpush1.xpose.msra.mxu0 0.0
  %166 = vmatprep.subr.mxu0 0.0
  %167 = vmatpush1.xpose.msra.mxu0 0.0
  %168 = vmatprep.subr.mxu0 0.0
  %169 = vmatpush1.xpose.msra.mxu0 0.0
  %170 = vmatprep.subr.mxu0 0.0
  %171 = vmatpush1.xpose.msra.mxu0 0.0
  %172 = vmatprep.subr.mxu0 0.0
  %173 = vmatpush1.xpose.msra.mxu0 0.0
  %174 = vmatprep.subr.mxu0 0.0
  %175 = vmatpush1.xpose.msra.mxu0 0.0
  %176 = vmatprep.subr.mxu0 0.0
  %177 = vmatpush1.xpose.msra.mxu0 0.0
  %178 = vmatprep.subr.mxu0 0.0
  %179 = vmatpush1.xpose.msra.mxu0 0.0
  %180 = vmatprep.subr.mxu0 0.0
  %181 = vmatpush1.xpose.msra.mxu0 0.0
  %182 = vmatprep.subr.mxu0 0.0
  %183 = vmatpush1.xpose.msra.mxu0 %v152
  %184 = vmatprep.subr.mxu0 0.0
  %185 = vmatpush1.xpose.msra.mxu0 %v150
  %186 = vmatprep.subr.mxu0 0.0
  %187 = vmatpush2.xpose.msra.mxu0 0.0
  %188 = vmatprep.subr.mxu0 0.0
  %189 = vmatpush2.xpose.msra.mxu0 0.0
  %190 = vmatprep.subr.mxu0 0.0
  %191 = vmatpush2.xpose.msra.mxu0 0.0
  %192 = vmatprep.subr.mxu0 0.0
  %193 = vmatpush2.xpose.msra.mxu0 0.0
  %194 = vmatprep.subr.mxu0 0.0
  %195 = vmatpush2.xpose.msra.mxu0 0.0
  %196 = vmatprep.subr.mxu0 0.0
  %197 = vmatpush2.xpose.msra.mxu0 0.0
  %198 = vmatprep.subr.mxu0 0.0
  %199 = vmatpush2.xpose.msra.mxu0 0.0
  %200 = vmatprep.subr.mxu0 0.0
  %201 = vmatpush2.xpose.msra.mxu0 0.0
  %202 = vmatprep.subr.mxu0 0.0
  %203 = vmatpush2.xpose.msra.mxu0 0.0
  %204 = vmatprep.subr.mxu0 0.0
  %205 = vmatpush2.xpose.msra.mxu0 0.0
  %206 = vmatprep.subr.mxu0 0.0
  %207 = vmatpush2.xpose.msra.mxu0 0.0
  %208 = vmatprep.subr.mxu0 0.0
  %209 = vmatpush2.xpose.msra.mxu0 0.0
  %210 = vmatprep.subr.mxu0 0.0
  %211 = vmatpush2.xpose.msra.mxu0 0.0
  %212 = vmatprep.subr.mxu0 0.0
  %213 = vmatpush2.xpose.msra.mxu0 0.0
  %214 = vmatprep.subr.mxu0 0.0
  %215 = vmatpush2.xpose.msra.mxu0 0.0
  %216 = vmatprep.subr.mxu0 0.0
  %217 = vmatpush2.xpose.msra.mxu0 0.0
  %218 = vmatprep.mubr.f32.mxu0 0.0
  %219 = vmatmul.mubr.f32.gmra.mxu0 %v146
  %v220 = vpop.f32.mrf.mxu0
  %v221 = vadd.f32 0.0, %v220
  %v222 = vpop.f32.mrf.mxu0
  %223 = vmatprep.mubr.f32.mxu0 0.0
  %224 = vmatmul.mubr.f32.gmra.mxu0 %v148
  %v225 = vpop.f32.mrf.mxu0
  %v226 = vadd.f32 0.0, %v225
  %v227 = vpop.f32.mrf.mxu0
  %228 = vdwg.mxu0
  %v229 = vmul.f32 %v221, 0.35355338
  %v230 = vmul.f32 %v226, 0.35355338
  %v231 = vadd.f32 %v229, %v37
  %v232 = vadd.f32 %v230, %v38
  %vm233 = vcmask 97280
  %v234 = vsel %vm233, %v231, -inf
  %235 = vmax.xlane.f32.xlu0 %v234
  %v236 = vpop.xlane.xlu0 %235
  %vm237 = vcmask 93184
  %v238 = vsel %vm237, %v232, -inf
  %239 = vmax.xlane.f32.xlu0 %v238
  %v240 = vpop.xlane.xlu0 %239
  %v241 = vsub.f32 %v231, %v236
  %v242 = vsub.f32 %v232, %v240
  %v243 = vmul.f32 %v241, 1.442695
  %v244 = vpow.pop %v243
  %v245 = vmul.f32 %v242, 1.442695
  %v246 = vpow.pop %v245
  %v247 = vsel %vm233, %v244, 0.0
  %248 = vadd.xlane.f32.xlu0 %v247
  %v249 = vpop.xlane.xlu0 %248
  %v250 = vsel %vm237, %v246, 0.0
  %251 = vadd.xlane.f32.xlu0 %v250
  %v252 = vpop.xlane.xlu0 %251
  %v253 = vrcp.pop %v249
  %v254 = vmul.f32 %v244, %v253
  %v255 = vrcp.pop %v252
  %v256 = vmul.f32 %v246, %v255
  %257 = vrot.lane.b32.xlu0 %v131, 64
  %v258 = vpop.permute.xlu0 %257
  %259 = vrot.lane.b32.xlu0 %v136, 64
  %v260 = vpop.permute.xlu0 %259
  %v263 = vsel %vm233, %v254, 0
  %v266 = vsel %vm233, %v256, 0
  %vm268 = vcmask 1043456
  %v269 = vsel %vm268, %v260, 0
  %271 = vmatprep.subr.mxu0 0.0
  %272 = vmatpush1.msra.mxu0 0.0
  %273 = vmatprep.subr.mxu0 0.0
  %274 = vmatpush1.msra.mxu0 0.0
  %275 = vmatprep.subr.mxu0 0.0
  %276 = vmatpush1.msra.mxu0 0.0
  %277 = vmatprep.subr.mxu0 0.0
  %278 = vmatpush1.msra.mxu0 0.0
  %279 = vmatprep.subr.mxu0 0.0
  %280 = vmatpush1.msra.mxu0 0.0
  %281 = vmatprep.subr.mxu0 0.0
  %282 = vmatpush1.msra.mxu0 0.0
  %283 = vmatprep.subr.mxu0 0.0
  %284 = vmatpush1.msra.mxu0 0.0
  %285 = vmatprep.subr.mxu0 0.0
  %286 = vmatpush1.msra.mxu0 0.0
  %287 = vmatprep.subr.mxu0 0.0
  %288 = vmatpush1.msra.mxu0 0.0
  %289 = vmatprep.subr.mxu0 0.0
  %290 = vmatpush1.msra.mxu0 0.0
  %291 = vmatprep.subr.mxu0 0.0
  %292 = vmatpush1.msra.mxu0 0.0
  %293 = vmatprep.subr.mxu0 0.0
  %294 = vmatpush1.msra.mxu0 0.0
  %295 = vmatprep.subr.mxu0 0.0
  %296 = vmatpush1.msra.mxu0 0.0
  %297 = vmatprep.subr.mxu0 0.0
  %298 = vmatpush1.msra.mxu0 0.0
  %299 = vmatprep.subr.mxu0 0.0
  %300 = vmatpush1.msra.mxu0 %v269
  %301 = vmatprep.subr.mxu0 0.0
  %302 = vmatpush1.msra.mxu0 %v258
  %303 = vmatprep.subr.mxu0 0.0
  %304 = vmatpush2.msra.mxu0 0.0
  %305 = vmatprep.subr.mxu0 0.0
  %306 = vmatpush2.msra.mxu0 0.0
  %307 = vmatprep.subr.mxu0 0.0
  %308 = vmatpush2.msra.mxu0 0.0
  %309 = vmatprep.subr.mxu0 0.0
  %310 = vmatpush2.msra.mxu0 0.0
  %311 = vmatprep.subr.mxu0 0.0
  %312 = vmatpush2.msra.mxu0 0.0
  %313 = vmatprep.subr.mxu0 0.0
  %314 = vmatpush2.msra.mxu0 0.0
  %315 = vmatprep.subr.mxu0 0.0
  %316 = vmatpush2.msra.mxu0 0.0
  %317 = vmatprep.subr.mxu0 0.0
  %318 = vmatpush2.msra.mxu0 0.0
  %319 = vmatprep.subr.mxu0 0.0
  %320 = vmatpush2.msra.mxu0 0.0
  %321 = vmatprep.subr.mxu0 0.0
  %322 = vmatpush2.msra.mxu0 0.0
  %323 = vmatprep.subr.mxu0 0.0
  %324 = vmatpush2.msra.mxu0 0.0
  %325 = vmatprep.subr.mxu0 0.0
  %326 = vmatpush2.msra.mxu0 0.0
  %327 = vmatprep.subr.mxu0 0.0
  %328 = vmatpush2.msra.mxu0 0.0
  %329 = vmatprep.subr.mxu0 0.0
  %330 = vmatpush2.msra.mxu0 0.0
  %331 = vmatprep.subr.mxu0 0.0
  %332 = vmatpush2.msra.mxu0 0.0
  %333 = vmatprep.subr.mxu0 0.0
  %334 = vmatpush2.msra.mxu0 0.0
  %335 = vmatprep.mubr.f32.mxu0 0.0
  %336 = vmatmul.mubr.f32.gmra.mxu0 %v263
  %v337 = vpop.f32.mrf.mxu0
  %v338 = vadd.f32 0.0, %v337
  %v339 = vpop.f32.mrf.mxu0
  %340 = vmatprep.mubr.f32.mxu0 0.0
  %341 = vmatmul.mubr.f32.gmra.mxu0 %v266
  %v342 = vpop.f32.mrf.mxu0
  %v343 = vadd.f32 0.0, %v342
  %v344 = vpop.f32.mrf.mxu0
  %345 = vdwg.mxu0
  %346 = vrot.lane.b32.xlu0 %v131, 120
  %v347 = vpop.permute.xlu0 %346
  %348 = vrot.lane.b32.xlu0 %v136, 120
  %v349 = vpop.permute.xlu0 %348
  %350 = vrot.lane.b32.xlu0 %v131, 88
  %v351 = vpop.permute.xlu0 %350
  %352 = vrot.lane.b32.xlu0 %v136, 88
  %v353 = vpop.permute.xlu0 %352
  %v354 = vsel %vm145, %v347, 0
  %v356 = vsel %vm145, %v349, 0
  %v358 = vsel %vm145, %v351, 0
  %v360 = vsel %vm145, %v353, 0
  %362 = vmatprep.subr.mxu0 0.0
  %363 = vmatpush1.xpose.msra.mxu0 0.0
  %364 = vmatprep.subr.mxu0 0.0
  %365 = vmatpush1.xpose.msra.mxu0 0.0
  %366 = vmatprep.subr.mxu0 0.0
  %367 = vmatpush1.xpose.msra.mxu0 0.0
  %368 = vmatprep.subr.mxu0 0.0
  %369 = vmatpush1.xpose.msra.mxu0 0.0
  %370 = vmatprep.subr.mxu0 0.0
  %371 = vmatpush1.xpose.msra.mxu0 0.0
  %372 = vmatprep.subr.mxu0 0.0
  %373 = vmatpush1.xpose.msra.mxu0 0.0
  %374 = vmatprep.subr.mxu0 0.0
  %375 = vmatpush1.xpose.msra.mxu0 0.0
  %376 = vmatprep.subr.mxu0 0.0
  %377 = vmatpush1.xpose.msra.mxu0 0.0
  %378 = vmatprep.subr.mxu0 0.0
  %379 = vmatpush1.xpose.msra.mxu0 0.0
  %380 = vmatprep.subr.mxu0 0.0
  %381 = vmatpush1.xpose.msra.mxu0 0.0
  %382 = vmatprep.subr.mxu0 0.0
  %383 = vmatpush1.xpose.msra.mxu0 0.0
  %384 = vmatprep.subr.mxu0 0.0
  %385 = vmatpush1.xpose.msra.mxu0 0.0
  %386 = vmatprep.subr.mxu0 0.0
  %387 = vmatpush1.xpose.msra.mxu0 0.0
  %388 = vmatprep.subr.mxu0 0.0
  %389 = vmatpush1.xpose.msra.mxu0 0.0
  %390 = vmatprep.subr.mxu0 0.0
  %391 = vmatpush1.xpose.msra.mxu0 %v360
  %392 = vmatprep.subr.mxu0 0.0
  %393 = vmatpush1.xpose.msra.mxu0 %v358
  %394 = vmatprep.subr.mxu0 0.0
  %395 = vmatpush2.xpose.msra.mxu0 0.0
  %396 = vmatprep.subr.mxu0 0.0
  %397 = vmatpush2.xpose.msra.mxu0 0.0
  %398 = vmatprep.subr.mxu0 0.0
  %399 = vmatpush2.xpose.msra.mxu0 0.0
  %400 = vmatprep.subr.mxu0 0.0
  %401 = vmatpush2.xpose.msra.mxu0 0.0
  %402 = vmatprep.subr.mxu0 0.0
  %403 = vmatpush2.xpose.msra.mxu0 0.0
  %404 = vmatprep.subr.mxu0 0.0
  %405 = vmatpush2.xpose.msra.mxu0 0.0
  %406 = vmatprep.subr.mxu0 0.0
  %407 = vmatpush2.xpose.msra.mxu0 0.0
  %408 = vmatprep.subr.mxu0 0.0
  %409 = vmatpush2.xpose.msra.mxu0 0.0
  %410 = vmatprep.subr.mxu0 0.0
  %411 = vmatpush2.xpose.msra.mxu0 0.0
  %412 = vmatprep.subr.mxu0 0.0
  %413 = vmatpush2.xpose.msra.mxu0 0.0
  %414 = vmatprep.subr.mxu0 0.0
  %415 = vmatpush2.xpose.msra.mxu0 0.0
  %416 = vmatprep.subr.mxu0 0.0
  %417 = vmatpush2.xpose.msra.mxu0 0.0
  %418 = vmatprep.subr.mxu0 0.0
  %419 = vmatpush2.xpose.msra.mxu0 0.0
  %420 = vmatprep.subr.mxu0 0.0
  %421 = vmatpush2.xpose.msra.mxu0 0.0
  %422 = vmatprep.subr.mxu0 0.0
  %423 = vmatpush2.xpose.msra.mxu0 0.0
  %424 = vmatprep.subr.mxu0 0.0
  %425 = vmatpush2.xpose.msra.mxu0 0.0
  %426 = vmatprep.mubr.f32.mxu0 0.0
  %427 = vmatmul.mubr.f32.gmra.mxu0 %v354
  %v428 = vpop.f32.mrf.mxu0
  %v429 = vadd.f32 0.0, %v428
  %v430 = vpop.f32.mrf.mxu0
  %431 = vmatprep.mubr.f32.mxu0 0.0
  %432 = vmatmul.mubr.f32.gmra.mxu0 %v356
  %v433 = vpop.f32.mrf.mxu0
  %v434 = vadd.f32 0.0, %v433
  %v435 = vpop.f32.mrf.mxu0
  %436 = vdwg.mxu0
  %v437 = vmul.f32 %v429, 0.35355338
  %v438 = vmul.f32 %v434, 0.35355338
  %v439 = vadd.f32 %v437, %v37
  %v440 = vadd.f32 %v438, %v38
  %v441 = vsel %vm233, %v439, -inf
  %442 = vmax.xlane.f32.xlu0 %v441
  %v443 = vpop.xlane.xlu0 %442
  %v444 = vsel %vm237, %v440, -inf
  %445 = vmax.xlane.f32.xlu0 %v444
  %v446 = vpop.xlane.xlu0 %445
  %v447 = vsub.f32 %v439, %v443
  %v448 = vsub.f32 %v440, %v446
  %v449 = vmul.f32 %v447, 1.442695
  %v450 = vpow.pop %v449
  %v451 = vmul.f32 %v448, 1.442695
  %v452 = vpow.pop %v451
  %v453 = vsel %vm233, %v450, 0.0
  %454 = vadd.xlane.f32.xlu0 %v453
  %v455 = vpop.xlane.xlu0 %454
  %v456 = vsel %vm237, %v452, 0.0
  %457 = vadd.xlane.f32.xlu0 %v456
  %v458 = vpop.xlane.xlu0 %457
  %v459 = vrcp.pop %v455
  %v460 = vmul.f32 %v450, %v459
  %v461 = vrcp.pop %v458
  %v462 = vmul.f32 %v452, %v461
  %463 = vrot.lane.b32.xlu0 %v131, 56
  %v464 = vpop.permute.xlu0 %463
  %465 = vrot.lane.b32.xlu0 %v136, 56
  %v466 = vpop.permute.xlu0 %465
  %v469 = vsel %vm233, %v460, 0
  %v472 = vsel %vm233, %v462, 0
  %v474 = vsel %vm268, %v466, 0
  %476 = vmatprep.subr.mxu0 0.0
  %477 = vmatpush1.msra.mxu0 0.0
  %478 = vmatprep.subr.mxu0 0.0
  %479 = vmatpush1.msra.mxu0 0.0
  %480 = vmatprep.subr.mxu0 0.0
  %481 = vmatpush1.msra.mxu0 0.0
  %482 = vmatprep.subr.mxu0 0.0
  %483 = vmatpush1.msra.mxu0 0.0
  %484 = vmatprep.subr.mxu0 0.0
  %485 = vmatpush1.msra.mxu0 0.0
  %486 = vmatprep.subr.mxu0 0.0
  %487 = vmatpush1.msra.mxu0 0.0
  %488 = vmatprep.subr.mxu0 0.0
  %489 = vmatpush1.msra.mxu0 0.0
  %490 = vmatprep.subr.mxu0 0.0
  %491 = vmatpush1.msra.mxu0 0.0
  %492 = vmatprep.subr.mxu0 0.0
  %493 = vmatpush1.msra.mxu0 0.0
  %494 = vmatprep.subr.mxu0 0.0
  %495 = vmatpush1.msra.mxu0 0.0
  %496 = vmatprep.subr.mxu0 0.0
  %497 = vmatpush1.msra.mxu0 0.0
  %498 = vmatprep.subr.mxu0 0.0
  %499 = vmatpush1.msra.mxu0 0.0
  %500 = vmatprep.subr.mxu0 0.0
  %501 = vmatpush1.msra.mxu0 0.0
  %502 = vmatprep.subr.mxu0 0.0
  %503 = vmatpush1.msra.mxu0 0.0
  %504 = vmatprep.subr.mxu0 0.0
  %505 = vmatpush1.msra.mxu0 %v474
  %506 = vmatprep.subr.mxu0 0.0
  %507 = vmatpush1.msra.mxu0 %v464
  %508 = vmatprep.subr.mxu0 0.0
  %509 = vmatpush2.msra.mxu0 0.0
  %510 = vmatprep.subr.mxu0 0.0
  %511 = vmatpush2.msra.mxu0 0.0
  %512 = vmatprep.subr.mxu0 0.0
  %513 = vmatpush2.msra.mxu0 0.0
  %514 = vmatprep.subr.mxu0 0.0
  %515 = vmatpush2.msra.mxu0 0.0
  %516 = vmatprep.subr.mxu0 0.0
  %517 = vmatpush2.msra.mxu0 0.0
  %518 = vmatprep.subr.mxu0 0.0
  %519 = vmatpush2.msra.mxu0 0.0
  %520 = vmatprep.subr.mxu0 0.0
  %521 = vmatpush2.msra.mxu0 0.0
  %522 = vmatprep.subr.mxu0 0.0
  %523 = vmatpush2.msra.mxu0 0.0
  %524 = vmatprep.subr.mxu0 0.0
  %525 = vmatpush2.msra.mxu0 0.0
  %526 = vmatprep.subr.mxu0 0.0
  %527 = vmatpush2.msra.mxu0 0.0
  %528 = vmatprep.subr.mxu0 0.0
  %529 = vmatpush2.msra.mxu0 0.0
  %530 = vmatprep.subr.mxu0 0.0
  %531 = vmatpush2.msra.mxu0 0.0
  %532 = vmatprep.subr.mxu0 0.0
  %533 = vmatpush2.msra.mxu0 0.0
  %534 = vmatprep.subr.mxu0 0.0
  %535 = vmatpush2.msra.mxu0 0.0
  %536 = vmatprep.subr.mxu0 0.0
  %537 = vmatpush2.msra.mxu0 0.0
  %538 = vmatprep.subr.mxu0 0.0
  %539 = vmatpush2.msra.mxu0 0.0
  %540 = vmatprep.mubr.f32.mxu0 0.0
  %541 = vmatmul.mubr.f32.gmra.mxu0 %v469
  %v542 = vpop.f32.mrf.mxu0
  %v543 = vadd.f32 0.0, %v542
  %v544 = vpop.f32.mrf.mxu0
  %545 = vmatprep.mubr.f32.mxu0 0.0
  %546 = vmatmul.mubr.f32.gmra.mxu0 %v472
  %v547 = vpop.f32.mrf.mxu0
  %v548 = vadd.f32 0.0, %v547
  %v549 = vpop.f32.mrf.mxu0
  %550 = vdwg.mxu0
  %551 = vrot.lane.b32.xlu0 %v131, 112
  %v552 = vpop.permute.xlu0 %551
  %553 = vrot.lane.b32.xlu0 %v136, 112
  %v554 = vpop.permute.xlu0 %553
  %555 = vrot.lane.b32.xlu0 %v131, 80
  %v556 = vpop.permute.xlu0 %555
  %557 = vrot.lane.b32.xlu0 %v136, 80
  %v558 = vpop.permute.xlu0 %557
  %v559 = vsel %vm145, %v552, 0
  %v561 = vsel %vm145, %v554, 0
  %v563 = vsel %vm145, %v556, 0
  %v565 = vsel %vm145, %v558, 0
  %567 = vmatprep.subr.mxu0 0.0
  %568 = vmatpush1.xpose.msra.mxu0 0.0
  %569 = vmatprep.subr.mxu0 0.0
  %570 = vmatpush1.xpose.msra.mxu0 0.0
  %571 = vmatprep.subr.mxu0 0.0
  %572 = vmatpush1.xpose.msra.mxu0 0.0
  %573 = vmatprep.subr.mxu0 0.0
  %574 = vmatpush1.xpose.msra.mxu0 0.0
  %575 = vmatprep.subr.mxu0 0.0
  %576 = vmatpush1.xpose.msra.mxu0 0.0
  %577 = vmatprep.subr.mxu0 0.0
  %578 = vmatpush1.xpose.msra.mxu0 0.0
  %579 = vmatprep.subr.mxu0 0.0
  %580 = vmatpush1.xpose.msra.mxu0 0.0
  %581 = vmatprep.subr.mxu0 0.0
  %582 = vmatpush1.xpose.msra.mxu0 0.0
  %583 = vmatprep.subr.mxu0 0.0
  %584 = vmatpush1.xpose.msra.mxu0 0.0
  %585 = vmatprep.subr.mxu0 0.0
  %586 = vmatpush1.xpose.msra.mxu0 0.0
  %587 = vmatprep.subr.mxu0 0.0
  %588 = vmatpush1.xpose.msra.mxu0 0.0
  %589 = vmatprep.subr.mxu0 0.0
  %590 = vmatpush1.xpose.msra.mxu0 0.0
  %591 = vmatprep.subr.mxu0 0.0
  %592 = vmatpush1.xpose.msra.mxu0 0.0
  %593 = vmatprep.subr.mxu0 0.0
  %594 = vmatpush1.xpose.msra.mxu0 0.0
  %595 = vmatprep.subr.mxu0 0.0
  %596 = vmatpush1.xpose.msra.mxu0 %v565
  %597 = vmatprep.subr.mxu0 0.0
  %598 = vmatpush1.xpose.msra.mxu0 %v563
  %599 = vmatprep.subr.mxu0 0.0
  %600 = vmatpush2.xpose.msra.mxu0 0.0
  %601 = vmatprep.subr.mxu0 0.0
  %602 = vmatpush2.xpose.msra.mxu0 0.0
  %603 = vmatprep.subr.mxu0 0.0
  %604 = vmatpush2.xpose.msra.mxu0 0.0
  %605 = vmatprep.subr.mxu0 0.0
  %606 = vmatpush2.xpose.msra.mxu0 0.0
  %607 = vmatprep.subr.mxu0 0.0
  %608 = vmatpush2.xpose.msra.mxu0 0.0
  %609 = vmatprep.subr.mxu0 0.0
  %610 = vmatpush2.xpose.msra.mxu0 0.0
  %611 = vmatprep.subr.mxu0 0.0
  %612 = vmatpush2.xpose.msra.mxu0 0.0
  %613 = vmatprep.subr.mxu0 0.0
  %614 = vmatpush2.xpose.msra.mxu0 0.0
  %615 = vmatprep.subr.mxu0 0.0
  %616 = vmatpush2.xpose.msra.mxu0 0.0
  %617 = vmatprep.subr.mxu0 0.0
  %618 = vmatpush2.xpose.msra.mxu0 0.0
  %619 = vmatprep.subr.mxu0 0.0
  %620 = vmatpush2.xpose.msra.mxu0 0.0
  %621 = vmatprep.subr.mxu0 0.0
  %622 = vmatpush2.xpose.msra.mxu0 0.0
  %623 = vmatprep.subr.mxu0 0.0
  %624 = vmatpush2.xpose.msra.mxu0 0.0
  %625 = vmatprep.subr.mxu0 0.0
  %626 = vmatpush2.xpose.msra.mxu0 0.0
  %627 = vmatprep.subr.mxu0 0.0
  %628 = vmatpush2.xpose.msra.mxu0 0.0
  %629 = vmatprep.subr.mxu0 0.0
  %630 = vmatpush2.xpose.msra.mxu0 0.0
  %631 = vmatprep.mubr.f32.mxu0 0.0
  %632 = vmatmul.mubr.f32.gmra.mxu0 %v559
  %v633 = vpop.f32.mrf.mxu0
  %v634 = vadd.f32 0.0, %v633
  %v635 = vpop.f32.mrf.mxu0
  %636 = vmatprep.mubr.f32.mxu0 0.0
  %637 = vmatmul.mubr.f32.gmra.mxu0 %v561
  %v638 = vpop.f32.mrf.mxu0
  %v639 = vadd.f32 0.0, %v638
  %v640 = vpop.f32.mrf.mxu0
  %641 = vdwg.mxu0
  %v642 = vmul.f32 %v634, 0.35355338
  %v643 = vmul.f32 %v639, 0.35355338
  %v644 = vadd.f32 %v642, %v37
  %v645 = vadd.f32 %v643, %v38
  %v646 = vsel %vm233, %v644, -inf
  %647 = vmax.xlane.f32.xlu0 %v646
  %v648 = vpop.xlane.xlu0 %647
  %v649 = vsel %vm237, %v645, -inf
  %650 = vmax.xlane.f32.xlu0 %v649
  %v651 = vpop.xlane.xlu0 %650
  %v652 = vsub.f32 %v644, %v648
  %v653 = vsub.f32 %v645, %v651
  %v654 = vmul.f32 %v652, 1.442695
  %v655 = vpow.pop %v654
  %v656 = vmul.f32 %v653, 1.442695
  %v657 = vpow.pop %v656
  %v658 = vsel %vm233, %v655, 0.0
  %659 = vadd.xlane.f32.xlu0 %v658
  %v660 = vpop.xlane.xlu0 %659
  %v661 = vsel %vm237, %v657, 0.0
  %662 = vadd.xlane.f32.xlu0 %v661
  %v663 = vpop.xlane.xlu0 %662
  %v664 = vrcp.pop %v660
  %v665 = vmul.f32 %v655, %v664
  %v666 = vrcp.pop %v663
  %v667 = vmul.f32 %v657, %v666
  %668 = vrot.lane.b32.xlu0 %v131, 48
  %v669 = vpop.permute.xlu0 %668
  %670 = vrot.lane.b32.xlu0 %v136, 48
  %v671 = vpop.permute.xlu0 %670
  %v674 = vsel %vm233, %v665, 0
  %v677 = vsel %vm233, %v667, 0
  %v679 = vsel %vm268, %v671, 0
  %681 = vmatprep.subr.mxu0 0.0
  %682 = vmatpush1.msra.mxu0 0.0
  %683 = vmatprep.subr.mxu0 0.0
  %684 = vmatpush1.msra.mxu0 0.0
  %685 = vmatprep.subr.mxu0 0.0
  %686 = vmatpush1.msra.mxu0 0.0
  %687 = vmatprep.subr.mxu0 0.0
  %688 = vmatpush1.msra.mxu0 0.0
  %689 = vmatprep.subr.mxu0 0.0
  %690 = vmatpush1.msra.mxu0 0.0
  %691 = vmatprep.subr.mxu0 0.0
  %692 = vmatpush1.msra.mxu0 0.0
  %693 = vmatprep.subr.mxu0 0.0
  %694 = vmatpush1.msra.mxu0 0.0
  %695 = vmatprep.subr.mxu0 0.0
  %696 = vmatpush1.msra.mxu0 0.0
  %697 = vmatprep.subr.mxu0 0.0
  %698 = vmatpush1.msra.mxu0 0.0
  %699 = vmatprep.subr.mxu0 0.0
  %700 = vmatpush1.msra.mxu0 0.0
  %701 = vmatprep.subr.mxu0 0.0
  %702 = vmatpush1.msra.mxu0 0.0
  %703 = vmatprep.subr.mxu0 0.0
  %704 = vmatpush1.msra.mxu0 0.0
  %705 = vmatprep.subr.mxu0 0.0
  %706 = vmatpush1.msra.mxu0 0.0
  %707 = vmatprep.subr.mxu0 0.0
  %708 = vmatpush1.msra.mxu0 0.0
  %709 = vmatprep.subr.mxu0 0.0
  %710 = vmatpush1.msra.mxu0 %v679
  %711 = vmatprep.subr.mxu0 0.0
  %712 = vmatpush1.msra.mxu0 %v669
  %713 = vmatprep.subr.mxu0 0.0
  %714 = vmatpush2.msra.mxu0 0.0
  %715 = vmatprep.subr.mxu0 0.0
  %716 = vmatpush2.msra.mxu0 0.0
  %717 = vmatprep.subr.mxu0 0.0
  %718 = vmatpush2.msra.mxu0 0.0
  %719 = vmatprep.subr.mxu0 0.0
  %720 = vmatpush2.msra.mxu0 0.0
  %721 = vmatprep.subr.mxu0 0.0
  %722 = vmatpush2.msra.mxu0 0.0
  %723 = vmatprep.subr.mxu0 0.0
  %724 = vmatpush2.msra.mxu0 0.0
  %725 = vmatprep.subr.mxu0 0.0
  %726 = vmatpush2.msra.mxu0 0.0
  %727 = vmatprep.subr.mxu0 0.0
  %728 = vmatpush2.msra.mxu0 0.0
  %729 = vmatprep.subr.mxu0 0.0
  %730 = vmatpush2.msra.mxu0 0.0
  %731 = vmatprep.subr.mxu0 0.0
  %732 = vmatpush2.msra.mxu0 0.0
  %733 = vmatprep.subr.mxu0 0.0
  %734 = vmatpush2.msra.mxu0 0.0
  %735 = vmatprep.subr.mxu0 0.0
  %736 = vmatpush2.msra.mxu0 0.0
  %737 = vmatprep.subr.mxu0 0.0
  %738 = vmatpush2.msra.mxu0 0.0
  %739 = vmatprep.subr.mxu0 0.0
  %740 = vmatpush2.msra.mxu0 0.0
  %741 = vmatprep.subr.mxu0 0.0
  %742 = vmatpush2.msra.mxu0 0.0
  %743 = vmatprep.subr.mxu0 0.0
  %744 = vmatpush2.msra.mxu0 0.0
  %745 = vmatprep.mubr.f32.mxu0 0.0
  %746 = vmatmul.mubr.f32.gmra.mxu0 %v674
  %v747 = vpop.f32.mrf.mxu0
  %v748 = vadd.f32 0.0, %v747
  %v749 = vpop.f32.mrf.mxu0
  %750 = vmatprep.mubr.f32.mxu0 0.0
  %751 = vmatmul.mubr.f32.gmra.mxu0 %v677
  %v752 = vpop.f32.mrf.mxu0
  %v753 = vadd.f32 0.0, %v752
  %v754 = vpop.f32.mrf.mxu0
  %755 = vdwg.mxu0
  %756 = vrot.lane.b32.xlu0 %v131, 104
  %v757 = vpop.permute.xlu0 %756
  %758 = vrot.lane.b32.xlu0 %v136, 104
  %v759 = vpop.permute.xlu0 %758
  %760 = vrot.lane.b32.xlu0 %v131, 72
  %v761 = vpop.permute.xlu0 %760
  %762 = vrot.lane.b32.xlu0 %v136, 72
  %v763 = vpop.permute.xlu0 %762
  %v764 = vsel %vm145, %v757, 0
  %v766 = vsel %vm145, %v759, 0
  %v768 = vsel %vm145, %v761, 0
  %v770 = vsel %vm145, %v763, 0
  %772 = vmatprep.subr.mxu0 0.0
  %773 = vmatpush1.xpose.msra.mxu0 0.0
  %774 = vmatprep.subr.mxu0 0.0
  %775 = vmatpush1.xpose.msra.mxu0 0.0
  %776 = vmatprep.subr.mxu0 0.0
  %777 = vmatpush1.xpose.msra.mxu0 0.0
  %778 = vmatprep.subr.mxu0 0.0
  %779 = vmatpush1.xpose.msra.mxu0 0.0
  %780 = vmatprep.subr.mxu0 0.0
  %781 = vmatpush1.xpose.msra.mxu0 0.0
  %782 = vmatprep.subr.mxu0 0.0
  %783 = vmatpush1.xpose.msra.mxu0 0.0
  %784 = vmatprep.subr.mxu0 0.0
  %785 = vmatpush1.xpose.msra.mxu0 0.0
  %786 = vmatprep.subr.mxu0 0.0
  %787 = vmatpush1.xpose.msra.mxu0 0.0
  %788 = vmatprep.subr.mxu0 0.0
  %789 = vmatpush1.xpose.msra.mxu0 0.0
  %790 = vmatprep.subr.mxu0 0.0
  %791 = vmatpush1.xpose.msra.mxu0 0.0
  %792 = vmatprep.subr.mxu0 0.0
  %793 = vmatpush1.xpose.msra.mxu0 0.0
  %794 = vmatprep.subr.mxu0 0.0
  %795 = vmatpush1.xpose.msra.mxu0 0.0
  %796 = vmatprep.subr.mxu0 0.0
  %797 = vmatpush1.xpose.msra.mxu0 0.0
  %798 = vmatprep.subr.mxu0 0.0
  %799 = vmatpush1.xpose.msra.mxu0 0.0
  %800 = vmatprep.subr.mxu0 0.0
  %801 = vmatpush1.xpose.msra.mxu0 %v770
  %802 = vmatprep.subr.mxu0 0.0
  %803 = vmatpush1.xpose.msra.mxu0 %v768
  %804 = vmatprep.subr.mxu0 0.0
  %805 = vmatpush2.xpose.msra.mxu0 0.0
  %806 = vmatprep.subr.mxu0 0.0
  %807 = vmatpush2.xpose.msra.mxu0 0.0
  %808 = vmatprep.subr.mxu0 0.0
  %809 = vmatpush2.xpose.msra.mxu0 0.0
  %810 = vmatprep.subr.mxu0 0.0
  %811 = vmatpush2.xpose.msra.mxu0 0.0
  %812 = vmatprep.subr.mxu0 0.0
  %813 = vmatpush2.xpose.msra.mxu0 0.0
  %814 = vmatprep.subr.mxu0 0.0
  %815 = vmatpush2.xpose.msra.mxu0 0.0
  %816 = vmatprep.subr.mxu0 0.0
  %817 = vmatpush2.xpose.msra.mxu0 0.0
  %818 = vmatprep.subr.mxu0 0.0
  %819 = vmatpush2.xpose.msra.mxu0 0.0
  %820 = vmatprep.subr.mxu0 0.0
  %821 = vmatpush2.xpose.msra.mxu0 0.0
  %822 = vmatprep.subr.mxu0 0.0
  %823 = vmatpush2.xpose.msra.mxu0 0.0
  %824 = vmatprep.subr.mxu0 0.0
  %825 = vmatpush2.xpose.msra.mxu0 0.0
  %826 = vmatprep.subr.mxu0 0.0
  %827 = vmatpush2.xpose.msra.mxu0 0.0
  %828 = vmatprep.subr.mxu0 0.0
  %829 = vmatpush2.xpose.msra.mxu0 0.0
  %830 = vmatprep.subr.mxu0 0.0
  %831 = vmatpush2.xpose.msra.mxu0 0.0
  %832 = vmatprep.subr.mxu0 0.0
  %833 = vmatpush2.xpose.msra.mxu0 0.0
  %834 = vmatprep.subr.mxu0 0.0
  %835 = vmatpush2.xpose.msra.mxu0 0.0
  %836 = vmatprep.mubr.f32.mxu0 0.0
  %837 = vmatmul.mubr.f32.gmra.mxu0 %v764
  %v838 = vpop.f32.mrf.mxu0
  %v839 = vadd.f32 0.0, %v838
  %v840 = vpop.f32.mrf.mxu0
  %841 = vmatprep.mubr.f32.mxu0 0.0
  %842 = vmatmul.mubr.f32.gmra.mxu0 %v766
  %v843 = vpop.f32.mrf.mxu0
  %v844 = vadd.f32 0.0, %v843
  %v845 = vpop.f32.mrf.mxu0
  %846 = vdwg.mxu0
  %v847 = vmul.f32 %v839, 0.35355338
  %v848 = vmul.f32 %v844, 0.35355338
  %v849 = vadd.f32 %v847, %v37
  %v850 = vadd.f32 %v848, %v38
  %v851 = vsel %vm233, %v849, -inf
  %852 = vmax.xlane.f32.xlu0 %v851
  %v853 = vpop.xlane.xlu0 %852
  %v854 = vsel %vm237, %v850, -inf
  %855 = vmax.xlane.f32.xlu0 %v854
  %v856 = vpop.xlane.xlu0 %855
  %v857 = vsub.f32 %v849, %v853
  %v858 = vsub.f32 %v850, %v856
  %v859 = vmul.f32 %v857, 1.442695
  %v860 = vpow.pop %v859
  %v861 = vmul.f32 %v858, 1.442695
  %v862 = vpow.pop %v861
  %v863 = vsel %vm233, %v860, 0.0
  %864 = vadd.xlane.f32.xlu0 %v863
  %v865 = vpop.xlane.xlu0 %864
  %v866 = vsel %vm237, %v862, 0.0
  %867 = vadd.xlane.f32.xlu0 %v866
  %v868 = vpop.xlane.xlu0 %867
  %v869 = vrcp.pop %v865
  %v870 = vmul.f32 %v860, %v869
  %v871 = vrcp.pop %v868
  %v872 = vmul.f32 %v862, %v871
  %873 = vrot.lane.b32.xlu0 %v131, 40
  %v874 = vpop.permute.xlu0 %873
  %875 = vrot.lane.b32.xlu0 %v136, 40
  %v876 = vpop.permute.xlu0 %875
  %v879 = vsel %vm233, %v870, 0
  %v882 = vsel %vm233, %v872, 0
  %v884 = vsel %vm268, %v876, 0
  %886 = vmatprep.subr.mxu0 0.0
  %887 = vmatpush1.msra.mxu0 0.0
  %888 = vmatprep.subr.mxu0 0.0
  %889 = vmatpush1.msra.mxu0 0.0
  %890 = vmatprep.subr.mxu0 0.0
  %891 = vmatpush1.msra.mxu0 0.0
  %892 = vmatprep.subr.mxu0 0.0
  %893 = vmatpush1.msra.mxu0 0.0
  %894 = vmatprep.subr.mxu0 0.0
  %895 = vmatpush1.msra.mxu0 0.0
  %896 = vmatprep.subr.mxu0 0.0
  %897 = vmatpush1.msra.mxu0 0.0
  %898 = vmatprep.subr.mxu0 0.0
  %899 = vmatpush1.msra.mxu0 0.0
  %900 = vmatprep.subr.mxu0 0.0
  %901 = vmatpush1.msra.mxu0 0.0
  %902 = vmatprep.subr.mxu0 0.0
  %903 = vmatpush1.msra.mxu0 0.0
  %904 = vmatprep.subr.mxu0 0.0
  %905 = vmatpush1.msra.mxu0 0.0
  %906 = vmatprep.subr.mxu0 0.0
  %907 = vmatpush1.msra.mxu0 0.0
  %908 = vmatprep.subr.mxu0 0.0
  %909 = vmatpush1.msra.mxu0 0.0
  %910 = vmatprep.subr.mxu0 0.0
  %911 = vmatpush1.msra.mxu0 0.0
  %912 = vmatprep.subr.mxu0 0.0
  %913 = vmatpush1.msra.mxu0 0.0
  %914 = vmatprep.subr.mxu0 0.0
  %915 = vmatpush1.msra.mxu0 %v884
  %916 = vmatprep.subr.mxu0 0.0
  %917 = vmatpush1.msra.mxu0 %v874
  %918 = vmatprep.subr.mxu0 0.0
  %919 = vmatpush2.msra.mxu0 0.0
  %920 = vmatprep.subr.mxu0 0.0
  %921 = vmatpush2.msra.mxu0 0.0
  %922 = vmatprep.subr.mxu0 0.0
  %923 = vmatpush2.msra.mxu0 0.0
  %924 = vmatprep.subr.mxu0 0.0
  %925 = vmatpush2.msra.mxu0 0.0
  %926 = vmatprep.subr.mxu0 0.0
  %927 = vmatpush2.msra.mxu0 0.0
  %928 = vmatprep.subr.mxu0 0.0
  %929 = vmatpush2.msra.mxu0 0.0
  %930 = vmatprep.subr.mxu0 0.0
  %931 = vmatpush2.msra.mxu0 0.0
  %932 = vmatprep.subr.mxu0 0.0
  %933 = vmatpush2.msra.mxu0 0.0
  %934 = vmatprep.subr.mxu0 0.0
  %935 = vmatpush2.msra.mxu0 0.0
  %936 = vmatprep.subr.mxu0 0.0
  %937 = vmatpush2.msra.mxu0 0.0
  %938 = vmatprep.subr.mxu0 0.0
  %939 = vmatpush2.msra.mxu0 0.0
  %940 = vmatprep.subr.mxu0 0.0
  %941 = vmatpush2.msra.mxu0 0.0
  %942 = vmatprep.subr.mxu0 0.0
  %943 = vmatpush2.msra.mxu0 0.0
  %944 = vmatprep.subr.mxu0 0.0
  %945 = vmatpush2.msra.mxu0 0.0
  %946 = vmatprep.subr.mxu0 0.0
  %947 = vmatpush2.msra.mxu0 0.0
  %948 = vmatprep.subr.mxu0 0.0
  %949 = vmatpush2.msra.mxu0 0.0
  %950 = vmatprep.mubr.f32.mxu0 0.0
  %951 = vmatmul.mubr.f32.gmra.mxu0 %v879
  %v952 = vpop.f32.mrf.mxu0
  %v953 = vadd.f32 0.0, %v952
  %v954 = vpop.f32.mrf.mxu0
  %955 = vmatprep.mubr.f32.mxu0 0.0
  %956 = vmatmul.mubr.f32.gmra.mxu0 %v882
  %v957 = vpop.f32.mrf.mxu0
  %v958 = vadd.f32 0.0, %v957
  %v959 = vpop.f32.mrf.mxu0
  %960 = vdwg.mxu0
  %963 = vrot.lane.b32.xlu0 %v543, 8
  %v964 = vpop.permute.xlu0 %963
  %965 = vrot.lane.b32.xlu0 %v548, 8
  %v966 = vpop.permute.xlu0 %965
  %971 = vrot.lane.b32.xlu0 %v748, 16
  %v972 = vpop.permute.xlu0 %971
  %973 = vrot.lane.b32.xlu0 %v753, 16
  %v974 = vpop.permute.xlu0 %973
  %979 = vrot.lane.b32.xlu0 %v953, 24
  %v980 = vpop.permute.xlu0 %979
  %981 = vrot.lane.b32.xlu0 %v958, 24
  %v982 = vpop.permute.xlu0 %981
  %v985 = vsel %vm145, %v338, %v964
  %v986 = vsel %vm145, %v343, %v966
  %vm987 = vcmask 130048
  %v988 = vsel %vm987, %v985, %v972
  %v989 = vsel %vm987, %v986, %v974
  %vm990 = vcmask 195584
  %v991 = vsel %vm990, %v988, %v980
  %v992 = vsel %vm990, %v989, %v982
  %v994 = vlaneseq
  %v995 = vshrl.u32 %v994, 7
  %v996 = vsub.s32 0, %v995
  %v997 = vrot.slane %v48, %v996
  %v1000 = vsel %vm57, %v991, 0
  %v1003 = vsel %vm57, %v992, 0
  %1005 = vmatprep.subr.mxu0 0.0
  %1006 = vmatpush1.msra.mxu0 0.0
  %1007 = vmatprep.subr.mxu0 0.0
  %1008 = vmatpush1.msra.mxu0 0.0
  %1009 = vmatprep.subr.mxu0 0.0
  %1010 = vmatpush1.msra.mxu0 0.0
  %1011 = vmatprep.subr.mxu0 0.0
  %1012 = vmatpush1.msra.mxu0 0.0
  %1013 = vmatprep.subr.mxu0 0.0
  %1014 = vmatpush1.msra.mxu0 0.0
  %1015 = vmatprep.subr.mxu0 0.0
  %1016 = vmatpush1.msra.mxu0 0.0
  %1017 = vmatprep.subr.mxu0 0.0
  %1018 = vmatpush1.msra.mxu0 0.0
  %1019 = vmatprep.subr.mxu0 0.0
  %1020 = vmatpush1.msra.mxu0 0.0
  %1021 = vmatprep.subr.mxu0 0.0
  %1022 = vmatpush1.msra.mxu0 0.0
  %1023 = vmatprep.subr.mxu0 0.0
  %1024 = vmatpush1.msra.mxu0 0.0
  %1025 = vmatprep.subr.mxu0 0.0
  %1026 = vmatpush1.msra.mxu0 0.0
  %1027 = vmatprep.subr.mxu0 0.0
  %1028 = vmatpush1.msra.mxu0 0.0
  %1029 = vmatprep.subr.mxu0 0.0
  %1030 = vmatpush1.msra.mxu0 %v47
  %1031 = vmatprep.subr.mxu0 0.0
  %1032 = vmatpush1.msra.mxu0 %v46
  %1033 = vmatprep.subr.mxu0 0.0
  %1034 = vmatpush1.msra.mxu0 %v45
  %1035 = vmatprep.subr.mxu0 0.0
  %1036 = vmatpush1.msra.mxu0 %v44
  %1037 = vmatprep.subr.mxu0 0.0
  %1038 = vmatpush2.msra.mxu0 0.0
  %1039 = vmatprep.subr.mxu0 0.0
  %1040 = vmatpush2.msra.mxu0 0.0
  %1041 = vmatprep.subr.mxu0 0.0
  %1042 = vmatpush2.msra.mxu0 0.0
  %1043 = vmatprep.subr.mxu0 0.0
  %1044 = vmatpush2.msra.mxu0 0.0
  %1045 = vmatprep.subr.mxu0 0.0
  %1046 = vmatpush2.msra.mxu0 0.0
  %1047 = vmatprep.subr.mxu0 0.0
  %1048 = vmatpush2.msra.mxu0 0.0
  %1049 = vmatprep.subr.mxu0 0.0
  %1050 = vmatpush2.msra.mxu0 0.0
  %1051 = vmatprep.subr.mxu0 0.0
  %1052 = vmatpush2.msra.mxu0 0.0
  %1053 = vmatprep.subr.mxu0 0.0
  %1054 = vmatpush2.msra.mxu0 0.0
  %1055 = vmatprep.subr.mxu0 0.0
  %1056 = vmatpush2.msra.mxu0 0.0
  %1057 = vmatprep.subr.mxu0 0.0
  %1058 = vmatpush2.msra.mxu0 0.0
  %1059 = vmatprep.subr.mxu0 0.0
  %1060 = vmatpush2.msra.mxu0 0.0
  %1061 = vmatprep.subr.mxu0 0.0
  %1062 = vmatpush2.msra.mxu0 0.0
  %1063 = vmatprep.subr.mxu0 0.0
  %1064 = vmatpush2.msra.mxu0 0.0
  %1065 = vmatprep.subr.mxu0 0.0
  %1066 = vmatpush2.msra.mxu0 0.0
  %1067 = vmatprep.subr.mxu0 0.0
  %1068 = vmatpush2.msra.mxu0 0.0
  %1069 = vmatprep.mubr.f32.mxu0 0.0
  %1070 = vmatmul.mubr.f32.gmra.mxu0 %v1000
  %v1071 = vpop.f32.mrf.mxu0
  %v1072 = vadd.f32 %v997, %v1071
  %v1073 = vpop.f32.mrf.mxu0
  %1074 = vmatprep.mubr.f32.mxu0 0.0
  %1075 = vmatmul.mubr.f32.gmra.mxu0 %v1003
  %v1076 = vpop.f32.mrf.mxu0
  %v1077 = vadd.f32 %v997, %v1076
  %v1078 = vpop.f32.mrf.mxu0
  %1079 = vdwg.mxu0
  %v1080 = vadd.f32 %v1072, %v35
  %v1081 = vadd.f32 %v1077, %v36
  %v1082 = vsel %vm57, %v1080, 0.0
  %1083 = vadd.xlane.f32.xlu0 %v1082
  %v1084 = vpop.xlane.xlu0 %1083
  %vm1085 = vcmask 257024
  %v1086 = vsel %vm1085, %v1081, 0.0
  %1087 = vadd.xlane.f32.xlu0 %v1086
  %v1088 = vpop.xlane.xlu0 %1087
  %v1089 = vrcp.pop 32.0
  %v1090 = vmul.f32 %v1084, %v1089
  %v1091 = vmul.f32 %v1088, %v1089
  %v1092 = vsub.f32 %v1080, %v1090
  %v1093 = vsub.f32 %v1081, %v1091
  %v1094 = vmul.f32 %v1092, %v1092
  %v1095 = vmul.f32 %v1093, %v1093
  %v1096 = vsel %vm57, %v1094, 0.0
  %1097 = vadd.xlane.f32.xlu0 %v1096
  %v1098 = vpop.xlane.xlu0 %1097
  %v1099 = vsel %vm1085, %v1095, 0.0
  %1100 = vadd.xlane.f32.xlu0 %v1099
  %v1101 = vpop.xlane.xlu0 %1100
  %v1102 = vmul.f32 %v1098, %v1089
  %v1103 = vmul.f32 %v1101, %v1089
  %v1104 = vadd.f32 %v1102, 1e-12
  %v1105 = vadd.f32 %v1103, 1e-12
  %v1106 = vrsqrt.pop %v1104
  %v1107 = vrsqrt.pop %v1105
  %v1108 = vmul.f32 %v1092, %v1106
  %v1109 = vmul.f32 %v1093, %v1107
  %v1111 = vlaneseq
  %v1112 = vshrl.u32 %v1111, 7
  %v1113 = vsub.s32 0, %v1112
  %v1114 = vrot.slane %v49, %v1113
  %v1116 = vmul.f32 %v1108, %v1114
  %v1117 = vmul.f32 %v1109, %v1114
  %v1119 = vlaneseq
  %v1120 = vshrl.u32 %v1119, 7
  %v1121 = vsub.s32 0, %v1120
  %v1122 = vrot.slane %v50, %v1121
  %v1124 = vadd.f32 %v1116, %v1122
  %v1125 = vadd.f32 %v1117, %v1122
  %v1127 = vrot.slane %v1124, 2
  %1128 = vrot.lane.b32.xlu0 %v1127, 32
  %v1129 = vpop.permute.xlu0 %1128
  %v1131 = vrot.slane %v1124, 4
  %1132 = vrot.lane.b32.xlu0 %v1131, 64
  %v1133 = vpop.permute.xlu0 %1132
  %v1135 = vrot.slane %v1124, 6
  %1136 = vrot.lane.b32.xlu0 %v1135, 96
  %v1137 = vpop.permute.xlu0 %1136
  %v1140 = vrot.slane %v1125, 2
  %1141 = vrot.lane.b32.xlu0 %v1140, 32
  %v1142 = vpop.permute.xlu0 %1141
  %v1144 = vsel %vm57, %v1124, %v1129
  %vm1145 = vcmask 523264
  %v1146 = vsel %vm1145, %v1144, %v1133
  %vm1147 = vcmask 785408
  %v1148 = vsel %vm1147, %v1146, %v1137
  %v1149 = vsel %vm57, %v1125, %v1142
  %v1150 = vld [vmem:[%s8] sm:$0xff]
  %v1151 = vld [vmem:[%s8 + $0x8] sm:$0xff]
  %v1152 = vld [vmem:[%s8 + $0x10] sm:$0xff]
  %v1153 = vld [vmem:[%s8 + $0x18] sm:$0xff]
  %v1154 = vld [vmem:[%s8 + $0x20] sm:$0xff]
  %v1155 = vld [vmem:[%s8 + $0x28] sm:$0xff]
  %v1156 = vld [vmem:[%s8 + $0x30] sm:$0xff]
  %v1157 = vld [vmem:[%s8 + $0x38] sm:$0xff]
  %v1158 = vld [vmem:[%s8 + $0x40] sm:$0xff]
  %v1159 = vld [vmem:[%s8 + $0x48] sm:$0xff]
  %v1160 = vld [vmem:[%s8 + $0x50] sm:$0xff]
  %v1161 = vld [vmem:[%s8 + $0x58] sm:$0xff]
  %v1162 = vld [vmem:[%s8 + $0x60] sm:$0xff]
  %v1163 = vld [vmem:[%s8 + $0x68] sm:$0xff]
  %v1164 = vld [vmem:[%s8 + $0x70] sm:$0xff]
  %v1165 = vld [vmem:[%s8 + $0x78] sm:$0xff]
  %v1166 = vld [vmem:[%s8 + $0x80] sm:$0xff]
  %v1167 = vld [vmem:[%s8 + $0x88] sm:$0xff]
  %v1168 = vld [vmem:[%s8 + $0x90] sm:$0xff]
  %v1169 = vld [vmem:[%s8 + $0x98] sm:$0xff]
  %v1170 = vld [vmem:[%s8 + $0xa0] sm:$0xff]
  %v1171 = vld [vmem:[%s8 + $0xa8] sm:$0xff]
  %v1172 = vld [vmem:[%s8 + $0xb0] sm:$0xff]
  %v1173 = vld [vmem:[%s8 + $0xb8] sm:$0xff]
  %v1174 = vld [vmem:[%s9] sm:$0x1]
  %v1176 = vlaneseq
  %v1177 = vshrl.u32 %v1176, 7
  %v1178 = vsub.s32 0, %v1177
  %v1179 = vrot.slane %v1174, %v1178
  %v1182 = vsel %vm1145, %v1149, 0
  %1184 = vmatprep.subr.mxu0 0.0
  %1185 = vmatpush1.msra.mxu0 %v1165
  %1186 = vmatprep.subr.mxu0 0.0
  %1187 = vmatpush1.msra.mxu0 %v1164
  %1188 = vmatprep.subr.mxu0 0.0
  %1189 = vmatpush1.msra.mxu0 %v1163
  %1190 = vmatprep.subr.mxu0 0.0
  %1191 = vmatpush1.msra.mxu0 %v1162
  %1192 = vmatprep.subr.mxu0 0.0
  %1193 = vmatpush1.msra.mxu0 %v1161
  %1194 = vmatprep.subr.mxu0 0.0
  %1195 = vmatpush1.msra.mxu0 %v1160
  %1196 = vmatprep.subr.mxu0 0.0
  %1197 = vmatpush1.msra.mxu0 %v1159
  %1198 = vmatprep.subr.mxu0 0.0
  %1199 = vmatpush1.msra.mxu0 %v1158
  %1200 = vmatprep.subr.mxu0 0.0
  %1201 = vmatpush1.msra.mxu0 %v1157
  %1202 = vmatprep.subr.mxu0 0.0
  %1203 = vmatpush1.msra.mxu0 %v1156
  %1204 = vmatprep.subr.mxu0 0.0
  %1205 = vmatpush1.msra.mxu0 %v1155
  %1206 = vmatprep.subr.mxu0 0.0
  %1207 = vmatpush1.msra.mxu0 %v1154
  %1208 = vmatprep.subr.mxu0 0.0
  %1209 = vmatpush1.msra.mxu0 %v1153
  %1210 = vmatprep.subr.mxu0 0.0
  %1211 = vmatpush1.msra.mxu0 %v1152
  %1212 = vmatprep.subr.mxu0 0.0
  %1213 = vmatpush1.msra.mxu0 %v1151
  %1214 = vmatprep.subr.mxu0 0.0
  %1215 = vmatpush1.msra.mxu0 %v1150
  %1216 = vmatprep.subr.mxu0 0.0
  %1217 = vmatpush2.msra.mxu0 0.0
  %1218 = vmatprep.subr.mxu0 0.0
  %1219 = vmatpush2.msra.mxu0 0.0
  %1220 = vmatprep.subr.mxu0 0.0
  %1221 = vmatpush2.msra.mxu0 0.0
  %1222 = vmatprep.subr.mxu0 0.0
  %1223 = vmatpush2.msra.mxu0 0.0
  %1224 = vmatprep.subr.mxu0 0.0
  %1225 = vmatpush2.msra.mxu0 0.0
  %1226 = vmatprep.subr.mxu0 0.0
  %1227 = vmatpush2.msra.mxu0 0.0
  %1228 = vmatprep.subr.mxu0 0.0
  %1229 = vmatpush2.msra.mxu0 0.0
  %1230 = vmatprep.subr.mxu0 0.0
  %1231 = vmatpush2.msra.mxu0 0.0
  %1232 = vmatprep.subr.mxu0 0.0
  %1233 = vmatpush2.msra.mxu0 %v1173
  %1234 = vmatprep.subr.mxu0 0.0
  %1235 = vmatpush2.msra.mxu0 %v1172
  %1236 = vmatprep.subr.mxu0 0.0
  %1237 = vmatpush2.msra.mxu0 %v1171
  %1238 = vmatprep.subr.mxu0 0.0
  %1239 = vmatpush2.msra.mxu0 %v1170
  %1240 = vmatprep.subr.mxu0 0.0
  %1241 = vmatpush2.msra.mxu0 %v1169
  %1242 = vmatprep.subr.mxu0 0.0
  %1243 = vmatpush2.msra.mxu0 %v1168
  %1244 = vmatprep.subr.mxu0 0.0
  %1245 = vmatpush2.msra.mxu0 %v1167
  %1246 = vmatprep.subr.mxu0 0.0
  %1247 = vmatpush2.msra.mxu0 %v1166
  %1248 = vmatprep.mubr.f32.mxu0 %v1182
  %1249 = vmatmul.mubr.f32.gmra.mxu0 %v1148
  %v1250 = vpop.f32.mrf.mxu0
  %v1251 = vadd.f32 %v1179, %v1250
  %v1252 = vpop.f32.mrf.mxu0
  %1253 = vdwg.mxu0
  %vm1254 = vcmask 41984
  %1255 = vst.msk [vmem:[%s10] sm:$0x3] %vm1254, %v1251
  // Predicated region
  $region42: #{forward.5} parent=0 // pred_check
    _
  $region43: #{forward.5} parent=0 // pred_check_branch
    %1257 = sbr.rel (0) target = $region45
  $region44: #{forward.5} parent=0 // pred_region
    _
  $region45: #{forward.5} parent=0 // pred_fallthru
    _
  // Predicated region
  $region46: #{forward.5} parent=0 // pred_check
    _
  $region47: #{forward.5} parent=0 // pred_check_branch
    %1259 = sbr.rel (0) target = $region49
  $region48: #{forward.5} parent=0 // pred_region
    _
  $region49: #{forward.5} parent=0 // pred_fallthru
    _

// kernel: forward.4
$region0: #{forward.4}
  #allocation0 [shape = 'u32[]', space=smem, size = 0x4, offset = 0x4, fixed_abs, tag = 'smem constant byte address 0x4 - core index']
  #allocation1 [shape = 'u32[144,128]{1,0:T(1,128)}', space=vmem, size = 0x12000, scoped, tag = 'internal scratch']
  %s0 = inlined_call_operand.vmem [shape: f32[6,4], index: 0, kind: input, shape index: {}]
  %s1 = inlined_call_operand.vmem [shape: f32[4,32,32], index: 1, kind: input, shape index: {}]
  %s2 = inlined_call_operand.vmem [shape: f32[32,32], index: 2, kind: input, shape index: {}]
  %s3 = inlined_call_operand.vmem [shape: f32[2,32], index: 3, kind: input, shape index: {}]
  %s4 = inlined_call_operand.vmem [shape: f32[6,32,96], index: 4, kind: input, shape index: {}]
  %s5 = inlined_call_operand.vmem [shape: f32[6,1,96], index: 5, kind: input, shape index: {}]
  %s6 = inlined_call_operand.vmem [shape: f32[6,32,32], index: 6, kind: input, shape index: {}]
  %s7 = inlined_call_operand.vmem [shape: f32[6,1,32], index: 7, kind: input, shape index: {}]
  %s8 = inlined_call_operand.vmem [shape: f32[6,1,32], index: 8, kind: input, shape index: {}]
  %s9 = inlined_call_operand.vmem [shape: f32[6,1,32], index: 9, kind: input, shape index: {}]
  %s10 = inlined_call_operand.vmem [shape: f32[6,2,32], index: 10, kind: output, shape index: {}]
  %s11 = sld [smem:[#allocation0]]
  $region77: #{forward.4} parent=0
    _
  %s13 = ssub.s32 1, %s11
  %s14 = scalar_select 0, %s13, %s11
  $region1: #{forward.4} parent=0
    #allocation2 [shape = 'u8[4096]{0}', space=smem, size = 0x1000, scoped, tag = 'input window, operand 0, single buffered']
    #allocation3 [shape = 's32[2]{0}', space=sflag, size = 0x8, scoped, tag = 'scoped memory for forward.4']
    %15 = vsyncpa [#allocation3], 0
    loop: start=0, step=1, limit=8
    $region2: #{forward.4} parent=1 // loop_pre_header
      _
    $region3: #{forward.4} parent=1 // loop_header
      %s17 = sphi 0, %s21
      %p18 = scmp.ge.s32.totalorder %s17, 8
      %s25 = sphi 0, %s25
      %s27 = sphi 0, %s25
      %s28 = sphi 0, %s27
      %s42 = sphi 0, %s28
      %s46 = sphi 0, %s46
      %s48 = sphi 0, %s46
      %s49 = sphi 0, %s48
      %s63 = sphi 0, %s49
      %s67 = sphi 0, %s67
      %s69 = sphi 0, %s67
      %s70 = sphi 0, %s69
      %s84 = sphi 0, %s70
      %s88 = sphi 0, %s88
      %s90 = sphi 0, %s88
      %s91 = sphi 0, %s90
      %s105 = sphi 0, %s91
      %s111 = sphi 0, %s113
      %s114 = sphi 0, %s111
      %s115 = sphi 0, %s114
      %s131 = sphi 0, %s115
      %s137 = sphi 0, %s139
      %s140 = sphi 0, %s137
      %s141 = sphi 0, %s140
      %s157 = sphi 0, %s141
      %s163 = sphi 0, %s165
      %s166 = sphi 0, %s163
      %s167 = sphi 0, %s166
      %s183 = sphi 0, %s167
      %s189 = sphi 0, %s191
      %s192 = sphi 0, %s189
      %s193 = sphi 0, %s192
      %s209 = sphi 0, %s193
      %s215 = sphi 0, %s217
      %s218 = sphi 0, %s215
      %s219 = sphi 0, %s218
      %s235 = sphi 0, %s219
      %s241 = sphi 0, %s243
      %s244 = sphi 0, %s241
      %s245 = sphi 0, %s244
      %s261 = sphi 0, %s245
      %s267 = sphi 0, %s269
      %s270 = sphi 0, %s267
      %s271 = sphi 0, %s270
      %s287 = sphi 0, %s271
    $region4: #{forward.4} parent=1 // loop_header_branch
      %20 = sbr.rel (%p18) target = $region8
    $region5: #{forward.4} parent=1 // loop_body
      %s22 = ssub.s32 %s17, 1
      %s23 = ssub.s32 %s17, 2
      %s24 = sadd.s32 %s17, 1
      %s26 = sadd.s32 %s25, 1
      %p29 = scmp.eq.s32.totalorder %s17, 5
      %p30 = scmp.ne.s32.totalorder %s25, %s27
      %p31 = scmp.eq.s32.totalorder %s17, 0
      %p32 = por %p30, %p31
      %p33 = scmp.ne.s32.totalorder %s25, %s27
      %p34 = scmp.eq.s32.totalorder %s22, 5
      %p35 = por %p33, %p34
      %p36 = scmp.ne.s32.totalorder %s27, %s28
      %p37 = scmp.eq.s32.totalorder %s22, 0
      %p38 = por %p36, %p37
      %p39 = scmp.ne.s32.totalorder %s27, %s28
      %p40 = scmp.eq.s32.totalorder %s23, 5
      %p41 = por %p39, %p40
      %p43 = scmp.ne.s32.totalorder %s28, %s42
      %p44 = scmp.eq.s32.totalorder %s23, 0
      %p45 = por %p43, %p44
      %s47 = sadd.s32 %s46, 1
      %p50 = scmp.eq.s32.totalorder %s17, 5
      %p51 = scmp.ne.s32.totalorder %s46, %s48
      %p52 = scmp.eq.s32.totalorder %s17, 0
      %p53 = por %p51, %p52
      %p54 = scmp.ne.s32.totalorder %s46, %s48
      %p55 = scmp.eq.s32.totalorder %s22, 5
      %p56 = por %p54, %p55
      %p57 = scmp.ne.s32.totalorder %s48, %s49
      %p58 = scmp.eq.s32.totalorder %s22, 0
      %p59 = por %p57, %p58
      %p60 = scmp.ne.s32.totalorder %s48, %s49
      %p61 = scmp.eq.s32.totalorder %s23, 5
      %p62 = por %p60, %p61
      %p64 = scmp.ne.s32.totalorder %s49, %s63
      %p65 = scmp.eq.s32.totalorder %s23, 0
      %p66 = por %p64, %p65
      %s68 = sadd.s32 %s67, 1
      %p71 = scmp.eq.s32.totalorder %s17, 5
      %p72 = scmp.ne.s32.totalorder %s67, %s69
      %p73 = scmp.eq.s32.totalorder %s17, 0
      %p74 = por %p72, %p73
      %p75 = scmp.ne.s32.totalorder %s67, %s69
      %p76 = scmp.eq.s32.totalorder %s22, 5
      %p77 = por %p75, %p76
      %p78 = scmp.ne.s32.totalorder %s69, %s70
      %p79 = scmp.eq.s32.totalorder %s22, 0
      %p80 = por %p78, %p79
      %p81 = scmp.ne.s32.totalorder %s69, %s70
      %p82 = scmp.eq.s32.totalorder %s23, 5
      %p83 = por %p81, %p82
      %p85 = scmp.ne.s32.totalorder %s70, %s84
      %p86 = scmp.eq.s32.totalorder %s23, 0
      %p87 = por %p85, %p86
      %s89 = sadd.s32 %s88, 1
      %p92 = scmp.eq.s32.totalorder %s17, 5
      %p93 = scmp.ne.s32.totalorder %s88, %s90
      %p94 = scmp.eq.s32.totalorder %s17, 0
      %p95 = por %p93, %p94
      %p96 = scmp.ne.s32.totalorder %s88, %s90
      %p97 = scmp.eq.s32.totalorder %s22, 5
      %p98 = por %p96, %p97
      %p99 = scmp.ne.s32.totalorder %s90, %s91
      %p100 = scmp.eq.s32.totalorder %s22, 0
      %p101 = por %p99, %p100
      %p102 = scmp.ne.s32.totalorder %s90, %s91
      %p103 = scmp.eq.s32.totalorder %s23, 5
      %p104 = por %p102, %p103
      %p106 = scmp.ne.s32.totalorder %s91, %s105
      %p107 = scmp.eq.s32.totalorder %s23, 0
      %p108 = por %p106, %p107
      %s109 = ssub.s32 %s17, %s24
      %p110 = scmp.eq.s32.totalorder %s109, 0
      %s112 = sadd.s32 %s111, 1
      %s113 = scalar_select %p110, %s111, %s112
      %p116 = pneg %p110
      %p117 = scmp.eq.s32.totalorder %s17, 5
      %p118 = por %p116, %p117
      %p119 = scmp.ne.s32.totalorder %s111, %s114
      %p120 = scmp.eq.s32.totalorder %s17, 0
      %p121 = por %p119, %p120
      %p122 = scmp.ne.s32.totalorder %s111, %s114
      %p123 = scmp.eq.s32.totalorder %s22, 5
      %p124 = por %p122, %p123
      %p125 = scmp.ne.s32.totalorder %s114, %s115
      %p126 = scmp.eq.s32.totalorder %s22, 0
      %p127 = por %p125, %p126
      %p128 = scmp.ne.s32.totalorder %s114, %s115
      %p129 = scmp.eq.s32.totalorder %s23, 5
      %p130 = por %p128, %p129
      %p132 = scmp.ne.s32.totalorder %s115, %s131
      %p133 = scmp.eq.s32.totalorder %s23, 0
      %p134 = por %p132, %p133
      %s135 = ssub.s32 %s17, %s24
      %p136 = scmp.eq.s32.totalorder %s135, 0
      %s138 = sadd.s32 %s137, 1
      %s139 = scalar_select %p136, %s137, %s138
      %p142 = pneg %p136
      %p143 = scmp.eq.s32.totalorder %s17, 5
      %p144 = por %p142, %p143
      %p145 = scmp.ne.s32.totalorder %s137, %s140
      %p146 = scmp.eq.s32.totalorder %s17, 0
      %p147 = por %p145, %p146
      %p148 = scmp.ne.s32.totalorder %s137, %s140
      %p149 = scmp.eq.s32.totalorder %s22, 5
      %p150 = por %p148, %p149
      %p151 = scmp.ne.s32.totalorder %s140, %s141
      %p152 = scmp.eq.s32.totalorder %s22, 0
      %p153 = por %p151, %p152
      %p154 = scmp.ne.s32.totalorder %s140, %s141
      %p155 = scmp.eq.s32.totalorder %s23, 5
      %p156 = por %p154, %p155
      %p158 = scmp.ne.s32.totalorder %s141, %s157
      %p159 = scmp.eq.s32.totalorder %s23, 0
      %p160 = por %p158, %p159
      %s161 = ssub.s32 %s17, %s24
      %p162 = scmp.eq.s32.totalorder %s161, 0
      %s164 = sadd.s32 %s163, 1
      %s165 = scalar_select %p162, %s163, %s164
      %p168 = pneg %p162
      %p169 = scmp.eq.s32.totalorder %s17, 5
      %p170 = por %p168, %p169
      %p171 = scmp.ne.s32.totalorder %s163, %s166
      %p172 = scmp.eq.s32.totalorder %s17, 0
      %p173 = por %p171, %p172
      %p174 = scmp.ne.s32.totalorder %s163, %s166
      %p175 = scmp.eq.s32.totalorder %s22, 5
      %p176 = por %p174, %p175
      %p177 = scmp.ne.s32.totalorder %s166, %s167
      %p178 = scmp.eq.s32.totalorder %s22, 0
      %p179 = por %p177, %p178
      %p180 = scmp.ne.s32.totalorder %s166, %s167
      %p181 = scmp.eq.s32.totalorder %s23, 5
      %p182 = por %p180, %p181
      %p184 = scmp.ne.s32.totalorder %s167, %s183
      %p185 = scmp.eq.s32.totalorder %s23, 0
      %p186 = por %p184, %p185
      %s187 = ssub.s32 %s17, %s24
      %p188 = scmp.eq.s32.totalorder %s187, 0
      %s190 = sadd.s32 %s189, 1
      %s191 = scalar_select %p188, %s189, %s190
      %p194 = pneg %p188
      %p195 = scmp.eq.s32.totalorder %s17, 5
      %p196 = por %p194, %p195
      %p197 = scmp.ne.s32.totalorder %s189, %s192
      %p198 = scmp.eq.s32.totalorder %s17, 0
      %p199 = por %p197, %p198
      %p200 = scmp.ne.s32.totalorder %s189, %s192
      %p201 = scmp.eq.s32.totalorder %s22, 5
      %p202 = por %p200, %p201
      %p203 = scmp.ne.s32.totalorder %s192, %s193
      %p204 = scmp.eq.s32.totalorder %s22, 0
      %p205 = por %p203, %p204
      %p206 = scmp.ne.s32.totalorder %s192, %s193
      %p207 = scmp.eq.s32.totalorder %s23, 5
      %p208 = por %p206, %p207
      %p210 = scmp.ne.s32.totalorder %s193, %s209
      %p211 = scmp.eq.s32.totalorder %s23, 0
      %p212 = por %p210, %p211
      %s213 = ssub.s32 %s17, %s24
      %p214 = scmp.eq.s32.totalorder %s213, 0
      %s216 = sadd.s32 %s215, 1
      %s217 = scalar_select %p214, %s215, %s216
      %p220 = pneg %p214
      %p221 = scmp.eq.s32.totalorder %s17, 5
      %p222 = por %p220, %p221
      %p223 = scmp.ne.s32.totalorder %s215, %s218
      %p224 = scmp.eq.s32.totalorder %s17, 0
      %p225 = por %p223, %p224
      %p226 = scmp.ne.s32.totalorder %s215, %s218
      %p227 = scmp.eq.s32.totalorder %s22, 5
      %p228 = por %p226, %p227
      %p229 = scmp.ne.s32.totalorder %s218, %s219
      %p230 = scmp.eq.s32.totalorder %s22, 0
      %p231 = por %p229, %p230
      %p232 = scmp.ne.s32.totalorder %s218, %s219
      %p233 = scmp.eq.s32.totalorder %s23, 5
      %p234 = por %p232, %p233
      %p236 = scmp.ne.s32.totalorder %s219, %s235
      %p237 = scmp.eq.s32.totalorder %s23, 0
      %p238 = por %p236, %p237
      %s239 = ssub.s32 %s17, %s24
      %p240 = scmp.eq.s32.totalorder %s239, 0
      %s242 = sadd.s32 %s241, 1
      %s243 = scalar_select %p240, %s241, %s242
      %p246 = pneg %p240
      %p247 = scmp.eq.s32.totalorder %s17, 5
      %p248 = por %p246, %p247
      %p249 = scmp.ne.s32.totalorder %s241, %s244
      %p250 = scmp.eq.s32.totalorder %s17, 0
      %p251 = por %p249, %p250
      %p252 = scmp.ne.s32.totalorder %s241, %s244
      %p253 = scmp.eq.s32.totalorder %s22, 5
      %p254 = por %p252, %p253
      %p255 = scmp.ne.s32.totalorder %s244, %s245
      %p256 = scmp.eq.s32.totalorder %s22, 0
      %p257 = por %p255, %p256
      %p258 = scmp.ne.s32.totalorder %s244, %s245
      %p259 = scmp.eq.s32.totalorder %s23, 5
      %p260 = por %p258, %p259
      %p262 = scmp.ne.s32.totalorder %s245, %s261
      %p263 = scmp.eq.s32.totalorder %s23, 0
      %p264 = por %p262, %p263
      %s265 = ssub.s32 %s17, %s24
      %p266 = scmp.eq.s32.totalorder %s265, 0
      %s268 = sadd.s32 %s267, 1
      %s269 = scalar_select %p266, %s267, %s268
      %p272 = pneg %p266
      %p273 = scmp.eq.s32.totalorder %s17, 5
      %p274 = por %p272, %p273
      %p275 = scmp.ne.s32.totalorder %s267, %s270
      %p276 = scmp.eq.s32.totalorder %s17, 0
      %p277 = por %p275, %p276
      %p278 = scmp.ne.s32.totalorder %s267, %s270
      %p279 = scmp.eq.s32.totalorder %s22, 5
      %p280 = por %p278, %p279
      %p281 = scmp.ne.s32.totalorder %s270, %s271
      %p282 = scmp.eq.s32.totalorder %s22, 0
      %p283 = por %p281, %p282
      %p284 = scmp.ne.s32.totalorder %s270, %s271
      %p285 = scmp.eq.s32.totalorder %s23, 5
      %p286 = por %p284, %p285
      %p288 = scmp.ne.s32.totalorder %s271, %s287
      %p289 = scmp.eq.s32.totalorder %s23, 0
      %p290 = por %p288, %p289
      %p291 = scmp.le.s32.totalorder 1, %s17
      %p292 = scmp.lt.s32.totalorder %s17, 7
      %p293 = pnand %p291, %p292
      %p294 = pneg %p293
      // Predicated region
      $region9: #{forward.4} parent=5 // pred_check
        _
      $region10: #{forward.4} parent=5 // pred_check_branch
        %296 = sbr.rel (%p293) target = $region12
      $region11: #{forward.4} parent=5 // pred_region
        %s297 = ssub.s32 %s17, 1
        // Predicated region
        $region13: #{forward.4} parent=11 // pred_check
          %p298 = pneg %p38
        $region14: #{forward.4} parent=11 // pred_check_branch
          %300 = sbr.rel (%p298) target = $region16
        $region15: #{forward.4} parent=11 // pred_region
          %s302 = ssub.s32 128, 128
          %303 = vsyncadd [#allocation3], %s302
          %s305 = sshll.u32 %s0, 4
          %s306 = int_to_ptr.vmem [resolvable:$true] %s305
          %308 = dma.vmem_to_smem %s306, 128, [#allocation2], [#allocation3]
        $region16: #{forward.4} parent=11 // pred_fallthru
          _
        // Predicated region
        $region17: #{forward.4} parent=11 // pred_check
          %p309 = pneg %p59
        $region18: #{forward.4} parent=11 // pred_check_branch
          %311 = sbr.rel (%p309) target = $region20
        $region19: #{forward.4} parent=11 // pred_region
          _
        $region20: #{forward.4} parent=11 // pred_fallthru
          _
        // Predicated region
        $region21: #{forward.4} parent=11 // pred_check
          %p312 = pneg %p80
        $region22: #{forward.4} parent=11 // pred_check_branch
          %314 = sbr.rel (%p312) target = $region24
        $region23: #{forward.4} parent=11 // pred_region
          _
        $region24: #{forward.4} parent=11 // pred_fallthru
          _
        // Predicated region
        $region25: #{forward.4} parent=11 // pred_check
          %p315 = pneg %p101
        $region26: #{forward.4} parent=11 // pred_check_branch
          %317 = sbr.rel (%p315) target = $region28
        $region27: #{forward.4} parent=11 // pred_region
          _
        $region28: #{forward.4} parent=11 // pred_fallthru
          _
      $region12: #{forward.4} parent=5 // pred_fallthru
        _
      %p318 = scmp.lt.s32.totalorder %s17, 6
      // Predicated region
      $region29: #{forward.4} parent=5 // pred_check
        %p319 = pneg %p318
      $region30: #{forward.4} parent=5 // pred_check_branch
        %321 = sbr.rel (%p319) target = $region32
      $region31: #{forward.4} parent=5 // pred_region
        // Predicated region
        $region33: #{forward.4} parent=31 // pred_check
          %p322 = pneg %p121
        $region34: #{forward.4} parent=31 // pred_check_branch
          %324 = sbr.rel (%p322) target = $region36
        $region35: #{forward.4} parent=31 // pred_region
          %p325 = scmp.lt.s32.totalorder %s17, 5
          %s326 = scalar_select %p325, %s17, 5
          %s327 = smul.addr %s326, 4
          %s328 = smul.addr %s327, 8
          %s329 = scalar_lea.vmem %s4, %s328
        $region36: #{forward.4} parent=31 // pred_fallthru
          _
        // Predicated region
        $region37: #{forward.4} parent=31 // pred_check
          %p330 = pneg %p147
        $region38: #{forward.4} parent=31 // pred_check_branch
          %332 = sbr.rel (%p330) target = $region40
        $region39: #{forward.4} parent=31 // pred_region
          %p333 = scmp.lt.s32.totalorder %s17, 5
          %s334 = scalar_select %p333, %s17, 5
          %s335 = scalar_lea.vmem %s5, %s334
        $region40: #{forward.4} parent=31 // pred_fallthru
          _
        // Predicated region
        $region41: #{forward.4} parent=31 // pred_check
          %p336 = pneg %p173
        $region42: #{forward.4} parent=31 // pred_check_branch
          %338 = sbr.rel (%p336) target = $region44
        $region43: #{forward.4} parent=31 // pred_region
          %p339 = scmp.lt.s32.totalorder %s17, 5
          %s340 = scalar_select %p339, %s17, 5
          %s341 = smul.addr %s340, 4
          %s342 = smul.addr %s341, 8
          %s343 = scalar_lea.vmem %s6, %s342
        $region44: #{forward.4} parent=31 // pred_fallthru
          _
        // Predicated region
        $region45: #{forward.4} parent=31 // pred_check
          %p344 = pneg %p199
        $region46: #{forward.4} parent=31 // pred_check_branch
          %346 = sbr.rel (%p344) target = $region48
        $region47: #{forward.4} parent=31 // pred_region
          %p347 = scmp.lt.s32.totalorder %s17, 5
          %s348 = scalar_select %p347, %s17, 5
          %s349 = scalar_lea.vmem %s7, %s348
        $region48: #{forward.4} parent=31 // pred_fallthru
          _
        // Predicated region
        $region49: #{forward.4} parent=31 // pred_check
          %p350 = pneg %p225
        $region50: #{forward.4} parent=31 // pred_check_branch
          %352 = sbr.rel (%p350) target = $region52
        $region51: #{forward.4} parent=31 // pred_region
          %p353 = scmp.lt.s32.totalorder %s17, 5
          %s354 = scalar_select %p353, %s17, 5
          %s355 = scalar_lea.vmem %s8, %s354
        $region52: #{forward.4} parent=31 // pred_fallthru
          _
        // Predicated region
        $region53: #{forward.4} parent=31 // pred_check
          %p356 = pneg %p251
        $region54: #{forward.4} parent=31 // pred_check_branch
          %358 = sbr.rel (%p356) target = $region56
        $region55: #{forward.4} parent=31 // pred_region
          %p359 = scmp.lt.s32.totalorder %s17, 5
          %s360 = scalar_select %p359, %s17, 5
          %s361 = scalar_lea.vmem %s9, %s360
        $region56: #{forward.4} parent=31 // pred_fallthru
          _
      $region32: #{forward.4} parent=5 // pred_fallthru
        _
      %p362 = scmp.le.s32.totalorder 1, %s17
      %p363 = scmp.lt.s32.totalorder %s17, 7
      %p364 = pnand %p362, %p363
      %p365 = pneg %p364
      // Predicated region
      $region57: #{forward.4} parent=5 // pred_check
        _
      $region58: #{forward.4} parent=5 // pred_check_branch
        %367 = sbr.rel (%p364) target = $region60
      $region59: #{forward.4} parent=5 // pred_region
        %s368 = ssub.s32 %s17, 1
        // Predicated region
        $region61: #{forward.4} parent=59 // pred_check
          %p369 = pneg %p38
        $region62: #{forward.4} parent=59 // pred_check_branch
          %371 = sbr.rel (%p369) target = $region64
        $region63: #{forward.4} parent=59 // pred_region
          %372 = dma.done [#allocation3], 128
        $region64: #{forward.4} parent=59 // pred_fallthru
          _
        %373 = sfence
        %p374 = pneg %p38
        %p375 = pneg %p35
        %p376 = pneg %p59
        %p377 = pneg %p56
        %p378 = pneg %p80
        %p379 = pneg %p77
        %p380 = pneg %p101
        %p381 = pneg %p98
        %p382 = scmp.lt.s32.totalorder %s22, 5
        %s383 = scalar_select %p382, %s22, 5
        %s384 = smul.addr %s383, 4
        %s385 = smul.addr %s384, 8
        %s386 = scalar_lea.vmem %s4, %s385
        %p387 = pneg %p127
        %p388 = pneg %p124
        %p389 = scmp.lt.s32.totalorder %s22, 5
        %s390 = scalar_select %p389, %s22, 5
        %s391 = scalar_lea.vmem %s5, %s390
        %p392 = pneg %p153
        %p393 = pneg %p150
        %p394 = scmp.lt.s32.totalorder %s22, 5
        %s395 = scalar_select %p394, %s22, 5
        %s396 = smul.addr %s395, 4
        %s397 = smul.addr %s396, 8
        %s398 = scalar_lea.vmem %s6, %s397
        %p399 = pneg %p179
        %p400 = pneg %p176
        %p401 = scmp.lt.s32.totalorder %s22, 5
        %s402 = scalar_select %p401, %s22, 5
        %s403 = scalar_lea.vmem %s7, %s402
        %p404 = pneg %p205
        %p405 = pneg %p202
        %p406 = scmp.lt.s32.totalorder %s22, 5
        %s407 = scalar_select %p406, %s22, 5
        %s408 = scalar_lea.vmem %s8, %s407
        %p409 = pneg %p231
        %p410 = pneg %p228
        %p411 = scmp.lt.s32.totalorder %s22, 5
        %s412 = scalar_select %p411, %s22, 5
        %s413 = scalar_lea.vmem %s9, %s412
        %p414 = pneg %p257
        %p415 = pneg %p254
        %p416 = pneg %p283
        %p417 = pneg %p280
        %p418 = scmp.lt.s32.totalorder %s22, 5
        %s419 = scalar_select %p418, %s22, 5
        %s420 = smul.addr %s419, 2
        %s421 = scalar_lea.vmem %s10, %s420
        %p422 = scmp.lt.s32.totalorder %s22, 5
        %s423 = scalar_select %p422, %s22, 5
        %s424 = smul.addr %s423, 4
        %s425 = smul.addr %s424, 8
        %s426 = scalar_lea.vmem %s4, %s425
        %p427 = scmp.lt.s32.totalorder %s22, 5
        %s428 = scalar_select %p427, %s22, 5
        %s429 = scalar_lea.vmem %s5, %s428
        %p430 = scmp.lt.s32.totalorder %s22, 5
        %s431 = scalar_select %p430, %s22, 5
        %s432 = smul.addr %s431, 4
        %s433 = smul.addr %s432, 8
        %s434 = scalar_lea.vmem %s6, %s433
        %p435 = scmp.lt.s32.totalorder %s22, 5
        %s436 = scalar_select %p435, %s22, 5
        %s437 = scalar_lea.vmem %s7, %s436
        %p438 = scmp.lt.s32.totalorder %s22, 5
        %s439 = scalar_select %p438, %s22, 5
        %s440 = scalar_lea.vmem %s8, %s439
        %p441 = scmp.lt.s32.totalorder %s22, 5
        %s442 = scalar_select %p441, %s22, 5
        %s443 = scalar_lea.vmem %s9, %s442
        %p444 = scmp.lt.s32.totalorder %s22, 5
        %s445 = scalar_select %p444, %s22, 5
        %s446 = smul.addr %s445, 2
        %s447 = scalar_lea.vmem %s10, %s446
        %s448 = smul.u32 %s22, 128
        %s449 = sld [smem:[#allocation2 + %s448]]
        %v450 = vld [vmem:[%s1] sm:$0xff]
        %v451 = vld [vmem:[%s1 + $0x8] sm:$0xff]
        %v452 = vld [vmem:[%s1 + $0x10] sm:$0xff]
        %v453 = vld [vmem:[%s1 + $0x18] sm:$0xff]
        %v454 = vstv %s449
        %v455 = vmul.f32 %v454, %v450
        %v456 = vmul.f32 %v454, %v451
        %v457 = vmul.f32 %v454, %v452
        %v458 = vmul.f32 %v454, %v453
        %s459 = sadd.s32 %s448, 1
        %s460 = sld [smem:[#allocation2 + %s459]]
        %s461 = scalar_lea.vmem %s1, 32
        %v462 = vld [vmem:[%s461] sm:$0xff]
        %v463 = vld [vmem:[%s461 + $0x8] sm:$0xff]
        %v464 = vld [vmem:[%s461 + $0x10] sm:$0xff]
        %v465 = vld [vmem:[%s461 + $0x18] sm:$0xff]
        %v466 = vstv %s460
        %v467 = vmul.f32 %v466, %v462
        %v468 = vmul.f32 %v466, %v463
        %v469 = vmul.f32 %v466, %v464
        %v470 = vmul.f32 %v466, %v465
        %v471 = vadd.f32 %v455, %v467
        %v472 = vadd.f32 %v456, %v468
        %v473 = vadd.f32 %v457, %v469
        %v474 = vadd.f32 %v458, %v470
        %s475 = sadd.s32 %s448, 2
        %s476 = sld [smem:[#allocation2 + %s475]]
        %s477 = scalar_lea.vmem %s1, 64
        %v478 = vld [vmem:[%s477] sm:$0xff]
        %v479 = vld [vmem:[%s477 + $0x8] sm:$0xff]
        %v480 = vld [vmem:[%s477 + $0x10] sm:$0xff]
        %v481 = vld [vmem:[%s477 + $0x18] sm:$0xff]
        %v482 = vstv %s476
        %v483 = vmul.f32 %v482, %v478
        %v484 = vmul.f32 %v482, %v479
        %v485 = vmul.f32 %v482, %v480
        %v486 = vmul.f32 %v482, %v481
        %v487 = vadd.f32 %v471, %v483
        %v488 = vadd.f32 %v472, %v484
        %v489 = vadd.f32 %v473, %v485
        %v490 = vadd.f32 %v474, %v486
        %s491 = sadd.s32 %s448, 3
        %s492 = sld [smem:[#allocation2 + %s491]]
        %s493 = scalar_lea.vmem %s1, 96
        %v494 = vld [vmem:[%s493] sm:$0xff]
        %v495 = vld [vmem:[%s493 + $0x8] sm:$0xff]
        %v496 = vld [vmem:[%s493 + $0x10] sm:$0xff]
        %v497 = vld [vmem:[%s493 + $0x18] sm:$0xff]
        %v498 = vstv %s492
        %v499 = vmul.f32 %v498, %v494
        %v500 = vmul.f32 %v498, %v495
        %v501 = vmul.f32 %v498, %v496
        %v502 = vmul.f32 %v498, %v497
        %v503 = vadd.f32 %v487, %v499
        %v504 = vadd.f32 %v488, %v500
        %v505 = vadd.f32 %v489, %v501
        %v506 = vadd.f32 %v490, %v502
        %v507 = vld [vmem:[%s2] sm:$0xff]
        %v508 = vld [vmem:[%s2 + $0x8] sm:$0xff]
        %v509 = vld [vmem:[%s2 + $0x10] sm:$0xff]
        %v510 = vld [vmem:[%s2 + $0x18] sm:$0xff]
        %v511 = vld [vmem:[%s426] sm:$0xff]
        %v512 = vld [vmem:[%s426 + $0x8] sm:$0xff]
        %v513 = vld [vmem:[%s426 + $0x10] sm:$0xff]
        %v514 = vld [vmem:[%s426 + $0x18] sm:$0xff]
        %v515 = vld [vmem:[%s429] sm:$0x1]
        %v516 = vld [vmem:[%s434] sm:$0xff]
        %v517 = vld [vmem:[%s434 + $0x8] sm:$0xff]
        %v518 = vld [vmem:[%s434 + $0x10] sm:$0xff]
        %v519 = vld [vmem:[%s434 + $0x18] sm:$0xff]
        %v520 = vld [vmem:[%s437] sm:$0x1]
        %v521 = vld [vmem:[%s440] sm:$0x1]
        %v522 = vld [vmem:[%s443] sm:$0x1]
        %v524 = vlaneseq
        %v525 = vshrl.u32 %v524, 7
        %v526 = vsub.s32 0, %v525
        %v527 = vrot.slane %v515, %v526
        %vm529 = vcmask 261120
        %v531 = vsel %vm529, %v503, 0
        %v534 = vsel %vm529, %v504, 0
        %v537 = vsel %vm529, %v505, 0
        %v540 = vsel %vm529, %v506, 0
        %542 = vmatprep.subr.mxu0 0.0
        %543 = vmatpush1.msra.mxu0 0.0
        %544 = vmatprep.subr.mxu0 0.0
        %545 = vmatpush1.msra.mxu0 0.0
        %546 = vmatprep.subr.mxu0 0.0
        %547 = vmatpush1.msra.mxu0 0.0
        %548 = vmatprep.subr.mxu0 0.0
        %549 = vmatpush1.msra.mxu0 0.0
        %550 = vmatprep.subr.mxu0 0.0
        %551 = vmatpush1.msra.mxu0 0.0
        %552 = vmatprep.subr.mxu0 0.0
        %553 = vmatpush1.msra.mxu0 0.0
        %554 = vmatprep.subr.mxu0 0.0
        %555 = vmatpush1.msra.mxu0 0.0
        %556 = vmatprep.subr.mxu0 0.0
        %557 = vmatpush1.msra.mxu0 0.0
        %558 = vmatprep.subr.mxu0 0.0
        %559 = vmatpush1.msra.mxu0 0.0
        %560 = vmatprep.subr.mxu0 0.0
        %561 = vmatpush1.msra.mxu0 0.0
        %562 = vmatprep.subr.mxu0 0.0
        %563 = vmatpush1.msra.mxu0 0.0
        %564 = vmatprep.subr.mxu0 0.0
        %565 = vmatpush1.msra.mxu0 0.0
        %566 = vmatprep.subr.mxu0 0.0
        %567 = vmatpush1.msra.mxu0 %v514
        %568 = vmatprep.subr.mxu0 0.0
        %569 = vmatpush1.msra.mxu0 %v513
        %570 = vmatprep.subr.mxu0 0.0
        %571 = vmatpush1.msra.mxu0 %v512
        %572 = vmatprep.subr.mxu0 0.0
        %573 = vmatpush1.msra.mxu0 %v511
        %574 = vmatprep.subr.mxu0 0.0
        %575 = vmatpush2.msra.mxu0 0.0
        %576 = vmatprep.subr.mxu0 0.0
        %577 = vmatpush2.msra.mxu0 0.0
        %578 = vmatprep.subr.mxu0 0.0
        %579 = vmatpush2.msra.mxu0 0.0
        %580 = vmatprep.subr.mxu0 0.0
        %581 = vmatpush2.msra.mxu0 0.0
        %582 = vmatprep.subr.mxu0 0.0
        %583 = vmatpush2.msra.mxu0 0.0
        %584 = vmatprep.subr.mxu0 0.0
        %585 = vmatpush2.msra.mxu0 0.0
        %586 = vmatprep.subr.mxu0 0.0
        %587 = vmatpush2.msra.mxu0 0.0
        %588 = vmatprep.subr.mxu0 0.0
        %589 = vmatpush2.msra.mxu0 0.0
        %590 = vmatprep.subr.mxu0 0.0
        %591 = vmatpush2.msra.mxu0 0.0
        %592 = vmatprep.subr.mxu0 0.0
        %593 = vmatpush2.msra.mxu0 0.0
        %594 = vmatprep.subr.mxu0 0.0
        %595 = vmatpush2.msra.mxu0 0.0
        %596 = vmatprep.subr.mxu0 0.0
        %597 = vmatpush2.msra.mxu0 0.0
        %598 = vmatprep.subr.mxu0 0.0
        %599 = vmatpush2.msra.mxu0 0.0
        %600 = vmatprep.subr.mxu0 0.0
        %601 = vmatpush2.msra.mxu0 0.0
        %602 = vmatprep.subr.mxu0 0.0
        %603 = vmatpush2.msra.mxu0 0.0
        %604 = vmatprep.subr.mxu0 0.0
        %605 = vmatpush2.msra.mxu0 0.0
        %606 = vmatprep.mubr.f32.mxu0 0.0
        %607 = vmatmul.mubr.f32.gmra.mxu0 %v531
        %v608 = vpop.f32.mrf.mxu0
        %v609 = vadd.f32 %v527, %v608
        %v610 = vpop.f32.mrf.mxu0
        %611 = vmatprep.mubr.f32.mxu0 0.0
        %612 = vmatmul.mubr.f32.gmra.mxu0 %v534
        %v613 = vpop.f32.mrf.mxu0
        %v614 = vadd.f32 %v527, %v613
        %v615 = vpop.f32.mrf.mxu0
        %616 = vmatprep.mubr.f32.mxu0 0.0
        %617 = vmatmul.mubr.f32.gmra.mxu0 %v537
        %v618 = vpop.f32.mrf.mxu0
        %v619 = vadd.f32 %v527, %v618
        %v620 = vpop.f32.mrf.mxu0
        %621 = vmatprep.mubr.f32.mxu0 0.0
        %622 = vmatmul.mubr.f32.gmra.mxu0 %v540
        %v623 = vpop.f32.mrf.mxu0
        %v624 = vadd.f32 %v527, %v623
        %v625 = vpop.f32.mrf.mxu0
        %626 = vdwg.mxu0
        %631 = vrot.lane.b32.xlu0 %v609, 96
        %v632 = vpop.permute.xlu0 %631
        %633 = vrot.lane.b32.xlu0 %v614, 96
        %v634 = vpop.permute.xlu0 %633
        %635 = vrot.lane.b32.xlu0 %v619, 96
        %v636 = vpop.permute.xlu0 %635
        %637 = vrot.lane.b32.xlu0 %v624, 96
        %v638 = vpop.permute.xlu0 %637
        %vm639 = vcmask 64512
        %v640 = vsel %vm639, %v609, 0
        %v642 = vsel %vm639, %v614, 0
        %v644 = vsel %vm639, %v619, 0
        %v646 = vsel %vm639, %v624, 0
        %v648 = vsel %vm639, %v632, 0
        %v650 = vsel %vm639, %v634, 0
        %v652 = vsel %vm639, %v636, 0
        %v654 = vsel %vm639, %v638, 0
        %656 = vmatprep.subr.mxu0 0.0
        %657 = vmatpush1.xpose.msra.mxu0 0.0
        %658 = vmatprep.subr.mxu0 0.0
        %659 = vmatpush1.xpose.msra.mxu0 0.0
        %660 = vmatprep.subr.mxu0 0.0
        %661 = vmatpush1.xpose.msra.mxu0 0.0
        %662 = vmatprep.subr.mxu0 0.0
        %663 = vmatpush1.xpose.msra.mxu0 0.0
        %664 = vmatprep.subr.mxu0 0.0
        %665 = vmatpush1.xpose.msra.mxu0 0.0
        %666 = vmatprep.subr.mxu0 0.0
        %667 = vmatpush1.xpose.msra.mxu0 0.0
        %668 = vmatprep.subr.mxu0 0.0
        %669 = vmatpush1.xpose.msra.mxu0 0.0
        %670 = vmatprep.subr.mxu0 0.0
        %671 = vmatpush1.xpose.msra.mxu0 0.0
        %672 = vmatprep.subr.mxu0 0.0
        %673 = vmatpush1.xpose.msra.mxu0 0.0
        %674 = vmatprep.subr.mxu0 0.0
        %675 = vmatpush1.xpose.msra.mxu0 0.0
        %676 = vmatprep.subr.mxu0 0.0
        %677 = vmatpush1.xpose.msra.mxu0 0.0
        %678 = vmatprep.subr.mxu0 0.0
        %679 = vmatpush1.xpose.msra.mxu0 0.0
        %680 = vmatprep.subr.mxu0 0.0
        %681 = vmatpush1.xpose.msra.mxu0 %v654
        %682 = vmatprep.subr.mxu0 0.0
        %683 = vmatpush1.xpose.msra.mxu0 %v652
        %684 = vmatprep.subr.mxu0 0.0
        %685 = vmatpush1.xpose.msra.mxu0 %v650
        %686 = vmatprep.subr.mxu0 0.0
        %687 = vmatpush1.xpose.msra.mxu0 %v648
        %688 = vmatprep.subr.mxu0 0.0
        %689 = vmatpush2.xpose.msra.mxu0 0.0
        %690 = vmatprep.subr.mxu0 0.0
        %691 = vmatpush2.xpose.msra.mxu0 0.0
        %692 = vmatprep.subr.mxu0 0.0
        %693 = vmatpush2.xpose.msra.mxu0 0.0
        %694 = vmatprep.subr.mxu0 0.0
        %695 = vmatpush2.xpose.msra.mxu0 0.0
        %696 = vmatprep.subr.mxu0 0.0
        %697 = vmatpush2.xpose.msra.mxu0 0.0
        %698 = vmatprep.subr.mxu0 0.0
        %699 = vmatpush2.xpose.msra.mxu0 0.0
        %700 = vmatprep.subr.mxu0 0.0
        %701 = vmatpush2.xpose.msra.mxu0 0.0
        %702 = vmatprep.subr.mxu0 0.0
        %703 = vmatpush2.xpose.msra.mxu0 0.0
        %704 = vmatprep.subr.mxu0 0.0
        %705 = vmatpush2.xpose.msra.mxu0 0.0
        %706 = vmatprep.subr.mxu0 0.0
        %707 = vmatpush2.xpose.msra.mxu0 0.0
        %708 = vmatprep.subr.mxu0 0.0
        %709 = vmatpush2.xpose.msra.mxu0 0.0
        %710 = vmatprep.subr.mxu0 0.0
        %711 = vmatpush2.xpose.msra.mxu0 0.0
        %712 = vmatprep.subr.mxu0 0.0
        %713 = vmatpush2.xpose.msra.mxu0 0.0
        %714 = vmatprep.subr.mxu0 0.0
        %715 = vmatpush2.xpose.msra.mxu0 0.0
        %716 = vmatprep.subr.mxu0 0.0
        %717 = vmatpush2.xpose.msra.mxu0 0.0
        %718 = vmatprep.subr.mxu0 0.0
        %719 = vmatpush2.xpose.msra.mxu0 0.0
        %720 = vmatprep.mubr.f32.mxu0 0.0
        %721 = vmatmul.mubr.f32.gmra.mxu0 %v640
        %v722 = vpop.f32.mrf.mxu0
        %v723 = vadd.f32 0.0, %v722
        %v724 = vpop.f32.mrf.mxu0
        %725 = vmatprep.mubr.f32.mxu0 0.0
        %726 = vmatmul.mubr.f32.gmra.mxu0 %v642
        %v727 = vpop.f32.mrf.mxu0
        %v728 = vadd.f32 0.0, %v727
        %v729 = vpop.f32.mrf.mxu0
        %730 = vmatprep.mubr.f32.mxu0 0.0
        %731 = vmatmul.mubr.f32.gmra.mxu0 %v644
        %v732 = vpop.f32.mrf.mxu0
        %v733 = vadd.f32 0.0, %v732
        %v734 = vpop.f32.mrf.mxu0
        %735 = vmatprep.mubr.f32.mxu0 0.0
        %736 = vmatmul.mubr.f32.gmra.mxu0 %v646
        %v737 = vpop.f32.mrf.mxu0
        %v738 = vadd.f32 0.0, %v737
        %v739 = vpop.f32.mrf.mxu0
        %740 = vdwg.mxu0
        %v741 = vmul.f32 %v723, 0.35355338
        %v742 = vmul.f32 %v728, 0.35355338
        %v743 = vmul.f32 %v733, 0.35355338
        %v744 = vmul.f32 %v738, 0.35355338
        %v745 = vadd.f32 %v741, %v507
        %v746 = vadd.f32 %v742, %v508
        %v747 = vadd.f32 %v743, %v509
        %v748 = vadd.f32 %v744, %v510
        %v749 = vsel %vm529, %v745, -inf
        %750 = vmax.xlane.f32.xlu0 %v749
        %v751 = vpop.xlane.xlu0 %750
        %v752 = vsel %vm529, %v746, -inf
        %753 = vmax.xlane.f32.xlu0 %v752
        %v754 = vpop.xlane.xlu0 %753
        %v755 = vsel %vm529, %v747, -inf
        %756 = vmax.xlane.f32.xlu0 %v755
        %v757 = vpop.xlane.xlu0 %756
        %v758 = vsel %vm529, %v748, -inf
        %759 = vmax.xlane.f32.xlu0 %v758
        %v760 = vpop.xlane.xlu0 %759
        %v761 = vsub.f32 %v745, %v751
        %v762 = vsub.f32 %v746, %v754
        %v763 = vsub.f32 %v747, %v757
        %v764 = vsub.f32 %v748, %v760
        %v765 = vmul.f32 %v761, 1.442695
        %v766 = vpow.pop %v765
        %v767 = vmul.f32 %v762, 1.442695
        %v768 = vpow.pop %v767
        %v769 = vmul.f32 %v763, 1.442695
        %v770 = vpow.pop %v769
        %v771 = vmul.f32 %v764, 1.442695
        %v772 = vpow.pop %v771
        %v773 = vsel %vm529, %v766, 0.0
        %774 = vadd.xlane.f32.xlu0 %v773
        %v775 = vpop.xlane.xlu0 %774
        %v776 = vsel %vm529, %v768, 0.0
        %777 = vadd.xlane.f32.xlu0 %v776
        %v778 = vpop.xlane.xlu0 %777
        %v779 = vsel %vm529, %v770, 0.0
        %780 = vadd.xlane.f32.xlu0 %v779
        %v781 = vpop.xlane.xlu0 %780
        %v782 = vsel %vm529, %v772, 0.0
        %783 = vadd.xlane.f32.xlu0 %v782
        %v784 = vpop.xlane.xlu0 %783
        %v785 = vrcp.pop %v775
        %v786 = vmul.f32 %v766, %v785
        %v787 = vrcp.pop %v778
        %v788 = vmul.f32 %v768, %v787
        %v789 = vrcp.pop %v781
        %v790 = vmul.f32 %v770, %v789
        %v791 = vrcp.pop %v784
        %v792 = vmul.f32 %v772, %v791
        %793 = vrot.lane.b32.xlu0 %v609, 64
        %v794 = vpop.permute.xlu0 %793
        %795 = vrot.lane.b32.xlu0 %v614, 64
        %v796 = vpop.permute.xlu0 %795
        %797 = vrot.lane.b32.xlu0 %v619, 64
        %v798 = vpop.permute.xlu0 %797
        %799 = vrot.lane.b32.xlu0 %v624, 64
        %v800 = vpop.permute.xlu0 %799
        %v806 = vsel %vm529, %v786, 0
        %v809 = vsel %vm529, %v788, 0
        %v812 = vsel %vm529, %v790, 0
        %v815 = vsel %vm529, %v792, 0
        %817 = vmatprep.subr.mxu0 0.0
        %818 = vmatpush1.msra.mxu0 0.0
        %819 = vmatprep.subr.mxu0 0.0
        %820 = vmatpush1.msra.mxu0 0.0
        %821 = vmatprep.subr.mxu0 0.0
        %822 = vmatpush1.msra.mxu0 0.0
        %823 = vmatprep.subr.mxu0 0.0
        %824 = vmatpush1.msra.mxu0 0.0
        %825 = vmatprep.subr.mxu0 0.0
        %826 = vmatpush1.msra.mxu0 0.0
        %827 = vmatprep.subr.mxu0 0.0
        %828 = vmatpush1.msra.mxu0 0.0
        %829 = vmatprep.subr.mxu0 0.0
        %830 = vmatpush1.msra.mxu0 0.0
        %831 = vmatprep.subr.mxu0 0.0
        %832 = vmatpush1.msra.mxu0 0.0
        %833 = vmatprep.subr.mxu0 0.0
        %834 = vmatpush1.msra.mxu0 0.0
        %835 = vmatprep.subr.mxu0 0.0
        %836 = vmatpush1.msra.mxu0 0.0
        %837 = vmatprep.subr.mxu0 0.0
        %838 = vmatpush1.msra.mxu0 0.0
        %839 = vmatprep.subr.mxu0 0.0
        %840 = vmatpush1.msra.mxu0 0.0
        %841 = vmatprep.subr.mxu0 0.0
        %842 = vmatpush1.msra.mxu0 %v800
        %843 = vmatprep.subr.mxu0 0.0
        %844 = vmatpush1.msra.mxu0 %v798
        %845 = vmatprep.subr.mxu0 0.0
        %846 = vmatpush1.msra.mxu0 %v796
        %847 = vmatprep.subr.mxu0 0.0
        %848 = vmatpush1.msra.mxu0 %v794
        %849 = vmatprep.subr.mxu0 0.0
        %850 = vmatpush2.msra.mxu0 0.0
        %851 = vmatprep.subr.mxu0 0.0
        %852 = vmatpush2.msra.mxu0 0.0
        %853 = vmatprep.subr.mxu0 0.0
        %854 = vmatpush2.msra.mxu0 0.0
        %855 = vmatprep.subr.mxu0 0.0
        %856 = vmatpush2.msra.mxu0 0.0
        %857 = vmatprep.subr.mxu0 0.0
        %858 = vmatpush2.msra.mxu0 0.0
        %859 = vmatprep.subr.mxu0 0.0
        %860 = vmatpush2.msra.mxu0 0.0
        %861 = vmatprep.subr.mxu0 0.0
        %862 = vmatpush2.msra.mxu0 0.0
        %863 = vmatprep.subr.mxu0 0.0
        %864 = vmatpush2.msra.mxu0 0.0
        %865 = vmatprep.subr.mxu0 0.0
        %866 = vmatpush2.msra.mxu0 0.0
        %867 = vmatprep.subr.mxu0 0.0
        %868 = vmatpush2.msra.mxu0 0.0
        %869 = vmatprep.subr.mxu0 0.0
        %870 = vmatpush2.msra.mxu0 0.0
        %871 = vmatprep.subr.mxu0 0.0
        %872 = vmatpush2.msra.mxu0 0.0
        %873 = vmatprep.subr.mxu0 0.0
        %874 = vmatpush2.msra.mxu0 0.0
        %875 = vmatprep.subr.mxu0 0.0
        %876 = vmatpush2.msra.mxu0 0.0
        %877 = vmatprep.subr.mxu0 0.0
        %878 = vmatpush2.msra.mxu0 0.0
        %879 = vmatprep.subr.mxu0 0.0
        %880 = vmatpush2.msra.mxu0 0.0
        %881 = vmatprep.mubr.f32.mxu0 0.0
        %882 = vmatmul.mubr.f32.gmra.mxu0 %v806
        %v883 = vpop.f32.mrf.mxu0
        %v884 = vadd.f32 0.0, %v883
        %v885 = vpop.f32.mrf.mxu0
        %886 = vmatprep.mubr.f32.mxu0 0.0
        %887 = vmatmul.mubr.f32.gmra.mxu0 %v809
        %v888 = vpop.f32.mrf.mxu0
        %v889 = vadd.f32 0.0, %v888
        %v890 = vpop.f32.mrf.mxu0
        %891 = vmatprep.mubr.f32.mxu0 0.0
        %892 = vmatmul.mubr.f32.gmra.mxu0 %v812
        %v893 = vpop.f32.mrf.mxu0
        %v894 = vadd.f32 0.0, %v893
        %v895 = vpop.f32.mrf.mxu0
        %896 = vmatprep.mubr.f32.mxu0 0.0
        %897 = vmatmul.mubr.f32.gmra.mxu0 %v815
        %v898 = vpop.f32.mrf.mxu0
        %v899 = vadd.f32 0.0, %v898
        %v900 = vpop.f32.mrf.mxu0
        %901 = vdwg.mxu0
        %902 = vrot.lane.b32.xlu0 %v609, 120
        %v903 = vpop.permute.xlu0 %902
        %904 = vrot.lane.b32.xlu0 %v614, 120
        %v905 = vpop.permute.xlu0 %904
        %906 = vrot.lane.b32.xlu0 %v619, 120
        %v907 = vpop.permute.xlu0 %906
        %908 = vrot.lane.b32.xlu0 %v624, 120
        %v909 = vpop.permute.xlu0 %908
        %910 = vrot.lane.b32.xlu0 %v609, 88
        %v911 = vpop.permute.xlu0 %910
        %912 = vrot.lane.b32.xlu0 %v614, 88
        %v913 = vpop.permute.xlu0 %912
        %914 = vrot.lane.b32.xlu0 %v619, 88
        %v915 = vpop.permute.xlu0 %914
        %916 = vrot.lane.b32.xlu0 %v624, 88
        %v917 = vpop.permute.xlu0 %916
        %v918 = vsel %vm639, %v903, 0
        %v920 = vsel %vm639, %v905, 0
        %v922 = vsel %vm639, %v907, 0
        %v924 = vsel %vm639, %v909, 0
        %v926 = vsel %vm639, %v911, 0
        %v928 = vsel %vm639, %v913, 0
        %v930 = vsel %vm639, %v915, 0
        %v932 = vsel %vm639, %v917, 0
        %934 = vmatprep.subr.mxu0 0.0
        %935 = vmatpush1.xpose.msra.mxu0 0.0
        %936 = vmatprep.subr.mxu0 0.0
        %937 = vmatpush1.xpose.msra.mxu0 0.0
        %938 = vmatprep.subr.mxu0 0.0
        %939 = vmatpush1.xpose.msra.mxu0 0.0
        %940 = vmatprep.subr.mxu0 0.0
        %941 = vmatpush1.xpose.msra.mxu0 0.0
        %942 = vmatprep.subr.mxu0 0.0
        %943 = vmatpush1.xpose.msra.mxu0 0.0
        %944 = vmatprep.subr.mxu0 0.0
        %945 = vmatpush1.xpose.msra.mxu0 0.0
        %946 = vmatprep.subr.mxu0 0.0
        %947 = vmatpush1.xpose.msra.mxu0 0.0
        %948 = vmatprep.subr.mxu0 0.0
        %949 = vmatpush1.xpose.msra.mxu0 0.0
        %950 = vmatprep.subr.mxu0 0.0
        %951 = vmatpush1.xpose.msra.mxu0 0.0
        %952 = vmatprep.subr.mxu0 0.0
        %953 = vmatpush1.xpose.msra.mxu0 0.0
        %954 = vmatprep.subr.mxu0 0.0
        %955 = vmatpush1.xpose.msra.mxu0 0.0
        %956 = vmatprep.subr.mxu0 0.0
        %957 = vmatpush1.xpose.msra.mxu0 0.0
        %958 = vmatprep.subr.mxu0 0.0
        %959 = vmatpush1.xpose.msra.mxu0 %v932
        %960 = vmatprep.subr.mxu0 0.0
        %961 = vmatpush1.xpose.msra.mxu0 %v930
        %962 = vmatprep.subr.mxu0 0.0
        %963 = vmatpush1.xpose.msra.mxu0 %v928
        %964 = vmatprep.subr.mxu0 0.0
        %965 = vmatpush1.xpose.msra.mxu0 %v926
        %966 = vmatprep.subr.mxu0 0.0
        %967 = vmatpush2.xpose.msra.mxu0 0.0
        %968 = vmatprep.subr.mxu0 0.0
        %969 = vmatpush2.xpose.msra.mxu0 0.0
        %970 = vmatprep.subr.mxu0 0.0
        %971 = vmatpush2.xpose.msra.mxu0 0.0
        %972 = vmatprep.subr.mxu0 0.0
        %973 = vmatpush2.xpose.msra.mxu0 0.0
        %974 = vmatprep.subr.mxu0 0.0
        %975 = vmatpush2.xpose.msra.mxu0 0.0
        %976 = vmatprep.subr.mxu0 0.0
        %977 = vmatpush2.xpose.msra.mxu0 0.0
        %978 = vmatprep.subr.mxu0 0.0
        %979 = vmatpush2.xpose.msra.mxu0 0.0
        %980 = vmatprep.subr.mxu0 0.0
        %981 = vmatpush2.xpose.msra.mxu0 0.0
        %982 = vmatprep.subr.mxu0 0.0
        %983 = vmatpush2.xpose.msra.mxu0 0.0
        %984 = vmatprep.subr.mxu0 0.0
        %985 = vmatpush2.xpose.msra.mxu0 0.0
        %986 = vmatprep.subr.mxu0 0.0
        %987 = vmatpush2.xpose.msra.mxu0 0.0
        %988 = vmatprep.subr.mxu0 0.0
        %989 = vmatpush2.xpose.msra.mxu0 0.0
        %990 = vmatprep.subr.mxu0 0.0
        %991 = vmatpush2.xpose.msra.mxu0 0.0
        %992 = vmatprep.subr.mxu0 0.0
        %993 = vmatpush2.xpose.msra.mxu0 0.0
        %994 = vmatprep.subr.mxu0 0.0
        %995 = vmatpush2.xpose.msra.mxu0 0.0
        %996 = vmatprep.subr.mxu0 0.0
        %997 = vmatpush2.xpose.msra.mxu0 0.0
        %998 = vmatprep.mubr.f32.mxu0 0.0
        %999 = vmatmul.mubr.f32.gmra.mxu0 %v918
        %v1000 = vpop.f32.mrf.mxu0
        %v1001 = vadd.f32 0.0, %v1000
        %v1002 = vpop.f32.mrf.mxu0
        %1003 = vmatprep.mubr.f32.mxu0 0.0
        %1004 = vmatmul.mubr.f32.gmra.mxu0 %v920
        %v1005 = vpop.f32.mrf.mxu0
        %v1006 = vadd.f32 0.0, %v1005
        %v1007 = vpop.f32.mrf.mxu0
        %1008 = vmatprep.mubr.f32.mxu0 0.0
        %1009 = vmatmul.mubr.f32.gmra.mxu0 %v922
        %v1010 = vpop.f32.mrf.mxu0
        %v1011 = vadd.f32 0.0, %v1010
        %v1012 = vpop.f32.mrf.mxu0
        %1013 = vmatprep.mubr.f32.mxu0 0.0
        %1014 = vmatmul.mubr.f32.gmra.mxu0 %v924
        %v1015 = vpop.f32.mrf.mxu0
        %v1016 = vadd.f32 0.0, %v1015
        %v1017 = vpop.f32.mrf.mxu0
        %1018 = vdwg.mxu0
        %v1019 = vmul.f32 %v1001, 0.35355338
        %v1020 = vmul.f32 %v1006, 0.35355338
        %v1021 = vmul.f32 %v1011, 0.35355338
        %v1022 = vmul.f32 %v1016, 0.35355338
        %v1023 = vadd.f32 %v1019, %v507
        %v1024 = vadd.f32 %v1020, %v508
        %v1025 = vadd.f32 %v1021, %v509
        %v1026 = vadd.f32 %v1022, %v510
        %v1027 = vsel %vm529, %v1023, -inf
        %1028 = vmax.xlane.f32.xlu0 %v1027
        %v1029 = vpop.xlane.xlu0 %1028
        %v1030 = vsel %vm529, %v1024, -inf
        %1031 = vmax.xlane.f32.xlu0 %v1030
        %v1032 = vpop.xlane.xlu0 %1031
        %v1033 = vsel %vm529, %v1025, -inf
        %1034 = vmax.xlane.f32.xlu0 %v1033
        %v1035 = vpop.xlane.xlu0 %1034
        %v1036 = vsel %vm529, %v1026, -inf
        %1037 = vmax.xlane.f32.xlu0 %v1036
        %v1038 = vpop.xlane.xlu0 %1037
        %v1039 = vsub.f32 %v1023, %v1029
        %v1040 = vsub.f32 %v1024, %v1032
        %v1041 = vsub.f32 %v1025, %v1035
        %v1042 = vsub.f32 %v1026, %v1038
        %v1043 = vmul.f32 %v1039, 1.442695
        %v1044 = vpow.pop %v1043
        %v1045 = vmul.f32 %v1040, 1.442695
        %v1046 = vpow.pop %v1045
        %v1047 = vmul.f32 %v1041, 1.442695
        %v1048 = vpow.pop %v1047
        %v1049 = vmul.f32 %v1042, 1.442695
        %v1050 = vpow.pop %v1049
        %v1051 = vsel %vm529, %v1044, 0.0
        %1052 = vadd.xlane.f32.xlu0 %v1051
        %v1053 = vpop.xlane.xlu0 %1052
        %v1054 = vsel %vm529, %v1046, 0.0
        %1055 = vadd.xlane.f32.xlu0 %v1054
        %v1056 = vpop.xlane.xlu0 %1055
        %v1057 = vsel %vm529, %v1048, 0.0
        %1058 = vadd.xlane.f32.xlu0 %v1057
        %v1059 = vpop.xlane.xlu0 %1058
        %v1060 = vsel %vm529, %v1050, 0.0
        %1061 = vadd.xlane.f32.xlu0 %v1060
        %v1062 = vpop.xlane.xlu0 %1061
        %v1063 = vrcp.pop %v1053
        %v1064 = vmul.f32 %v1044, %v1063
        %v1065 = vrcp.pop %v1056
        %v1066 = vmul.f32 %v1046, %v1065
        %v1067 = vrcp.pop %v1059
        %v1068 = vmul.f32 %v1048, %v1067
        %v1069 = vrcp.pop %v1062
        %v1070 = vmul.f32 %v1050, %v1069
        %1071 = vrot.lane.b32.xlu0 %v609, 56
        %v1072 = vpop.permute.xlu0 %1071
        %1073 = vrot.lane.b32.xlu0 %v614, 56
        %v1074 = vpop.permute.xlu0 %1073
        %1075 = vrot.lane.b32.xlu0 %v619, 56
        %v1076 = vpop.permute.xlu0 %1075
        %1077 = vrot.lane.b32.xlu0 %v624, 56
        %v1078 = vpop.permute.xlu0 %1077
        %v1084 = vsel %vm529, %v1064, 0
        %v1087 = vsel %vm529, %v1066, 0
        %v1090 = vsel %vm529, %v1068, 0
        %v1093 = vsel %vm529, %v1070, 0
        %1095 = vmatprep.subr.mxu0 0.0
        %1096 = vmatpush1.msra.mxu0 0.0
        %1097 = vmatprep.subr.mxu0 0.0
        %1098 = vmatpush1.msra.mxu0 0.0
        %1099 = vmatprep.subr.mxu0 0.0
        %1100 = vmatpush1.msra.mxu0 0.0
        %1101 = vmatprep.subr.mxu0 0.0
        %1102 = vmatpush1.msra.mxu0 0.0
        %1103 = vmatprep.subr.mxu0 0.0
        %1104 = vmatpush1.msra.mxu0 0.0
        %1105 = vmatprep.subr.mxu0 0.0
        %1106 = vmatpush1.msra.mxu0 0.0
        %1107 = vmatprep.subr.mxu0 0.0
        %1108 = vmatpush1.msra.mxu0 0.0
        %1109 = vmatprep.subr.mxu0 0.0
        %1110 = vmatpush1.msra.mxu0 0.0
        %1111 = vmatprep.subr.mxu0 0.0
        %1112 = vmatpush1.msra.mxu0 0.0
        %1113 = vmatprep.subr.mxu0 0.0
        %1114 = vmatpush1.msra.mxu0 0.0
        %1115 = vmatprep.subr.mxu0 0.0
        %1116 = vmatpush1.msra.mxu0 0.0
        %1117 = vmatprep.subr.mxu0 0.0
        %1118 = vmatpush1.msra.mxu0 0.0
        %1119 = vmatprep.subr.mxu0 0.0
        %1120 = vmatpush1.msra.mxu0 %v1078
        %1121 = vmatprep.subr.mxu0 0.0
        %1122 = vmatpush1.msra.mxu0 %v1076
        %1123 = vmatprep.subr.mxu0 0.0
        %1124 = vmatpush1.msra.mxu0 %v1074
        %1125 = vmatprep.subr.mxu0 0.0
        %1126 = vmatpush1.msra.mxu0 %v1072
        %1127 = vmatprep.subr.mxu0 0.0
        %1128 = vmatpush2.msra.mxu0 0.0
        %1129 = vmatprep.subr.mxu0 0.0
        %1130 = vmatpush2.msra.mxu0 0.0
        %1131 = vmatprep.subr.mxu0 0.0
        %1132 = vmatpush2.msra.mxu0 0.0
        %1133 = vmatprep.subr.mxu0 0.0
        %1134 = vmatpush2.msra.mxu0 0.0
        %1135 = vmatprep.subr.mxu0 0.0
        %1136 = vmatpush2.msra.mxu0 0.0
        %1137 = vmatprep.subr.mxu0 0.0
        %1138 = vmatpush2.msra.mxu0 0.0
        %1139 = vmatprep.subr.mxu0 0.0
        %1140 = vmatpush2.msra.mxu0 0.0
        %1141 = vmatprep.subr.mxu0 0.0
        %1142 = vmatpush2.msra.mxu0 0.0
        %1143 = vmatprep.subr.mxu0 0.0
        %1144 = vmatpush2.msra.mxu0 0.0
        %1145 = vmatprep.subr.mxu0 0.0
        %1146 = vmatpush2.msra.mxu0 0.0
        %1147 = vmatprep.subr.mxu0 0.0
        %1148 = vmatpush2.msra.mxu0 0.0
        %1149 = vmatprep.subr.mxu0 0.0
        %1150 = vmatpush2.msra.mxu0 0.0
        %1151 = vmatprep.subr.mxu0 0.0
        %1152 = vmatpush2.msra.mxu0 0.0
        %1153 = vmatprep.subr.mxu0 0.0
        %1154 = vmatpush2.msra.mxu0 0.0
        %1155 = vmatprep.subr.mxu0 0.0
        %1156 = vmatpush2.msra.mxu0 0.0
        %1157 = vmatprep.subr.mxu0 0.0
        %1158 = vmatpush2.msra.mxu0 0.0
        %1159 = vmatprep.mubr.f32.mxu0 0.0
        %1160 = vmatmul.mubr.f32.gmra.mxu0 %v1084
        %v1161 = vpop.f32.mrf.mxu0
        %v1162 = vadd.f32 0.0, %v1161
        %v1163 = vpop.f32.mrf.mxu0
        %1164 = vmatprep.mubr.f32.mxu0 0.0
        %1165 = vmatmul.mubr.f32.gmra.mxu0 %v1087
        %v1166 = vpop.f32.mrf.mxu0
        %v1167 = vadd.f32 0.0, %v1166
        %v1168 = vpop.f32.mrf.mxu0
        %1169 = vmatprep.mubr.f32.mxu0 0.0
        %1170 = vmatmul.mubr.f32.gmra.mxu0 %v1090
        %v1171 = vpop.f32.mrf.mxu0
        %v1172 = vadd.f32 0.0, %v1171
        %v1173 = vpop.f32.mrf.mxu0
        %1174 = vmatprep.mubr.f32.mxu0 0.0
        %1175 = vmatmul.mubr.f32.gmra.mxu0 %v1093
        %v1176 = vpop.f32.mrf.mxu0
        %v1177 = vadd.f32 0.0, %v1176
        %v1178 = vpop.f32.mrf.mxu0
        %1179 = vdwg.mxu0
        %1180 = vrot.lane.b32.xlu0 %v609, 112
        %v1181 = vpop.permute.xlu0 %1180
        %1182 = vrot.lane.b32.xlu0 %v614, 112
        %v1183 = vpop.permute.xlu0 %1182
        %1184 = vrot.lane.b32.xlu0 %v619, 112
        %v1185 = vpop.permute.xlu0 %1184
        %1186 = vrot.lane.b32.xlu0 %v624, 112
        %v1187 = vpop.permute.xlu0 %1186
        %1188 = vrot.lane.b32.xlu0 %v609, 80
        %v1189 = vpop.permute.xlu0 %1188
        %1190 = vrot.lane.b32.xlu0 %v614, 80
        %v1191 = vpop.permute.xlu0 %1190
        %1192 = vrot.lane.b32.xlu0 %v619, 80
        %v1193 = vpop.permute.xlu0 %1192
        %1194 = vrot.lane.b32.xlu0 %v624, 80
        %v1195 = vpop.permute.xlu0 %1194
        %v1196 = vsel %vm639, %v1181, 0
        %v1198 = vsel %vm639, %v1183, 0
        %v1200 = vsel %vm639, %v1185, 0
        %v1202 = vsel %vm639, %v1187, 0
        %v1204 = vsel %vm639, %v1189, 0
        %v1206 = vsel %vm639, %v1191, 0
        %v1208 = vsel %vm639, %v1193, 0
        %v1210 = vsel %vm639, %v1195, 0
        %1212 = vmatprep.subr.mxu0 0.0
        %1213 = vmatpush1.xpose.msra.mxu0 0.0
        %1214 = vmatprep.subr.mxu0 0.0
        %1215 = vmatpush1.xpose.msra.mxu0 0.0
        %1216 = vmatprep.subr.mxu0 0.0
        %1217 = vmatpush1.xpose.msra.mxu0 0.0
        %1218 = vmatprep.subr.mxu0 0.0
        %1219 = vmatpush1.xpose.msra.mxu0 0.0
        %1220 = vmatprep.subr.mxu0 0.0
        %1221 = vmatpush1.xpose.msra.mxu0 0.0
        %1222 = vmatprep.subr.mxu0 0.0
        %1223 = vmatpush1.xpose.msra.mxu0 0.0
        %1224 = vmatprep.subr.mxu0 0.0
        %1225 = vmatpush1.xpose.msra.mxu0 0.0
        %1226 = vmatprep.subr.mxu0 0.0
        %1227 = vmatpush1.xpose.msra.mxu0 0.0
        %1228 = vmatprep.subr.mxu0 0.0
        %1229 = vmatpush1.xpose.msra.mxu0 0.0
        %1230 = vmatprep.subr.mxu0 0.0
        %1231 = vmatpush1.xpose.msra.mxu0 0.0
        %1232 = vmatprep.subr.mxu0 0.0
        %1233 = vmatpush1.xpose.msra.mxu0 0.0
        %1234 = vmatprep.subr.mxu0 0.0
        %1235 = vmatpush1.xpose.msra.mxu0 0.0
        %1236 = vmatprep.subr.mxu0 0.0
        %1237 = vmatpush1.xpose.msra.mxu0 %v1210
        %1238 = vmatprep.subr.mxu0 0.0
        %1239 = vmatpush1.xpose.msra.mxu0 %v1208
        %1240 = vmatprep.subr.mxu0 0.0
        %1241 = vmatpush1.xpose.msra.mxu0 %v1206
        %1242 = vmatprep.subr.mxu0 0.0
        %1243 = vmatpush1.xpose.msra.mxu0 %v1204
        %1244 = vmatprep.subr.mxu0 0.0
        %1245 = vmatpush2.xpose.msra.mxu0 0.0
        %1246 = vmatprep.subr.mxu0 0.0
        %1247 = vmatpush2.xpose.msra.mxu0 0.0
        %1248 = vmatprep.subr.mxu0 0.0
        %1249 = vmatpush2.xpose.msra.mxu0 0.0
        %1250 = vmatprep.subr.mxu0 0.0
        %1251 = vmatpush2.xpose.msra.mxu0 0.0
        %1252 = vmatprep.subr.mxu0 0.0
        %1253 = vmatpush2.xpose.msra.mxu0 0.0
        %1254 = vmatprep.subr.mxu0 0.0
        %1255 = vmatpush2.xpose.msra.mxu0 0.0
        %1256 = vmatprep.subr.mxu0 0.0
        %1257 = vmatpush2.xpose.msra.mxu0 0.0
        %1258 = vmatprep.subr.mxu0 0.0
        %1259 = vmatpush2.xpose.msra.mxu0 0.0
        %1260 = vmatprep.subr.mxu0 0.0
        %1261 = vmatpush2.xpose.msra.mxu0 0.0
        %1262 = vmatprep.subr.mxu0 0.0
        %1263 = vmatpush2.xpose.msra.mxu0 0.0
        %1264 = vmatprep.subr.mxu0 0.0
        %1265 = vmatpush2.xpose.msra.mxu0 0.0
        %1266 = vmatprep.subr.mxu0 0.0
        %1267 = vmatpush2.xpose.msra.mxu0 0.0
        %1268 = vmatprep.subr.mxu0 0.0
        %1269 = vmatpush2.xpose.msra.mxu0 0.0
        %1270 = vmatprep.subr.mxu0 0.0
        %1271 = vmatpush2.xpose.msra.mxu0 0.0
        %1272 = vmatprep.subr.mxu0 0.0
        %1273 = vmatpush2.xpose.msra.mxu0 0.0
        %1274 = vmatprep.subr.mxu0 0.0
        %1275 = vmatpush2.xpose.msra.mxu0 0.0
        %1276 = vmatprep.mubr.f32.mxu0 0.0
        %1277 = vmatmul.mubr.f32.gmra.mxu0 %v1196
        %v1278 = vpop.f32.mrf.mxu0
        %v1279 = vadd.f32 0.0, %v1278
        %v1280 = vpop.f32.mrf.mxu0
        %1281 = vmatprep.mubr.f32.mxu0 0.0
        %1282 = vmatmul.mubr.f32.gmra.mxu0 %v1198
        %v1283 = vpop.f32.mrf.mxu0
        %v1284 = vadd.f32 0.0, %v1283
        %v1285 = vpop.f32.mrf.mxu0
        %1286 = vmatprep.mubr.f32.mxu0 0.0
        %1287 = vmatmul.mubr.f32.gmra.mxu0 %v1200
        %v1288 = vpop.f32.mrf.mxu0
        %v1289 = vadd.f32 0.0, %v1288
        %v1290 = vpop.f32.mrf.mxu0
        %1291 = vmatprep.mubr.f32.mxu0 0.0
        %1292 = vmatmul.mubr.f32.gmra.mxu0 %v1202
        %v1293 = vpop.f32.mrf.mxu0
        %v1294 = vadd.f32 0.0, %v1293
        %v1295 = vpop.f32.mrf.mxu0
        %1296 = vdwg.mxu0
        %v1297 = vmul.f32 %v1279, 0.35355338
        %v1298 = vmul.f32 %v1284, 0.35355338
        %v1299 = vmul.f32 %v1289, 0.35355338
        %v1300 = vmul.f32 %v1294, 0.35355338
        %v1301 = vadd.f32 %v1297, %v507
        %v1302 = vadd.f32 %v1298, %v508
        %v1303 = vadd.f32 %v1299, %v509
        %v1304 = vadd.f32 %v1300, %v510
        %v1305 = vsel %vm529, %v1301, -inf
        %1306 = vmax.xlane.f32.xlu0 %v1305
        %v1307 = vpop.xlane.xlu0 %1306
        %v1308 = vsel %vm529, %v1302, -inf
        %1309 = vmax.xlane.f32.xlu0 %v1308
        %v1310 = vpop.xlane.xlu0 %1309
        %v1311 = vsel %vm529, %v1303, -inf
        %1312 = vmax.xlane.f32.xlu0 %v1311
        %v1313 = vpop.xlane.xlu0 %1312
        %v1314 = vsel %vm529, %v1304, -inf
        %1315 = vmax.xlane.f32.xlu0 %v1314
        %v1316 = vpop.xlane.xlu0 %1315
        %v1317 = vsub.f32 %v1301, %v1307
        %v1318 = vsub.f32 %v1302, %v1310
        %v1319 = vsub.f32 %v1303, %v1313
        %v1320 = vsub.f32 %v1304, %v1316
        %v1321 = vmul.f32 %v1317, 1.442695
        %v1322 = vpow.pop %v1321
        %v1323 = vmul.f32 %v1318, 1.442695
        %v1324 = vpow.pop %v1323
        %v1325 = vmul.f32 %v1319, 1.442695
        %v1326 = vpow.pop %v1325
        %v1327 = vmul.f32 %v1320, 1.442695
        %v1328 = vpow.pop %v1327
        %v1329 = vsel %vm529, %v1322, 0.0
        %1330 = vadd.xlane.f32.xlu0 %v1329
        %v1331 = vpop.xlane.xlu0 %1330
        %v1332 = vsel %vm529, %v1324, 0.0
        %1333 = vadd.xlane.f32.xlu0 %v1332
        %v1334 = vpop.xlane.xlu0 %1333
        %v1335 = vsel %vm529, %v1326, 0.0
        %1336 = vadd.xlane.f32.xlu0 %v1335
        %v1337 = vpop.xlane.xlu0 %1336
        %v1338 = vsel %vm529, %v1328, 0.0
        %1339 = vadd.xlane.f32.xlu0 %v1338
        %v1340 = vpop.xlane.xlu0 %1339
        %v1341 = vrcp.pop %v1331
        %v1342 = vmul.f32 %v1322, %v1341
        %v1343 = vrcp.pop %v1334
        %v1344 = vmul.f32 %v1324, %v1343
        %v1345 = vrcp.pop %v1337
        %v1346 = vmul.f32 %v1326, %v1345
        %v1347 = vrcp.pop %v1340
        %v1348 = vmul.f32 %v1328, %v1347
        %1349 = vrot.lane.b32.xlu0 %v609, 48
        %v1350 = vpop.permute.xlu0 %1349
        %1351 = vrot.lane.b32.xlu0 %v614, 48
        %v1352 = vpop.permute.xlu0 %1351
        %1353 = vrot.lane.b32.xlu0 %v619, 48
        %v1354 = vpop.permute.xlu0 %1353
        %1355 = vrot.lane.b32.xlu0 %v624, 48
        %v1356 = vpop.permute.xlu0 %1355
        %v1362 = vsel %vm529, %v1342, 0
        %v1365 = vsel %vm529, %v1344, 0
        %v1368 = vsel %vm529, %v1346, 0
        %v1371 = vsel %vm529, %v1348, 0
        %1373 = vmatprep.subr.mxu0 0.0
        %1374 = vmatpush1.msra.mxu0 0.0
        %1375 = vmatprep.subr.mxu0 0.0
        %1376 = vmatpush1.msra.mxu0 0.0
        %1377 = vmatprep.subr.mxu0 0.0
        %1378 = vmatpush1.msra.mxu0 0.0
        %1379 = vmatprep.subr.mxu0 0.0
        %1380 = vmatpush1.msra.mxu0 0.0
        %1381 = vmatprep.subr.mxu0 0.0
        %1382 = vmatpush1.msra.mxu0 0.0
        %1383 = vmatprep.subr.mxu0 0.0
        %1384 = vmatpush1.msra.mxu0 0.0
        %1385 = vmatprep.subr.mxu0 0.0
        %1386 = vmatpush1.msra.mxu0 0.0
        %1387 = vmatprep.subr.mxu0 0.0
        %1388 = vmatpush1.msra.mxu0 0.0
        %1389 = vmatprep.subr.mxu0 0.0
        %1390 = vmatpush1.msra.mxu0 0.0
        %1391 = vmatprep.subr.mxu0 0.0
        %1392 = vmatpush1.msra.mxu0 0.0
        %1393 = vmatprep.subr.mxu0 0.0
        %1394 = vmatpush1.msra.mxu0 0.0
        %1395 = vmatprep.subr.mxu0 0.0
        %1396 = vmatpush1.msra.mxu0 0.0
        %1397 = vmatprep.subr.mxu0 0.0
        %1398 = vmatpush1.msra.mxu0 %v1356
        %1399 = vmatprep.subr.mxu0 0.0
        %1400 = vmatpush1.msra.mxu0 %v1354
        %1401 = vmatprep.subr.mxu0 0.0
        %1402 = vmatpush1.msra.mxu0 %v1352
        %1403 = vmatprep.subr.mxu0 0.0
        %1404 = vmatpush1.msra.mxu0 %v1350
        %1405 = vmatprep.subr.mxu0 0.0
        %1406 = vmatpush2.msra.mxu0 0.0
        %1407 = vmatprep.subr.mxu0 0.0
        %1408 = vmatpush2.msra.mxu0 0.0
        %1409 = vmatprep.subr.mxu0 0.0
        %1410 = vmatpush2.msra.mxu0 0.0
        %1411 = vmatprep.subr.mxu0 0.0
        %1412 = vmatpush2.msra.mxu0 0.0
        %1413 = vmatprep.subr.mxu0 0.0
        %1414 = vmatpush2.msra.mxu0 0.0
        %1415 = vmatprep.subr.mxu0 0.0
        %1416 = vmatpush2.msra.mxu0 0.0
        %1417 = vmatprep.subr.mxu0 0.0
        %1418 = vmatpush2.msra.mxu0 0.0
        %1419 = vmatprep.subr.mxu0 0.0
        %1420 = vmatpush2.msra.mxu0 0.0
        %1421 = vmatprep.subr.mxu0 0.0
        %1422 = vmatpush2.msra.mxu0 0.0
        %1423 = vmatprep.subr.mxu0 0.0
        %1424 = vmatpush2.msra.mxu0 0.0
        %1425 = vmatprep.subr.mxu0 0.0
        %1426 = vmatpush2.msra.mxu0 0.0
        %1427 = vmatprep.subr.mxu0 0.0
        %1428 = vmatpush2.msra.mxu0 0.0
        %1429 = vmatprep.subr.mxu0 0.0
        %1430 = vmatpush2.msra.mxu0 0.0
        %1431 = vmatprep.subr.mxu0 0.0
        %1432 = vmatpush2.msra.mxu0 0.0
        %1433 = vmatprep.subr.mxu0 0.0
        %1434 = vmatpush2.msra.mxu0 0.0
        %1435 = vmatprep.subr.mxu0 0.0
        %1436 = vmatpush2.msra.mxu0 0.0
        %1437 = vmatprep.mubr.f32.mxu0 0.0
        %1438 = vmatmul.mubr.f32.gmra.mxu0 %v1362
        %v1439 = vpop.f32.mrf.mxu0
        %v1440 = vadd.f32 0.0, %v1439
        %v1441 = vpop.f32.mrf.mxu0
        %1442 = vmatprep.mubr.f32.mxu0 0.0
        %1443 = vmatmul.mubr.f32.gmra.mxu0 %v1365
        %v1444 = vpop.f32.mrf.mxu0
        %v1445 = vadd.f32 0.0, %v1444
        %v1446 = vpop.f32.mrf.mxu0
        %1447 = vmatprep.mubr.f32.mxu0 0.0
        %1448 = vmatmul.mubr.f32.gmra.mxu0 %v1368
        %v1449 = vpop.f32.mrf.mxu0
        %v1450 = vadd.f32 0.0, %v1449
        %v1451 = vpop.f32.mrf.mxu0
        %1452 = vmatprep.mubr.f32.mxu0 0.0
        %1453 = vmatmul.mubr.f32.gmra.mxu0 %v1371
        %v1454 = vpop.f32.mrf.mxu0
        %v1455 = vadd.f32 0.0, %v1454
        %v1456 = vpop.f32.mrf.mxu0
        %1457 = vdwg.mxu0
        %1458 = vrot.lane.b32.xlu0 %v609, 104
        %v1459 = vpop.permute.xlu0 %1458
        %1460 = vrot.lane.b32.xlu0 %v614, 104
        %v1461 = vpop.permute.xlu0 %1460
        %1462 = vrot.lane.b32.xlu0 %v619, 104
        %v1463 = vpop.permute.xlu0 %1462
        %1464 = vrot.lane.b32.xlu0 %v624, 104
        %v1465 = vpop.permute.xlu0 %1464
        %1466 = vrot.lane.b32.xlu0 %v609, 72
        %v1467 = vpop.permute.xlu0 %1466
        %1468 = vrot.lane.b32.xlu0 %v614, 72
        %v1469 = vpop.permute.xlu0 %1468
        %1470 = vrot.lane.b32.xlu0 %v619, 72
        %v1471 = vpop.permute.xlu0 %1470
        %1472 = vrot.lane.b32.xlu0 %v624, 72
        %v1473 = vpop.permute.xlu0 %1472
        %v1474 = vsel %vm639, %v1459, 0
        %v1476 = vsel %vm639, %v1461, 0
        %v1478 = vsel %vm639, %v1463, 0
        %v1480 = vsel %vm639, %v1465, 0
        %v1482 = vsel %vm639, %v1467, 0
        %v1484 = vsel %vm639, %v1469, 0
        %v1486 = vsel %vm639, %v1471, 0
        %v1488 = vsel %vm639, %v1473, 0
        %1490 = vmatprep.subr.mxu0 0.0
        %1491 = vmatpush1.xpose.msra.mxu0 0.0
        %1492 = vmatprep.subr.mxu0 0.0
        %1493 = vmatpush1.xpose.msra.mxu0 0.0
        %1494 = vmatprep.subr.mxu0 0.0
        %1495 = vmatpush1.xpose.msra.mxu0 0.0
        %1496 = vmatprep.subr.mxu0 0.0
        %1497 = vmatpush1.xpose.msra.mxu0 0.0
        %1498 = vmatprep.subr.mxu0 0.0
        %1499 = vmatpush1.xpose.msra.mxu0 0.0
        %1500 = vmatprep.subr.mxu0 0.0
        %1501 = vmatpush1.xpose.msra.mxu0 0.0
        %1502 = vmatprep.subr.mxu0 0.0
        %1503 = vmatpush1.xpose.msra.mxu0 0.0
        %1504 = vmatprep.subr.mxu0 0.0
        %1505 = vmatpush1.xpose.msra.mxu0 0.0
        %1506 = vmatprep.subr.mxu0 0.0
        %1507 = vmatpush1.xpose.msra.mxu0 0.0
        %1508 = vmatprep.subr.mxu0 0.0
        %1509 = vmatpush1.xpose.msra.mxu0 0.0
        %1510 = vmatprep.subr.mxu0 0.0
        %1511 = vmatpush1.xpose.msra.mxu0 0.0
        %1512 = vmatprep.subr.mxu0 0.0
        %1513 = vmatpush1.xpose.msra.mxu0 0.0
        %1514 = vmatprep.subr.mxu0 0.0
        %1515 = vmatpush1.xpose.msra.mxu0 %v1488
        %1516 = vmatprep.subr.mxu0 0.0
        %1517 = vmatpush1.xpose.msra.mxu0 %v1486
        %1518 = vmatprep.subr.mxu0 0.0
        %1519 = vmatpush1.xpose.msra.mxu0 %v1484
        %1520 = vmatprep.subr.mxu0 0.0
        %1521 = vmatpush1.xpose.msra.mxu0 %v1482
        %1522 = vmatprep.subr.mxu0 0.0
        %1523 = vmatpush2.xpose.msra.mxu0 0.0
        %1524 = vmatprep.subr.mxu0 0.0
        %1525 = vmatpush2.xpose.msra.mxu0 0.0
        %1526 = vmatprep.subr.mxu0 0.0
        %1527 = vmatpush2.xpose.msra.mxu0 0.0
        %1528 = vmatprep.subr.mxu0 0.0
        %1529 = vmatpush2.xpose.msra.mxu0 0.0
        %1530 = vmatprep.subr.mxu0 0.0
        %1531 = vmatpush2.xpose.msra.mxu0 0.0
        %1532 = vmatprep.subr.mxu0 0.0
        %1533 = vmatpush2.xpose.msra.mxu0 0.0
        %1534 = vmatprep.subr.mxu0 0.0
        %1535 = vmatpush2.xpose.msra.mxu0 0.0
        %1536 = vmatprep.subr.mxu0 0.0
        %1537 = vmatpush2.xpose.msra.mxu0 0.0
        %1538 = vmatprep.subr.mxu0 0.0
        %1539 = vmatpush2.xpose.msra.mxu0 0.0
        %1540 = vmatprep.subr.mxu0 0.0
        %1541 = vmatpush2.xpose.msra.mxu0 0.0
        %1542 = vmatprep.subr.mxu0 0.0
        %1543 = vmatpush2.xpose.msra.mxu0 0.0
        %1544 = vmatprep.subr.mxu0 0.0
        %1545 = vmatpush2.xpose.msra.mxu0 0.0
        %1546 = vmatprep.subr.mxu0 0.0
        %1547 = vmatpush2.xpose.msra.mxu0 0.0
        %1548 = vmatprep.subr.mxu0 0.0
        %1549 = vmatpush2.xpose.msra.mxu0 0.0
        %1550 = vmatprep.subr.mxu0 0.0
        %1551 = vmatpush2.xpose.msra.mxu0 0.0
        %1552 = vmatprep.subr.mxu0 0.0
        %1553 = vmatpush2.xpose.msra.mxu0 0.0
        %1554 = vmatprep.mubr.f32.mxu0 0.0
        %1555 = vmatmul.mubr.f32.gmra.mxu0 %v1474
        %v1556 = vpop.f32.mrf.mxu0
        %v1557 = vadd.f32 0.0, %v1556
        %v1558 = vpop.f32.mrf.mxu0
        %1559 = vmatprep.mubr.f32.mxu0 0.0
        %1560 = vmatmul.mubr.f32.gmra.mxu0 %v1476
        %v1561 = vpop.f32.mrf.mxu0
        %v1562 = vadd.f32 0.0, %v1561
        %v1563 = vpop.f32.mrf.mxu0
        %1564 = vmatprep.mubr.f32.mxu0 0.0
        %1565 = vmatmul.mubr.f32.gmra.mxu0 %v1478
        %v1566 = vpop.f32.mrf.mxu0
        %v1567 = vadd.f32 0.0, %v1566
        %v1568 = vpop.f32.mrf.mxu0
        %1569 = vmatprep.mubr.f32.mxu0 0.0
        %1570 = vmatmul.mubr.f32.gmra.mxu0 %v1480
        %v1571 = vpop.f32.mrf.mxu0
        %v1572 = vadd.f32 0.0, %v1571
        %v1573 = vpop.f32.mrf.mxu0
        %1574 = vdwg.mxu0
        %v1575 = vmul.f32 %v1557, 0.35355338
        %v1576 = vmul.f32 %v1562, 0.35355338
        %v1577 = vmul.f32 %v1567, 0.35355338
        %v1578 = vmul.f32 %v1572, 0.35355338
        %v1579 = vadd.f32 %v1575, %v507
        %v1580 = vadd.f32 %v1576, %v508
        %v1581 = vadd.f32 %v1577, %v509
        %v1582 = vadd.f32 %v1578, %v510
        %v1583 = vsel %vm529, %v1579, -inf
        %1584 = vmax.xlane.f32.xlu0 %v1583
        %v1585 = vpop.xlane.xlu0 %1584
        %v1586 = vsel %vm529, %v1580, -inf
        %1587 = vmax.xlane.f32.xlu0 %v1586
        %v1588 = vpop.xlane.xlu0 %1587
        %v1589 = vsel %vm529, %v1581, -inf
        %1590 = vmax.xlane.f32.xlu0 %v1589
        %v1591 = vpop.xlane.xlu0 %1590
        %v1592 = vsel %vm529, %v1582, -inf
        %1593 = vmax.xlane.f32.xlu0 %v1592
        %v1594 = vpop.xlane.xlu0 %1593
        %v1595 = vsub.f32 %v1579, %v1585
        %v1596 = vsub.f32 %v1580, %v1588
        %v1597 = vsub.f32 %v1581, %v1591
        %v1598 = vsub.f32 %v1582, %v1594
        %v1599 = vmul.f32 %v1595, 1.442695
        %v1600 = vpow.pop %v1599
        %v1601 = vmul.f32 %v1596, 1.442695
        %v1602 = vpow.pop %v1601
        %v1603 = vmul.f32 %v1597, 1.442695
        %v1604 = vpow.pop %v1603
        %v1605 = vmul.f32 %v1598, 1.442695
        %v1606 = vpow.pop %v1605
        %v1607 = vsel %vm529, %v1600, 0.0
        %1608 = vadd.xlane.f32.xlu0 %v1607
        %v1609 = vpop.xlane.xlu0 %1608
        %v1610 = vsel %vm529, %v1602, 0.0
        %1611 = vadd.xlane.f32.xlu0 %v1610
        %v1612 = vpop.xlane.xlu0 %1611
        %v1613 = vsel %vm529, %v1604, 0.0
        %1614 = vadd.xlane.f32.xlu0 %v1613
        %v1615 = vpop.xlane.xlu0 %1614
        %v1616 = vsel %vm529, %v1606, 0.0
        %1617 = vadd.xlane.f32.xlu0 %v1616
        %v1618 = vpop.xlane.xlu0 %1617
        %v1619 = vrcp.pop %v1609
        %v1620 = vmul.f32 %v1600, %v1619
        %v1621 = vrcp.pop %v1612
        %v1622 = vmul.f32 %v1602, %v1621
        %v1623 = vrcp.pop %v1615
        %v1624 = vmul.f32 %v1604, %v1623
        %v1625 = vrcp.pop %v1618
        %v1626 = vmul.f32 %v1606, %v1625
        %1627 = vrot.lane.b32.xlu0 %v609, 40
        %v1628 = vpop.permute.xlu0 %1627
        %1629 = vrot.lane.b32.xlu0 %v614, 40
        %v1630 = vpop.permute.xlu0 %1629
        %1631 = vrot.lane.b32.xlu0 %v619, 40
        %v1632 = vpop.permute.xlu0 %1631
        %1633 = vrot.lane.b32.xlu0 %v624, 40
        %v1634 = vpop.permute.xlu0 %1633
        %v1640 = vsel %vm529, %v1620, 0
        %v1643 = vsel %vm529, %v1622, 0
        %v1646 = vsel %vm529, %v1624, 0
        %v1649 = vsel %vm529, %v1626, 0
        %1651 = vmatprep.subr.mxu0 0.0
        %1652 = vmatpush1.msra.mxu0 0.0
        %1653 = vmatprep.subr.mxu0 0.0
        %1654 = vmatpush1.msra.mxu0 0.0
        %1655 = vmatprep.subr.mxu0 0.0
        %1656 = vmatpush1.msra.mxu0 0.0
        %1657 = vmatprep.subr.mxu0 0.0
        %1658 = vmatpush1.msra.mxu0 0.0
        %1659 = vmatprep.subr.mxu0 0.0
        %1660 = vmatpush1.msra.mxu0 0.0
        %1661 = vmatprep.subr.mxu0 0.0
        %1662 = vmatpush1.msra.mxu0 0.0
        %1663 = vmatprep.subr.mxu0 0.0
        %1664 = vmatpush1.msra.mxu0 0.0
        %1665 = vmatprep.subr.mxu0 0.0
        %1666 = vmatpush1.msra.mxu0 0.0
        %1667 = vmatprep.subr.mxu0 0.0
        %1668 = vmatpush1.msra.mxu0 0.0
        %1669 = vmatprep.subr.mxu0 0.0
        %1670 = vmatpush1.msra.mxu0 0.0
        %1671 = vmatprep.subr.mxu0 0.0
        %1672 = vmatpush1.msra.mxu0 0.0
        %1673 = vmatprep.subr.mxu0 0.0
        %1674 = vmatpush1.msra.mxu0 0.0
        %1675 = vmatprep.subr.mxu0 0.0
        %1676 = vmatpush1.msra.mxu0 %v1634
        %1677 = vmatprep.subr.mxu0 0.0
        %1678 = vmatpush1.msra.mxu0 %v1632
        %1679 = vmatprep.subr.mxu0 0.0
        %1680 = vmatpush1.msra.mxu0 %v1630
        %1681 = vmatprep.subr.mxu0 0.0
        %1682 = vmatpush1.msra.mxu0 %v1628
        %1683 = vmatprep.subr.mxu0 0.0
        %1684 = vmatpush2.msra.mxu0 0.0
        %1685 = vmatprep.subr.mxu0 0.0
        %1686 = vmatpush2.msra.mxu0 0.0
        %1687 = vmatprep.subr.mxu0 0.0
        %1688 = vmatpush2.msra.mxu0 0.0
        %1689 = vmatprep.subr.mxu0 0.0
        %1690 = vmatpush2.msra.mxu0 0.0
        %1691 = vmatprep.subr.mxu0 0.0
        %1692 = vmatpush2.msra.mxu0 0.0
        %1693 = vmatprep.subr.mxu0 0.0
        %1694 = vmatpush2.msra.mxu0 0.0
        %1695 = vmatprep.subr.mxu0 0.0
        %1696 = vmatpush2.msra.mxu0 0.0
        %1697 = vmatprep.subr.mxu0 0.0
        %1698 = vmatpush2.msra.mxu0 0.0
        %1699 = vmatprep.subr.mxu0 0.0
        %1700 = vmatpush2.msra.mxu0 0.0
        %1701 = vmatprep.subr.mxu0 0.0
        %1702 = vmatpush2.msra.mxu0 0.0
        %1703 = vmatprep.subr.mxu0 0.0
        %1704 = vmatpush2.msra.mxu0 0.0
        %1705 = vmatprep.subr.mxu0 0.0
        %1706 = vmatpush2.msra.mxu0 0.0
        %1707 = vmatprep.subr.mxu0 0.0
        %1708 = vmatpush2.msra.mxu0 0.0
        %1709 = vmatprep.subr.mxu0 0.0
        %1710 = vmatpush2.msra.mxu0 0.0
        %1711 = vmatprep.subr.mxu0 0.0
        %1712 = vmatpush2.msra.mxu0 0.0
        %1713 = vmatprep.subr.mxu0 0.0
        %1714 = vmatpush2.msra.mxu0 0.0
        %1715 = vmatprep.mubr.f32.mxu0 0.0
        %1716 = vmatmul.mubr.f32.gmra.mxu0 %v1640
        %v1717 = vpop.f32.mrf.mxu0
        %v1718 = vadd.f32 0.0, %v1717
        %v1719 = vpop.f32.mrf.mxu0
        %1720 = vmatprep.mubr.f32.mxu0 0.0
        %1721 = vmatmul.mubr.f32.gmra.mxu0 %v1643
        %v1722 = vpop.f32.mrf.mxu0
        %v1723 = vadd.f32 0.0, %v1722
        %v1724 = vpop.f32.mrf.mxu0
        %1725 = vmatprep.mubr.f32.mxu0 0.0
        %1726 = vmatmul.mubr.f32.gmra.mxu0 %v1646
        %v1727 = vpop.f32.mrf.mxu0
        %v1728 = vadd.f32 0.0, %v1727
        %v1729 = vpop.f32.mrf.mxu0
        %1730 = vmatprep.mubr.f32.mxu0 0.0
        %1731 = vmatmul.mubr.f32.gmra.mxu0 %v1649
        %v1732 = vpop.f32.mrf.mxu0
        %v1733 = vadd.f32 0.0, %v1732
        %v1734 = vpop.f32.mrf.mxu0
        %1735 = vdwg.mxu0
        %1740 = vrot.lane.b32.xlu0 %v1162, 8
        %v1741 = vpop.permute.xlu0 %1740
        %1742 = vrot.lane.b32.xlu0 %v1167, 8
        %v1743 = vpop.permute.xlu0 %1742
        %1744 = vrot.lane.b32.xlu0 %v1172, 8
        %v1745 = vpop.permute.xlu0 %1744
        %1746 = vrot.lane.b32.xlu0 %v1177, 8
        %v1747 = vpop.permute.xlu0 %1746
        %1756 = vrot.lane.b32.xlu0 %v1440, 16
        %v1757 = vpop.permute.xlu0 %1756
        %1758 = vrot.lane.b32.xlu0 %v1445, 16
        %v1759 = vpop.permute.xlu0 %1758
        %1760 = vrot.lane.b32.xlu0 %v1450, 16
        %v1761 = vpop.permute.xlu0 %1760
        %1762 = vrot.lane.b32.xlu0 %v1455, 16
        %v1763 = vpop.permute.xlu0 %1762
        %1772 = vrot.lane.b32.xlu0 %v1718, 24
        %v1773 = vpop.permute.xlu0 %1772
        %1774 = vrot.lane.b32.xlu0 %v1723, 24
        %v1775 = vpop.permute.xlu0 %1774
        %1776 = vrot.lane.b32.xlu0 %v1728, 24
        %v1777 = vpop.permute.xlu0 %1776
        %1778 = vrot.lane.b32.xlu0 %v1733, 24
        %v1779 = vpop.permute.xlu0 %1778
        %v1784 = vsel %vm639, %v884, %v1741
        %v1785 = vsel %vm639, %v889, %v1743
        %v1786 = vsel %vm639, %v894, %v1745
        %v1787 = vsel %vm639, %v899, %v1747
        %vm1788 = vcmask 130048
        %v1789 = vsel %vm1788, %v1784, %v1757
        %v1790 = vsel %vm1788, %v1785, %v1759
        %v1791 = vsel %vm1788, %v1786, %v1761
        %v1792 = vsel %vm1788, %v1787, %v1763
        %vm1793 = vcmask 195584
        %v1794 = vsel %vm1793, %v1789, %v1773
        %v1795 = vsel %vm1793, %v1790, %v1775
        %v1796 = vsel %vm1793, %v1791, %v1777
        %v1797 = vsel %vm1793, %v1792, %v1779
        %v1799 = vlaneseq
        %v1800 = vshrl.u32 %v1799, 7
        %v1801 = vsub.s32 0, %v1800
        %v1802 = vrot.slane %v520, %v1801
        %v1805 = vsel %vm529, %v1794, 0
        %v1808 = vsel %vm529, %v1795, 0
        %v1811 = vsel %vm529, %v1796, 0
        %v1814 = vsel %vm529, %v1797, 0
        %1816 = vmatprep.subr.mxu0 0.0
        %1817 = vmatpush1.msra.mxu0 0.0
        %1818 = vmatprep.subr.mxu0 0.0
        %1819 = vmatpush1.msra.mxu0 0.0
        %1820 = vmatprep.subr.mxu0 0.0
        %1821 = vmatpush1.msra.mxu0 0.0
        %1822 = vmatprep.subr.mxu0 0.0
        %1823 = vmatpush1.msra.mxu0 0.0
        %1824 = vmatprep.subr.mxu0 0.0
        %1825 = vmatpush1.msra.mxu0 0.0
        %1826 = vmatprep.subr.mxu0 0.0
        %1827 = vmatpush1.msra.mxu0 0.0
        %1828 = vmatprep.subr.mxu0 0.0
        %1829 = vmatpush1.msra.mxu0 0.0
        %1830 = vmatprep.subr.mxu0 0.0
        %1831 = vmatpush1.msra.mxu0 0.0
        %1832 = vmatprep.subr.mxu0 0.0
        %1833 = vmatpush1.msra.mxu0 0.0
        %1834 = vmatprep.subr.mxu0 0.0
        %1835 = vmatpush1.msra.mxu0 0.0
        %1836 = vmatprep.subr.mxu0 0.0
        %1837 = vmatpush1.msra.mxu0 0.0
        %1838 = vmatprep.subr.mxu0 0.0
        %1839 = vmatpush1.msra.mxu0 0.0
        %1840 = vmatprep.subr.mxu0 0.0
        %1841 = vmatpush1.msra.mxu0 %v519
        %1842 = vmatprep.subr.mxu0 0.0
        %1843 = vmatpush1.msra.mxu0 %v518
        %1844 = vmatprep.subr.mxu0 0.0
        %1845 = vmatpush1.msra.mxu0 %v517
        %1846 = vmatprep.subr.mxu0 0.0
        %1847 = vmatpush1.msra.mxu0 %v516
        %1848 = vmatprep.subr.mxu0 0.0
        %1849 = vmatpush2.msra.mxu0 0.0
        %1850 = vmatprep.subr.mxu0 0.0
        %1851 = vmatpush2.msra.mxu0 0.0
        %1852 = vmatprep.subr.mxu0 0.0
        %1853 = vmatpush2.msra.mxu0 0.0
        %1854 = vmatprep.subr.mxu0 0.0
        %1855 = vmatpush2.msra.mxu0 0.0
        %1856 = vmatprep.subr.mxu0 0.0
        %1857 = vmatpush2.msra.mxu0 0.0
        %1858 = vmatprep.subr.mxu0 0.0
        %1859 = vmatpush2.msra.mxu0 0.0
        %1860 = vmatprep.subr.mxu0 0.0
        %1861 = vmatpush2.msra.mxu0 0.0
        %1862 = vmatprep.subr.mxu0 0.0
        %1863 = vmatpush2.msra.mxu0 0.0
        %1864 = vmatprep.subr.mxu0 0.0
        %1865 = vmatpush2.msra.mxu0 0.0
        %1866 = vmatprep.subr.mxu0 0.0
        %1867 = vmatpush2.msra.mxu0 0.0
        %1868 = vmatprep.subr.mxu0 0.0
        %1869 = vmatpush2.msra.mxu0 0.0
        %1870 = vmatprep.subr.mxu0 0.0
        %1871 = vmatpush2.msra.mxu0 0.0
        %1872 = vmatprep.subr.mxu0 0.0
        %1873 = vmatpush2.msra.mxu0 0.0
        %1874 = vmatprep.subr.mxu0 0.0
        %1875 = vmatpush2.msra.mxu0 0.0
        %1876 = vmatprep.subr.mxu0 0.0
        %1877 = vmatpush2.msra.mxu0 0.0
        %1878 = vmatprep.subr.mxu0 0.0
        %1879 = vmatpush2.msra.mxu0 0.0
        %1880 = vmatprep.mubr.f32.mxu0 0.0
        %1881 = vmatmul.mubr.f32.gmra.mxu0 %v1805
        %v1882 = vpop.f32.mrf.mxu0
        %v1883 = vadd.f32 %v1802, %v1882
        %v1884 = vpop.f32.mrf.mxu0
        %1885 = vmatprep.mubr.f32.mxu0 0.0
        %1886 = vmatmul.mubr.f32.gmra.mxu0 %v1808
        %v1887 = vpop.f32.mrf.mxu0
        %v1888 = vadd.f32 %v1802, %v1887
        %v1889 = vpop.f32.mrf.mxu0
        %1890 = vmatprep.mubr.f32.mxu0 0.0
        %1891 = vmatmul.mubr.f32.gmra.mxu0 %v1811
        %v1892 = vpop.f32.mrf.mxu0
        %v1893 = vadd.f32 %v1802, %v1892
        %v1894 = vpop.f32.mrf.mxu0
        %1895 = vmatprep.mubr.f32.mxu0 0.0
        %1896 = vmatmul.mubr.f32.gmra.mxu0 %v1814
        %v1897 = vpop.f32.mrf.mxu0
        %v1898 = vadd.f32 %v1802, %v1897
        %v1899 = vpop.f32.mrf.mxu0
        %1900 = vdwg.mxu0
        %v1901 = vadd.f32 %v1883, %v503
        %v1902 = vadd.f32 %v1888, %v504
        %v1903 = vadd.f32 %v1893, %v505
        %v1904 = vadd.f32 %v1898, %v506
        %v1905 = vsel %vm529, %v1901, 0.0
        %1906 = vadd.xlane.f32.xlu0 %v1905
        %v1907 = vpop.xlane.xlu0 %1906
        %v1908 = vsel %vm529, %v1902, 0.0
        %1909 = vadd.xlane.f32.xlu0 %v1908
        %v1910 = vpop.xlane.xlu0 %1909
        %v1911 = vsel %vm529, %v1903, 0.0
        %1912 = vadd.xlane.f32.xlu0 %v1911
        %v1913 = vpop.xlane.xlu0 %1912
        %v1914 = vsel %vm529, %v1904, 0.0
        %1915 = vadd.xlane.f32.xlu0 %v1914
        %v1916 = vpop.xlane.xlu0 %1915
        %v1917 = vrcp.pop 32.0
        %v1918 = vmul.f32 %v1907, %v1917
        %v1919 = vmul.f32 %v1910, %v1917
        %v1920 = vmul.f32 %v1913, %v1917
        %v1921 = vmul.f32 %v1916, %v1917
        %v1922 = vsub.f32 %v1901, %v1918
        %v1923 = vsub.f32 %v1902, %v1919
        %v1924 = vsub.f32 %v1903, %v1920
        %v1925 = vsub.f32 %v1904, %v1921
        %v1926 = vmul.f32 %v1922, %v1922
        %v1927 = vmul.f32 %v1923, %v1923
        %v1928 = vmul.f32 %v1924, %v1924
        %v1929 = vmul.f32 %v1925, %v1925
        %v1930 = vsel %vm529, %v1926, 0.0
        %1931 = vadd.xlane.f32.xlu0 %v1930
        %v1932 = vpop.xlane.xlu0 %1931
        %v1933 = vsel %vm529, %v1927, 0.0
        %1934 = vadd.xlane.f32.xlu0 %v1933
        %v1935 = vpop.xlane.xlu0 %1934
        %v1936 = vsel %vm529, %v1928, 0.0
        %1937 = vadd.xlane.f32.xlu0 %v1936
        %v1938 = vpop.xlane.xlu0 %1937
        %v1939 = vsel %vm529, %v1929, 0.0
        %1940 = vadd.xlane.f32.xlu0 %v1939
        %v1941 = vpop.xlane.xlu0 %1940
        %v1942 = vmul.f32 %v1932, %v1917
        %v1943 = vmul.f32 %v1935, %v1917
        %v1944 = vmul.f32 %v1938, %v1917
        %v1945 = vmul.f32 %v1941, %v1917
        %v1946 = vadd.f32 %v1942, 1e-12
        %v1947 = vadd.f32 %v1943, 1e-12
        %v1948 = vadd.f32 %v1944, 1e-12
        %v1949 = vadd.f32 %v1945, 1e-12
        %v1950 = vrsqrt.pop %v1946
        %v1951 = vrsqrt.pop %v1947
        %v1952 = vrsqrt.pop %v1948
        %v1953 = vrsqrt.pop %v1949
        %v1954 = vmul.f32 %v1922, %v1950
        %v1955 = vmul.f32 %v1923, %v1951
        %v1956 = vmul.f32 %v1924, %v1952
        %v1957 = vmul.f32 %v1925, %v1953
        %v1959 = vlaneseq
        %v1960 = vshrl.u32 %v1959, 7
        %v1961 = vsub.s32 0, %v1960
        %v1962 = vrot.slane %v521, %v1961
        %v1964 = vmul.f32 %v1954, %v1962
        %v1965 = vmul.f32 %v1955, %v1962
        %v1966 = vmul.f32 %v1956, %v1962
        %v1967 = vmul.f32 %v1957, %v1962
        %v1969 = vlaneseq
        %v1970 = vshrl.u32 %v1969, 7
        %v1971 = vsub.s32 0, %v1970
        %v1972 = vrot.slane %v522, %v1971
        %v1974 = vadd.f32 %v1964, %v1972
        %v1975 = vadd.f32 %v1965, %v1972
        %v1976 = vadd.f32 %v1966, %v1972
        %v1977 = vadd.f32 %v1967, %v1972
        %v1978 = vld [vmem:[%s3] sm:$0x3]
        %v1980 = vsel %vm529, %v1978, 0
        %1982 = vmatprep.subr.mxu0 0.0
        %1983 = vmatpush1.msra.mxu0 0.0
        %1984 = vmatprep.subr.mxu0 0.0
        %1985 = vmatpush1.msra.mxu0 0.0
        %1986 = vmatprep.subr.mxu0 0.0
        %1987 = vmatpush1.msra.mxu0 0.0
        %1988 = vmatprep.subr.mxu0 0.0
        %1989 = vmatpush1.msra.mxu0 0.0
        %1990 = vmatprep.subr.mxu0 0.0
        %1991 = vmatpush1.msra.mxu0 0.0
        %1992 = vmatprep.subr.mxu0 0.0
        %1993 = vmatpush1.msra.mxu0 0.0
        %1994 = vmatprep.subr.mxu0 0.0
        %1995 = vmatpush1.msra.mxu0 0.0
        %1996 = vmatprep.subr.mxu0 0.0
        %1997 = vmatpush1.msra.mxu0 0.0
        %1998 = vmatprep.subr.mxu0 0.0
        %1999 = vmatpush1.msra.mxu0 0.0
        %2000 = vmatprep.subr.mxu0 0.0
        %2001 = vmatpush1.msra.mxu0 0.0
        %2002 = vmatprep.subr.mxu0 0.0
        %2003 = vmatpush1.msra.mxu0 0.0
        %2004 = vmatprep.subr.mxu0 0.0
        %2005 = vmatpush1.msra.mxu0 0.0
        %2006 = vmatprep.subr.mxu0 0.0
        %2007 = vmatpush1.msra.mxu0 %v1977
        %2008 = vmatprep.subr.mxu0 0.0
        %2009 = vmatpush1.msra.mxu0 %v1976
        %2010 = vmatprep.subr.mxu0 0.0
        %2011 = vmatpush1.msra.mxu0 %v1975
        %2012 = vmatprep.subr.mxu0 0.0
        %2013 = vmatpush1.msra.mxu0 %v1974
        %2014 = vmatprep.subr.mxu0 0.0
        %2015 = vmatpush2.msra.mxu0 0.0
        %2016 = vmatprep.subr.mxu0 0.0
        %2017 = vmatpush2.msra.mxu0 0.0
        %2018 = vmatprep.subr.mxu0 0.0
        %2019 = vmatpush2.msra.mxu0 0.0
        %2020 = vmatprep.subr.mxu0 0.0
        %2021 = vmatpush2.msra.mxu0 0.0
        %2022 = vmatprep.subr.mxu0 0.0
        %2023 = vmatpush2.msra.mxu0 0.0
        %2024 = vmatprep.subr.mxu0 0.0
        %2025 = vmatpush2.msra.mxu0 0.0
        %2026 = vmatprep.subr.mxu0 0.0
        %2027 = vmatpush2.msra.mxu0 0.0
        %2028 = vmatprep.subr.mxu0 0.0
        %2029 = vmatpush2.msra.mxu0 0.0
        %2030 = vmatprep.subr.mxu0 0.0
        %2031 = vmatpush2.msra.mxu0 0.0
        %2032 = vmatprep.subr.mxu0 0.0
        %2033 = vmatpush2.msra.mxu0 0.0
        %2034 = vmatprep.subr.mxu0 0.0
        %2035 = vmatpush2.msra.mxu0 0.0
        %2036 = vmatprep.subr.mxu0 0.0
        %2037 = vmatpush2.msra.mxu0 0.0
        %2038 = vmatprep.subr.mxu0 0.0
        %2039 = vmatpush2.msra.mxu0 0.0
        %2040 = vmatprep.subr.mxu0 0.0
        %2041 = vmatpush2.msra.mxu0 0.0
        %2042 = vmatprep.subr.mxu0 0.0
        %2043 = vmatpush2.msra.mxu0 0.0
        %2044 = vmatprep.subr.mxu0 0.0
        %2045 = vmatpush2.msra.mxu0 0.0
        %2046 = vmatprep.mubr.f32.mxu0 0.0
        %2047 = vmatmul.mubr.f32.gmra.mxu0 %v1980
        %v2048 = vpop.f32.mrf.mxu0
        %v2049 = vadd.f32 0.0, %v2048
        %v2050 = vpop.f32.mrf.mxu0
        %2051 = vdwg.mxu0
        %vm2052 = vcmask 254976
        %v2053 = vsel %vm2052, %v1978, 0.0
        %2054 = vadd.xlane.f32.xlu0 %v2053
        %v2055 = vpop.xlane.xlu0 %2054
        %v2056 = vmax.f32 %v2055, 1e-09
        %v2057 = vrcp.pop %v2056
        %v2058 = vmul.f32 %v2049, %v2057
        %2059 = vst.msk [vmem:[%s447] sm:$0x3] %vm2052, %v2058
        %p2060 = scmp.lt.s32.totalorder %s22, 5
        %s2061 = scalar_select %p2060, %s22, 5
        %s2062 = smul.addr %s2061, 2
        %s2063 = scalar_lea.vmem %s10, %s2062
        // Predicated region
        $region65: #{forward.4} parent=59 // pred_check
          %p2064 = pneg %p280
        $region66: #{forward.4} parent=59 // pred_check_branch
          %2066 = sbr.rel (%p2064) target = $region68
        $region67: #{forward.4} parent=59 // pred_region
          _
        $region68: #{forward.4} parent=59 // pred_fallthru
          _
      $region60: #{forward.4} parent=5 // pred_fallthru
        _
      %p2067 = scmp.le.s32.totalorder 2, %s17
      // Predicated region
      $region69: #{forward.4} parent=5 // pred_check
        %p2068 = pneg %p2067
      $region70: #{forward.4} parent=5 // pred_check_branch
        %2070 = sbr.rel (%p2068) target = $region72
      $region71: #{forward.4} parent=5 // pred_region
        %s2071 = ssub.s32 %s17, 2
        // Predicated region
        $region73: #{forward.4} parent=71 // pred_check
          %p2072 = pneg %p286
        $region74: #{forward.4} parent=71 // pred_check_branch
          %2074 = sbr.rel (%p2072) target = $region76
        $region75: #{forward.4} parent=71 // pred_region
          %p2075 = scmp.lt.s32.totalorder %s23, 5
          %s2076 = scalar_select %p2075, %s23, 5
          %s2077 = smul.addr %s2076, 2
          %s2078 = scalar_lea.vmem %s10, %s2077
        $region76: #{forward.4} parent=71 // pred_fallthru
          _
      $region72: #{forward.4} parent=5 // pred_fallthru
        _
    $region6: #{forward.4} parent=1 // loop_footer
      %s21 = sadd.s32 1, %s17
    $region7: #{forward.4} parent=1 // loop_footer_branch
      %16 = sbr.rel target = $region3
    $region8: #{forward.4} parent=1 // loop_exit
      _
    %2079 = vsyncpa [#allocation3], 1
    %s2080 = scalar_lea.sflag [#allocation3], 1
    %2081 = vsyncpa %s2080, 1

// kernel: forward.3
$region0: #{forward.3}
  #allocation0 [shape = 'u32[]', space=smem, size = 0x4, offset = 0x4, fixed_abs, tag = 'smem constant byte address 0x4 - core index']
  #allocation1 [shape = 'u32[144,128]{1,0:T(1,128)}', space=vmem, size = 0x12000, scoped, tag = 'internal scratch']
  #allocation2 [shape = 'f32[32,32]{1,0:T(8,128)}', space=vmem, size = 0x4000, scoped, tag = 'scratch operand']
  %s0 = inlined_call_operand.vmem [shape: f32[32,32], index: 0, kind: input, shape index: {}]
  %s1 = inlined_call_operand.vmem [shape: f32[32,32], index: 1, kind: input, shape index: {}]
  %s2 = inlined_call_operand.vmem [shape: f32[4,32,96], index: 2, kind: input, shape index: {}]
  %s3 = inlined_call_operand.vmem [shape: f32[4,1,96], index: 3, kind: input, shape index: {}]
  %s4 = inlined_call_operand.vmem [shape: f32[4,32,32], index: 4, kind: input, shape index: {}]
  %s5 = inlined_call_operand.vmem [shape: f32[4,1,32], index: 5, kind: input, shape index: {}]
  %s6 = inlined_call_operand.vmem [shape: f32[4,1,32], index: 6, kind: input, shape index: {}]
  %s7 = inlined_call_operand.vmem [shape: f32[4,1,32], index: 7, kind: input, shape index: {}]
  %s8 = inlined_call_operand.vmem [shape: f32[4,32,64], index: 8, kind: input, shape index: {}]
  %s9 = inlined_call_operand.vmem [shape: f32[4,1,64], index: 9, kind: input, shape index: {}]
  %s10 = inlined_call_operand.vmem [shape: f32[4,64,32], index: 10, kind: input, shape index: {}]
  %s11 = inlined_call_operand.vmem [shape: f32[4,1,32], index: 11, kind: input, shape index: {}]
  %s12 = inlined_call_operand.vmem [shape: f32[4,1,32], index: 12, kind: input, shape index: {}]
  %s13 = inlined_call_operand.vmem [shape: f32[4,1,32], index: 13, kind: input, shape index: {}]
  %s14 = inlined_call_operand.vmem [shape: f32[4,32,32], index: 14, kind: output, shape index: {}]
  %s15 = sld [smem:[#allocation0]]
  $region93: #{forward.3} parent=0
    _
  %s17 = ssub.s32 1, %s15
  %s18 = scalar_select 0, %s17, %s15
  loop: start=0, step=1, limit=6
  $region2: #{forward.3} parent=0 // loop_pre_header
    _
  $region3: #{forward.3} parent=0 // loop_header
    %s20 = sphi 0, %s24
    %p21 = scmp.ge.s32.totalorder %s20, 6
    %s28 = sphi 0, %s28
    %s30 = sphi 0, %s28
    %s31 = sphi 0, %s30
    %s45 = sphi 0, %s31
    %s49 = sphi 0, %s49
    %s51 = sphi 0, %s49
    %s52 = sphi 0, %s51
    %s66 = sphi 0, %s52
    %s72 = sphi 0, %s74
    %s75 = sphi 0, %s72
    %s76 = sphi 0, %s75
    %s92 = sphi 0, %s76
    %s98 = sphi 0, %s100
    %s101 = sphi 0, %s98
    %s102 = sphi 0, %s101
    %s118 = sphi 0, %s102
    %s124 = sphi 0, %s126
    %s127 = sphi 0, %s124
    %s128 = sphi 0, %s127
    %s144 = sphi 0, %s128
    %s150 = sphi 0, %s152
    %s153 = sphi 0, %s150
    %s154 = sphi 0, %s153
    %s170 = sphi 0, %s154
    %s176 = sphi 0, %s178
    %s179 = sphi 0, %s176
    %s180 = sphi 0, %s179
    %s196 = sphi 0, %s180
    %s202 = sphi 0, %s204
    %s205 = sphi 0, %s202
    %s206 = sphi 0, %s205
    %s222 = sphi 0, %s206
    %s228 = sphi 0, %s230
    %s231 = sphi 0, %s228
    %s232 = sphi 0, %s231
    %s248 = sphi 0, %s232
    %s254 = sphi 0, %s256
    %s257 = sphi 0, %s254
    %s258 = sphi 0, %s257
    %s274 = sphi 0, %s258
    %s280 = sphi 0, %s282
    %s283 = sphi 0, %s280
    %s284 = sphi 0, %s283
    %s300 = sphi 0, %s284
    %s306 = sphi 0, %s308
    %s309 = sphi 0, %s306
    %s310 = sphi 0, %s309
    %s326 = sphi 0, %s310
    %s332 = sphi 0, %s334
    %s335 = sphi 0, %s332
    %s336 = sphi 0, %s335
    %s352 = sphi 0, %s336
    %s358 = sphi 0, %s360
    %s361 = sphi 0, %s358
    %s362 = sphi 0, %s361
    %s378 = sphi 0, %s362
    %s384 = sphi 0, %s386
    %s387 = sphi 0, %s384
    %s388 = sphi 0, %s387
    %s404 = sphi 0, %s388
  $region4: #{forward.3} parent=0 // loop_header_branch
    %23 = sbr.rel (%p21) target = $region8
  $region5: #{forward.3} parent=0 // loop_body
    %s25 = ssub.s32 %s20, 1
    %s26 = ssub.s32 %s20, 2
    %s27 = sadd.s32 %s20, 1
    %s29 = sadd.s32 %s28, 1
    %p32 = scmp.eq.s32.totalorder %s20, 3
    %p33 = scmp.ne.s32.totalorder %s28, %s30
    %p34 = scmp.eq.s32.totalorder %s20, 0
    %p35 = por %p33, %p34
    %p36 = scmp.ne.s32.totalorder %s28, %s30
    %p37 = scmp.eq.s32.totalorder %s25, 3
    %p38 = por %p36, %p37
    %p39 = scmp.ne.s32.totalorder %s30, %s31
    %p40 = scmp.eq.s32.totalorder %s25, 0
    %p41 = por %p39, %p40
    %p42 = scmp.ne.s32.totalorder %s30, %s31
    %p43 = scmp.eq.s32.totalorder %s26, 3
    %p44 = por %p42, %p43
    %p46 = scmp.ne.s32.totalorder %s31, %s45
    %p47 = scmp.eq.s32.totalorder %s26, 0
    %p48 = por %p46, %p47
    %s50 = sadd.s32 %s49, 1
    %p53 = scmp.eq.s32.totalorder %s20, 3
    %p54 = scmp.ne.s32.totalorder %s49, %s51
    %p55 = scmp.eq.s32.totalorder %s20, 0
    %p56 = por %p54, %p55
    %p57 = scmp.ne.s32.totalorder %s49, %s51
    %p58 = scmp.eq.s32.totalorder %s25, 3
    %p59 = por %p57, %p58
    %p60 = scmp.ne.s32.totalorder %s51, %s52
    %p61 = scmp.eq.s32.totalorder %s25, 0
    %p62 = por %p60, %p61
    %p63 = scmp.ne.s32.totalorder %s51, %s52
    %p64 = scmp.eq.s32.totalorder %s26, 3
    %p65 = por %p63, %p64
    %p67 = scmp.ne.s32.totalorder %s52, %s66
    %p68 = scmp.eq.s32.totalorder %s26, 0
    %p69 = por %p67, %p68
    %s70 = ssub.s32 %s20, %s27
    %p71 = scmp.eq.s32.totalorder %s70, 0
    %s73 = sadd.s32 %s72, 1
    %s74 = scalar_select %p71, %s72, %s73
    %p77 = pneg %p71
    %p78 = scmp.eq.s32.totalorder %s20, 3
    %p79 = por %p77, %p78
    %p80 = scmp.ne.s32.totalorder %s72, %s75
    %p81 = scmp.eq.s32.totalorder %s20, 0
    %p82 = por %p80, %p81
    %p83 = scmp.ne.s32.totalorder %s72, %s75
    %p84 = scmp.eq.s32.totalorder %s25, 3
    %p85 = por %p83, %p84
    %p86 = scmp.ne.s32.totalorder %s75, %s76
    %p87 = scmp.eq.s32.totalorder %s25, 0
    %p88 = por %p86, %p87
    %p89 = scmp.ne.s32.totalorder %s75, %s76
    %p90 = scmp.eq.s32.totalorder %s26, 3
    %p91 = por %p89, %p90
    %p93 = scmp.ne.s32.totalorder %s76, %s92
    %p94 = scmp.eq.s32.totalorder %s26, 0
    %p95 = por %p93, %p94
    %s96 = ssub.s32 %s20, %s27
    %p97 = scmp.eq.s32.totalorder %s96, 0
    %s99 = sadd.s32 %s98, 1
    %s100 = scalar_select %p97, %s98, %s99
    %p103 = pneg %p97
    %p104 = scmp.eq.s32.totalorder %s20, 3
    %p105 = por %p103, %p104
    %p106 = scmp.ne.s32.totalorder %s98, %s101
    %p107 = scmp.eq.s32.totalorder %s20, 0
    %p108 = por %p106, %p107
    %p109 = scmp.ne.s32.totalorder %s98, %s101
    %p110 = scmp.eq.s32.totalorder %s25, 3
    %p111 = por %p109, %p110
    %p112 = scmp.ne.s32.totalorder %s101, %s102
    %p113 = scmp.eq.s32.totalorder %s25, 0
    %p114 = por %p112, %p113
    %p115 = scmp.ne.s32.totalorder %s101, %s102
    %p116 = scmp.eq.s32.totalorder %s26, 3
    %p117 = por %p115, %p116
    %p119 = scmp.ne.s32.totalorder %s102, %s118
    %p120 = scmp.eq.s32.totalorder %s26, 0
    %p121 = por %p119, %p120
    %s122 = ssub.s32 %s20, %s27
    %p123 = scmp.eq.s32.totalorder %s122, 0
    %s125 = sadd.s32 %s124, 1
    %s126 = scalar_select %p123, %s124, %s125
    %p129 = pneg %p123
    %p130 = scmp.eq.s32.totalorder %s20, 3
    %p131 = por %p129, %p130
    %p132 = scmp.ne.s32.totalorder %s124, %s127
    %p133 = scmp.eq.s32.totalorder %s20, 0
    %p134 = por %p132, %p133
    %p135 = scmp.ne.s32.totalorder %s124, %s127
    %p136 = scmp.eq.s32.totalorder %s25, 3
    %p137 = por %p135, %p136
    %p138 = scmp.ne.s32.totalorder %s127, %s128
    %p139 = scmp.eq.s32.totalorder %s25, 0
    %p140 = por %p138, %p139
    %p141 = scmp.ne.s32.totalorder %s127, %s128
    %p142 = scmp.eq.s32.totalorder %s26, 3
    %p143 = por %p141, %p142
    %p145 = scmp.ne.s32.totalorder %s128, %s144
    %p146 = scmp.eq.s32.totalorder %s26, 0
    %p147 = por %p145, %p146
    %s148 = ssub.s32 %s20, %s27
    %p149 = scmp.eq.s32.totalorder %s148, 0
    %s151 = sadd.s32 %s150, 1
    %s152 = scalar_select %p149, %s150, %s151
    %p155 = pneg %p149
    %p156 = scmp.eq.s32.totalorder %s20, 3
    %p157 = por %p155, %p156
    %p158 = scmp.ne.s32.totalorder %s150, %s153
    %p159 = scmp.eq.s32.totalorder %s20, 0
    %p160 = por %p158, %p159
    %p161 = scmp.ne.s32.totalorder %s150, %s153
    %p162 = scmp.eq.s32.totalorder %s25, 3
    %p163 = por %p161, %p162
    %p164 = scmp.ne.s32.totalorder %s153, %s154
    %p165 = scmp.eq.s32.totalorder %s25, 0
    %p166 = por %p164, %p165
    %p167 = scmp.ne.s32.totalorder %s153, %s154
    %p168 = scmp.eq.s32.totalorder %s26, 3
    %p169 = por %p167, %p168
    %p171 = scmp.ne.s32.totalorder %s154, %s170
    %p172 = scmp.eq.s32.totalorder %s26, 0
    %p173 = por %p171, %p172
    %s174 = ssub.s32 %s20, %s27
    %p175 = scmp.eq.s32.totalorder %s174, 0
    %s177 = sadd.s32 %s176, 1
    %s178 = scalar_select %p175, %s176, %s177
    %p181 = pneg %p175
    %p182 = scmp.eq.s32.totalorder %s20, 3
    %p183 = por %p181, %p182
    %p184 = scmp.ne.s32.totalorder %s176, %s179
    %p185 = scmp.eq.s32.totalorder %s20, 0
    %p186 = por %p184, %p185
    %p187 = scmp.ne.s32.totalorder %s176, %s179
    %p188 = scmp.eq.s32.totalorder %s25, 3
    %p189 = por %p187, %p188
    %p190 = scmp.ne.s32.totalorder %s179, %s180
    %p191 = scmp.eq.s32.totalorder %s25, 0
    %p192 = por %p190, %p191
    %p193 = scmp.ne.s32.totalorder %s179, %s180
    %p194 = scmp.eq.s32.totalorder %s26, 3
    %p195 = por %p193, %p194
    %p197 = scmp.ne.s32.totalorder %s180, %s196
    %p198 = scmp.eq.s32.totalorder %s26, 0
    %p199 = por %p197, %p198
    %s200 = ssub.s32 %s20, %s27
    %p201 = scmp.eq.s32.totalorder %s200, 0
    %s203 = sadd.s32 %s202, 1
    %s204 = scalar_select %p201, %s202, %s203
    %p207 = pneg %p201
    %p208 = scmp.eq.s32.totalorder %s20, 3
    %p209 = por %p207, %p208
    %p210 = scmp.ne.s32.totalorder %s202, %s205
    %p211 = scmp.eq.s32.totalorder %s20, 0
    %p212 = por %p210, %p211
    %p213 = scmp.ne.s32.totalorder %s202, %s205
    %p214 = scmp.eq.s32.totalorder %s25, 3
    %p215 = por %p213, %p214
    %p216 = scmp.ne.s32.totalorder %s205, %s206
    %p217 = scmp.eq.s32.totalorder %s25, 0
    %p218 = por %p216, %p217
    %p219 = scmp.ne.s32.totalorder %s205, %s206
    %p220 = scmp.eq.s32.totalorder %s26, 3
    %p221 = por %p219, %p220
    %p223 = scmp.ne.s32.totalorder %s206, %s222
    %p224 = scmp.eq.s32.totalorder %s26, 0
    %p225 = por %p223, %p224
    %s226 = ssub.s32 %s20, %s27
    %p227 = scmp.eq.s32.totalorder %s226, 0
    %s229 = sadd.s32 %s228, 1
    %s230 = scalar_select %p227, %s228, %s229
    %p233 = pneg %p227
    %p234 = scmp.eq.s32.totalorder %s20, 3
    %p235 = por %p233, %p234
    %p236 = scmp.ne.s32.totalorder %s228, %s231
    %p237 = scmp.eq.s32.totalorder %s20, 0
    %p238 = por %p236, %p237
    %p239 = scmp.ne.s32.totalorder %s228, %s231
    %p240 = scmp.eq.s32.totalorder %s25, 3
    %p241 = por %p239, %p240
    %p242 = scmp.ne.s32.totalorder %s231, %s232
    %p243 = scmp.eq.s32.totalorder %s25, 0
    %p244 = por %p242, %p243
    %p245 = scmp.ne.s32.totalorder %s231, %s232
    %p246 = scmp.eq.s32.totalorder %s26, 3
    %p247 = por %p245, %p246
    %p249 = scmp.ne.s32.totalorder %s232, %s248
    %p250 = scmp.eq.s32.totalorder %s26, 0
    %p251 = por %p249, %p250
    %s252 = ssub.s32 %s20, %s27
    %p253 = scmp.eq.s32.totalorder %s252, 0
    %s255 = sadd.s32 %s254, 1
    %s256 = scalar_select %p253, %s254, %s255
    %p259 = pneg %p253
    %p260 = scmp.eq.s32.totalorder %s20, 3
    %p261 = por %p259, %p260
    %p262 = scmp.ne.s32.totalorder %s254, %s257
    %p263 = scmp.eq.s32.totalorder %s20, 0
    %p264 = por %p262, %p263
    %p265 = scmp.ne.s32.totalorder %s254, %s257
    %p266 = scmp.eq.s32.totalorder %s25, 3
    %p267 = por %p265, %p266
    %p268 = scmp.ne.s32.totalorder %s257, %s258
    %p269 = scmp.eq.s32.totalorder %s25, 0
    %p270 = por %p268, %p269
    %p271 = scmp.ne.s32.totalorder %s257, %s258
    %p272 = scmp.eq.s32.totalorder %s26, 3
    %p273 = por %p271, %p272
    %p275 = scmp.ne.s32.totalorder %s258, %s274
    %p276 = scmp.eq.s32.totalorder %s26, 0
    %p277 = por %p275, %p276
    %s278 = ssub.s32 %s20, %s27
    %p279 = scmp.eq.s32.totalorder %s278, 0
    %s281 = sadd.s32 %s280, 1
    %s282 = scalar_select %p279, %s280, %s281
    %p285 = pneg %p279
    %p286 = scmp.eq.s32.totalorder %s20, 3
    %p287 = por %p285, %p286
    %p288 = scmp.ne.s32.totalorder %s280, %s283
    %p289 = scmp.eq.s32.totalorder %s20, 0
    %p290 = por %p288, %p289
    %p291 = scmp.ne.s32.totalorder %s280, %s283
    %p292 = scmp.eq.s32.totalorder %s25, 3
    %p293 = por %p291, %p292
    %p294 = scmp.ne.s32.totalorder %s283, %s284
    %p295 = scmp.eq.s32.totalorder %s25, 0
    %p296 = por %p294, %p295
    %p297 = scmp.ne.s32.totalorder %s283, %s284
    %p298 = scmp.eq.s32.totalorder %s26, 3
    %p299 = por %p297, %p298
    %p301 = scmp.ne.s32.totalorder %s284, %s300
    %p302 = scmp.eq.s32.totalorder %s26, 0
    %p303 = por %p301, %p302
    %s304 = ssub.s32 %s20, %s27
    %p305 = scmp.eq.s32.totalorder %s304, 0
    %s307 = sadd.s32 %s306, 1
    %s308 = scalar_select %p305, %s306, %s307
    %p311 = pneg %p305
    %p312 = scmp.eq.s32.totalorder %s20, 3
    %p313 = por %p311, %p312
    %p314 = scmp.ne.s32.totalorder %s306, %s309
    %p315 = scmp.eq.s32.totalorder %s20, 0
    %p316 = por %p314, %p315
    %p317 = scmp.ne.s32.totalorder %s306, %s309
    %p318 = scmp.eq.s32.totalorder %s25, 3
    %p319 = por %p317, %p318
    %p320 = scmp.ne.s32.totalorder %s309, %s310
    %p321 = scmp.eq.s32.totalorder %s25, 0
    %p322 = por %p320, %p321
    %p323 = scmp.ne.s32.totalorder %s309, %s310
    %p324 = scmp.eq.s32.totalorder %s26, 3
    %p325 = por %p323, %p324
    %p327 = scmp.ne.s32.totalorder %s310, %s326
    %p328 = scmp.eq.s32.totalorder %s26, 0
    %p329 = por %p327, %p328
    %s330 = ssub.s32 %s20, %s27
    %p331 = scmp.eq.s32.totalorder %s330, 0
    %s333 = sadd.s32 %s332, 1
    %s334 = scalar_select %p331, %s332, %s333
    %p337 = pneg %p331
    %p338 = scmp.eq.s32.totalorder %s20, 3
    %p339 = por %p337, %p338
    %p340 = scmp.ne.s32.totalorder %s332, %s335
    %p341 = scmp.eq.s32.totalorder %s20, 0
    %p342 = por %p340, %p341
    %p343 = scmp.ne.s32.totalorder %s332, %s335
    %p344 = scmp.eq.s32.totalorder %s25, 3
    %p345 = por %p343, %p344
    %p346 = scmp.ne.s32.totalorder %s335, %s336
    %p347 = scmp.eq.s32.totalorder %s25, 0
    %p348 = por %p346, %p347
    %p349 = scmp.ne.s32.totalorder %s335, %s336
    %p350 = scmp.eq.s32.totalorder %s26, 3
    %p351 = por %p349, %p350
    %p353 = scmp.ne.s32.totalorder %s336, %s352
    %p354 = scmp.eq.s32.totalorder %s26, 0
    %p355 = por %p353, %p354
    %s356 = ssub.s32 %s20, %s27
    %p357 = scmp.eq.s32.totalorder %s356, 0
    %s359 = sadd.s32 %s358, 1
    %s360 = scalar_select %p357, %s358, %s359
    %p363 = pneg %p357
    %p364 = scmp.eq.s32.totalorder %s20, 3
    %p365 = por %p363, %p364
    %p366 = scmp.ne.s32.totalorder %s358, %s361
    %p367 = scmp.eq.s32.totalorder %s20, 0
    %p368 = por %p366, %p367
    %p369 = scmp.ne.s32.totalorder %s358, %s361
    %p370 = scmp.eq.s32.totalorder %s25, 3
    %p371 = por %p369, %p370
    %p372 = scmp.ne.s32.totalorder %s361, %s362
    %p373 = scmp.eq.s32.totalorder %s25, 0
    %p374 = por %p372, %p373
    %p375 = scmp.ne.s32.totalorder %s361, %s362
    %p376 = scmp.eq.s32.totalorder %s26, 3
    %p377 = por %p375, %p376
    %p379 = scmp.ne.s32.totalorder %s362, %s378
    %p380 = scmp.eq.s32.totalorder %s26, 0
    %p381 = por %p379, %p380
    %s382 = ssub.s32 %s20, %s27
    %p383 = scmp.eq.s32.totalorder %s382, 0
    %s385 = sadd.s32 %s384, 1
    %s386 = scalar_select %p383, %s384, %s385
    %p389 = pneg %p383
    %p390 = scmp.eq.s32.totalorder %s20, 3
    %p391 = por %p389, %p390
    %p392 = scmp.ne.s32.totalorder %s384, %s387
    %p393 = scmp.eq.s32.totalorder %s20, 0
    %p394 = por %p392, %p393
    %p395 = scmp.ne.s32.totalorder %s384, %s387
    %p396 = scmp.eq.s32.totalorder %s25, 3
    %p397 = por %p395, %p396
    %p398 = scmp.ne.s32.totalorder %s387, %s388
    %p399 = scmp.eq.s32.totalorder %s25, 0
    %p400 = por %p398, %p399
    %p401 = scmp.ne.s32.totalorder %s387, %s388
    %p402 = scmp.eq.s32.totalorder %s26, 3
    %p403 = por %p401, %p402
    %p405 = scmp.ne.s32.totalorder %s388, %s404
    %p406 = scmp.eq.s32.totalorder %s26, 0
    %p407 = por %p405, %p406
    %p408 = scmp.le.s32.totalorder 1, %s20
    %p409 = scmp.lt.s32.totalorder %s20, 5
    %p410 = pnand %p408, %p409
    %p411 = pneg %p410
    // Predicated region
    $region9: #{forward.3} parent=5 // pred_check
      _
    $region10: #{forward.3} parent=5 // pred_check_branch
      %413 = sbr.rel (%p410) target = $region12
    $region11: #{forward.3} parent=5 // pred_region
      %s414 = ssub.s32 %s20, 1
      // Predicated region
      $region13: #{forward.3} parent=11 // pred_check
        %p415 = pneg %p41
      $region14: #{forward.3} parent=11 // pred_check_branch
        %417 = sbr.rel (%p415) target = $region16
      $region15: #{forward.3} parent=11 // pred_region
        _
      $region16: #{forward.3} parent=11 // pred_fallthru
        _
      // Predicated region
      $region17: #{forward.3} parent=11 // pred_check
        %p418 = pneg %p62
      $region18: #{forward.3} parent=11 // pred_check_branch
        %420 = sbr.rel (%p418) target = $region20
      $region19: #{forward.3} parent=11 // pred_region
        _
      $region20: #{forward.3} parent=11 // pred_fallthru
        _
    $region12: #{forward.3} parent=5 // pred_fallthru
      _
    %p421 = scmp.lt.s32.totalorder %s20, 4
    // Predicated region
    $region21: #{forward.3} parent=5 // pred_check
      %p422 = pneg %p421
    $region22: #{forward.3} parent=5 // pred_check_branch
      %424 = sbr.rel (%p422) target = $region24
    $region23: #{forward.3} parent=5 // pred_region
      // Predicated region
      $region25: #{forward.3} parent=23 // pred_check
        %p425 = pneg %p82
      $region26: #{forward.3} parent=23 // pred_check_branch
        %427 = sbr.rel (%p425) target = $region28
      $region27: #{forward.3} parent=23 // pred_region
        %p428 = scmp.lt.s32.totalorder %s20, 3
        %s429 = scalar_select %p428, %s20, 3
        %s430 = smul.addr %s429, 4
        %s431 = smul.addr %s430, 8
        %s432 = scalar_lea.vmem %s2, %s431
      $region28: #{forward.3} parent=23 // pred_fallthru
        _
      // Predicated region
      $region29: #{forward.3} parent=23 // pred_check
        %p433 = pneg %p108
      $region30: #{forward.3} parent=23 // pred_check_branch
        %435 = sbr.rel (%p433) target = $region32
      $region31: #{forward.3} parent=23 // pred_region
        %p436 = scmp.lt.s32.totalorder %s20, 3
        %s437 = scalar_select %p436, %s20, 3
        %s438 = scalar_lea.vmem %s3, %s437
      $region32: #{forward.3} parent=23 // pred_fallthru
        _
      // Predicated region
      $region33: #{forward.3} parent=23 // pred_check
        %p439 = pneg %p134
      $region34: #{forward.3} parent=23 // pred_check_branch
        %441 = sbr.rel (%p439) target = $region36
      $region35: #{forward.3} parent=23 // pred_region
        %p442 = scmp.lt.s32.totalorder %s20, 3
        %s443 = scalar_select %p442, %s20, 3
        %s444 = smul.addr %s443, 4
        %s445 = smul.addr %s444, 8
        %s446 = scalar_lea.vmem %s4, %s445
      $region36: #{forward.3} parent=23 // pred_fallthru
        _
      // Predicated region
      $region37: #{forward.3} parent=23 // pred_check
        %p447 = pneg %p160
      $region38: #{forward.3} parent=23 // pred_check_branch
        %449 = sbr.rel (%p447) target = $region40
      $region39: #{forward.3} parent=23 // pred_region
        %p450 = scmp.lt.s32.totalorder %s20, 3
        %s451 = scalar_select %p450, %s20, 3
        %s452 = scalar_lea.vmem %s5, %s451
      $region40: #{forward.3} parent=23 // pred_fallthru
        _
      // Predicated region
      $region41: #{forward.3} parent=23 // pred_check
        %p453 = pneg %p186
      $region42: #{forward.3} parent=23 // pred_check_branch
        %455 = sbr.rel (%p453) target = $region44
      $region43: #{forward.3} parent=23 // pred_region
        %p456 = scmp.lt.s32.totalorder %s20, 3
        %s457 = scalar_select %p456, %s20, 3
        %s458 = scalar_lea.vmem %s6, %s457
      $region44: #{forward.3} parent=23 // pred_fallthru
        _
      // Predicated region
      $region45: #{forward.3} parent=23 // pred_check
        %p459 = pneg %p212
      $region46: #{forward.3} parent=23 // pred_check_branch
        %461 = sbr.rel (%p459) target = $region48
      $region47: #{forward.3} parent=23 // pred_region
        %p462 = scmp.lt.s32.totalorder %s20, 3
        %s463 = scalar_select %p462, %s20, 3
        %s464 = scalar_lea.vmem %s7, %s463
      $region48: #{forward.3} parent=23 // pred_fallthru
        _
      // Predicated region
      $region49: #{forward.3} parent=23 // pred_check
        %p465 = pneg %p238
      $region50: #{forward.3} parent=23 // pred_check_branch
        %467 = sbr.rel (%p465) target = $region52
      $region51: #{forward.3} parent=23 // pred_region
        %p468 = scmp.lt.s32.totalorder %s20, 3
        %s469 = scalar_select %p468, %s20, 3
        %s470 = smul.addr %s469, 4
        %s471 = smul.addr %s470, 8
        %s472 = scalar_lea.vmem %s8, %s471
      $region52: #{forward.3} parent=23 // pred_fallthru
        _
      // Predicated region
      $region53: #{forward.3} parent=23 // pred_check
        %p473 = pneg %p264
      $region54: #{forward.3} parent=23 // pred_check_branch
        %475 = sbr.rel (%p473) target = $region56
      $region55: #{forward.3} parent=23 // pred_region
        %p476 = scmp.lt.s32.totalorder %s20, 3
        %s477 = scalar_select %p476, %s20, 3
        %s478 = scalar_lea.vmem %s9, %s477
      $region56: #{forward.3} parent=23 // pred_fallthru
        _
      // Predicated region
      $region57: #{forward.3} parent=23 // pred_check
        %p479 = pneg %p290
      $region58: #{forward.3} parent=23 // pred_check_branch
        %481 = sbr.rel (%p479) target = $region60
      $region59: #{forward.3} parent=23 // pred_region
        %p482 = scmp.lt.s32.totalorder %s20, 3
        %s483 = scalar_select %p482, %s20, 3
        %s484 = smul.addr %s483, 8
        %s485 = smul.addr %s484, 8
        %s486 = scalar_lea.vmem %s10, %s485
      $region60: #{forward.3} parent=23 // pred_fallthru
        _
      // Predicated region
      $region61: #{forward.3} parent=23 // pred_check
        %p487 = pneg %p316
      $region62: #{forward.3} parent=23 // pred_check_branch
        %489 = sbr.rel (%p487) target = $region64
      $region63: #{forward.3} parent=23 // pred_region
        %p490 = scmp.lt.s32.totalorder %s20, 3
        %s491 = scalar_select %p490, %s20, 3
        %s492 = scalar_lea.vmem %s11, %s491
      $region64: #{forward.3} parent=23 // pred_fallthru
        _
      // Predicated region
      $region65: #{forward.3} parent=23 // pred_check
        %p493 = pneg %p342
      $region66: #{forward.3} parent=23 // pred_check_branch
        %495 = sbr.rel (%p493) target = $region68
      $region67: #{forward.3} parent=23 // pred_region
        %p496 = scmp.lt.s32.totalorder %s20, 3
        %s497 = scalar_select %p496, %s20, 3
        %s498 = scalar_lea.vmem %s12, %s497
      $region68: #{forward.3} parent=23 // pred_fallthru
        _
      // Predicated region
      $region69: #{forward.3} parent=23 // pred_check
        %p499 = pneg %p368
      $region70: #{forward.3} parent=23 // pred_check_branch
        %501 = sbr.rel (%p499) target = $region72
      $region71: #{forward.3} parent=23 // pred_region
        %p502 = scmp.lt.s32.totalorder %s20, 3
        %s503 = scalar_select %p502, %s20, 3
        %s504 = scalar_lea.vmem %s13, %s503
      $region72: #{forward.3} parent=23 // pred_fallthru
        _
    $region24: #{forward.3} parent=5 // pred_fallthru
      _
    %p505 = scmp.le.s32.totalorder 1, %s20
    %p506 = scmp.lt.s32.totalorder %s20, 5
    %p507 = pnand %p505, %p506
    %p508 = pneg %p507
    // Predicated region
    $region73: #{forward.3} parent=5 // pred_check
      _
    $region74: #{forward.3} parent=5 // pred_check_branch
      %510 = sbr.rel (%p507) target = $region76
    $region75: #{forward.3} parent=5 // pred_region
      %s511 = ssub.s32 %s20, 1
      %p512 = pneg %p41
      %p513 = pneg %p38
      %p514 = pneg %p62
      %p515 = pneg %p59
      %p516 = scmp.lt.s32.totalorder %s25, 3
      %s517 = scalar_select %p516, %s25, 3
      %s518 = smul.addr %s517, 4
      %s519 = smul.addr %s518, 8
      %s520 = scalar_lea.vmem %s2, %s519
      %p521 = pneg %p88
      %p522 = pneg %p85
      %p523 = scmp.lt.s32.totalorder %s25, 3
      %s524 = scalar_select %p523, %s25, 3
      %s525 = scalar_lea.vmem %s3, %s524
      %p526 = pneg %p114
      %p527 = pneg %p111
      %p528 = scmp.lt.s32.totalorder %s25, 3
      %s529 = scalar_select %p528, %s25, 3
      %s530 = smul.addr %s529, 4
      %s531 = smul.addr %s530, 8
      %s532 = scalar_lea.vmem %s4, %s531
      %p533 = pneg %p140
      %p534 = pneg %p137
      %p535 = scmp.lt.s32.totalorder %s25, 3
      %s536 = scalar_select %p535, %s25, 3
      %s537 = scalar_lea.vmem %s5, %s536
      %p538 = pneg %p166
      %p539 = pneg %p163
      %p540 = scmp.lt.s32.totalorder %s25, 3
      %s541 = scalar_select %p540, %s25, 3
      %s542 = scalar_lea.vmem %s6, %s541
      %p543 = pneg %p192
      %p544 = pneg %p189
      %p545 = scmp.lt.s32.totalorder %s25, 3
      %s546 = scalar_select %p545, %s25, 3
      %s547 = scalar_lea.vmem %s7, %s546
      %p548 = pneg %p218
      %p549 = pneg %p215
      %p550 = scmp.lt.s32.totalorder %s25, 3
      %s551 = scalar_select %p550, %s25, 3
      %s552 = smul.addr %s551, 4
      %s553 = smul.addr %s552, 8
      %s554 = scalar_lea.vmem %s8, %s553
      %p555 = pneg %p244
      %p556 = pneg %p241
      %p557 = scmp.lt.s32.totalorder %s25, 3
      %s558 = scalar_select %p557, %s25, 3
      %s559 = scalar_lea.vmem %s9, %s558
      %p560 = pneg %p270
      %p561 = pneg %p267
      %p562 = scmp.lt.s32.totalorder %s25, 3
      %s563 = scalar_select %p562, %s25, 3
      %s564 = smul.addr %s563, 8
      %s565 = smul.addr %s564, 8
      %s566 = scalar_lea.vmem %s10, %s565
      %p567 = pneg %p296
      %p568 = pneg %p293
      %p569 = scmp.lt.s32.totalorder %s25, 3
      %s570 = scalar_select %p569, %s25, 3
      %s571 = scalar_lea.vmem %s11, %s570
      %p572 = pneg %p322
      %p573 = pneg %p319
      %p574 = scmp.lt.s32.totalorder %s25, 3
      %s575 = scalar_select %p574, %s25, 3
      %s576 = scalar_lea.vmem %s12, %s575
      %p577 = pneg %p348
      %p578 = pneg %p345
      %p579 = scmp.lt.s32.totalorder %s25, 3
      %s580 = scalar_select %p579, %s25, 3
      %s581 = scalar_lea.vmem %s13, %s580
      %p582 = pneg %p374
      %p583 = pneg %p371
      %p584 = pneg %p400
      %p585 = pneg %p397
      %p586 = scmp.lt.s32.totalorder %s25, 3
      %s587 = scalar_select %p586, %s25, 3
      %s588 = smul.addr %s587, 4
      %s589 = smul.addr %s588, 8
      %s590 = scalar_lea.vmem %s14, %s589
      %p591 = scmp.lt.s32.totalorder %s25, 3
      %s592 = scalar_select %p591, %s25, 3
      %s593 = smul.addr %s592, 4
      %s594 = smul.addr %s593, 8
      %s595 = scalar_lea.vmem %s2, %s594
      %p596 = scmp.lt.s32.totalorder %s25, 3
      %s597 = scalar_select %p596, %s25, 3
      %s598 = scalar_lea.vmem %s3, %s597
      %p599 = scmp.lt.s32.totalorder %s25, 3
      %s600 = scalar_select %p599, %s25, 3
      %s601 = smul.addr %s600, 4
      %s602 = smul.addr %s601, 8
      %s603 = scalar_lea.vmem %s4, %s602
      %p604 = scmp.lt.s32.totalorder %s25, 3
      %s605 = scalar_select %p604, %s25, 3
      %s606 = scalar_lea.vmem %s5, %s605
      %p607 = scmp.lt.s32.totalorder %s25, 3
      %s608 = scalar_select %p607, %s25, 3
      %s609 = scalar_lea.vmem %s6, %s608
      %p610 = scmp.lt.s32.totalorder %s25, 3
      %s611 = scalar_select %p610, %s25, 3
      %s612 = scalar_lea.vmem %s7, %s611
      %p613 = scmp.lt.s32.totalorder %s25, 3
      %s614 = scalar_select %p613, %s25, 3
      %s615 = smul.addr %s614, 4
      %s616 = smul.addr %s615, 8
      %s617 = scalar_lea.vmem %s8, %s616
      %p618 = scmp.lt.s32.totalorder %s25, 3
      %s619 = scalar_select %p618, %s25, 3
      %s620 = scalar_lea.vmem %s9, %s619
      %p621 = scmp.lt.s32.totalorder %s25, 3
      %s622 = scalar_select %p621, %s25, 3
      %s623 = smul.addr %s622, 8
      %s624 = smul.addr %s623, 8
      %s625 = scalar_lea.vmem %s10, %s624
      %p626 = scmp.lt.s32.totalorder %s25, 3
      %s627 = scalar_select %p626, %s25, 3
      %s628 = scalar_lea.vmem %s11, %s627
      %p629 = scmp.lt.s32.totalorder %s25, 3
      %s630 = scalar_select %p629, %s25, 3
      %s631 = scalar_lea.vmem %s12, %s630
      %p632 = scmp.lt.s32.totalorder %s25, 3
      %s633 = scalar_select %p632, %s25, 3
      %s634 = scalar_lea.vmem %s13, %s633
      %p635 = scmp.lt.s32.totalorder %s25, 3
      %s636 = scalar_select %p635, %s25, 3
      %s637 = smul.addr %s636, 4
      %s638 = smul.addr %s637, 8
      %s639 = scalar_lea.vmem %s14, %s638
      %p640 = scmp.eq.s32.totalorder %s25, 0
      // Predicated region
      $region77: #{forward.3} parent=75 // pred_check
        %p641 = pneg %p640
      $region78: #{forward.3} parent=75 // pred_check_branch
        %643 = sbr.rel (%p641) target = $region80
      $region79: #{forward.3} parent=75 // pred_region
        %v644 = vld [vmem:[%s0] sm:$0xff]
        %v645 = vld [vmem:[%s0 + $0x8] sm:$0xff]
        %v646 = vld [vmem:[%s0 + $0x10] sm:$0xff]
        %v647 = vld [vmem:[%s0 + $0x18] sm:$0xff]
        %vm648 = vcmask 261120
        %649 = vst.msk [vmem:[#allocation2] sm:$0xff] %vm648, %v644
        %650 = vst.msk [vmem:[#allocation2 + $0x8] sm:$0xff] %vm648, %v645
        %651 = vst.msk [vmem:[#allocation2 + $0x10] sm:$0xff] %vm648, %v646
        %652 = vst.msk [vmem:[#allocation2 + $0x18] sm:$0xff] %vm648, %v647
      $region80: #{forward.3} parent=75 // pred_fallthru
        _
      %v653 = vld [vmem:[#allocation2] sm:$0xff]
      %v654 = vld [vmem:[#allocation2 + $0x8] sm:$0xff]
      %v655 = vld [vmem:[#allocation2 + $0x10] sm:$0xff]
      %v656 = vld [vmem:[#allocation2 + $0x18] sm:$0xff]
      %v657 = vld [vmem:[%s1] sm:$0xff]
      %v658 = vld [vmem:[%s1 + $0x8] sm:$0xff]
      %v659 = vld [vmem:[%s1 + $0x10] sm:$0xff]
      %v660 = vld [vmem:[%s1 + $0x18] sm:$0xff]
      %v661 = vld [vmem:[%s595] sm:$0xff]
      %v662 = vld [vmem:[%s595 + $0x8] sm:$0xff]
      %v663 = vld [vmem:[%s595 + $0x10] sm:$0xff]
      %v664 = vld [vmem:[%s595 + $0x18] sm:$0xff]
      %v665 = vld [vmem:[%s598] sm:$0x1]
      %v666 = vld [vmem:[%s603] sm:$0xff]
      %v667 = vld [vmem:[%s603 + $0x8] sm:$0xff]
      %v668 = vld [vmem:[%s603 + $0x10] sm:$0xff]
      %v669 = vld [vmem:[%s603 + $0x18] sm:$0xff]
      %v670 = vld [vmem:[%s606] sm:$0x1]
      %v671 = vld [vmem:[%s609] sm:$0x1]
      %v672 = vld [vmem:[%s612] sm:$0x1]
      %v674 = vlaneseq
      %v675 = vshrl.u32 %v674, 7
      %v676 = vsub.s32 0, %v675
      %v677 = vrot.slane %v665, %v676
      %vm679 = vcmask 261120
      %v681 = vsel %vm679, %v653, 0
      %v684 = vsel %vm679, %v654, 0
      %v687 = vsel %vm679, %v655, 0
      %v690 = vsel %vm679, %v656, 0
      %692 = vmatprep.subr.mxu0 0.0
      %693 = vmatpush1.msra.mxu0 0.0
      %694 = vmatprep.subr.mxu0 0.0
      %695 = vmatpush1.msra.mxu0 0.0
      %696 = vmatprep.subr.mxu0 0.0
      %697 = vmatpush1.msra.mxu0 0.0
      %698 = vmatprep.subr.mxu0 0.0
      %699 = vmatpush1.msra.mxu0 0.0
      %700 = vmatprep.subr.mxu0 0.0
      %701 = vmatpush1.msra.mxu0 0.0
      %702 = vmatprep.subr.mxu0 0.0
      %703 = vmatpush1.msra.mxu0 0.0
      %704 = vmatprep.subr.mxu0 0.0
      %705 = vmatpush1.msra.mxu0 0.0
      %706 = vmatprep.subr.mxu0 0.0
      %707 = vmatpush1.msra.mxu0 0.0
      %708 = vmatprep.subr.mxu0 0.0
      %709 = vmatpush1.msra.mxu0 0.0
      %710 = vmatprep.subr.mxu0 0.0
      %711 = vmatpush1.msra.mxu0 0.0
      %712 = vmatprep.subr.mxu0 0.0
      %713 = vmatpush1.msra.mxu0 0.0
      %714 = vmatprep.subr.mxu0 0.0
      %715 = vmatpush1.msra.mxu0 0.0
      %716 = vmatprep.subr.mxu0 0.0
      %717 = vmatpush1.msra.mxu0 %v664
      %718 = vmatprep.subr.mxu0 0.0
      %719 = vmatpush1.msra.mxu0 %v663
      %720 = vmatprep.subr.mxu0 0.0
      %721 = vmatpush1.msra.mxu0 %v662
      %722 = vmatprep.subr.mxu0 0.0
      %723 = vmatpush1.msra.mxu0 %v661
      %724 = vmatprep.subr.mxu0 0.0
      %725 = vmatpush2.msra.mxu0 0.0
      %726 = vmatprep.subr.mxu0 0.0
      %727 = vmatpush2.msra.mxu0 0.0
      %728 = vmatprep.subr.mxu0 0.0
      %729 = vmatpush2.msra.mxu0 0.0
      %730 = vmatprep.subr.mxu0 0.0
      %731 = vmatpush2.msra.mxu0 0.0
      %732 = vmatprep.subr.mxu0 0.0
      %733 = vmatpush2.msra.mxu0 0.0
      %734 = vmatprep.subr.mxu0 0.0
      %735 = vmatpush2.msra.mxu0 0.0
      %736 = vmatprep.subr.mxu0 0.0
      %737 = vmatpush2.msra.mxu0 0.0
      %738 = vmatprep.subr.mxu0 0.0
      %739 = vmatpush2.msra.mxu0 0.0
      %740 = vmatprep.subr.mxu0 0.0
      %741 = vmatpush2.msra.mxu0 0.0
      %742 = vmatprep.subr.mxu0 0.0
      %743 = vmatpush2.msra.mxu0 0.0
      %744 = vmatprep.subr.mxu0 0.0
      %745 = vmatpush2.msra.mxu0 0.0
      %746 = vmatprep.subr.mxu0 0.0
      %747 = vmatpush2.msra.mxu0 0.0
      %748 = vmatprep.subr.mxu0 0.0
      %749 = vmatpush2.msra.mxu0 0.0
      %750 = vmatprep.subr.mxu0 0.0
      %751 = vmatpush2.msra.mxu0 0.0
      %752 = vmatprep.subr.mxu0 0.0
      %753 = vmatpush2.msra.mxu0 0.0
      %754 = vmatprep.subr.mxu0 0.0
      %755 = vmatpush2.msra.mxu0 0.0
      %756 = vmatprep.mubr.f32.mxu0 0.0
      %757 = vmatmul.mubr.f32.gmra.mxu0 %v681
      %v758 = vpop.f32.mrf.mxu0
      %v759 = vadd.f32 %v677, %v758
      %v760 = vpop.f32.mrf.mxu0
      %761 = vmatprep.mubr.f32.mxu0 0.0
      %762 = vmatmul.mubr.f32.gmra.mxu0 %v684
      %v763 = vpop.f32.mrf.mxu0
      %v764 = vadd.f32 %v677, %v763
      %v765 = vpop.f32.mrf.mxu0
      %766 = vmatprep.mubr.f32.mxu0 0.0
      %767 = vmatmul.mubr.f32.gmra.mxu0 %v687
      %v768 = vpop.f32.mrf.mxu0
      %v769 = vadd.f32 %v677, %v768
      %v770 = vpop.f32.mrf.mxu0
      %771 = vmatprep.mubr.f32.mxu0 0.0
      %772 = vmatmul.mubr.f32.gmra.mxu0 %v690
      %v773 = vpop.f32.mrf.mxu0
      %v774 = vadd.f32 %v677, %v773
      %v775 = vpop.f32.mrf.mxu0
      %776 = vdwg.mxu0
      %781 = vrot.lane.b32.xlu0 %v759, 96
      %v782 = vpop.permute.xlu0 %781
      %783 = vrot.lane.b32.xlu0 %v764, 96
      %v784 = vpop.permute.xlu0 %783
      %785 = vrot.lane.b32.xlu0 %v769, 96
      %v786 = vpop.permute.xlu0 %785
      %787 = vrot.lane.b32.xlu0 %v774, 96
      %v788 = vpop.permute.xlu0 %787
      %vm789 = vcmask 64512
      %v790 = vsel %vm789, %v759, 0
      %v792 = vsel %vm789, %v764, 0
      %v794 = vsel %vm789, %v769, 0
      %v796 = vsel %vm789, %v774, 0
      %v798 = vsel %vm789, %v782, 0
      %v800 = vsel %vm789, %v784, 0
      %v802 = vsel %vm789, %v786, 0
      %v804 = vsel %vm789, %v788, 0
      %806 = vmatprep.subr.mxu0 0.0
      %807 = vmatpush1.xpose.msra.mxu0 0.0
      %808 = vmatprep.subr.mxu0 0.0
      %809 = vmatpush1.xpose.msra.mxu0 0.0
      %810 = vmatprep.subr.mxu0 0.0
      %811 = vmatpush1.xpose.msra.mxu0 0.0
      %812 = vmatprep.subr.mxu0 0.0
      %813 = vmatpush1.xpose.msra.mxu0 0.0
      %814 = vmatprep.subr.mxu0 0.0
      %815 = vmatpush1.xpose.msra.mxu0 0.0
      %816 = vmatprep.subr.mxu0 0.0
      %817 = vmatpush1.xpose.msra.mxu0 0.0
      %818 = vmatprep.subr.mxu0 0.0
      %819 = vmatpush1.xpose.msra.mxu0 0.0
      %820 = vmatprep.subr.mxu0 0.0
      %821 = vmatpush1.xpose.msra.mxu0 0.0
      %822 = vmatprep.subr.mxu0 0.0
      %823 = vmatpush1.xpose.msra.mxu0 0.0
      %824 = vmatprep.subr.mxu0 0.0
      %825 = vmatpush1.xpose.msra.mxu0 0.0
      %826 = vmatprep.subr.mxu0 0.0
      %827 = vmatpush1.xpose.msra.mxu0 0.0
      %828 = vmatprep.subr.mxu0 0.0
      %829 = vmatpush1.xpose.msra.mxu0 0.0
      %830 = vmatprep.subr.mxu0 0.0
      %831 = vmatpush1.xpose.msra.mxu0 %v804
      %832 = vmatprep.subr.mxu0 0.0
      %833 = vmatpush1.xpose.msra.mxu0 %v802
      %834 = vmatprep.subr.mxu0 0.0
      %835 = vmatpush1.xpose.msra.mxu0 %v800
      %836 = vmatprep.subr.mxu0 0.0
      %837 = vmatpush1.xpose.msra.mxu0 %v798
      %838 = vmatprep.subr.mxu0 0.0
      %839 = vmatpush2.xpose.msra.mxu0 0.0
      %840 = vmatprep.subr.mxu0 0.0
      %841 = vmatpush2.xpose.msra.mxu0 0.0
      %842 = vmatprep.subr.mxu0 0.0
      %843 = vmatpush2.xpose.msra.mxu0 0.0
      %844 = vmatprep.subr.mxu0 0.0
      %845 = vmatpush2.xpose.msra.mxu0 0.0
      %846 = vmatprep.subr.mxu0 0.0
      %847 = vmatpush2.xpose.msra.mxu0 0.0
      %848 = vmatprep.subr.mxu0 0.0
      %849 = vmatpush2.xpose.msra.mxu0 0.0
      %850 = vmatprep.subr.mxu0 0.0
      %851 = vmatpush2.xpose.msra.mxu0 0.0
      %852 = vmatprep.subr.mxu0 0.0
      %853 = vmatpush2.xpose.msra.mxu0 0.0
      %854 = vmatprep.subr.mxu0 0.0
      %855 = vmatpush2.xpose.msra.mxu0 0.0
      %856 = vmatprep.subr.mxu0 0.0
      %857 = vmatpush2.xpose.msra.mxu0 0.0
      %858 = vmatprep.subr.mxu0 0.0
      %859 = vmatpush2.xpose.msra.mxu0 0.0
      %860 = vmatprep.subr.mxu0 0.0
      %861 = vmatpush2.xpose.msra.mxu0 0.0
      %862 = vmatprep.subr.mxu0 0.0
      %863 = vmatpush2.xpose.msra.mxu0 0.0
      %864 = vmatprep.subr.mxu0 0.0
      %865 = vmatpush2.xpose.msra.mxu0 0.0
      %866 = vmatprep.subr.mxu0 0.0
      %867 = vmatpush2.xpose.msra.mxu0 0.0
      %868 = vmatprep.subr.mxu0 0.0
      %869 = vmatpush2.xpose.msra.mxu0 0.0
      %870 = vmatprep.mubr.f32.mxu0 0.0
      %871 = vmatmul.mubr.f32.gmra.mxu0 %v790
      %v872 = vpop.f32.mrf.mxu0
      %v873 = vadd.f32 0.0, %v872
      %v874 = vpop.f32.mrf.mxu0
      %875 = vmatprep.mubr.f32.mxu0 0.0
      %876 = vmatmul.mubr.f32.gmra.mxu0 %v792
      %v877 = vpop.f32.mrf.mxu0
      %v878 = vadd.f32 0.0, %v877
      %v879 = vpop.f32.mrf.mxu0
      %880 = vmatprep.mubr.f32.mxu0 0.0
      %881 = vmatmul.mubr.f32.gmra.mxu0 %v794
      %v882 = vpop.f32.mrf.mxu0
      %v883 = vadd.f32 0.0, %v882
      %v884 = vpop.f32.mrf.mxu0
      %885 = vmatprep.mubr.f32.mxu0 0.0
      %886 = vmatmul.mubr.f32.gmra.mxu0 %v796
      %v887 = vpop.f32.mrf.mxu0
      %v888 = vadd.f32 0.0, %v887
      %v889 = vpop.f32.mrf.mxu0
      %890 = vdwg.mxu0
      %v891 = vmul.f32 %v873, 0.35355338
      %v892 = vmul.f32 %v878, 0.35355338
      %v893 = vmul.f32 %v883, 0.35355338
      %v894 = vmul.f32 %v888, 0.35355338
      %v895 = vadd.f32 %v891, %v657
      %v896 = vadd.f32 %v892, %v658
      %v897 = vadd.f32 %v893, %v659
      %v898 = vadd.f32 %v894, %v660
      %v899 = vsel %vm679, %v895, -inf
      %900 = vmax.xlane.f32.xlu0 %v899
      %v901 = vpop.xlane.xlu0 %900
      %v902 = vsel %vm679, %v896, -inf
      %903 = vmax.xlane.f32.xlu0 %v902
      %v904 = vpop.xlane.xlu0 %903
      %v905 = vsel %vm679, %v897, -inf
      %906 = vmax.xlane.f32.xlu0 %v905
      %v907 = vpop.xlane.xlu0 %906
      %v908 = vsel %vm679, %v898, -inf
      %909 = vmax.xlane.f32.xlu0 %v908
      %v910 = vpop.xlane.xlu0 %909
      %v911 = vsub.f32 %v895, %v901
      %v912 = vsub.f32 %v896, %v904
      %v913 = vsub.f32 %v897, %v907
      %v914 = vsub.f32 %v898, %v910
      %v915 = vmul.f32 %v911, 1.442695
      %v916 = vpow.pop %v915
      %v917 = vmul.f32 %v912, 1.442695
      %v918 = vpow.pop %v917
      %v919 = vmul.f32 %v913, 1.442695
      %v920 = vpow.pop %v919
      %v921 = vmul.f32 %v914, 1.442695
      %v922 = vpow.pop %v921
      %v923 = vsel %vm679, %v916, 0.0
      %924 = vadd.xlane.f32.xlu0 %v923
      %v925 = vpop.xlane.xlu0 %924
      %v926 = vsel %vm679, %v918, 0.0
      %927 = vadd.xlane.f32.xlu0 %v926
      %v928 = vpop.xlane.xlu0 %927
      %v929 = vsel %vm679, %v920, 0.0
      %930 = vadd.xlane.f32.xlu0 %v929
      %v931 = vpop.xlane.xlu0 %930
      %v932 = vsel %vm679, %v922, 0.0
      %933 = vadd.xlane.f32.xlu0 %v932
      %v934 = vpop.xlane.xlu0 %933
      %v935 = vrcp.pop %v925
      %v936 = vmul.f32 %v916, %v935
      %v937 = vrcp.pop %v928
      %v938 = vmul.f32 %v918, %v937
      %v939 = vrcp.pop %v931
      %v940 = vmul.f32 %v920, %v939
      %v941 = vrcp.pop %v934
      %v942 = vmul.f32 %v922, %v941
      %943 = vrot.lane.b32.xlu0 %v759, 64
      %v944 = vpop.permute.xlu0 %943
      %945 = vrot.lane.b32.xlu0 %v764, 64
      %v946 = vpop.permute.xlu0 %945
      %947 = vrot.lane.b32.xlu0 %v769, 64
      %v948 = vpop.permute.xlu0 %947
      %949 = vrot.lane.b32.xlu0 %v774, 64
      %v950 = vpop.permute.xlu0 %949
      %v956 = vsel %vm679, %v936, 0
      %v959 = vsel %vm679, %v938, 0
      %v962 = vsel %vm679, %v940, 0
      %v965 = vsel %vm679, %v942, 0
      %967 = vmatprep.subr.mxu0 0.0
      %968 = vmatpush1.msra.mxu0 0.0
      %969 = vmatprep.subr.mxu0 0.0
      %970 = vmatpush1.msra.mxu0 0.0
      %971 = vmatprep.subr.mxu0 0.0
      %972 = vmatpush1.msra.mxu0 0.0
      %973 = vmatprep.subr.mxu0 0.0
      %974 = vmatpush1.msra.mxu0 0.0
      %975 = vmatprep.subr.mxu0 0.0
      %976 = vmatpush1.msra.mxu0 0.0
      %977 = vmatprep.subr.mxu0 0.0
      %978 = vmatpush1.msra.mxu0 0.0
      %979 = vmatprep.subr.mxu0 0.0
      %980 = vmatpush1.msra.mxu0 0.0
      %981 = vmatprep.subr.mxu0 0.0
      %982 = vmatpush1.msra.mxu0 0.0
      %983 = vmatprep.subr.mxu0 0.0
      %984 = vmatpush1.msra.mxu0 0.0
      %985 = vmatprep.subr.mxu0 0.0
      %986 = vmatpush1.msra.mxu0 0.0
      %987 = vmatprep.subr.mxu0 0.0
      %988 = vmatpush1.msra.mxu0 0.0
      %989 = vmatprep.subr.mxu0 0.0
      %990 = vmatpush1.msra.mxu0 0.0
      %991 = vmatprep.subr.mxu0 0.0
      %992 = vmatpush1.msra.mxu0 %v950
      %993 = vmatprep.subr.mxu0 0.0
      %994 = vmatpush1.msra.mxu0 %v948
      %995 = vmatprep.subr.mxu0 0.0
      %996 = vmatpush1.msra.mxu0 %v946
      %997 = vmatprep.subr.mxu0 0.0
      %998 = vmatpush1.msra.mxu0 %v944
      %999 = vmatprep.subr.mxu0 0.0
      %1000 = vmatpush2.msra.mxu0 0.0
      %1001 = vmatprep.subr.mxu0 0.0
      %1002 = vmatpush2.msra.mxu0 0.0
      %1003 = vmatprep.subr.mxu0 0.0
      %1004 = vmatpush2.msra.mxu0 0.0
      %1005 = vmatprep.subr.mxu0 0.0
      %1006 = vmatpush2.msra.mxu0 0.0
      %1007 = vmatprep.subr.mxu0 0.0
      %1008 = vmatpush2.msra.mxu0 0.0
      %1009 = vmatprep.subr.mxu0 0.0
      %1010 = vmatpush2.msra.mxu0 0.0
      %1011 = vmatprep.subr.mxu0 0.0
      %1012 = vmatpush2.msra.mxu0 0.0
      %1013 = vmatprep.subr.mxu0 0.0
      %1014 = vmatpush2.msra.mxu0 0.0
      %1015 = vmatprep.subr.mxu0 0.0
      %1016 = vmatpush2.msra.mxu0 0.0
      %1017 = vmatprep.subr.mxu0 0.0
      %1018 = vmatpush2.msra.mxu0 0.0
      %1019 = vmatprep.subr.mxu0 0.0
      %1020 = vmatpush2.msra.mxu0 0.0
      %1021 = vmatprep.subr.mxu0 0.0
      %1022 = vmatpush2.msra.mxu0 0.0
      %1023 = vmatprep.subr.mxu0 0.0
      %1024 = vmatpush2.msra.mxu0 0.0
      %1025 = vmatprep.subr.mxu0 0.0
      %1026 = vmatpush2.msra.mxu0 0.0
      %1027 = vmatprep.subr.mxu0 0.0
      %1028 = vmatpush2.msra.mxu0 0.0
      %1029 = vmatprep.subr.mxu0 0.0
      %1030 = vmatpush2.msra.mxu0 0.0
      %1031 = vmatprep.mubr.f32.mxu0 0.0
      %1032 = vmatmul.mubr.f32.gmra.mxu0 %v956
      %v1033 = vpop.f32.mrf.mxu0
      %v1034 = vadd.f32 0.0, %v1033
      %v1035 = vpop.f32.mrf.mxu0
      %1036 = vmatprep.mubr.f32.mxu0 0.0
      %1037 = vmatmul.mubr.f32.gmra.mxu0 %v959
      %v1038 = vpop.f32.mrf.mxu0
      %v1039 = vadd.f32 0.0, %v1038
      %v1040 = vpop.f32.mrf.mxu0
      %1041 = vmatprep.mubr.f32.mxu0 0.0
      %1042 = vmatmul.mubr.f32.gmra.mxu0 %v962
      %v1043 = vpop.f32.mrf.mxu0
      %v1044 = vadd.f32 0.0, %v1043
      %v1045 = vpop.f32.mrf.mxu0
      %1046 = vmatprep.mubr.f32.mxu0 0.0
      %1047 = vmatmul.mubr.f32.gmra.mxu0 %v965
      %v1048 = vpop.f32.mrf.mxu0
      %v1049 = vadd.f32 0.0, %v1048
      %v1050 = vpop.f32.mrf.mxu0
      %1051 = vdwg.mxu0
      %1052 = vrot.lane.b32.xlu0 %v759, 120
      %v1053 = vpop.permute.xlu0 %1052
      %1054 = vrot.lane.b32.xlu0 %v764, 120
      %v1055 = vpop.permute.xlu0 %1054
      %1056 = vrot.lane.b32.xlu0 %v769, 120
      %v1057 = vpop.permute.xlu0 %1056
      %1058 = vrot.lane.b32.xlu0 %v774, 120
      %v1059 = vpop.permute.xlu0 %1058
      %1060 = vrot.lane.b32.xlu0 %v759, 88
      %v1061 = vpop.permute.xlu0 %1060
      %1062 = vrot.lane.b32.xlu0 %v764, 88
      %v1063 = vpop.permute.xlu0 %1062
      %1064 = vrot.lane.b32.xlu0 %v769, 88
      %v1065 = vpop.permute.xlu0 %1064
      %1066 = vrot.lane.b32.xlu0 %v774, 88
      %v1067 = vpop.permute.xlu0 %1066
      %v1068 = vsel %vm789, %v1053, 0
      %v1070 = vsel %vm789, %v1055, 0
      %v1072 = vsel %vm789, %v1057, 0
      %v1074 = vsel %vm789, %v1059, 0
      %v1076 = vsel %vm789, %v1061, 0
      %v1078 = vsel %vm789, %v1063, 0
      %v1080 = vsel %vm789, %v1065, 0
      %v1082 = vsel %vm789, %v1067, 0
      %1084 = vmatprep.subr.mxu0 0.0
      %1085 = vmatpush1.xpose.msra.mxu0 0.0
      %1086 = vmatprep.subr.mxu0 0.0
      %1087 = vmatpush1.xpose.msra.mxu0 0.0
      %1088 = vmatprep.subr.mxu0 0.0
      %1089 = vmatpush1.xpose.msra.mxu0 0.0
      %1090 = vmatprep.subr.mxu0 0.0
      %1091 = vmatpush1.xpose.msra.mxu0 0.0
      %1092 = vmatprep.subr.mxu0 0.0
      %1093 = vmatpush1.xpose.msra.mxu0 0.0
      %1094 = vmatprep.subr.mxu0 0.0
      %1095 = vmatpush1.xpose.msra.mxu0 0.0
      %1096 = vmatprep.subr.mxu0 0.0
      %1097 = vmatpush1.xpose.msra.mxu0 0.0
      %1098 = vmatprep.subr.mxu0 0.0
      %1099 = vmatpush1.xpose.msra.mxu0 0.0
      %1100 = vmatprep.subr.mxu0 0.0
      %1101 = vmatpush1.xpose.msra.mxu0 0.0
      %1102 = vmatprep.subr.mxu0 0.0
      %1103 = vmatpush1.xpose.msra.mxu0 0.0
      %1104 = vmatprep.subr.mxu0 0.0
      %1105 = vmatpush1.xpose.msra.mxu0 0.0
      %1106 = vmatprep.subr.mxu0 0.0
      %1107 = vmatpush1.xpose.msra.mxu0 0.0
      %1108 = vmatprep.subr.mxu0 0.0
      %1109 = vmatpush1.xpose.msra.mxu0 %v1082
      %1110 = vmatprep.subr.mxu0 0.0
      %1111 = vmatpush1.xpose.msra.mxu0 %v1080
      %1112 = vmatprep.subr.mxu0 0.0
      %1113 = vmatpush1.xpose.msra.mxu0 %v1078
      %1114 = vmatprep.subr.mxu0 0.0
      %1115 = vmatpush1.xpose.msra.mxu0 %v1076
      %1116 = vmatprep.subr.mxu0 0.0
      %1117 = vmatpush2.xpose.msra.mxu0 0.0
      %1118 = vmatprep.subr.mxu0 0.0
      %1119 = vmatpush2.xpose.msra.mxu0 0.0
      %1120 = vmatprep.subr.mxu0 0.0
      %1121 = vmatpush2.xpose.msra.mxu0 0.0
      %1122 = vmatprep.subr.mxu0 0.0
      %1123 = vmatpush2.xpose.msra.mxu0 0.0
      %1124 = vmatprep.subr.mxu0 0.0
      %1125 = vmatpush2.xpose.msra.mxu0 0.0
      %1126 = vmatprep.subr.mxu0 0.0
      %1127 = vmatpush2.xpose.msra.mxu0 0.0
      %1128 = vmatprep.subr.mxu0 0.0
      %1129 = vmatpush2.xpose.msra.mxu0 0.0
      %1130 = vmatprep.subr.mxu0 0.0
      %1131 = vmatpush2.xpose.msra.mxu0 0.0
      %1132 = vmatprep.subr.mxu0 0.0
      %1133 = vmatpush2.xpose.msra.mxu0 0.0
      %1134 = vmatprep.subr.mxu0 0.0
      %1135 = vmatpush2.xpose.msra.mxu0 0.0
      %1136 = vmatprep.subr.mxu0 0.0
      %1137 = vmatpush2.xpose.msra.mxu0 0.0
      %1138 = vmatprep.subr.mxu0 0.0
      %1139 = vmatpush2.xpose.msra.mxu0 0.0
      %1140 = vmatprep.subr.mxu0 0.0
      %1141 = vmatpush2.xpose.msra.mxu0 0.0
      %1142 = vmatprep.subr.mxu0 0.0
      %1143 = vmatpush2.xpose.msra.mxu0 0.0
      %1144 = vmatprep.subr.mxu0 0.0
      %1145 = vmatpush2.xpose.msra.mxu0 0.0
      %1146 = vmatprep.subr.mxu0 0.0
      %1147 = vmatpush2.xpose.msra.mxu0 0.0
      %1148 = vmatprep.mubr.f32.mxu0 0.0
      %1149 = vmatmul.mubr.f32.gmra.mxu0 %v1068
      %v1150 = vpop.f32.mrf.mxu0
      %v1151 = vadd.f32 0.0, %v1150
      %v1152 = vpop.f32.mrf.mxu0
      %1153 = vmatprep.mubr.f32.mxu0 0.0
      %1154 = vmatmul.mubr.f32.gmra.mxu0 %v1070
      %v1155 = vpop.f32.mrf.mxu0
      %v1156 = vadd.f32 0.0, %v1155
      %v1157 = vpop.f32.mrf.mxu0
      %1158 = vmatprep.mubr.f32.mxu0 0.0
      %1159 = vmatmul.mubr.f32.gmra.mxu0 %v1072
      %v1160 = vpop.f32.mrf.mxu0
      %v1161 = vadd.f32 0.0, %v1160
      %v1162 = vpop.f32.mrf.mxu0
      %1163 = vmatprep.mubr.f32.mxu0 0.0
      %1164 = vmatmul.mubr.f32.gmra.mxu0 %v1074
      %v1165 = vpop.f32.mrf.mxu0
      %v1166 = vadd.f32 0.0, %v1165
      %v1167 = vpop.f32.mrf.mxu0
      %1168 = vdwg.mxu0
      %v1169 = vmul.f32 %v1151, 0.35355338
      %v1170 = vmul.f32 %v1156, 0.35355338
      %v1171 = vmul.f32 %v1161, 0.35355338
      %v1172 = vmul.f32 %v1166, 0.35355338
      %v1173 = vadd.f32 %v1169, %v657
      %v1174 = vadd.f32 %v1170, %v658
      %v1175 = vadd.f32 %v1171, %v659
      %v1176 = vadd.f32 %v1172, %v660
      %v1177 = vsel %vm679, %v1173, -inf
      %1178 = vmax.xlane.f32.xlu0 %v1177
      %v1179 = vpop.xlane.xlu0 %1178
      %v1180 = vsel %vm679, %v1174, -inf
      %1181 = vmax.xlane.f32.xlu0 %v1180
      %v1182 = vpop.xlane.xlu0 %1181
      %v1183 = vsel %vm679, %v1175, -inf
      %1184 = vmax.xlane.f32.xlu0 %v1183
      %v1185 = vpop.xlane.xlu0 %1184
      %v1186 = vsel %vm679, %v1176, -inf
      %1187 = vmax.xlane.f32.xlu0 %v1186
      %v1188 = vpop.xlane.xlu0 %1187
      %v1189 = vsub.f32 %v1173, %v1179
      %v1190 = vsub.f32 %v1174, %v1182
      %v1191 = vsub.f32 %v1175, %v1185
      %v1192 = vsub.f32 %v1176, %v1188
      %v1193 = vmul.f32 %v1189, 1.442695
      %v1194 = vpow.pop %v1193
      %v1195 = vmul.f32 %v1190, 1.442695
      %v1196 = vpow.pop %v1195
      %v1197 = vmul.f32 %v1191, 1.442695
      %v1198 = vpow.pop %v1197
      %v1199 = vmul.f32 %v1192, 1.442695
      %v1200 = vpow.pop %v1199
      %v1201 = vsel %vm679, %v1194, 0.0
      %1202 = vadd.xlane.f32.xlu0 %v1201
      %v1203 = vpop.xlane.xlu0 %1202
      %v1204 = vsel %vm679, %v1196, 0.0
      %1205 = vadd.xlane.f32.xlu0 %v1204
      %v1206 = vpop.xlane.xlu0 %1205
      %v1207 = vsel %vm679, %v1198, 0.0
      %1208 = vadd.xlane.f32.xlu0 %v1207
      %v1209 = vpop.xlane.xlu0 %1208
      %v1210 = vsel %vm679, %v1200, 0.0
      %1211 = vadd.xlane.f32.xlu0 %v1210
      %v1212 = vpop.xlane.xlu0 %1211
      %v1213 = vrcp.pop %v1203
      %v1214 = vmul.f32 %v1194, %v1213
      %v1215 = vrcp.pop %v1206
      %v1216 = vmul.f32 %v1196, %v1215
      %v1217 = vrcp.pop %v1209
      %v1218 = vmul.f32 %v1198, %v1217
      %v1219 = vrcp.pop %v1212
      %v1220 = vmul.f32 %v1200, %v1219
      %1221 = vrot.lane.b32.xlu0 %v759, 56
      %v1222 = vpop.permute.xlu0 %1221
      %1223 = vrot.lane.b32.xlu0 %v764, 56
      %v1224 = vpop.permute.xlu0 %1223
      %1225 = vrot.lane.b32.xlu0 %v769, 56
      %v1226 = vpop.permute.xlu0 %1225
      %1227 = vrot.lane.b32.xlu0 %v774, 56
      %v1228 = vpop.permute.xlu0 %1227
      %v1234 = vsel %vm679, %v1214, 0
      %v1237 = vsel %vm679, %v1216, 0
      %v1240 = vsel %vm679, %v1218, 0
      %v1243 = vsel %vm679, %v1220, 0
      %1245 = vmatprep.subr.mxu0 0.0
      %1246 = vmatpush1.msra.mxu0 0.0
      %1247 = vmatprep.subr.mxu0 0.0
      %1248 = vmatpush1.msra.mxu0 0.0
      %1249 = vmatprep.subr.mxu0 0.0
      %1250 = vmatpush1.msra.mxu0 0.0
      %1251 = vmatprep.subr.mxu0 0.0
      %1252 = vmatpush1.msra.mxu0 0.0
      %1253 = vmatprep.subr.mxu0 0.0
      %1254 = vmatpush1.msra.mxu0 0.0
      %1255 = vmatprep.subr.mxu0 0.0
      %1256 = vmatpush1.msra.mxu0 0.0
      %1257 = vmatprep.subr.mxu0 0.0
      %1258 = vmatpush1.msra.mxu0 0.0
      %1259 = vmatprep.subr.mxu0 0.0
      %1260 = vmatpush1.msra.mxu0 0.0
      %1261 = vmatprep.subr.mxu0 0.0
      %1262 = vmatpush1.msra.mxu0 0.0
      %1263 = vmatprep.subr.mxu0 0.0
      %1264 = vmatpush1.msra.mxu0 0.0
      %1265 = vmatprep.subr.mxu0 0.0
      %1266 = vmatpush1.msra.mxu0 0.0
      %1267 = vmatprep.subr.mxu0 0.0
      %1268 = vmatpush1.msra.mxu0 0.0
      %1269 = vmatprep.subr.mxu0 0.0
      %1270 = vmatpush1.msra.mxu0 %v1228
      %1271 = vmatprep.subr.mxu0 0.0
      %1272 = vmatpush1.msra.mxu0 %v1226
      %1273 = vmatprep.subr.mxu0 0.0
      %1274 = vmatpush1.msra.mxu0 %v1224
      %1275 = vmatprep.subr.mxu0 0.0
      %1276 = vmatpush1.msra.mxu0 %v1222
      %1277 = vmatprep.subr.mxu0 0.0
      %1278 = vmatpush2.msra.mxu0 0.0
      %1279 = vmatprep.subr.mxu0 0.0
      %1280 = vmatpush2.msra.mxu0 0.0
      %1281 = vmatprep.subr.mxu0 0.0
      %1282 = vmatpush2.msra.mxu0 0.0
      %1283 = vmatprep.subr.mxu0 0.0
      %1284 = vmatpush2.msra.mxu0 0.0
      %1285 = vmatprep.subr.mxu0 0.0
      %1286 = vmatpush2.msra.mxu0 0.0
      %1287 = vmatprep.subr.mxu0 0.0
      %1288 = vmatpush2.msra.mxu0 0.0
      %1289 = vmatprep.subr.mxu0 0.0
      %1290 = vmatpush2.msra.mxu0 0.0
      %1291 = vmatprep.subr.mxu0 0.0
      %1292 = vmatpush2.msra.mxu0 0.0
      %1293 = vmatprep.subr.mxu0 0.0
      %1294 = vmatpush2.msra.mxu0 0.0
      %1295 = vmatprep.subr.mxu0 0.0
      %1296 = vmatpush2.msra.mxu0 0.0
      %1297 = vmatprep.subr.mxu0 0.0
      %1298 = vmatpush2.msra.mxu0 0.0
      %1299 = vmatprep.subr.mxu0 0.0
      %1300 = vmatpush2.msra.mxu0 0.0
      %1301 = vmatprep.subr.mxu0 0.0
      %1302 = vmatpush2.msra.mxu0 0.0
      %1303 = vmatprep.subr.mxu0 0.0
      %1304 = vmatpush2.msra.mxu0 0.0
      %1305 = vmatprep.subr.mxu0 0.0
      %1306 = vmatpush2.msra.mxu0 0.0
      %1307 = vmatprep.subr.mxu0 0.0
      %1308 = vmatpush2.msra.mxu0 0.0
      %1309 = vmatprep.mubr.f32.mxu0 0.0
      %1310 = vmatmul.mubr.f32.gmra.mxu0 %v1234
      %v1311 = vpop.f32.mrf.mxu0
      %v1312 = vadd.f32 0.0, %v1311
      %v1313 = vpop.f32.mrf.mxu0
      %1314 = vmatprep.mubr.f32.mxu0 0.0
      %1315 = vmatmul.mubr.f32.gmra.mxu0 %v1237
      %v1316 = vpop.f32.mrf.mxu0
      %v1317 = vadd.f32 0.0, %v1316
      %v1318 = vpop.f32.mrf.mxu0
      %1319 = vmatprep.mubr.f32.mxu0 0.0
      %1320 = vmatmul.mubr.f32.gmra.mxu0 %v1240
      %v1321 = vpop.f32.mrf.mxu0
      %v1322 = vadd.f32 0.0, %v1321
      %v1323 = vpop.f32.mrf.mxu0
      %1324 = vmatprep.mubr.f32.mxu0 0.0
      %1325 = vmatmul.mubr.f32.gmra.mxu0 %v1243
      %v1326 = vpop.f32.mrf.mxu0
      %v1327 = vadd.f32 0.0, %v1326
      %v1328 = vpop.f32.mrf.mxu0
      %1329 = vdwg.mxu0
      %1330 = vrot.lane.b32.xlu0 %v759, 112
      %v1331 = vpop.permute.xlu0 %1330
      %1332 = vrot.lane.b32.xlu0 %v764, 112
      %v1333 = vpop.permute.xlu0 %1332
      %1334 = vrot.lane.b32.xlu0 %v769, 112
      %v1335 = vpop.permute.xlu0 %1334
      %1336 = vrot.lane.b32.xlu0 %v774, 112
      %v1337 = vpop.permute.xlu0 %1336
      %1338 = vrot.lane.b32.xlu0 %v759, 80
      %v1339 = vpop.permute.xlu0 %1338
      %1340 = vrot.lane.b32.xlu0 %v764, 80
      %v1341 = vpop.permute.xlu0 %1340
      %1342 = vrot.lane.b32.xlu0 %v769, 80
      %v1343 = vpop.permute.xlu0 %1342
      %1344 = vrot.lane.b32.xlu0 %v774, 80
      %v1345 = vpop.permute.xlu0 %1344
      %v1346 = vsel %vm789, %v1331, 0
      %v1348 = vsel %vm789, %v1333, 0
      %v1350 = vsel %vm789, %v1335, 0
      %v1352 = vsel %vm789, %v1337, 0
      %v1354 = vsel %vm789, %v1339, 0
      %v1356 = vsel %vm789, %v1341, 0
      %v1358 = vsel %vm789, %v1343, 0
      %v1360 = vsel %vm789, %v1345, 0
      %1362 = vmatprep.subr.mxu0 0.0
      %1363 = vmatpush1.xpose.msra.mxu0 0.0
      %1364 = vmatprep.subr.mxu0 0.0
      %1365 = vmatpush1.xpose.msra.mxu0 0.0
      %1366 = vmatprep.subr.mxu0 0.0
      %1367 = vmatpush1.xpose.msra.mxu0 0.0
      %1368 = vmatprep.subr.mxu0 0.0
      %1369 = vmatpush1.xpose.msra.mxu0 0.0
      %1370 = vmatprep.subr.mxu0 0.0
      %1371 = vmatpush1.xpose.msra.mxu0 0.0
      %1372 = vmatprep.subr.mxu0 0.0
      %1373 = vmatpush1.xpose.msra.mxu0 0.0
      %1374 = vmatprep.subr.mxu0 0.0
      %1375 = vmatpush1.xpose.msra.mxu0 0.0
      %1376 = vmatprep.subr.mxu0 0.0
      %1377 = vmatpush1.xpose.msra.mxu0 0.0
      %1378 = vmatprep.subr.mxu0 0.0
      %1379 = vmatpush1.xpose.msra.mxu0 0.0
      %1380 = vmatprep.subr.mxu0 0.0
      %1381 = vmatpush1.xpose.msra.mxu0 0.0
      %1382 = vmatprep.subr.mxu0 0.0
      %1383 = vmatpush1.xpose.msra.mxu0 0.0
      %1384 = vmatprep.subr.mxu0 0.0
      %1385 = vmatpush1.xpose.msra.mxu0 0.0
      %1386 = vmatprep.subr.mxu0 0.0
      %1387 = vmatpush1.xpose.msra.mxu0 %v1360
      %1388 = vmatprep.subr.mxu0 0.0
      %1389 = vmatpush1.xpose.msra.mxu0 %v1358
      %1390 = vmatprep.subr.mxu0 0.0
      %1391 = vmatpush1.xpose.msra.mxu0 %v1356
      %1392 = vmatprep.subr.mxu0 0.0
      %1393 = vmatpush1.xpose.msra.mxu0 %v1354
      %1394 = vmatprep.subr.mxu0 0.0
      %1395 = vmatpush2.xpose.msra.mxu0 0.0
      %1396 = vmatprep.subr.mxu0 0.0
      %1397 = vmatpush2.xpose.msra.mxu0 0.0
      %1398 = vmatprep.subr.mxu0 0.0
      %1399 = vmatpush2.xpose.msra.mxu0 0.0
      %1400 = vmatprep.subr.mxu0 0.0
      %1401 = vmatpush2.xpose.msra.mxu0 0.0
      %1402 = vmatprep.subr.mxu0 0.0
      %1403 = vmatpush2.xpose.msra.mxu0 0.0
      %1404 = vmatprep.subr.mxu0 0.0
      %1405 = vmatpush2.xpose.msra.mxu0 0.0
      %1406 = vmatprep.subr.mxu0 0.0
      %1407 = vmatpush2.xpose.msra.mxu0 0.0
      %1408 = vmatprep.subr.mxu0 0.0
      %1409 = vmatpush2.xpose.msra.mxu0 0.0
      %1410 = vmatprep.subr.mxu0 0.0
      %1411 = vmatpush2.xpose.msra.mxu0 0.0
      %1412 = vmatprep.subr.mxu0 0.0
      %1413 = vmatpush2.xpose.msra.mxu0 0.0
      %1414 = vmatprep.subr.mxu0 0.0
      %1415 = vmatpush2.xpose.msra.mxu0 0.0
      %1416 = vmatprep.subr.mxu0 0.0
      %1417 = vmatpush2.xpose.msra.mxu0 0.0
      %1418 = vmatprep.subr.mxu0 0.0
      %1419 = vmatpush2.xpose.msra.mxu0 0.0
      %1420 = vmatprep.subr.mxu0 0.0
      %1421 = vmatpush2.xpose.msra.mxu0 0.0
      %1422 = vmatprep.subr.mxu0 0.0
      %1423 = vmatpush2.xpose.msra.mxu0 0.0
      %1424 = vmatprep.subr.mxu0 0.0
      %1425 = vmatpush2.xpose.msra.mxu0 0.0
      %1426 = vmatprep.mubr.f32.mxu0 0.0
      %1427 = vmatmul.mubr.f32.gmra.mxu0 %v1346
      %v1428 = vpop.f32.mrf.mxu0
      %v1429 = vadd.f32 0.0, %v1428
      %v1430 = vpop.f32.mrf.mxu0
      %1431 = vmatprep.mubr.f32.mxu0 0.0
      %1432 = vmatmul.mubr.f32.gmra.mxu0 %v1348
      %v1433 = vpop.f32.mrf.mxu0
      %v1434 = vadd.f32 0.0, %v1433
      %v1435 = vpop.f32.mrf.mxu0
      %1436 = vmatprep.mubr.f32.mxu0 0.0
      %1437 = vmatmul.mubr.f32.gmra.mxu0 %v1350
      %v1438 = vpop.f32.mrf.mxu0
      %v1439 = vadd.f32 0.0, %v1438
      %v1440 = vpop.f32.mrf.mxu0
      %1441 = vmatprep.mubr.f32.mxu0 0.0
      %1442 = vmatmul.mubr.f32.gmra.mxu0 %v1352
      %v1443 = vpop.f32.mrf.mxu0
      %v1444 = vadd.f32 0.0, %v1443
      %v1445 = vpop.f32.mrf.mxu0
      %1446 = vdwg.mxu0
      %v1447 = vmul.f32 %v1429, 0.35355338
      %v1448 = vmul.f32 %v1434, 0.35355338
      %v1449 = vmul.f32 %v1439, 0.35355338
      %v1450 = vmul.f32 %v1444, 0.35355338
      %v1451 = vadd.f32 %v1447, %v657
      %v1452 = vadd.f32 %v1448, %v658
      %v1453 = vadd.f32 %v1449, %v659
      %v1454 = vadd.f32 %v1450, %v660
      %v1455 = vsel %vm679, %v1451, -inf
      %1456 = vmax.xlane.f32.xlu0 %v1455
      %v1457 = vpop.xlane.xlu0 %1456
      %v1458 = vsel %vm679, %v1452, -inf
      %1459 = vmax.xlane.f32.xlu0 %v1458
      %v1460 = vpop.xlane.xlu0 %1459
      %v1461 = vsel %vm679, %v1453, -inf
      %1462 = vmax.xlane.f32.xlu0 %v1461
      %v1463 = vpop.xlane.xlu0 %1462
      %v1464 = vsel %vm679, %v1454, -inf
      %1465 = vmax.xlane.f32.xlu0 %v1464
      %v1466 = vpop.xlane.xlu0 %1465
      %v1467 = vsub.f32 %v1451, %v1457
      %v1468 = vsub.f32 %v1452, %v1460
      %v1469 = vsub.f32 %v1453, %v1463
      %v1470 = vsub.f32 %v1454, %v1466
      %v1471 = vmul.f32 %v1467, 1.442695
      %v1472 = vpow.pop %v1471
      %v1473 = vmul.f32 %v1468, 1.442695
      %v1474 = vpow.pop %v1473
      %v1475 = vmul.f32 %v1469, 1.442695
      %v1476 = vpow.pop %v1475
      %v1477 = vmul.f32 %v1470, 1.442695
      %v1478 = vpow.pop %v1477
      %v1479 = vsel %vm679, %v1472, 0.0
      %1480 = vadd.xlane.f32.xlu0 %v1479
      %v1481 = vpop.xlane.xlu0 %1480
      %v1482 = vsel %vm679, %v1474, 0.0
      %1483 = vadd.xlane.f32.xlu0 %v1482
      %v1484 = vpop.xlane.xlu0 %1483
      %v1485 = vsel %vm679, %v1476, 0.0
      %1486 = vadd.xlane.f32.xlu0 %v1485
      %v1487 = vpop.xlane.xlu0 %1486
      %v1488 = vsel %vm679, %v1478, 0.0
      %1489 = vadd.xlane.f32.xlu0 %v1488
      %v1490 = vpop.xlane.xlu0 %1489
      %v1491 = vrcp.pop %v1481
      %v1492 = vmul.f32 %v1472, %v1491
      %v1493 = vrcp.pop %v1484
      %v1494 = vmul.f32 %v1474, %v1493
      %v1495 = vrcp.pop %v1487
      %v1496 = vmul.f32 %v1476, %v1495
      %v1497 = vrcp.pop %v1490
      %v1498 = vmul.f32 %v1478, %v1497
      %1499 = vrot.lane.b32.xlu0 %v759, 48
      %v1500 = vpop.permute.xlu0 %1499
      %1501 = vrot.lane.b32.xlu0 %v764, 48
      %v1502 = vpop.permute.xlu0 %1501
      %1503 = vrot.lane.b32.xlu0 %v769, 48
      %v1504 = vpop.permute.xlu0 %1503
      %1505 = vrot.lane.b32.xlu0 %v774, 48
      %v1506 = vpop.permute.xlu0 %1505
      %v1512 = vsel %vm679, %v1492, 0
      %v1515 = vsel %vm679, %v1494, 0
      %v1518 = vsel %vm679, %v1496, 0
      %v1521 = vsel %vm679, %v1498, 0
      %1523 = vmatprep.subr.mxu0 0.0
      %1524 = vmatpush1.msra.mxu0 0.0
      %1525 = vmatprep.subr.mxu0 0.0
      %1526 = vmatpush1.msra.mxu0 0.0
      %1527 = vmatprep.subr.mxu0 0.0
      %1528 = vmatpush1.msra.mxu0 0.0
      %1529 = vmatprep.subr.mxu0 0.0
      %1530 = vmatpush1.msra.mxu0 0.0
      %1531 = vmatprep.subr.mxu0 0.0
      %1532 = vmatpush1.msra.mxu0 0.0
      %1533 = vmatprep.subr.mxu0 0.0
      %1534 = vmatpush1.msra.mxu0 0.0
      %1535 = vmatprep.subr.mxu0 0.0
      %1536 = vmatpush1.msra.mxu0 0.0
      %1537 = vmatprep.subr.mxu0 0.0
      %1538 = vmatpush1.msra.mxu0 0.0
      %1539 = vmatprep.subr.mxu0 0.0
      %1540 = vmatpush1.msra.mxu0 0.0
      %1541 = vmatprep.subr.mxu0 0.0
      %1542 = vmatpush1.msra.mxu0 0.0
      %1543 = vmatprep.subr.mxu0 0.0
      %1544 = vmatpush1.msra.mxu0 0.0
      %1545 = vmatprep.subr.mxu0 0.0
      %1546 = vmatpush1.msra.mxu0 0.0
      %1547 = vmatprep.subr.mxu0 0.0
      %1548 = vmatpush1.msra.mxu0 %v1506
      %1549 = vmatprep.subr.mxu0 0.0
      %1550 = vmatpush1.msra.mxu0 %v1504
      %1551 = vmatprep.subr.mxu0 0.0
      %1552 = vmatpush1.msra.mxu0 %v1502
      %1553 = vmatprep.subr.mxu0 0.0
      %1554 = vmatpush1.msra.mxu0 %v1500
      %1555 = vmatprep.subr.mxu0 0.0
      %1556 = vmatpush2.msra.mxu0 0.0
      %1557 = vmatprep.subr.mxu0 0.0
      %1558 = vmatpush2.msra.mxu0 0.0
      %1559 = vmatprep.subr.mxu0 0.0
      %1560 = vmatpush2.msra.mxu0 0.0
      %1561 = vmatprep.subr.mxu0 0.0
      %1562 = vmatpush2.msra.mxu0 0.0
      %1563 = vmatprep.subr.mxu0 0.0
      %1564 = vmatpush2.msra.mxu0 0.0
      %1565 = vmatprep.subr.mxu0 0.0
      %1566 = vmatpush2.msra.mxu0 0.0
      %1567 = vmatprep.subr.mxu0 0.0
      %1568 = vmatpush2.msra.mxu0 0.0
      %1569 = vmatprep.subr.mxu0 0.0
      %1570 = vmatpush2.msra.mxu0 0.0
      %1571 = vmatprep.subr.mxu0 0.0
      %1572 = vmatpush2.msra.mxu0 0.0
      %1573 = vmatprep.subr.mxu0 0.0
      %1574 = vmatpush2.msra.mxu0 0.0
      %1575 = vmatprep.subr.mxu0 0.0
      %1576 = vmatpush2.msra.mxu0 0.0
      %1577 = vmatprep.subr.mxu0 0.0
      %1578 = vmatpush2.msra.mxu0 0.0
      %1579 = vmatprep.subr.mxu0 0.0
      %1580 = vmatpush2.msra.mxu0 0.0
      %1581 = vmatprep.subr.mxu0 0.0
      %1582 = vmatpush2.msra.mxu0 0.0
      %1583 = vmatprep.subr.mxu0 0.0
      %1584 = vmatpush2.msra.mxu0 0.0
      %1585 = vmatprep.subr.mxu0 0.0
      %1586 = vmatpush2.msra.mxu0 0.0
      %1587 = vmatprep.mubr.f32.mxu0 0.0
      %1588 = vmatmul.mubr.f32.gmra.mxu0 %v1512
      %v1589 = vpop.f32.mrf.mxu0
      %v1590 = vadd.f32 0.0, %v1589
      %v1591 = vpop.f32.mrf.mxu0
      %1592 = vmatprep.mubr.f32.mxu0 0.0
      %1593 = vmatmul.mubr.f32.gmra.mxu0 %v1515
      %v1594 = vpop.f32.mrf.mxu0
      %v1595 = vadd.f32 0.0, %v1594
      %v1596 = vpop.f32.mrf.mxu0
      %1597 = vmatprep.mubr.f32.mxu0 0.0
      %1598 = vmatmul.mubr.f32.gmra.mxu0 %v1518
      %v1599 = vpop.f32.mrf.mxu0
      %v1600 = vadd.f32 0.0, %v1599
      %v1601 = vpop.f32.mrf.mxu0
      %1602 = vmatprep.mubr.f32.mxu0 0.0
      %1603 = vmatmul.mubr.f32.gmra.mxu0 %v1521
      %v1604 = vpop.f32.mrf.mxu0
      %v1605 = vadd.f32 0.0, %v1604
      %v1606 = vpop.f32.mrf.mxu0
      %1607 = vdwg.mxu0
      %1608 = vrot.lane.b32.xlu0 %v759, 104
      %v1609 = vpop.permute.xlu0 %1608
      %1610 = vrot.lane.b32.xlu0 %v764, 104
      %v1611 = vpop.permute.xlu0 %1610
      %1612 = vrot.lane.b32.xlu0 %v769, 104
      %v1613 = vpop.permute.xlu0 %1612
      %1614 = vrot.lane.b32.xlu0 %v774, 104
      %v1615 = vpop.permute.xlu0 %1614
      %1616 = vrot.lane.b32.xlu0 %v759, 72
      %v1617 = vpop.permute.xlu0 %1616
      %1618 = vrot.lane.b32.xlu0 %v764, 72
      %v1619 = vpop.permute.xlu0 %1618
      %1620 = vrot.lane.b32.xlu0 %v769, 72
      %v1621 = vpop.permute.xlu0 %1620
      %1622 = vrot.lane.b32.xlu0 %v774, 72
      %v1623 = vpop.permute.xlu0 %1622
      %v1624 = vsel %vm789, %v1609, 0
      %v1626 = vsel %vm789, %v1611, 0
      %v1628 = vsel %vm789, %v1613, 0
      %v1630 = vsel %vm789, %v1615, 0
      %v1632 = vsel %vm789, %v1617, 0
      %v1634 = vsel %vm789, %v1619, 0
      %v1636 = vsel %vm789, %v1621, 0
      %v1638 = vsel %vm789, %v1623, 0
      %1640 = vmatprep.subr.mxu0 0.0
      %1641 = vmatpush1.xpose.msra.mxu0 0.0
      %1642 = vmatprep.subr.mxu0 0.0
      %1643 = vmatpush1.xpose.msra.mxu0 0.0
      %1644 = vmatprep.subr.mxu0 0.0
      %1645 = vmatpush1.xpose.msra.mxu0 0.0
      %1646 = vmatprep.subr.mxu0 0.0
      %1647 = vmatpush1.xpose.msra.mxu0 0.0
      %1648 = vmatprep.subr.mxu0 0.0
      %1649 = vmatpush1.xpose.msra.mxu0 0.0
      %1650 = vmatprep.subr.mxu0 0.0
      %1651 = vmatpush1.xpose.msra.mxu0 0.0
      %1652 = vmatprep.subr.mxu0 0.0
      %1653 = vmatpush1.xpose.msra.mxu0 0.0
      %1654 = vmatprep.subr.mxu0 0.0
      %1655 = vmatpush1.xpose.msra.mxu0 0.0
      %1656 = vmatprep.subr.mxu0 0.0
      %1657 = vmatpush1.xpose.msra.mxu0 0.0
      %1658 = vmatprep.subr.mxu0 0.0
      %1659 = vmatpush1.xpose.msra.mxu0 0.0
      %1660 = vmatprep.subr.mxu0 0.0
      %1661 = vmatpush1.xpose.msra.mxu0 0.0
      %1662 = vmatprep.subr.mxu0 0.0
      %1663 = vmatpush1.xpose.msra.mxu0 0.0
      %1664 = vmatprep.subr.mxu0 0.0
      %1665 = vmatpush1.xpose.msra.mxu0 %v1638
      %1666 = vmatprep.subr.mxu0 0.0
      %1667 = vmatpush1.xpose.msra.mxu0 %v1636
      %1668 = vmatprep.subr.mxu0 0.0
      %1669 = vmatpush1.xpose.msra.mxu0 %v1634
      %1670 = vmatprep.subr.mxu0 0.0
      %1671 = vmatpush1.xpose.msra.mxu0 %v1632
      %1672 = vmatprep.subr.mxu0 0.0
      %1673 = vmatpush2.xpose.msra.mxu0 0.0
      %1674 = vmatprep.subr.mxu0 0.0
      %1675 = vmatpush2.xpose.msra.mxu0 0.0
      %1676 = vmatprep.subr.mxu0 0.0
      %1677 = vmatpush2.xpose.msra.mxu0 0.0
      %1678 = vmatprep.subr.mxu0 0.0
      %1679 = vmatpush2.xpose.msra.mxu0 0.0
      %1680 = vmatprep.subr.mxu0 0.0
      %1681 = vmatpush2.xpose.msra.mxu0 0.0
      %1682 = vmatprep.subr.mxu0 0.0
      %1683 = vmatpush2.xpose.msra.mxu0 0.0
      %1684 = vmatprep.subr.mxu0 0.0
      %1685 = vmatpush2.xpose.msra.mxu0 0.0
      %1686 = vmatprep.subr.mxu0 0.0
      %1687 = vmatpush2.xpose.msra.mxu0 0.0
      %1688 = vmatprep.subr.mxu0 0.0
      %1689 = vmatpush2.xpose.msra.mxu0 0.0
      %1690 = vmatprep.subr.mxu0 0.0
      %1691 = vmatpush2.xpose.msra.mxu0 0.0
      %1692 = vmatprep.subr.mxu0 0.0
      %1693 = vmatpush2.xpose.msra.mxu0 0.0
      %1694 = vmatprep.subr.mxu0 0.0
      %1695 = vmatpush2.xpose.msra.mxu0 0.0
      %1696 = vmatprep.subr.mxu0 0.0
      %1697 = vmatpush2.xpose.msra.mxu0 0.0
      %1698 = vmatprep.subr.mxu0 0.0
      %1699 = vmatpush2.xpose.msra.mxu0 0.0
      %1700 = vmatprep.subr.mxu0 0.0
      %1701 = vmatpush2.xpose.msra.mxu0 0.0
      %1702 = vmatprep.subr.mxu0 0.0
      %1703 = vmatpush2.xpose.msra.mxu0 0.0
      %1704 = vmatprep.mubr.f32.mxu0 0.0
      %1705 = vmatmul.mubr.f32.gmra.mxu0 %v1624
      %v1706 = vpop.f32.mrf.mxu0
      %v1707 = vadd.f32 0.0, %v1706
      %v1708 = vpop.f32.mrf.mxu0
      %1709 = vmatprep.mubr.f32.mxu0 0.0
      %1710 = vmatmul.mubr.f32.gmra.mxu0 %v1626
      %v1711 = vpop.f32.mrf.mxu0
      %v1712 = vadd.f32 0.0, %v1711
      %v1713 = vpop.f32.mrf.mxu0
      %1714 = vmatprep.mubr.f32.mxu0 0.0
      %1715 = vmatmul.mubr.f32.gmra.mxu0 %v1628
      %v1716 = vpop.f32.mrf.mxu0
      %v1717 = vadd.f32 0.0, %v1716
      %v1718 = vpop.f32.mrf.mxu0
      %1719 = vmatprep.mubr.f32.mxu0 0.0
      %1720 = vmatmul.mubr.f32.gmra.mxu0 %v1630
      %v1721 = vpop.f32.mrf.mxu0
      %v1722 = vadd.f32 0.0, %v1721
      %v1723 = vpop.f32.mrf.mxu0
      %1724 = vdwg.mxu0
      %v1725 = vmul.f32 %v1707, 0.35355338
      %v1726 = vmul.f32 %v1712, 0.35355338
      %v1727 = vmul.f32 %v1717, 0.35355338
      %v1728 = vmul.f32 %v1722, 0.35355338
      %v1729 = vadd.f32 %v1725, %v657
      %v1730 = vadd.f32 %v1726, %v658
      %v1731 = vadd.f32 %v1727, %v659
      %v1732 = vadd.f32 %v1728, %v660
      %v1733 = vsel %vm679, %v1729, -inf
      %1734 = vmax.xlane.f32.xlu0 %v1733
      %v1735 = vpop.xlane.xlu0 %1734
      %v1736 = vsel %vm679, %v1730, -inf
      %1737 = vmax.xlane.f32.xlu0 %v1736
      %v1738 = vpop.xlane.xlu0 %1737
      %v1739 = vsel %vm679, %v1731, -inf
      %1740 = vmax.xlane.f32.xlu0 %v1739
      %v1741 = vpop.xlane.xlu0 %1740
      %v1742 = vsel %vm679, %v1732, -inf
      %1743 = vmax.xlane.f32.xlu0 %v1742
      %v1744 = vpop.xlane.xlu0 %1743
      %v1745 = vsub.f32 %v1729, %v1735
      %v1746 = vsub.f32 %v1730, %v1738
      %v1747 = vsub.f32 %v1731, %v1741
      %v1748 = vsub.f32 %v1732, %v1744
      %v1749 = vmul.f32 %v1745, 1.442695
      %v1750 = vpow.pop %v1749
      %v1751 = vmul.f32 %v1746, 1.442695
      %v1752 = vpow.pop %v1751
      %v1753 = vmul.f32 %v1747, 1.442695
      %v1754 = vpow.pop %v1753
      %v1755 = vmul.f32 %v1748, 1.442695
      %v1756 = vpow.pop %v1755
      %v1757 = vsel %vm679, %v1750, 0.0
      %1758 = vadd.xlane.f32.xlu0 %v1757
      %v1759 = vpop.xlane.xlu0 %1758
      %v1760 = vsel %vm679, %v1752, 0.0
      %1761 = vadd.xlane.f32.xlu0 %v1760
      %v1762 = vpop.xlane.xlu0 %1761
      %v1763 = vsel %vm679, %v1754, 0.0
      %1764 = vadd.xlane.f32.xlu0 %v1763
      %v1765 = vpop.xlane.xlu0 %1764
      %v1766 = vsel %vm679, %v1756, 0.0
      %1767 = vadd.xlane.f32.xlu0 %v1766
      %v1768 = vpop.xlane.xlu0 %1767
      %v1769 = vrcp.pop %v1759
      %v1770 = vmul.f32 %v1750, %v1769
      %v1771 = vrcp.pop %v1762
      %v1772 = vmul.f32 %v1752, %v1771
      %v1773 = vrcp.pop %v1765
      %v1774 = vmul.f32 %v1754, %v1773
      %v1775 = vrcp.pop %v1768
      %v1776 = vmul.f32 %v1756, %v1775
      %1777 = vrot.lane.b32.xlu0 %v759, 40
      %v1778 = vpop.permute.xlu0 %1777
      %1779 = vrot.lane.b32.xlu0 %v764, 40
      %v1780 = vpop.permute.xlu0 %1779
      %1781 = vrot.lane.b32.xlu0 %v769, 40
      %v1782 = vpop.permute.xlu0 %1781
      %1783 = vrot.lane.b32.xlu0 %v774, 40
      %v1784 = vpop.permute.xlu0 %1783
      %v1790 = vsel %vm679, %v1770, 0
      %v1793 = vsel %vm679, %v1772, 0
      %v1796 = vsel %vm679, %v1774, 0
      %v1799 = vsel %vm679, %v1776, 0
      %1801 = vmatprep.subr.mxu0 0.0
      %1802 = vmatpush1.msra.mxu0 0.0
      %1803 = vmatprep.subr.mxu0 0.0
      %1804 = vmatpush1.msra.mxu0 0.0
      %1805 = vmatprep.subr.mxu0 0.0
      %1806 = vmatpush1.msra.mxu0 0.0
      %1807 = vmatprep.subr.mxu0 0.0
      %1808 = vmatpush1.msra.mxu0 0.0
      %1809 = vmatprep.subr.mxu0 0.0
      %1810 = vmatpush1.msra.mxu0 0.0
      %1811 = vmatprep.subr.mxu0 0.0
      %1812 = vmatpush1.msra.mxu0 0.0
      %1813 = vmatprep.subr.mxu0 0.0
      %1814 = vmatpush1.msra.mxu0 0.0
      %1815 = vmatprep.subr.mxu0 0.0
      %1816 = vmatpush1.msra.mxu0 0.0
      %1817 = vmatprep.subr.mxu0 0.0
      %1818 = vmatpush1.msra.mxu0 0.0
      %1819 = vmatprep.subr.mxu0 0.0
      %1820 = vmatpush1.msra.mxu0 0.0
      %1821 = vmatprep.subr.mxu0 0.0
      %1822 = vmatpush1.msra.mxu0 0.0
      %1823 = vmatprep.subr.mxu0 0.0
      %1824 = vmatpush1.msra.mxu0 0.0
      %1825 = vmatprep.subr.mxu0 0.0
      %1826 = vmatpush1.msra.mxu0 %v1784
      %1827 = vmatprep.subr.mxu0 0.0
      %1828 = vmatpush1.msra.mxu0 %v1782
      %1829 = vmatprep.subr.mxu0 0.0
      %1830 = vmatpush1.msra.mxu0 %v1780
      %1831 = vmatprep.subr.mxu0 0.0
      %1832 = vmatpush1.msra.mxu0 %v1778
      %1833 = vmatprep.subr.mxu0 0.0
      %1834 = vmatpush2.msra.mxu0 0.0
      %1835 = vmatprep.subr.mxu0 0.0
      %1836 = vmatpush2.msra.mxu0 0.0
      %1837 = vmatprep.subr.mxu0 0.0
      %1838 = vmatpush2.msra.mxu0 0.0
      %1839 = vmatprep.subr.mxu0 0.0
      %1840 = vmatpush2.msra.mxu0 0.0
      %1841 = vmatprep.subr.mxu0 0.0
      %1842 = vmatpush2.msra.mxu0 0.0
      %1843 = vmatprep.subr.mxu0 0.0
      %1844 = vmatpush2.msra.mxu0 0.0
      %1845 = vmatprep.subr.mxu0 0.0
      %1846 = vmatpush2.msra.mxu0 0.0
      %1847 = vmatprep.subr.mxu0 0.0
      %1848 = vmatpush2.msra.mxu0 0.0
      %1849 = vmatprep.subr.mxu0 0.0
      %1850 = vmatpush2.msra.mxu0 0.0
      %1851 = vmatprep.subr.mxu0 0.0
      %1852 = vmatpush2.msra.mxu0 0.0
      %1853 = vmatprep.subr.mxu0 0.0
      %1854 = vmatpush2.msra.mxu0 0.0
      %1855 = vmatprep.subr.mxu0 0.0
      %1856 = vmatpush2.msra.mxu0 0.0
      %1857 = vmatprep.subr.mxu0 0.0
      %1858 = vmatpush2.msra.mxu0 0.0
      %1859 = vmatprep.subr.mxu0 0.0
      %1860 = vmatpush2.msra.mxu0 0.0
      %1861 = vmatprep.subr.mxu0 0.0
      %1862 = vmatpush2.msra.mxu0 0.0
      %1863 = vmatprep.subr.mxu0 0.0
      %1864 = vmatpush2.msra.mxu0 0.0
      %1865 = vmatprep.mubr.f32.mxu0 0.0
      %1866 = vmatmul.mubr.f32.gmra.mxu0 %v1790
      %v1867 = vpop.f32.mrf.mxu0
      %v1868 = vadd.f32 0.0, %v1867
      %v1869 = vpop.f32.mrf.mxu0
      %1870 = vmatprep.mubr.f32.mxu0 0.0
      %1871 = vmatmul.mubr.f32.gmra.mxu0 %v1793
      %v1872 = vpop.f32.mrf.mxu0
      %v1873 = vadd.f32 0.0, %v1872
      %v1874 = vpop.f32.mrf.mxu0
      %1875 = vmatprep.mubr.f32.mxu0 0.0
      %1876 = vmatmul.mubr.f32.gmra.mxu0 %v1796
      %v1877 = vpop.f32.mrf.mxu0
      %v1878 = vadd.f32 0.0, %v1877
      %v1879 = vpop.f32.mrf.mxu0
      %1880 = vmatprep.mubr.f32.mxu0 0.0
      %1881 = vmatmul.mubr.f32.gmra.mxu0 %v1799
      %v1882 = vpop.f32.mrf.mxu0
      %v1883 = vadd.f32 0.0, %v1882
      %v1884 = vpop.f32.mrf.mxu0
      %1885 = vdwg.mxu0
      %1890 = vrot.lane.b32.xlu0 %v1312, 8
      %v1891 = vpop.permute.xlu0 %1890
      %1892 = vrot.lane.b32.xlu0 %v1317, 8
      %v1893 = vpop.permute.xlu0 %1892
      %1894 = vrot.lane.b32.xlu0 %v1322, 8
      %v1895 = vpop.permute.xlu0 %1894
      %1896 = vrot.lane.b32.xlu0 %v1327, 8
      %v1897 = vpop.permute.xlu0 %1896
      %1906 = vrot.lane.b32.xlu0 %v1590, 16
      %v1907 = vpop.permute.xlu0 %1906
      %1908 = vrot.lane.b32.xlu0 %v1595, 16
      %v1909 = vpop.permute.xlu0 %1908
      %1910 = vrot.lane.b32.xlu0 %v1600, 16
      %v1911 = vpop.permute.xlu0 %1910
      %1912 = vrot.lane.b32.xlu0 %v1605, 16
      %v1913 = vpop.permute.xlu0 %1912
      %1922 = vrot.lane.b32.xlu0 %v1868, 24
      %v1923 = vpop.permute.xlu0 %1922
      %1924 = vrot.lane.b32.xlu0 %v1873, 24
      %v1925 = vpop.permute.xlu0 %1924
      %1926 = vrot.lane.b32.xlu0 %v1878, 24
      %v1927 = vpop.permute.xlu0 %1926
      %1928 = vrot.lane.b32.xlu0 %v1883, 24
      %v1929 = vpop.permute.xlu0 %1928
      %v1934 = vsel %vm789, %v1034, %v1891
      %v1935 = vsel %vm789, %v1039, %v1893
      %v1936 = vsel %vm789, %v1044, %v1895
      %v1937 = vsel %vm789, %v1049, %v1897
      %vm1938 = vcmask 130048
      %v1939 = vsel %vm1938, %v1934, %v1907
      %v1940 = vsel %vm1938, %v1935, %v1909
      %v1941 = vsel %vm1938, %v1936, %v1911
      %v1942 = vsel %vm1938, %v1937, %v1913
      %vm1943 = vcmask 195584
      %v1944 = vsel %vm1943, %v1939, %v1923
      %v1945 = vsel %vm1943, %v1940, %v1925
      %v1946 = vsel %vm1943, %v1941, %v1927
      %v1947 = vsel %vm1943, %v1942, %v1929
      %v1949 = vlaneseq
      %v1950 = vshrl.u32 %v1949, 7
      %v1951 = vsub.s32 0, %v1950
      %v1952 = vrot.slane %v670, %v1951
      %v1955 = vsel %vm679, %v1944, 0
      %v1958 = vsel %vm679, %v1945, 0
      %v1961 = vsel %vm679, %v1946, 0
      %v1964 = vsel %vm679, %v1947, 0
      %1966 = vmatprep.subr.mxu0 0.0
      %1967 = vmatpush1.msra.mxu0 0.0
      %1968 = vmatprep.subr.mxu0 0.0
      %1969 = vmatpush1.msra.mxu0 0.0
      %1970 = vmatprep.subr.mxu0 0.0
      %1971 = vmatpush1.msra.mxu0 0.0
      %1972 = vmatprep.subr.mxu0 0.0
      %1973 = vmatpush1.msra.mxu0 0.0
      %1974 = vmatprep.subr.mxu0 0.0
      %1975 = vmatpush1.msra.mxu0 0.0
      %1976 = vmatprep.subr.mxu0 0.0
      %1977 = vmatpush1.msra.mxu0 0.0
      %1978 = vmatprep.subr.mxu0 0.0
      %1979 = vmatpush1.msra.mxu0 0.0
      %1980 = vmatprep.subr.mxu0 0.0
      %1981 = vmatpush1.msra.mxu0 0.0
      %1982 = vmatprep.subr.mxu0 0.0
      %1983 = vmatpush1.msra.mxu0 0.0
      %1984 = vmatprep.subr.mxu0 0.0
      %1985 = vmatpush1.msra.mxu0 0.0
      %1986 = vmatprep.subr.mxu0 0.0
      %1987 = vmatpush1.msra.mxu0 0.0
      %1988 = vmatprep.subr.mxu0 0.0
      %1989 = vmatpush1.msra.mxu0 0.0
      %1990 = vmatprep.subr.mxu0 0.0
      %1991 = vmatpush1.msra.mxu0 %v669
      %1992 = vmatprep.subr.mxu0 0.0
      %1993 = vmatpush1.msra.mxu0 %v668
      %1994 = vmatprep.subr.mxu0 0.0
      %1995 = vmatpush1.msra.mxu0 %v667
      %1996 = vmatprep.subr.mxu0 0.0
      %1997 = vmatpush1.msra.mxu0 %v666
      %1998 = vmatprep.subr.mxu0 0.0
      %1999 = vmatpush2.msra.mxu0 0.0
      %2000 = vmatprep.subr.mxu0 0.0
      %2001 = vmatpush2.msra.mxu0 0.0
      %2002 = vmatprep.subr.mxu0 0.0
      %2003 = vmatpush2.msra.mxu0 0.0
      %2004 = vmatprep.subr.mxu0 0.0
      %2005 = vmatpush2.msra.mxu0 0.0
      %2006 = vmatprep.subr.mxu0 0.0
      %2007 = vmatpush2.msra.mxu0 0.0
      %2008 = vmatprep.subr.mxu0 0.0
      %2009 = vmatpush2.msra.mxu0 0.0
      %2010 = vmatprep.subr.mxu0 0.0
      %2011 = vmatpush2.msra.mxu0 0.0
      %2012 = vmatprep.subr.mxu0 0.0
      %2013 = vmatpush2.msra.mxu0 0.0
      %2014 = vmatprep.subr.mxu0 0.0
      %2015 = vmatpush2.msra.mxu0 0.0
      %2016 = vmatprep.subr.mxu0 0.0
      %2017 = vmatpush2.msra.mxu0 0.0
      %2018 = vmatprep.subr.mxu0 0.0
      %2019 = vmatpush2.msra.mxu0 0.0
      %2020 = vmatprep.subr.mxu0 0.0
      %2021 = vmatpush2.msra.mxu0 0.0
      %2022 = vmatprep.subr.mxu0 0.0
      %2023 = vmatpush2.msra.mxu0 0.0
      %2024 = vmatprep.subr.mxu0 0.0
      %2025 = vmatpush2.msra.mxu0 0.0
      %2026 = vmatprep.subr.mxu0 0.0
      %2027 = vmatpush2.msra.mxu0 0.0
      %2028 = vmatprep.subr.mxu0 0.0
      %2029 = vmatpush2.msra.mxu0 0.0
      %2030 = vmatprep.mubr.f32.mxu0 0.0
      %2031 = vmatmul.mubr.f32.gmra.mxu0 %v1955
      %v2032 = vpop.f32.mrf.mxu0
      %v2033 = vadd.f32 %v1952, %v2032
      %v2034 = vpop.f32.mrf.mxu0
      %2035 = vmatprep.mubr.f32.mxu0 0.0
      %2036 = vmatmul.mubr.f32.gmra.mxu0 %v1958
      %v2037 = vpop.f32.mrf.mxu0
      %v2038 = vadd.f32 %v1952, %v2037
      %v2039 = vpop.f32.mrf.mxu0
      %2040 = vmatprep.mubr.f32.mxu0 0.0
      %2041 = vmatmul.mubr.f32.gmra.mxu0 %v1961
      %v2042 = vpop.f32.mrf.mxu0
      %v2043 = vadd.f32 %v1952, %v2042
      %v2044 = vpop.f32.mrf.mxu0
      %2045 = vmatprep.mubr.f32.mxu0 0.0
      %2046 = vmatmul.mubr.f32.gmra.mxu0 %v1964
      %v2047 = vpop.f32.mrf.mxu0
      %v2048 = vadd.f32 %v1952, %v2047
      %v2049 = vpop.f32.mrf.mxu0
      %2050 = vdwg.mxu0
      %v2051 = vadd.f32 %v2033, %v653
      %v2052 = vadd.f32 %v2038, %v654
      %v2053 = vadd.f32 %v2043, %v655
      %v2054 = vadd.f32 %v2048, %v656
      %v2055 = vsel %vm679, %v2051, 0.0
      %2056 = vadd.xlane.f32.xlu0 %v2055
      %v2057 = vpop.xlane.xlu0 %2056
      %v2058 = vsel %vm679, %v2052, 0.0
      %2059 = vadd.xlane.f32.xlu0 %v2058
      %v2060 = vpop.xlane.xlu0 %2059
      %v2061 = vsel %vm679, %v2053, 0.0
      %2062 = vadd.xlane.f32.xlu0 %v2061
      %v2063 = vpop.xlane.xlu0 %2062
      %v2064 = vsel %vm679, %v2054, 0.0
      %2065 = vadd.xlane.f32.xlu0 %v2064
      %v2066 = vpop.xlane.xlu0 %2065
      %v2067 = vrcp.pop 32.0
      %v2068 = vmul.f32 %v2057, %v2067
      %v2069 = vmul.f32 %v2060, %v2067
      %v2070 = vmul.f32 %v2063, %v2067
      %v2071 = vmul.f32 %v2066, %v2067
      %v2072 = vsub.f32 %v2051, %v2068
      %v2073 = vsub.f32 %v2052, %v2069
      %v2074 = vsub.f32 %v2053, %v2070
      %v2075 = vsub.f32 %v2054, %v2071
      %v2076 = vmul.f32 %v2072, %v2072
      %v2077 = vmul.f32 %v2073, %v2073
      %v2078 = vmul.f32 %v2074, %v2074
      %v2079 = vmul.f32 %v2075, %v2075
      %v2080 = vsel %vm679, %v2076, 0.0
      %2081 = vadd.xlane.f32.xlu0 %v2080
      %v2082 = vpop.xlane.xlu0 %2081
      %v2083 = vsel %vm679, %v2077, 0.0
      %2084 = vadd.xlane.f32.xlu0 %v2083
      %v2085 = vpop.xlane.xlu0 %2084
      %v2086 = vsel %vm679, %v2078, 0.0
      %2087 = vadd.xlane.f32.xlu0 %v2086
      %v2088 = vpop.xlane.xlu0 %2087
      %v2089 = vsel %vm679, %v2079, 0.0
      %2090 = vadd.xlane.f32.xlu0 %v2089
      %v2091 = vpop.xlane.xlu0 %2090
      %v2092 = vmul.f32 %v2082, %v2067
      %v2093 = vmul.f32 %v2085, %v2067
      %v2094 = vmul.f32 %v2088, %v2067
      %v2095 = vmul.f32 %v2091, %v2067
      %v2096 = vadd.f32 %v2092, 1e-12
      %v2097 = vadd.f32 %v2093, 1e-12
      %v2098 = vadd.f32 %v2094, 1e-12
      %v2099 = vadd.f32 %v2095, 1e-12
      %v2100 = vrsqrt.pop %v2096
      %v2101 = vrsqrt.pop %v2097
      %v2102 = vrsqrt.pop %v2098
      %v2103 = vrsqrt.pop %v2099
      %v2104 = vmul.f32 %v2072, %v2100
      %v2105 = vmul.f32 %v2073, %v2101
      %v2106 = vmul.f32 %v2074, %v2102
      %v2107 = vmul.f32 %v2075, %v2103
      %v2109 = vlaneseq
      %v2110 = vshrl.u32 %v2109, 7
      %v2111 = vsub.s32 0, %v2110
      %v2112 = vrot.slane %v671, %v2111
      %v2114 = vmul.f32 %v2104, %v2112
      %v2115 = vmul.f32 %v2105, %v2112
      %v2116 = vmul.f32 %v2106, %v2112
      %v2117 = vmul.f32 %v2107, %v2112
      %v2119 = vlaneseq
      %v2120 = vshrl.u32 %v2119, 7
      %v2121 = vsub.s32 0, %v2120
      %v2122 = vrot.slane %v672, %v2121
      %v2124 = vadd.f32 %v2114, %v2122
      %v2125 = vadd.f32 %v2115, %v2122
      %v2126 = vadd.f32 %v2116, %v2122
      %v2127 = vadd.f32 %v2117, %v2122
      %v2128 = vld [vmem:[%s617] sm:$0xff]
      %v2129 = vld [vmem:[%s617 + $0x8] sm:$0xff]
      %v2130 = vld [vmem:[%s617 + $0x10] sm:$0xff]
      %v2131 = vld [vmem:[%s617 + $0x18] sm:$0xff]
      %v2132 = vld [vmem:[%s620] sm:$0x1]
      %v2133 = vld [vmem:[%s625] sm:$0xff]
      %v2134 = vld [vmem:[%s625 + $0x8] sm:$0xff]
      %v2135 = vld [vmem:[%s625 + $0x10] sm:$0xff]
      %v2136 = vld [vmem:[%s625 + $0x18] sm:$0xff]
      %v2137 = vld [vmem:[%s625 + $0x20] sm:$0xff]
      %v2138 = vld [vmem:[%s625 + $0x28] sm:$0xff]
      %v2139 = vld [vmem:[%s625 + $0x30] sm:$0xff]
      %v2140 = vld [vmem:[%s625 + $0x38] sm:$0xff]
      %v2141 = vld [vmem:[%s628] sm:$0x1]
      %v2142 = vld [vmem:[%s631] sm:$0x1]
      %v2143 = vld [vmem:[%s634] sm:$0x1]
      %v2145 = vlaneseq
      %v2146 = vshrl.u32 %v2145, 7
      %v2147 = vsub.s32 0, %v2146
      %v2148 = vrot.slane %v2132, %v2147
      %v2151 = vsel %vm679, %v2124, 0
      %v2154 = vsel %vm679, %v2125, 0
      %v2157 = vsel %vm679, %v2126, 0
      %v2160 = vsel %vm679, %v2127, 0
      %2162 = vmatprep.subr.mxu0 0.0
      %2163 = vmatpush1.msra.mxu0 0.0
      %2164 = vmatprep.subr.mxu0 0.0
      %2165 = vmatpush1.msra.mxu0 0.0
      %2166 = vmatprep.subr.mxu0 0.0
      %2167 = vmatpush1.msra.mxu0 0.0
      %2168 = vmatprep.subr.mxu0 0.0
      %2169 = vmatpush1.msra.mxu0 0.0
      %2170 = vmatprep.subr.mxu0 0.0
      %2171 = vmatpush1.msra.mxu0 0.0
      %2172 = vmatprep.subr.mxu0 0.0
      %2173 = vmatpush1.msra.mxu0 0.0
      %2174 = vmatprep.subr.mxu0 0.0
      %2175 = vmatpush1.msra.mxu0 0.0
      %2176 = vmatprep.subr.mxu0 0.0
      %2177 = vmatpush1.msra.mxu0 0.0
      %2178 = vmatprep.subr.mxu0 0.0
      %2179 = vmatpush1.msra.mxu0 0.0
      %2180 = vmatprep.subr.mxu0 0.0
      %2181 = vmatpush1.msra.mxu0 0.0
      %2182 = vmatprep.subr.mxu0 0.0
      %2183 = vmatpush1.msra.mxu0 0.0
      %2184 = vmatprep.subr.mxu0 0.0
      %2185 = vmatpush1.msra.mxu0 0.0
      %2186 = vmatprep.subr.mxu0 0.0
      %2187 = vmatpush1.msra.mxu0 %v2131
      %2188 = vmatprep.subr.mxu0 0.0
      %2189 = vmatpush1.msra.mxu0 %v2130
      %2190 = vmatprep.subr.mxu0 0.0
      %2191 = vmatpush1.msra.mxu0 %v2129
      %2192 = vmatprep.subr.mxu0 0.0
      %2193 = vmatpush1.msra.mxu0 %v2128
      %2194 = vmatprep.subr.mxu0 0.0
      %2195 = vmatpush2.msra.mxu0 0.0
      %2196 = vmatprep.subr.mxu0 0.0
      %2197 = vmatpush2.msra.mxu0 0.0
      %2198 = vmatprep.subr.mxu0 0.0
      %2199 = vmatpush2.msra.mxu0 0.0
      %2200 = vmatprep.subr.mxu0 0.0
      %2201 = vmatpush2.msra.mxu0 0.0
      %2202 = vmatprep.subr.mxu0 0.0
      %2203 = vmatpush2.msra.mxu0 0.0
      %2204 = vmatprep.subr.mxu0 0.0
      %2205 = vmatpush2.msra.mxu0 0.0
      %2206 = vmatprep.subr.mxu0 0.0
      %2207 = vmatpush2.msra.mxu0 0.0
      %2208 = vmatprep.subr.mxu0 0.0
      %2209 = vmatpush2.msra.mxu0 0.0
      %2210 = vmatprep.subr.mxu0 0.0
      %2211 = vmatpush2.msra.mxu0 0.0
      %2212 = vmatprep.subr.mxu0 0.0
      %2213 = vmatpush2.msra.mxu0 0.0
      %2214 = vmatprep.subr.mxu0 0.0
      %2215 = vmatpush2.msra.mxu0 0.0
      %2216 = vmatprep.subr.mxu0 0.0
      %2217 = vmatpush2.msra.mxu0 0.0
      %2218 = vmatprep.subr.mxu0 0.0
      %2219 = vmatpush2.msra.mxu0 0.0
      %2220 = vmatprep.subr.mxu0 0.0
      %2221 = vmatpush2.msra.mxu0 0.0
      %2222 = vmatprep.subr.mxu0 0.0
      %2223 = vmatpush2.msra.mxu0 0.0
      %2224 = vmatprep.subr.mxu0 0.0
      %2225 = vmatpush2.msra.mxu0 0.0
      %2226 = vmatprep.mubr.f32.mxu0 0.0
      %2227 = vmatmul.mubr.f32.gmra.mxu0 %v2151
      %v2228 = vpop.f32.mrf.mxu0
      %v2229 = vadd.f32 %v2148, %v2228
      %v2230 = vpop.f32.mrf.mxu0
      %2231 = vmatprep.mubr.f32.mxu0 0.0
      %2232 = vmatmul.mubr.f32.gmra.mxu0 %v2154
      %v2233 = vpop.f32.mrf.mxu0
      %v2234 = vadd.f32 %v2148, %v2233
      %v2235 = vpop.f32.mrf.mxu0
      %2236 = vmatprep.mubr.f32.mxu0 0.0
      %2237 = vmatmul.mubr.f32.gmra.mxu0 %v2157
      %v2238 = vpop.f32.mrf.mxu0
      %v2239 = vadd.f32 %v2148, %v2238
      %v2240 = vpop.f32.mrf.mxu0
      %2241 = vmatprep.mubr.f32.mxu0 0.0
      %2242 = vmatmul.mubr.f32.gmra.mxu0 %v2160
      %v2243 = vpop.f32.mrf.mxu0
      %v2244 = vadd.f32 %v2148, %v2243
      %v2245 = vpop.f32.mrf.mxu0
      %2246 = vdwg.mxu0
      %v2247 = vmul.f32 %v2229, %v2229
      %v2248 = vmul.f32 %v2234, %v2234
      %v2249 = vmul.f32 %v2239, %v2239
      %v2250 = vmul.f32 %v2244, %v2244
      %v2251 = vmul.f32 %v2229, %v2247
      %v2252 = vmul.f32 %v2234, %v2248
      %v2253 = vmul.f32 %v2239, %v2249
      %v2254 = vmul.f32 %v2244, %v2250
      %v2255 = vmul.f32 %v2251, 0.044715
      %v2256 = vmul.f32 %v2252, 0.044715
      %v2257 = vmul.f32 %v2253, 0.044715
      %v2258 = vmul.f32 %v2254, 0.044715
      %v2259 = vadd.f32 %v2229, %v2255
      %v2260 = vadd.f32 %v2234, %v2256
      %v2261 = vadd.f32 %v2239, %v2257
      %v2262 = vadd.f32 %v2244, %v2258
      %v2263 = vmul.f32 %v2259, 0.7978846
      %v2264 = vmul.f32 %v2260, 0.7978846
      %v2265 = vmul.f32 %v2261, 0.7978846
      %v2266 = vmul.f32 %v2262, 0.7978846
      %v2267 = vtanh.pop %v2263
      %v2268 = vtanh.pop %v2264
      %v2269 = vtanh.pop %v2265
      %v2270 = vtanh.pop %v2266
      %v2271 = vadd.f32 %v2267, 1.0
      %v2272 = vadd.f32 %v2268, 1.0
      %v2273 = vadd.f32 %v2269, 1.0
      %v2274 = vadd.f32 %v2270, 1.0
      %v2275 = vmul.f32 %v2271, 0.5
      %v2276 = vmul.f32 %v2272, 0.5
      %v2277 = vmul.f32 %v2273, 0.5
      %v2278 = vmul.f32 %v2274, 0.5
      %v2279 = vmul.f32 %v2229, %v2275
      %v2280 = vmul.f32 %v2234, %v2276
      %v2281 = vmul.f32 %v2239, %v2277
      %v2282 = vmul.f32 %v2244, %v2278
      %v2284 = vlaneseq
      %v2285 = vshrl.u32 %v2284, 7
      %v2286 = vsub.s32 0, %v2285
      %v2287 = vrot.slane %v2141, %v2286
      %vm2289 = vcmask 523264
      %v2291 = vsel %vm2289, %v2279, 0
      %v2294 = vsel %vm2289, %v2280, 0
      %v2297 = vsel %vm2289, %v2281, 0
      %v2300 = vsel %vm2289, %v2282, 0
      %2302 = vmatprep.subr.mxu0 0.0
      %2303 = vmatpush1.msra.mxu0 0.0
      %2304 = vmatprep.subr.mxu0 0.0
      %2305 = vmatpush1.msra.mxu0 0.0
      %2306 = vmatprep.subr.mxu0 0.0
      %2307 = vmatpush1.msra.mxu0 0.0
      %2308 = vmatprep.subr.mxu0 0.0
      %2309 = vmatpush1.msra.mxu0 0.0
      %2310 = vmatprep.subr.mxu0 0.0
      %2311 = vmatpush1.msra.mxu0 0.0
      %2312 = vmatprep.subr.mxu0 0.0
      %2313 = vmatpush1.msra.mxu0 0.0
      %2314 = vmatprep.subr.mxu0 0.0
      %2315 = vmatpush1.msra.mxu0 0.0
      %2316 = vmatprep.subr.mxu0 0.0
      %2317 = vmatpush1.msra.mxu0 0.0
      %2318 = vmatprep.subr.mxu0 0.0
      %2319 = vmatpush1.msra.mxu0 %v2140
      %2320 = vmatprep.subr.mxu0 0.0
      %2321 = vmatpush1.msra.mxu0 %v2139
      %2322 = vmatprep.subr.mxu0 0.0
      %2323 = vmatpush1.msra.mxu0 %v2138
      %2324 = vmatprep.subr.mxu0 0.0
      %2325 = vmatpush1.msra.mxu0 %v2137
      %2326 = vmatprep.subr.mxu0 0.0
      %2327 = vmatpush1.msra.mxu0 %v2136
      %2328 = vmatprep.subr.mxu0 0.0
      %2329 = vmatpush1.msra.mxu0 %v2135
      %2330 = vmatprep.subr.mxu0 0.0
      %2331 = vmatpush1.msra.mxu0 %v2134
      %2332 = vmatprep.subr.mxu0 0.0
      %2333 = vmatpush1.msra.mxu0 %v2133
      %2334 = vmatprep.subr.mxu0 0.0
      %2335 = vmatpush2.msra.mxu0 0.0
      %2336 = vmatprep.subr.mxu0 0.0
      %2337 = vmatpush2.msra.mxu0 0.0
      %2338 = vmatprep.subr.mxu0 0.0
      %2339 = vmatpush2.msra.mxu0 0.0
      %2340 = vmatprep.subr.mxu0 0.0
      %2341 = vmatpush2.msra.mxu0 0.0
      %2342 = vmatprep.subr.mxu0 0.0
      %2343 = vmatpush2.msra.mxu0 0.0
      %2344 = vmatprep.subr.mxu0 0.0
      %2345 = vmatpush2.msra.mxu0 0.0
      %2346 = vmatprep.subr.mxu0 0.0
      %2347 = vmatpush2.msra.mxu0 0.0
      %2348 = vmatprep.subr.mxu0 0.0
      %2349 = vmatpush2.msra.mxu0 0.0
      %2350 = vmatprep.subr.mxu0 0.0
      %2351 = vmatpush2.msra.mxu0 0.0
      %2352 = vmatprep.subr.mxu0 0.0
      %2353 = vmatpush2.msra.mxu0 0.0
      %2354 = vmatprep.subr.mxu0 0.0
      %2355 = vmatpush2.msra.mxu0 0.0
      %2356 = vmatprep.subr.mxu0 0.0
      %2357 = vmatpush2.msra.mxu0 0.0
      %2358 = vmatprep.subr.mxu0 0.0
      %2359 = vmatpush2.msra.mxu0 0.0
      %2360 = vmatprep.subr.mxu0 0.0
      %2361 = vmatpush2.msra.mxu0 0.0
      %2362 = vmatprep.subr.mxu0 0.0
      %2363 = vmatpush2.msra.mxu0 0.0
      %2364 = vmatprep.subr.mxu0 0.0
      %2365 = vmatpush2.msra.mxu0 0.0
      %2366 = vmatprep.mubr.f32.mxu0 0.0
      %2367 = vmatmul.mubr.f32.gmra.mxu0 %v2291
      %v2368 = vpop.f32.mrf.mxu0
      %v2369 = vadd.f32 %v2287, %v2368
      %v2370 = vpop.f32.mrf.mxu0
      %2371 = vmatprep.mubr.f32.mxu0 0.0
      %2372 = vmatmul.mubr.f32.gmra.mxu0 %v2294
      %v2373 = vpop.f32.mrf.mxu0
      %v2374 = vadd.f32 %v2287, %v2373
      %v2375 = vpop.f32.mrf.mxu0
      %2376 = vmatprep.mubr.f32.mxu0 0.0
      %2377 = vmatmul.mubr.f32.gmra.mxu0 %v2297
      %v2378 = vpop.f32.mrf.mxu0
      %v2379 = vadd.f32 %v2287, %v2378
      %v2380 = vpop.f32.mrf.mxu0
      %2381 = vmatprep.mubr.f32.mxu0 0.0
      %2382 = vmatmul.mubr.f32.gmra.mxu0 %v2300
      %v2383 = vpop.f32.mrf.mxu0
      %v2384 = vadd.f32 %v2287, %v2383
      %v2385 = vpop.f32.mrf.mxu0
      %2386 = vdwg.mxu0
      %v2387 = vadd.f32 %v2369, %v2124
      %v2388 = vadd.f32 %v2374, %v2125
      %v2389 = vadd.f32 %v2379, %v2126
      %v2390 = vadd.f32 %v2384, %v2127
      %v2391 = vsel %vm679, %v2387, 0.0
      %2392 = vadd.xlane.f32.xlu0 %v2391
      %v2393 = vpop.xlane.xlu0 %2392
      %v2394 = vsel %vm679, %v2388, 0.0
      %2395 = vadd.xlane.f32.xlu0 %v2394
      %v2396 = vpop.xlane.xlu0 %2395
      %v2397 = vsel %vm679, %v2389, 0.0
      %2398 = vadd.xlane.f32.xlu0 %v2397
      %v2399 = vpop.xlane.xlu0 %2398
      %v2400 = vsel %vm679, %v2390, 0.0
      %2401 = vadd.xlane.f32.xlu0 %v2400
      %v2402 = vpop.xlane.xlu0 %2401
      %v2403 = vmul.f32 %v2393, %v2067
      %v2404 = vmul.f32 %v2396, %v2067
      %v2405 = vmul.f32 %v2399, %v2067
      %v2406 = vmul.f32 %v2402, %v2067
      %v2407 = vsub.f32 %v2387, %v2403
      %v2408 = vsub.f32 %v2388, %v2404
      %v2409 = vsub.f32 %v2389, %v2405
      %v2410 = vsub.f32 %v2390, %v2406
      %v2411 = vmul.f32 %v2407, %v2407
      %v2412 = vmul.f32 %v2408, %v2408
      %v2413 = vmul.f32 %v2409, %v2409
      %v2414 = vmul.f32 %v2410, %v2410
      %v2415 = vsel %vm679, %v2411, 0.0
      %2416 = vadd.xlane.f32.xlu0 %v2415
      %v2417 = vpop.xlane.xlu0 %2416
      %v2418 = vsel %vm679, %v2412, 0.0
      %2419 = vadd.xlane.f32.xlu0 %v2418
      %v2420 = vpop.xlane.xlu0 %2419
      %v2421 = vsel %vm679, %v2413, 0.0
      %2422 = vadd.xlane.f32.xlu0 %v2421
      %v2423 = vpop.xlane.xlu0 %2422
      %v2424 = vsel %vm679, %v2414, 0.0
      %2425 = vadd.xlane.f32.xlu0 %v2424
      %v2426 = vpop.xlane.xlu0 %2425
      %v2427 = vmul.f32 %v2417, %v2067
      %v2428 = vmul.f32 %v2420, %v2067
      %v2429 = vmul.f32 %v2423, %v2067
      %v2430 = vmul.f32 %v2426, %v2067
      %v2431 = vadd.f32 %v2427, 1e-12
      %v2432 = vadd.f32 %v2428, 1e-12
      %v2433 = vadd.f32 %v2429, 1e-12
      %v2434 = vadd.f32 %v2430, 1e-12
      %v2435 = vrsqrt.pop %v2431
      %v2436 = vrsqrt.pop %v2432
      %v2437 = vrsqrt.pop %v2433
      %v2438 = vrsqrt.pop %v2434
      %v2439 = vmul.f32 %v2407, %v2435
      %v2440 = vmul.f32 %v2408, %v2436
      %v2441 = vmul.f32 %v2409, %v2437
      %v2442 = vmul.f32 %v2410, %v2438
      %v2444 = vlaneseq
      %v2445 = vshrl.u32 %v2444, 7
      %v2446 = vsub.s32 0, %v2445
      %v2447 = vrot.slane %v2142, %v2446
      %v2449 = vmul.f32 %v2439, %v2447
      %v2450 = vmul.f32 %v2440, %v2447
      %v2451 = vmul.f32 %v2441, %v2447
      %v2452 = vmul.f32 %v2442, %v2447
      %v2454 = vlaneseq
      %v2455 = vshrl.u32 %v2454, 7
      %v2456 = vsub.s32 0, %v2455
      %v2457 = vrot.slane %v2143, %v2456
      %v2459 = vadd.f32 %v2449, %v2457
      %v2460 = vadd.f32 %v2450, %v2457
      %v2461 = vadd.f32 %v2451, %v2457
      %v2462 = vadd.f32 %v2452, %v2457
      %2463 = vst.msk [vmem:[#allocation2] sm:$0xff] %vm679, %v2459
      %2464 = vst.msk [vmem:[#allocation2 + $0x8] sm:$0xff] %vm679, %v2460
      %2465 = vst.msk [vmem:[#allocation2 + $0x10] sm:$0xff] %vm679, %v2461
      %2466 = vst.msk [vmem:[#allocation2 + $0x18] sm:$0xff] %vm679, %v2462
      %2467 = vst.msk [vmem:[%s639] sm:$0xff] %vm679, %v2459
      %2468 = vst.msk [vmem:[%s639 + $0x8] sm:$0xff] %vm679, %v2460
      %2469 = vst.msk [vmem:[%s639 + $0x10] sm:$0xff] %vm679, %v2461
      %2470 = vst.msk [vmem:[%s639 + $0x18] sm:$0xff] %vm679, %v2462
      %p2471 = scmp.lt.s32.totalorder %s25, 3
      %s2472 = scalar_select %p2471, %s25, 3
      %s2473 = smul.addr %s2472, 4
      %s2474 = smul.addr %s2473, 8
      %s2475 = scalar_lea.vmem %s14, %s2474
      // Predicated region
      $region81: #{forward.3} parent=75 // pred_check
        %p2476 = pneg %p397
      $region82: #{forward.3} parent=75 // pred_check_branch
        %2478 = sbr.rel (%p2476) target = $region84
      $region83: #{forward.3} parent=75 // pred_region
        _
      $region84: #{forward.3} parent=75 // pred_fallthru
        _
    $region76: #{forward.3} parent=5 // pred_fallthru
      _
    %p2479 = scmp.le.s32.totalorder 2, %s20
    // Predicated region
    $region85: #{forward.3} parent=5 // pred_check
      %p2480 = pneg %p2479
    $region86: #{forward.3} parent=5 // pred_check_branch
      %2482 = sbr.rel (%p2480) target = $region88
    $region87: #{forward.3} parent=5 // pred_region
      %s2483 = ssub.s32 %s20, 2
      // Predicated region
      $region89: #{forward.3} parent=87 // pred_check
        %p2484 = pneg %p403
      $region90: #{forward.3} parent=87 // pred_check_branch
        %2486 = sbr.rel (%p2484) target = $region92
      $region91: #{forward.3} parent=87 // pred_region
        %p2487 = scmp.lt.s32.totalorder %s26, 3
        %s2488 = scalar_select %p2487, %s26, 3
        %s2489 = smul.addr %s2488, 4
        %s2490 = smul.addr %s2489, 8
        %s2491 = scalar_lea.vmem %s14, %s2490
      $region92: #{forward.3} parent=87 // pred_fallthru
        _
    $region88: #{forward.3} parent=5 // pred_fallthru
      _
  $region6: #{forward.3} parent=0 // loop_footer
    %s24 = sadd.s32 1, %s20
  $region7: #{forward.3} parent=0 // loop_footer_branch
    %19 = sbr.rel target = $region3
  $region8: #{forward.3} parent=0 // loop_exit
    _

</llo_original>
